<compile_context>
chip_gen: v5e
topology: v5e:2x2
jax: 0.10.0
libtpu: 0.0.40
codegen_flags: <defaults>
</compile_context>

<pallas_src>
import numpy as np
import jax
import jax.numpy as jnp
from jax.experimental import pallas as pl
from jax.experimental.pallas import tpu as pltpu

IN_CH = 2
CONV_DIMS = [IN_CH, 64, 128, 256, 512, 1024]
OUT_CH = 400
OUT_PAD = 512  # lane-dense padding of the 400-wide fc head (multiple of 128)
FC_DIMS = [1024, OUT_CH, OUT_CH, OUT_CH, OUT_CH]
BN_EPS = 1e-3


def make_hbco_kernel(B, P):
    """Kernel factory; B (batch) and P (pixels per image) are static."""

    def kernel(x_ref,
               w1, b1, w2, b2, w3, b3, w4, b4, b5,
               fb1, fb2, fb3, fb4,
               w5_hbm, fw1_hbm, fw2_hbm, fw3_hbm, fw4_hbm,
               out_ref,
               w5_v, fw1_v, fw2_v, fw3_v, fw4_v, sem):
        # Kick off HBM->VMEM DMAs for the big late-use weights so they overlap
        # the conv-stack compute (single-buffered scratch, no double buffering).
        hbm_refs = (w5_hbm, fw1_hbm, fw2_hbm, fw3_hbm, fw4_hbm)
        vmem_bufs = (w5_v, fw1_v, fw2_v, fw3_v, fw4_v)
        copies = [pltpu.make_async_copy(h, v, sem.at[i])
                  for i, (h, v) in enumerate(zip(hbm_refs, vmem_bufs))]
        for c in copies:
            c.start()

        def dense(h, w, b, relu=True):
            # bf16 operands, f32 MXU accumulation; epilogue in f32, next
            # activation stored as bf16 (halves vreg/spill pressure).
            y = jnp.dot(h, w, preferred_element_type=jnp.float32) + b[...]
            if relu:
                y = jnp.maximum(y, 0.0)
            return y.astype(jnp.bfloat16)

        # Five BasicConv2d blocks: 1x1 conv (no bias) + folded BN + ReLU
        # == per-pixel dense layers on the (B*P, C) slab.
        h = x_ref[...]                       # (B*P, 2) bf16
        h = dense(h, w1[...], b1)
        h = dense(h, w2[...], b2)
        h = dense(h, w3[...], b3)
        h = dense(h, w4[...], b4)

        copies[0].wait()                     # w5 (512x1024)
        h = dense(h, w5_v[...], b5)          # (B*P, 1024) bf16

        # AdaptiveAvgPool2d((1,1)) + Flatten: per-batch mean over pixels
        # (VPU/XLU reduction instead of an M=2 pooling matmul).
        pooled = jnp.mean(
            h.astype(jnp.float32).reshape(B, P, CONV_DIMS[-1]), axis=1
        ).astype(jnp.bfloat16)               # (B, 1024)

        # fc head: Linear+ReLU (+Dropout == identity in eval) x3, final Linear.
        copies[1].wait()
        f = dense(pooled, fw1_v[...], fb1)
        copies[2].wait()
        f = dense(f, fw2_v[...], fb2)
        copies[3].wait()
        f = dense(f, fw3_v[...], fb3)
        copies[4].wait()
        f = jnp.dot(f, fw4_v[...], preferred_element_type=jnp.float32) + fb4[...]
        out_ref[...] = f.astype(out_ref.dtype)

    return kernel


def init_params(key):
    """Deterministic synthetic params (f32); BN (eval) folded into conv weight/bias."""
    params = {"conv": [], "fc": []}
    for i in range(5):
        cin, cout = CONV_DIMS[i], CONV_DIMS[i + 1]
        key, k1, k2, k3 = jax.random.split(key, 4)
        w = jax.random.normal(k1, (cin, cout), jnp.float32) * (1.0 / np.sqrt(cin))
        gamma = 1.0 + 0.1 * jax.random.normal(k2, (cout,), jnp.float32)
        beta = 0.1 * jax.random.normal(k3, (cout,), jnp.float32)
        running_mean = jnp.zeros((cout,), jnp.float32)
        running_var = jnp.ones((cout,), jnp.float32)
        s = gamma / jnp.sqrt(running_var + BN_EPS)
        params["conv"].append((w * s[None, :], (beta - running_mean * s)[None, :]))
    for i in range(4):
        fin, fout = FC_DIMS[i], FC_DIMS[i + 1]
        key, k1, k2 = jax.random.split(key, 3)
        w = jax.random.normal(k1, (fin, fout), jnp.float32) * (1.0 / np.sqrt(fin))
        b = (0.01 * jax.random.normal(k2, (fout,), jnp.float32))[None, :]
        params["fc"].append((w, b))
    return params


def _pad_to(a, shape):
    return jnp.pad(a, [(0, t - s) for s, t in zip(a.shape, shape)])


def _full_spec(a):
    nd = a.ndim
    return pl.BlockSpec(a.shape, lambda i, _nd=nd: (0,) * _nd)


def hbco_pallas(x, params):
    # x: raw module input, shape (B, D1, 2, D3), as fed to HBCO.forward.
    x_nchw = jnp.transpose(x, (0, 2, 3, 1))            # torch.permute([0,2,3,1])
    B, C, H, W = x_nchw.shape
    P = H * W
    # NCHW -> NHWC -> (B*P, C) pixels-major slab (bf16) for the kernel.
    x_flat = (jnp.transpose(x_nchw, (0, 2, 3, 1))
              .reshape(B * P, C).astype(jnp.bfloat16))

    # Conv weights -> bf16; biases stay f32 (added to the f32 accumulator).
    cw = [w.astype(jnp.bfloat16) for (w, _) in params["conv"]]
    cb = [b for (_, b) in params["conv"]]

    # FC weights/biases padded 400 -> 512 (zero padding keeps semantics exact),
    # weights in bf16.
    fw_p, fb_p = [], []
    for i, (w, b) in enumerate(params["fc"]):
        tgt_in = w.shape[0] if i == 0 else OUT_PAD
        fw_p.append(_pad_to(w, (tgt_in, OUT_PAD)).astype(jnp.bfloat16))
        fb_p.append(_pad_to(b, (1, OUT_PAD)).astype(jnp.float32))

    # Small tensors go through the normal BlockSpec pipeline; the five large
    # late-use weights are raw HBM refs (pl.ANY) DMA'd manually in-kernel.
    vmem_inputs = [x_flat,
                   cw[0], cb[0], cw[1], cb[1], cw[2], cb[2], cw[3], cb[3],
                   cb[4],
                   fb_p[0], fb_p[1], fb_p[2], fb_p[3]]
    hbm_inputs = [cw[4], fw_p[0], fw_p[1], fw_p[2], fw_p[3]]

    in_specs = ([_full_spec(a) for a in vmem_inputs]
                + [pl.BlockSpec(memory_space=pl.ANY)] * len(hbm_inputs))
    out_spec = pl.BlockSpec((B, OUT_PAD), lambda i: (0, 0))

    scratch_shapes = [
        pltpu.VMEM((CONV_DIMS[4], CONV_DIMS[5]), jnp.bfloat16),  # w5  (512,1024)
        pltpu.VMEM((FC_DIMS[0], OUT_PAD), jnp.bfloat16),         # fc1 (1024,512)
        pltpu.VMEM((OUT_PAD, OUT_PAD), jnp.bfloat16),            # fc2 (512,512)
        pltpu.VMEM((OUT_PAD, OUT_PAD), jnp.bfloat16),            # fc3 (512,512)
        pltpu.VMEM((OUT_PAD, OUT_PAD), jnp.bfloat16),            # fc4 (512,512)
        pltpu.SemaphoreType.DMA((5,)),
    ]

    out_pad = pl.pallas_call(
        make_hbco_kernel(B, P),
        out_shape=jax.ShapeDtypeStruct((B, OUT_PAD), jnp.float32),
        grid=(1,),
        in_specs=in_specs,
        out_specs=out_spec,
        scratch_shapes=scratch_shapes,
        compiler_params=pltpu.CompilerParams(
            dimension_semantics=("arbitrary",),
            vmem_limit_bytes=32 << 20,
        ),
    )(*(vmem_inputs + hbm_inputs))

    # TODO(synk): optional v7x-only 2-TC sharding of the w5/fc1 N-dim not done;
    # single-core is fine at these shapes (kernel stays HBM-DMA bound).
    return out_pad[:, :OUT_CH]


def hbco_ref(x, params):
    """Plain-JAX f32 reference of the eval-mode forward pass (unpadded params)."""
    x_nchw = jnp.transpose(x, (0, 2, 3, 1))
    h = jnp.transpose(x_nchw, (0, 2, 3, 1)).astype(jnp.float32)  # NHWC
    for w, b in params["conv"]:
        h = jnp.maximum(jnp.einsum("bhwc,cd->bhwd", h, w) + b[0], 0.0)
    pooled = h.mean(axis=(1, 2))
    f = pooled
    for i, (w, b) in enumerate(params["fc"]):
        f = f @ w + b[0]
        if i < 3:
            f = jnp.maximum(f, 0.0)
    return f


if __name__ == "__main__":
    key = jax.random.PRNGKey(0)
    key, kx, kp = jax.random.split(key, 3)
    # Raw input (B, D1, 2, D3): after the module's permute this becomes
    # NCHW = (2, 2, 4, 8) with in_channels = 2.
    x = jax.random.normal(kx, (2, 8, 2, 4), jnp.float32)
    params = init_params(kp)

    out = hbco_pallas(x, params)
    out = jax.block_until_ready(out)

    ref = jax.block_until_ready(hbco_ref(x, params))
    assert out.shape == (2, OUT_CH)
    # Tolerance loosened for bf16 weights/activations (f32 accumulation).
    np.testing.assert_allclose(np.asarray(out), np.asarray(ref),
                               rtol=3e-2, atol=5e-2)
    print("KERNEL_OK")
</pallas_src>

<mosaic_0001>
module attributes {stable_mosaic.version = 11 : i64} {
  func.func @kernel(%arg0: i32, %arg1: memref<64x2xbf16, #tpu.memory_space<vmem>>, %arg2: memref<2x64xbf16, #tpu.memory_space<vmem>>, %arg3: memref<1x64xf32, #tpu.memory_space<vmem>>, %arg4: memref<64x128xbf16, #tpu.memory_space<vmem>>, %arg5: memref<1x128xf32, #tpu.memory_space<vmem>>, %arg6: memref<128x256xbf16, #tpu.memory_space<vmem>>, %arg7: memref<1x256xf32, #tpu.memory_space<vmem>>, %arg8: memref<256x512xbf16, #tpu.memory_space<vmem>>, %arg9: memref<1x512xf32, #tpu.memory_space<vmem>>, %arg10: memref<1x1024xf32, #tpu.memory_space<vmem>>, %arg11: memref<1x512xf32, #tpu.memory_space<vmem>>, %arg12: memref<1x512xf32, #tpu.memory_space<vmem>>, %arg13: memref<1x512xf32, #tpu.memory_space<vmem>>, %arg14: memref<1x512xf32, #tpu.memory_space<vmem>>, %arg15: memref<512x1024xbf16, #tpu.memory_space<any>>, %arg16: memref<1024x512xbf16, #tpu.memory_space<any>>, %arg17: memref<512x512xbf16, #tpu.memory_space<any>>, %arg18: memref<512x512xbf16, #tpu.memory_space<any>>, %arg19: memref<512x512xbf16, #tpu.memory_space<any>>, %arg20: memref<2x512xf32, #tpu.memory_space<vmem>>, %arg21: memref<512x1024xbf16, #tpu.memory_space<vmem>>, %arg22: memref<1024x512xbf16, #tpu.memory_space<vmem>>, %arg23: memref<512x512xbf16, #tpu.memory_space<vmem>>, %arg24: memref<512x512xbf16, #tpu.memory_space<vmem>>, %arg25: memref<512x512xbf16, #tpu.memory_space<vmem>>, %arg26: memref<5x!tpu.dma_semaphore, #tpu.memory_space<semaphore_mem>>) attributes {dimension_semantics = [#tpu.dimension_semantics<arbitrary>], iteration_bounds = array<i64: 1>, scalar_prefetch = 0 : i64, scratch_operands = 6 : i64, tpu.core_type = #tpu.core_type<tc>, window_params = [{pipeline_mode = #tpu.pipeline_mode<synchronous>, transform_indices = @transform_0, window_bounds = array<i64: 64, 2>}, {pipeline_mode = #tpu.pipeline_mode<synchronous>, transform_indices = @transform_1, window_bounds = array<i64: 2, 64>}, {pipeline_mode = #tpu.pipeline_mode<synchronous>, transform_indices = @transform_2, window_bounds = array<i64: 1, 64>}, {pipeline_mode = #tpu.pipeline_mode<synchronous>, transform_indices = @transform_3, window_bounds = array<i64: 64, 128>}, {pipeline_mode = #tpu.pipeline_mode<synchronous>, transform_indices = @transform_4, window_bounds = array<i64: 1, 128>}, {pipeline_mode = #tpu.pipeline_mode<synchronous>, transform_indices = @transform_5, window_bounds = array<i64: 128, 256>}, {pipeline_mode = #tpu.pipeline_mode<synchronous>, transform_indices = @transform_6, window_bounds = array<i64: 1, 256>}, {pipeline_mode = #tpu.pipeline_mode<synchronous>, transform_indices = @transform_7, window_bounds = array<i64: 256, 512>}, {pipeline_mode = #tpu.pipeline_mode<synchronous>, transform_indices = @transform_8, window_bounds = array<i64: 1, 512>}, {pipeline_mode = #tpu.pipeline_mode<synchronous>, transform_indices = @transform_9, window_bounds = array<i64: 1, 1024>}, {pipeline_mode = #tpu.pipeline_mode<synchronous>, transform_indices = @transform_10, window_bounds = array<i64: 1, 512>}, {pipeline_mode = #tpu.pipeline_mode<synchronous>, transform_indices = @transform_11, window_bounds = array<i64: 1, 512>}, {pipeline_mode = #tpu.pipeline_mode<synchronous>, transform_indices = @transform_12, window_bounds = array<i64: 1, 512>}, {pipeline_mode = #tpu.pipeline_mode<synchronous>, transform_indices = @transform_13, window_bounds = array<i64: 1, 512>}, {}, {}, {}, {}, {}, {pipeline_mode = #tpu.pipeline_mode<synchronous>, transform_indices = @transform_19, window_bounds = array<i64: 2, 512>}]} {
    %c0_i32 = arith.constant 0 : i32
    %0 = tpu.memref_slice %arg26[%c0_i32] : memref<5x!tpu.dma_semaphore, #tpu.memory_space<semaphore_mem>> -> memref<1x!tpu.dma_semaphore, #tpu.memory_space<semaphore_mem>>
    %1 = tpu.memref_squeeze %0 : memref<1x!tpu.dma_semaphore, #tpu.memory_space<semaphore_mem>> -> memref<!tpu.dma_semaphore, #tpu.memory_space<semaphore_mem>>
    tpu.enqueue_dma source(%arg15 : memref<512x1024xbf16, #tpu.memory_space<any>>) target(%arg21 : memref<512x1024xbf16, #tpu.memory_space<vmem>>) target_semaphore(%1 : memref<!tpu.dma_semaphore, #tpu.memory_space<semaphore_mem>>)
    %c1_i32 = arith.constant 1 : i32
    %2 = tpu.memref_slice %arg26[%c1_i32] : memref<5x!tpu.dma_semaphore, #tpu.memory_space<semaphore_mem>> -> memref<1x!tpu.dma_semaphore, #tpu.memory_space<semaphore_mem>>
    %3 = tpu.memref_squeeze %2 : memref<1x!tpu.dma_semaphore, #tpu.memory_space<semaphore_mem>> -> memref<!tpu.dma_semaphore, #tpu.memory_space<semaphore_mem>>
    tpu.enqueue_dma source(%arg16 : memref<1024x512xbf16, #tpu.memory_space<any>>) target(%arg22 : memref<1024x512xbf16, #tpu.memory_space<vmem>>) target_semaphore(%3 : memref<!tpu.dma_semaphore, #tpu.memory_space<semaphore_mem>>)
    %c2_i32 = arith.constant 2 : i32
    %4 = tpu.memref_slice %arg26[%c2_i32] : memref<5x!tpu.dma_semaphore, #tpu.memory_space<semaphore_mem>> -> memref<1x!tpu.dma_semaphore, #tpu.memory_space<semaphore_mem>>
    %5 = tpu.memref_squeeze %4 : memref<1x!tpu.dma_semaphore, #tpu.memory_space<semaphore_mem>> -> memref<!tpu.dma_semaphore, #tpu.memory_space<semaphore_mem>>
    tpu.enqueue_dma source(%arg17 : memref<512x512xbf16, #tpu.memory_space<any>>) target(%arg23 : memref<512x512xbf16, #tpu.memory_space<vmem>>) target_semaphore(%5 : memref<!tpu.dma_semaphore, #tpu.memory_space<semaphore_mem>>)
    %c3_i32 = arith.constant 3 : i32
    %6 = tpu.memref_slice %arg26[%c3_i32] : memref<5x!tpu.dma_semaphore, #tpu.memory_space<semaphore_mem>> -> memref<1x!tpu.dma_semaphore, #tpu.memory_space<semaphore_mem>>
    %7 = tpu.memref_squeeze %6 : memref<1x!tpu.dma_semaphore, #tpu.memory_space<semaphore_mem>> -> memref<!tpu.dma_semaphore, #tpu.memory_space<semaphore_mem>>
    tpu.enqueue_dma source(%arg18 : memref<512x512xbf16, #tpu.memory_space<any>>) target(%arg24 : memref<512x512xbf16, #tpu.memory_space<vmem>>) target_semaphore(%7 : memref<!tpu.dma_semaphore, #tpu.memory_space<semaphore_mem>>)
    %c4_i32 = arith.constant 4 : i32
    %8 = tpu.memref_slice %arg26[%c4_i32] : memref<5x!tpu.dma_semaphore, #tpu.memory_space<semaphore_mem>> -> memref<1x!tpu.dma_semaphore, #tpu.memory_space<semaphore_mem>>
    %9 = tpu.memref_squeeze %8 : memref<1x!tpu.dma_semaphore, #tpu.memory_space<semaphore_mem>> -> memref<!tpu.dma_semaphore, #tpu.memory_space<semaphore_mem>>
    tpu.enqueue_dma source(%arg19 : memref<512x512xbf16, #tpu.memory_space<any>>) target(%arg25 : memref<512x512xbf16, #tpu.memory_space<vmem>>) target_semaphore(%9 : memref<!tpu.dma_semaphore, #tpu.memory_space<semaphore_mem>>)
    %c0 = arith.constant 0 : index
    %c0_0 = arith.constant 0 : index
    %10 = vector.load %arg1[%c0, %c0_0] : memref<64x2xbf16, #tpu.memory_space<vmem>>, vector<64x2xbf16>
    %c0_1 = arith.constant 0 : index
    %c0_2 = arith.constant 0 : index
    %11 = vector.load %arg2[%c0_1, %c0_2] : memref<2x64xbf16, #tpu.memory_space<vmem>>, vector<2x64xbf16>
    %cst = arith.constant dense<0.000000e+00> : vector<64x64xf32>
    %12 = tpu.matmul %10, %11, %cst {dimension_numbers = #tpu.dot_dimension_numbers<[1], [0], [0], [1], [0, 0, 1, 1], [], []>} : vector<64x2xbf16>, vector<2x64xbf16>, vector<64x64xf32> -> vector<64x64xf32>
    %c0_3 = arith.constant 0 : index
    %c0_4 = arith.constant 0 : index
    %13 = vector.load %arg3[%c0_3, %c0_4] : memref<1x64xf32, #tpu.memory_space<vmem>>, vector<1x64xf32>
    %14 = vector.broadcast %13 : vector<1x64xf32> to vector<64x64xf32>
    %15 = arith.addf %12, %14 : vector<64x64xf32>
    %cst_5 = arith.constant 0.000000e+00 : f32
    %16 = vector.broadcast %cst_5 : f32 to vector<64x64xf32>
    %17 = arith.maximumf %15, %16 : vector<64x64xf32>
    %18 = arith.truncf %17 : vector<64x64xf32> to vector<64x64xbf16>
    %c0_6 = arith.constant 0 : index
    %c0_7 = arith.constant 0 : index
    %19 = vector.load %arg4[%c0_6, %c0_7] : memref<64x128xbf16, #tpu.memory_space<vmem>>, vector<64x128xbf16>
    %cst_8 = arith.constant dense<0.000000e+00> : vector<64x128xf32>
    %20 = tpu.matmul %18, %19, %cst_8 {dimension_numbers = #tpu.dot_dimension_numbers<[1], [0], [0], [1], [0, 0, 1, 1], [], []>} : vector<64x64xbf16>, vector<64x128xbf16>, vector<64x128xf32> -> vector<64x128xf32>
    %c0_9 = arith.constant 0 : index
    %c0_10 = arith.constant 0 : index
    %21 = vector.load %arg5[%c0_9, %c0_10] : memref<1x128xf32, #tpu.memory_space<vmem>>, vector<1x128xf32>
    %22 = vector.broadcast %21 : vector<1x128xf32> to vector<64x128xf32>
    %23 = arith.addf %20, %22 : vector<64x128xf32>
    %cst_11 = arith.constant 0.000000e+00 : f32
    %24 = vector.broadcast %cst_11 : f32 to vector<64x128xf32>
    %25 = arith.maximumf %23, %24 : vector<64x128xf32>
    %26 = arith.truncf %25 : vector<64x128xf32> to vector<64x128xbf16>
    %c0_12 = arith.constant 0 : index
    %c0_13 = arith.constant 0 : index
    %27 = vector.load %arg6[%c0_12, %c0_13] : memref<128x256xbf16, #tpu.memory_space<vmem>>, vector<128x256xbf16>
    %cst_14 = arith.constant dense<0.000000e+00> : vector<64x256xf32>
    %28 = tpu.matmul %26, %27, %cst_14 {dimension_numbers = #tpu.dot_dimension_numbers<[1], [0], [0], [1], [0, 0, 1, 1], [], []>} : vector<64x128xbf16>, vector<128x256xbf16>, vector<64x256xf32> -> vector<64x256xf32>
    %c0_15 = arith.constant 0 : index
    %c0_16 = arith.constant 0 : index
    %29 = vector.load %arg7[%c0_15, %c0_16] : memref<1x256xf32, #tpu.memory_space<vmem>>, vector<1x256xf32>
    %30 = vector.broadcast %29 : vector<1x256xf32> to vector<64x256xf32>
    %31 = arith.addf %28, %30 : vector<64x256xf32>
    %cst_17 = arith.constant 0.000000e+00 : f32
    %32 = vector.broadcast %cst_17 : f32 to vector<64x256xf32>
    %33 = arith.maximumf %31, %32 : vector<64x256xf32>
    %34 = arith.truncf %33 : vector<64x256xf32> to vector<64x256xbf16>
    %c0_18 = arith.constant 0 : index
    %c0_19 = arith.constant 0 : index
    %35 = vector.load %arg8[%c0_18, %c0_19] : memref<256x512xbf16, #tpu.memory_space<vmem>>, vector<256x512xbf16>
    %cst_20 = arith.constant dense<0.000000e+00> : vector<64x512xf32>
    %36 = tpu.matmul %34, %35, %cst_20 {dimension_numbers = #tpu.dot_dimension_numbers<[1], [0], [0], [1], [0, 0, 1, 1], [], []>} : vector<64x256xbf16>, vector<256x512xbf16>, vector<64x512xf32> -> vector<64x512xf32>
    %c0_21 = arith.constant 0 : index
    %c0_22 = arith.constant 0 : index
    %37 = vector.load %arg9[%c0_21, %c0_22] : memref<1x512xf32, #tpu.memory_space<vmem>>, vector<1x512xf32>
    %38 = vector.broadcast %37 : vector<1x512xf32> to vector<64x512xf32>
    %39 = arith.addf %36, %38 : vector<64x512xf32>
    %cst_23 = arith.constant 0.000000e+00 : f32
    %40 = vector.broadcast %cst_23 : f32 to vector<64x512xf32>
    %41 = arith.maximumf %39, %40 : vector<64x512xf32>
    %42 = arith.truncf %41 : vector<64x512xf32> to vector<64x512xbf16>
    %c0_i32_24 = arith.constant 0 : i32
    %43 = tpu.memref_slice %arg26[%c0_i32_24] : memref<5x!tpu.dma_semaphore, #tpu.memory_space<semaphore_mem>> -> memref<1x!tpu.dma_semaphore, #tpu.memory_space<semaphore_mem>>
    %44 = tpu.memref_squeeze %43 : memref<1x!tpu.dma_semaphore, #tpu.memory_space<semaphore_mem>> -> memref<!tpu.dma_semaphore, #tpu.memory_space<semaphore_mem>>
    tpu.wait_dma2 semaphore(%44 : memref<!tpu.dma_semaphore, #tpu.memory_space<semaphore_mem>>) src(%arg15 : memref<512x1024xbf16, #tpu.memory_space<any>>) dst(%arg21 : memref<512x1024xbf16, #tpu.memory_space<vmem>>)
    %c0_25 = arith.constant 0 : index
    %c0_26 = arith.constant 0 : index
    %45 = vector.load %arg21[%c0_25, %c0_26] : memref<512x1024xbf16, #tpu.memory_space<vmem>>, vector<512x1024xbf16>
    %cst_27 = arith.constant dense<0.000000e+00> : vector<64x1024xf32>
    %46 = tpu.matmul %42, %45, %cst_27 {dimension_numbers = #tpu.dot_dimension_numbers<[1], [0], [0], [1], [0, 0, 1, 1], [], []>} : vector<64x512xbf16>, vector<512x1024xbf16>, vector<64x1024xf32> -> vector<64x1024xf32>
    %c0_28 = arith.constant 0 : index
    %c0_29 = arith.constant 0 : index
    %47 = vector.load %arg10[%c0_28, %c0_29] : memref<1x1024xf32, #tpu.memory_space<vmem>>, vector<1x1024xf32>
    %48 = vector.broadcast %47 : vector<1x1024xf32> to vector<64x1024xf32>
    %49 = arith.addf %46, %48 : vector<64x1024xf32>
    %cst_30 = arith.constant 0.000000e+00 : f32
    %50 = vector.broadcast %cst_30 : f32 to vector<64x1024xf32>
    %51 = arith.maximumf %49, %50 : vector<64x1024xf32>
    %52 = arith.truncf %51 : vector<64x1024xf32> to vector<64x1024xbf16>
    %53 = arith.extf %52 : vector<64x1024xbf16> to vector<64x1024xf32>
    %54 = vector.shape_cast %53 : vector<64x1024xf32> to vector<2x32x1024xf32>
    %cst_31 = arith.constant dense<0.000000e+00> : vector<2x1024xf32>
    %55 = vector.multi_reduction <add>, %54, %cst_31 [1] : vector<2x32x1024xf32> to vector<2x1024xf32>
    %cst_32 = arith.constant 3.200000e+01 : f32
    %56 = vector.broadcast %cst_32 : f32 to vector<2x1024xf32>
    %57 = arith.divf %55, %56 : vector<2x1024xf32>
    %58 = arith.truncf %57 : vector<2x1024xf32> to vector<2x1024xbf16>
    %c1_i32_33 = arith.constant 1 : i32
    %59 = tpu.memref_slice %arg26[%c1_i32_33] : memref<5x!tpu.dma_semaphore, #tpu.memory_space<semaphore_mem>> -> memref<1x!tpu.dma_semaphore, #tpu.memory_space<semaphore_mem>>
    %60 = tpu.memref_squeeze %59 : memref<1x!tpu.dma_semaphore, #tpu.memory_space<semaphore_mem>> -> memref<!tpu.dma_semaphore, #tpu.memory_space<semaphore_mem>>
    tpu.wait_dma2 semaphore(%60 : memref<!tpu.dma_semaphore, #tpu.memory_space<semaphore_mem>>) src(%arg16 : memref<1024x512xbf16, #tpu.memory_space<any>>) dst(%arg22 : memref<1024x512xbf16, #tpu.memory_space<vmem>>)
    %c0_34 = arith.constant 0 : index
    %c0_35 = arith.constant 0 : index
    %61 = vector.load %arg22[%c0_34, %c0_35] : memref<1024x512xbf16, #tpu.memory_space<vmem>>, vector<1024x512xbf16>
    %cst_36 = arith.constant dense<0.000000e+00> : vector<2x512xf32>
    %62 = tpu.matmul %58, %61, %cst_36 {dimension_numbers = #tpu.dot_dimension_numbers<[1], [0], [0], [1], [0, 0, 1, 1], [], []>} : vector<2x1024xbf16>, vector<1024x512xbf16>, vector<2x512xf32> -> vector<2x512xf32>
    %c0_37 = arith.constant 0 : index
    %c0_38 = arith.constant 0 : index
    %63 = vector.load %arg11[%c0_37, %c0_38] : memref<1x512xf32, #tpu.memory_space<vmem>>, vector<1x512xf32>
    %64 = vector.broadcast %63 : vector<1x512xf32> to vector<2x512xf32>
    %65 = arith.addf %62, %64 : vector<2x512xf32>
    %cst_39 = arith.constant 0.000000e+00 : f32
    %66 = vector.broadcast %cst_39 : f32 to vector<2x512xf32>
    %67 = arith.maximumf %65, %66 : vector<2x512xf32>
    %68 = arith.truncf %67 : vector<2x512xf32> to vector<2x512xbf16>
    %c2_i32_40 = arith.constant 2 : i32
    %69 = tpu.memref_slice %arg26[%c2_i32_40] : memref<5x!tpu.dma_semaphore, #tpu.memory_space<semaphore_mem>> -> memref<1x!tpu.dma_semaphore, #tpu.memory_space<semaphore_mem>>
    %70 = tpu.memref_squeeze %69 : memref<1x!tpu.dma_semaphore, #tpu.memory_space<semaphore_mem>> -> memref<!tpu.dma_semaphore, #tpu.memory_space<semaphore_mem>>
    tpu.wait_dma2 semaphore(%70 : memref<!tpu.dma_semaphore, #tpu.memory_space<semaphore_mem>>) src(%arg17 : memref<512x512xbf16, #tpu.memory_space<any>>) dst(%arg23 : memref<512x512xbf16, #tpu.memory_space<vmem>>)
    %c0_41 = arith.constant 0 : index
    %c0_42 = arith.constant 0 : index
    %71 = vector.load %arg23[%c0_41, %c0_42] : memref<512x512xbf16, #tpu.memory_space<vmem>>, vector<512x512xbf16>
    %cst_43 = arith.constant dense<0.000000e+00> : vector<2x512xf32>
    %72 = tpu.matmul %68, %71, %cst_43 {dimension_numbers = #tpu.dot_dimension_numbers<[1], [0], [0], [1], [0, 0, 1, 1], [], []>} : vector<2x512xbf16>, vector<512x512xbf16>, vector<2x512xf32> -> vector<2x512xf32>
    %c0_44 = arith.constant 0 : index
    %c0_45 = arith.constant 0 : index
    %73 = vector.load %arg12[%c0_44, %c0_45] : memref<1x512xf32, #tpu.memory_space<vmem>>, vector<1x512xf32>
    %74 = vector.broadcast %73 : vector<1x512xf32> to vector<2x512xf32>
    %75 = arith.addf %72, %74 : vector<2x512xf32>
    %cst_46 = arith.constant 0.000000e+00 : f32
    %76 = vector.broadcast %cst_46 : f32 to vector<2x512xf32>
    %77 = arith.maximumf %75, %76 : vector<2x512xf32>
    %78 = arith.truncf %77 : vector<2x512xf32> to vector<2x512xbf16>
    %c3_i32_47 = arith.constant 3 : i32
    %79 = tpu.memref_slice %arg26[%c3_i32_47] : memref<5x!tpu.dma_semaphore, #tpu.memory_space<semaphore_mem>> -> memref<1x!tpu.dma_semaphore, #tpu.memory_space<semaphore_mem>>
    %80 = tpu.memref_squeeze %79 : memref<1x!tpu.dma_semaphore, #tpu.memory_space<semaphore_mem>> -> memref<!tpu.dma_semaphore, #tpu.memory_space<semaphore_mem>>
    tpu.wait_dma2 semaphore(%80 : memref<!tpu.dma_semaphore, #tpu.memory_space<semaphore_mem>>) src(%arg18 : memref<512x512xbf16, #tpu.memory_space<any>>) dst(%arg24 : memref<512x512xbf16, #tpu.memory_space<vmem>>)
    %c0_48 = arith.constant 0 : index
    %c0_49 = arith.constant 0 : index
    %81 = vector.load %arg24[%c0_48, %c0_49] : memref<512x512xbf16, #tpu.memory_space<vmem>>, vector<512x512xbf16>
    %cst_50 = arith.constant dense<0.000000e+00> : vector<2x512xf32>
    %82 = tpu.matmul %78, %81, %cst_50 {dimension_numbers = #tpu.dot_dimension_numbers<[1], [0], [0], [1], [0, 0, 1, 1], [], []>} : vector<2x512xbf16>, vector<512x512xbf16>, vector<2x512xf32> -> vector<2x512xf32>
    %c0_51 = arith.constant 0 : index
    %c0_52 = arith.constant 0 : index
    %83 = vector.load %arg13[%c0_51, %c0_52] : memref<1x512xf32, #tpu.memory_space<vmem>>, vector<1x512xf32>
    %84 = vector.broadcast %83 : vector<1x512xf32> to vector<2x512xf32>
    %85 = arith.addf %82, %84 : vector<2x512xf32>
    %cst_53 = arith.constant 0.000000e+00 : f32
    %86 = vector.broadcast %cst_53 : f32 to vector<2x512xf32>
    %87 = arith.maximumf %85, %86 : vector<2x512xf32>
    %88 = arith.truncf %87 : vector<2x512xf32> to vector<2x512xbf16>
    %c4_i32_54 = arith.constant 4 : i32
    %89 = tpu.memref_slice %arg26[%c4_i32_54] : memref<5x!tpu.dma_semaphore, #tpu.memory_space<semaphore_mem>> -> memref<1x!tpu.dma_semaphore, #tpu.memory_space<semaphore_mem>>
    %90 = tpu.memref_squeeze %89 : memref<1x!tpu.dma_semaphore, #tpu.memory_space<semaphore_mem>> -> memref<!tpu.dma_semaphore, #tpu.memory_space<semaphore_mem>>
    tpu.wait_dma2 semaphore(%90 : memref<!tpu.dma_semaphore, #tpu.memory_space<semaphore_mem>>) src(%arg19 : memref<512x512xbf16, #tpu.memory_space<any>>) dst(%arg25 : memref<512x512xbf16, #tpu.memory_space<vmem>>)
    %c0_55 = arith.constant 0 : index
    %c0_56 = arith.constant 0 : index
    %91 = vector.load %arg25[%c0_55, %c0_56] : memref<512x512xbf16, #tpu.memory_space<vmem>>, vector<512x512xbf16>
    %cst_57 = arith.constant dense<0.000000e+00> : vector<2x512xf32>
    %92 = tpu.matmul %88, %91, %cst_57 {dimension_numbers = #tpu.dot_dimension_numbers<[1], [0], [0], [1], [0, 0, 1, 1], [], []>} : vector<2x512xbf16>, vector<512x512xbf16>, vector<2x512xf32> -> vector<2x512xf32>
    %c0_58 = arith.constant 0 : index
    %c0_59 = arith.constant 0 : index
    %93 = vector.load %arg14[%c0_58, %c0_59] : memref<1x512xf32, #tpu.memory_space<vmem>>, vector<1x512xf32>
    %94 = vector.broadcast %93 : vector<1x512xf32> to vector<2x512xf32>
    %95 = arith.addf %92, %94 : vector<2x512xf32>
    %c0_60 = arith.constant 0 : index
    %c0_61 = arith.constant 0 : index
    %96 = vector.load %arg20[%c0_60, %c0_61] : memref<2x512xf32, #tpu.memory_space<vmem>>, vector<2x512xf32>
    tpu.vector_store %arg20[%c0_60, %c0_61], %95 {strides = array<i32>} : memref<2x512xf32, #tpu.memory_space<vmem>>, vector<2x512xf32>,
    return
  }
  func.func @transform_0(%arg0: i32) -> (i32, i32) {
    %c0_i32 = arith.constant 0 : i32
    %c0_i32_0 = arith.constant 0 : i32
    %c0_i32_1 = arith.constant 0 : i32
    return %c0_i32, %c0_i32_0 : i32, i32
  }
  func.func @transform_1(%arg0: i32) -> (i32, i32) {
    %c0_i32 = arith.constant 0 : i32
    %c0_i32_0 = arith.constant 0 : i32
    %c0_i32_1 = arith.constant 0 : i32
    return %c0_i32, %c0_i32_0 : i32, i32
  }
  func.func @transform_2(%arg0: i32) -> (i32, i32) {
    %c0_i32 = arith.constant 0 : i32
    %c0_i32_0 = arith.constant 0 : i32
    %c0_i32_1 = arith.constant 0 : i32
    return %c0_i32, %c0_i32_0 : i32, i32
  }
  func.func @transform_3(%arg0: i32) -> (i32, i32) {
    %c0_i32 = arith.constant 0 : i32
    %c0_i32_0 = arith.constant 0 : i32
    %c0_i32_1 = arith.constant 0 : i32
    return %c0_i32, %c0_i32_0 : i32, i32
  }
  func.func @transform_4(%arg0: i32) -> (i32, i32) {
    %c0_i32 = arith.constant 0 : i32
    %c0_i32_0 = arith.constant 0 : i32
    %c0_i32_1 = arith.constant 0 : i32
    return %c0_i32, %c0_i32_0 : i32, i32
  }
  func.func @transform_5(%arg0: i32) -> (i32, i32) {
    %c0_i32 = arith.constant 0 : i32
    %c0_i32_0 = arith.constant 0 : i32
    %c0_i32_1 = arith.constant 0 : i32
    return %c0_i32, %c0_i32_0 : i32, i32
  }
  func.func @transform_6(%arg0: i32) -> (i32, i32) {
    %c0_i32 = arith.constant 0 : i32
    %c0_i32_0 = arith.constant 0 : i32
    %c0_i32_1 = arith.constant 0 : i32
    return %c0_i32, %c0_i32_0 : i32, i32
  }
  func.func @transform_7(%arg0: i32) -> (i32, i32) {
    %c0_i32 = arith.constant 0 : i32
    %c0_i32_0 = arith.constant 0 : i32
    %c0_i32_1 = arith.constant 0 : i32
    return %c0_i32, %c0_i32_0 : i32, i32
  }
  func.func @transform_8(%arg0: i32) -> (i32, i32) {
    %c0_i32 = arith.constant 0 : i32
    %c0_i32_0 = arith.constant 0 : i32
    %c0_i32_1 = arith.constant 0 : i32
    return %c0_i32, %c0_i32_0 : i32, i32
  }
  func.func @transform_9(%arg0: i32) -> (i32, i32) {
    %c0_i32 = arith.constant 0 : i32
    %c0_i32_0 = arith.constant 0 : i32
    %c0_i32_1 = arith.constant 0 : i32
    return %c0_i32, %c0_i32_0 : i32, i32
  }
  func.func @transform_10(%arg0: i32) -> (i32, i32) {
    %c0_i32 = arith.constant 0 : i32
    %c0_i32_0 = arith.constant 0 : i32
    %c0_i32_1 = arith.constant 0 : i32
    return %c0_i32, %c0_i32_0 : i32, i32
  }
  func.func @transform_11(%arg0: i32) -> (i32, i32) {
    %c0_i32 = arith.constant 0 : i32
    %c0_i32_0 = arith.constant 0 : i32
    %c0_i32_1 = arith.constant 0 : i32
    return %c0_i32, %c0_i32_0 : i32, i32
  }
  func.func @transform_12(%arg0: i32) -> (i32, i32) {
    %c0_i32 = arith.constant 0 : i32
    %c0_i32_0 = arith.constant 0 : i32
    %c0_i32_1 = arith.constant 0 : i32
    return %c0_i32, %c0_i32_0 : i32, i32
  }
  func.func @transform_13(%arg0: i32) -> (i32, i32) {
    %c0_i32 = arith.constant 0 : i32
    %c0_i32_0 = arith.constant 0 : i32
    %c0_i32_1 = arith.constant 0 : i32
    return %c0_i32, %c0_i32_0 : i32, i32
  }
  func.func @transform_19(%arg0: i32) -> (i32, i32) {
    %c0_i32 = arith.constant 0 : i32
    %c0_i32_0 = arith.constant 0 : i32
    %c0_i32_1 = arith.constant 0 : i32
    return %c0_i32, %c0_i32_0 : i32, i32
  }
}

</mosaic_0001>

<llo_original>
// kernel: tpu_custom_call.1
$region0: #{tpu_custom_call.1}
  #allocation0 [shape = 'u32[]', space=smem, size = 0x4, offset = 0x4, fixed_abs, tag = 'smem constant byte address 0x4 - core index']
  #allocation1 [shape = 'u32[72,128]{1,0:T(1,128)}', space=vmem, size = 0x9000, scoped, tag = 'internal scratch']
  #allocation2 [shape = 'bf16[512,1024]{1,0:T(8,128)(2,1)}', space=vmem, size = 0x100000, scoped, tag = 'scratch operand']
  #allocation3 [shape = 'bf16[1024,512]{1,0:T(8,128)(2,1)}', space=vmem, size = 0x100000, scoped, tag = 'scratch operand']
  #allocation4 [shape = 'bf16[512,512]{1,0:T(8,128)(2,1)}', space=vmem, size = 0x80000, scoped, tag = 'scratch operand']
  #allocation5 [shape = 'bf16[512,512]{1,0:T(8,128)(2,1)}', space=vmem, size = 0x80000, scoped, tag = 'scratch operand']
  #allocation6 [shape = 'bf16[512,512]{1,0:T(8,128)(2,1)}', space=vmem, size = 0x80000, scoped, tag = 'scratch operand']
  #allocation7 [shape = 's32[5]{0}', space=sflag, size = 0x14, scoped, tag = 'scratch operand']
  #allocation26 [shape = 's32[]', space=sflag, size = 0x4, offset = 0, fixed_abs, tag = 'sflag constant byte address 0x0 - dummy sync flag']
  #allocation27 [shape = 's32[]', space=sflag, size = 0x4, offset = 0, fixed_abs, tag = 'sflag constant byte address 0x0 - dummy sync flag']
  #allocation28 [shape = 'u32[]', space=smem, size = 0x4, offset = 0x44, fixed_abs, tag = 'smem constant byte address 0x44 - assertion arg 0']
  #allocation29 [shape = 'u32[]', space=smem, size = 0x4, offset = 0x48, fixed_abs, tag = 'smem constant byte address 0x48 - assertion arg 1']
  #allocation30 [shape = 's32[]', space=sflag, size = 0x4, offset = 0, fixed_abs, tag = 'sflag constant byte address 0x0 - dummy sync flag']
  #allocation31 [shape = 's32[]', space=sflag, size = 0x4, offset = 0, fixed_abs, tag = 'sflag constant byte address 0x0 - dummy sync flag']
  #allocation32 [shape = 's32[]', space=sflag, size = 0x4, offset = 0, fixed_abs, tag = 'sflag constant byte address 0x0 - dummy sync flag']
  #allocation33 [shape = 's32[]', space=sflag, size = 0x4, offset = 0, fixed_abs, tag = 'sflag constant byte address 0x0 - dummy sync flag']
  #allocation34 [shape = 's32[]', space=sflag, size = 0x4, offset = 0, fixed_abs, tag = 'sflag constant byte address 0x0 - dummy sync flag']
  #allocation35 [shape = 's32[]', space=sflag, size = 0x4, offset = 0, fixed_abs, tag = 'sflag constant byte address 0x0 - dummy sync flag']
  #allocation36 [shape = 's32[]', space=sflag, size = 0x4, offset = 0, fixed_abs, tag = 'sflag constant byte address 0x0 - dummy sync flag']
  #allocation37 [shape = 's32[]', space=sflag, size = 0x4, offset = 0, fixed_abs, tag = 'sflag constant byte address 0x0 - dummy sync flag']
  %s0 = inlined_call_operand.vmem [shape: bf16[64,2], index: 0, kind: input, shape index: {}]
  %s1 = inlined_call_operand.hbm [shape: bf16[2,64], index: 1, kind: input, shape index: {}]
  %s2 = inlined_call_operand.hbm [shape: f32[1,64], index: 2, kind: input, shape index: {}]
  %s3 = inlined_call_operand.vmem [shape: bf16[64,128], index: 3, kind: input, shape index: {}]
  %s4 = inlined_call_operand.hbm [shape: f32[1,128], index: 4, kind: input, shape index: {}]
  %s5 = inlined_call_operand.hbm [shape: bf16[128,256], index: 5, kind: input, shape index: {}]
  %s6 = inlined_call_operand.hbm [shape: f32[1,256], index: 6, kind: input, shape index: {}]
  %s7 = inlined_call_operand.hbm [shape: bf16[256,512], index: 7, kind: input, shape index: {}]
  %s8 = inlined_call_operand.hbm [shape: f32[1,512], index: 8, kind: input, shape index: {}]
  %s9 = inlined_call_operand.vmem [shape: f32[1,1024], index: 9, kind: input, shape index: {}]
  %s10 = inlined_call_operand.hbm [shape: f32[1,512], index: 10, kind: input, shape index: {}]
  %s11 = inlined_call_operand.hbm [shape: f32[1,512], index: 11, kind: input, shape index: {}]
  %s12 = inlined_call_operand.vmem [shape: f32[1,512], index: 12, kind: input, shape index: {}]
  %s13 = inlined_call_operand.hbm [shape: f32[1,512], index: 13, kind: input, shape index: {}]
  %s14 = inlined_call_operand.hbm [shape: bf16[512,1024], index: 14, kind: input, shape index: {}]
  %s15 = inlined_call_operand.hbm [shape: bf16[1024,512], index: 15, kind: input, shape index: {}]
  %s16 = inlined_call_operand.hbm [shape: bf16[512,512], index: 16, kind: input, shape index: {}]
  %s17 = inlined_call_operand.hbm [shape: bf16[512,512], index: 17, kind: input, shape index: {}]
  %s18 = inlined_call_operand.hbm [shape: bf16[512,512], index: 18, kind: input, shape index: {}]
  %s19 = inlined_call_operand.hbm [shape: f32[2,512], index: 19, kind: output, shape index: {}]
  %s20 = sld [smem:[#allocation0]]
  $region126: #{tpu_custom_call.1} parent=0
    _
  %s22 = ssub.s32 1, %s20
  %s23 = scalar_select 0, %s22, %s20
  $region1: #{tpu_custom_call.1} parent=0
    #allocation8 [shape = 'u8[512]{0}', space=vmem, size = 0x400, scoped, tag = 'input window, operand 1, single buffered']
    #allocation9 [shape = 's32[1]{0}', space=sflag, size = 0x4, scoped, tag = 'scoped memory for tpu_custom_call.1']
    #allocation10 [shape = 's32[1]{0}', space=sflag, size = 0x4, scoped, tag = 'scoped memory for tpu_custom_call.1']
    #allocation11 [shape = 'u8[512]{0}', space=vmem, size = 0x400, scoped, tag = 'input window, operand 2, single buffered']
    #allocation12 [shape = 's32[1]{0}', space=sflag, size = 0x4, scoped, tag = 'scoped memory for tpu_custom_call.1']
    #allocation13 [shape = 'u8[512]{0}', space=vmem, size = 0x400, scoped, tag = 'input window, operand 4, single buffered']
    #allocation14 [shape = 'u8[65536]{0}', space=vmem, size = 0x10000, scoped, tag = 'input window, operand 5, single buffered']
    #allocation15 [shape = 's32[1]{0}', space=sflag, size = 0x4, scoped, tag = 'scoped memory for tpu_custom_call.1']
    #allocation16 [shape = 'u8[1024]{0}', space=vmem, size = 0x400, scoped, tag = 'input window, operand 6, single buffered']
    #allocation17 [shape = 'u8[262144]{0}', space=vmem, size = 0x40000, scoped, tag = 'input window, operand 7, single buffered']
    #allocation18 [shape = 's32[1]{0}', space=sflag, size = 0x4, scoped, tag = 'scoped memory for tpu_custom_call.1']
    #allocation19 [shape = 'u8[2048]{0}', space=vmem, size = 0x800, scoped, tag = 'input window, operand 8, single buffered']
    #allocation20 [shape = 'u8[2048]{0}', space=vmem, size = 0x800, scoped, tag = 'input window, operand 10, single buffered']
    #allocation21 [shape = 's32[1]{0}', space=sflag, size = 0x4, scoped, tag = 'scoped memory for tpu_custom_call.1']
    #allocation22 [shape = 'u8[2048]{0}', space=vmem, size = 0x800, scoped, tag = 'input window, operand 11, single buffered']
    #allocation23 [shape = 'u8[2048]{0}', space=vmem, size = 0x800, scoped, tag = 'input window, operand 13, single buffered']
    #allocation24 [shape = 's32[1]{0}', space=sflag, size = 0x4, scoped, tag = 'scoped memory for tpu_custom_call.1']
    #allocation25 [shape = 'u8[4096]{0}', space=vmem, size = 0x1000, scoped, tag = 'output window, operand 0, single buffered']
    %24 = vsyncpa [#allocation9], 0
    %25 = vsyncpa [#allocation12], 0
    %26 = vsyncpa [#allocation15], 0
    %27 = vsyncpa [#allocation18], 0
    %28 = vsyncpa [#allocation21], 0
    %29 = vsyncpa [#allocation24], 0
    %30 = vsyncpa [#allocation10], 0
    // Predicated region
    $region2: #{tpu_custom_call.1} parent=1 // pred_check
      _
    $region3: #{tpu_custom_call.1} parent=1 // pred_check_branch
      %32 = sbr.rel (0) target = $region5
    $region4: #{tpu_custom_call.1} parent=1 // pred_region
      _
    $region5: #{tpu_custom_call.1} parent=1 // pred_fallthru
      _
    // Predicated region
    $region6: #{tpu_custom_call.1} parent=1 // pred_check
      _
    $region7: #{tpu_custom_call.1} parent=1 // pred_check_branch
      %34 = sbr.rel (0) target = $region9
    $region8: #{tpu_custom_call.1} parent=1 // pred_region
      %36 = vsyncadd [#allocation9], 0
      %s38 = sshll.u32 %s1, 4
      %s39 = int_to_ptr.hbm [resolvable:$true] %s38
      %s40 = sshll.u32 [#allocation8], 4
      %s41 = int_to_ptr.vmem [resolvable:$true] %s40
      %43 = dma.hbm_to_vmem [thread:$0]  %s39, 16, %s41, [#allocation9]
    $region9: #{tpu_custom_call.1} parent=1 // pred_fallthru
      _
    // Predicated region
    $region10: #{tpu_custom_call.1} parent=1 // pred_check
      _
    $region11: #{tpu_custom_call.1} parent=1 // pred_check_branch
      %45 = sbr.rel (0) target = $region13
    $region12: #{tpu_custom_call.1} parent=1 // pred_region
      %47 = vsyncadd [#allocation12], 0
      %s49 = sshll.u32 %s2, 4
      %s50 = int_to_ptr.hbm [resolvable:$true] %s49
      %s51 = sshll.u32 [#allocation11], 4
      %s52 = int_to_ptr.vmem [resolvable:$true] %s51
      %54 = dma.hbm_to_vmem [thread:$0]  %s50, 16, %s52, [#allocation12]
    $region13: #{tpu_custom_call.1} parent=1 // pred_fallthru
      _
    // Predicated region
    $region14: #{tpu_custom_call.1} parent=1 // pred_check
      _
    $region15: #{tpu_custom_call.1} parent=1 // pred_check_branch
      %56 = sbr.rel (0) target = $region17
    $region16: #{tpu_custom_call.1} parent=1 // pred_region
      _
    $region17: #{tpu_custom_call.1} parent=1 // pred_fallthru
      _
    // Predicated region
    $region18: #{tpu_custom_call.1} parent=1 // pred_check
      _
    $region19: #{tpu_custom_call.1} parent=1 // pred_check_branch
      %58 = sbr.rel (0) target = $region21
    $region20: #{tpu_custom_call.1} parent=1 // pred_region
      %60 = vsyncadd [#allocation12], 0
      %s62 = sshll.u32 %s4, 4
      %s63 = int_to_ptr.hbm [resolvable:$true] %s62
      %s64 = sshll.u32 [#allocation13], 4
      %s65 = int_to_ptr.vmem [resolvable:$true] %s64
      %67 = dma.hbm_to_vmem [thread:$0]  %s63, 16, %s65, [#allocation12]
    $region21: #{tpu_custom_call.1} parent=1 // pred_fallthru
      _
    // Predicated region
    $region22: #{tpu_custom_call.1} parent=1 // pred_check
      _
    $region23: #{tpu_custom_call.1} parent=1 // pred_check_branch
      %69 = sbr.rel (0) target = $region25
    $region24: #{tpu_custom_call.1} parent=1 // pred_region
      %71 = vsyncadd [#allocation15], 0
      %s72 = sshll.u32 %s5, 4
      %s73 = int_to_ptr.hbm [resolvable:$true] %s72
      %s74 = sshll.u32 [#allocation14], 4
      %s75 = int_to_ptr.vmem [resolvable:$true] %s74
      %80 = dma.hbm_to_vmem [thread:$0]  %s73, 2048, %s75, [#allocation15], 128, 128, 8
    $region25: #{tpu_custom_call.1} parent=1 // pred_fallthru
      _
    // Predicated region
    $region26: #{tpu_custom_call.1} parent=1 // pred_check
      _
    $region27: #{tpu_custom_call.1} parent=1 // pred_check_branch
      %82 = sbr.rel (0) target = $region29
    $region28: #{tpu_custom_call.1} parent=1 // pred_region
      %84 = vsyncadd [#allocation15], 0
      %s86 = sshll.u32 %s6, 4
      %s87 = int_to_ptr.hbm [resolvable:$true] %s86
      %s88 = sshll.u32 [#allocation16], 4
      %s89 = int_to_ptr.vmem [resolvable:$true] %s88
      %91 = dma.hbm_to_vmem [thread:$0]  %s87, 32, %s89, [#allocation15]
    $region29: #{tpu_custom_call.1} parent=1 // pred_fallthru
      _
    // Predicated region
    $region30: #{tpu_custom_call.1} parent=1 // pred_check
      _
    $region31: #{tpu_custom_call.1} parent=1 // pred_check_branch
      %93 = sbr.rel (0) target = $region33
    $region32: #{tpu_custom_call.1} parent=1 // pred_region
      %95 = vsyncadd [#allocation18], 0
      %s96 = sshll.u32 %s7, 4
      %s97 = int_to_ptr.hbm [resolvable:$true] %s96
      %s98 = sshll.u32 [#allocation17], 4
      %s99 = int_to_ptr.vmem [resolvable:$true] %s98
      %104 = dma.hbm_to_vmem [thread:$0]  %s97, 8192, %s99, [#allocation18], 256, 256, 16
    $region33: #{tpu_custom_call.1} parent=1 // pred_fallthru
      _
    // Predicated region
    $region34: #{tpu_custom_call.1} parent=1 // pred_check
      _
    $region35: #{tpu_custom_call.1} parent=1 // pred_check_branch
      %106 = sbr.rel (0) target = $region37
    $region36: #{tpu_custom_call.1} parent=1 // pred_region
      %108 = vsyncadd [#allocation18], 0
      %s110 = sshll.u32 %s8, 4
      %s111 = int_to_ptr.hbm [resolvable:$true] %s110
      %s112 = sshll.u32 [#allocation19], 4
      %s113 = int_to_ptr.vmem [resolvable:$true] %s112
      %115 = dma.hbm_to_vmem [thread:$0]  %s111, 64, %s113, [#allocation18]
    $region37: #{tpu_custom_call.1} parent=1 // pred_fallthru
      _
    // Predicated region
    $region38: #{tpu_custom_call.1} parent=1 // pred_check
      _
    $region39: #{tpu_custom_call.1} parent=1 // pred_check_branch
      %117 = sbr.rel (0) target = $region41
    $region40: #{tpu_custom_call.1} parent=1 // pred_region
      _
    $region41: #{tpu_custom_call.1} parent=1 // pred_fallthru
      _
    // Predicated region
    $region42: #{tpu_custom_call.1} parent=1 // pred_check
      _
    $region43: #{tpu_custom_call.1} parent=1 // pred_check_branch
      %119 = sbr.rel (0) target = $region45
    $region44: #{tpu_custom_call.1} parent=1 // pred_region
      %121 = vsyncadd [#allocation21], 0
      %s123 = sshll.u32 %s10, 4
      %s124 = int_to_ptr.hbm [resolvable:$true] %s123
      %s125 = sshll.u32 [#allocation20], 4
      %s126 = int_to_ptr.vmem [resolvable:$true] %s125
      %128 = dma.hbm_to_vmem [thread:$0]  %s124, 64, %s126, [#allocation21]
    $region45: #{tpu_custom_call.1} parent=1 // pred_fallthru
      _
    // Predicated region
    $region46: #{tpu_custom_call.1} parent=1 // pred_check
      _
    $region47: #{tpu_custom_call.1} parent=1 // pred_check_branch
      %130 = sbr.rel (0) target = $region49
    $region48: #{tpu_custom_call.1} parent=1 // pred_region
      %132 = vsyncadd [#allocation21], 0
      %s134 = sshll.u32 %s11, 4
      %s135 = int_to_ptr.hbm [resolvable:$true] %s134
      %s136 = sshll.u32 [#allocation22], 4
      %s137 = int_to_ptr.vmem [resolvable:$true] %s136
      %139 = dma.hbm_to_vmem [thread:$0]  %s135, 64, %s137, [#allocation21]
    $region49: #{tpu_custom_call.1} parent=1 // pred_fallthru
      _
    // Predicated region
    $region50: #{tpu_custom_call.1} parent=1 // pred_check
      _
    $region51: #{tpu_custom_call.1} parent=1 // pred_check_branch
      %141 = sbr.rel (0) target = $region53
    $region52: #{tpu_custom_call.1} parent=1 // pred_region
      _
    $region53: #{tpu_custom_call.1} parent=1 // pred_fallthru
      _
    // Predicated region
    $region54: #{tpu_custom_call.1} parent=1 // pred_check
      _
    $region55: #{tpu_custom_call.1} parent=1 // pred_check_branch
      %143 = sbr.rel (0) target = $region57
    $region56: #{tpu_custom_call.1} parent=1 // pred_region
      %145 = vsyncadd [#allocation24], 0
      %s147 = sshll.u32 %s13, 4
      %s148 = int_to_ptr.hbm [resolvable:$true] %s147
      %s149 = sshll.u32 [#allocation23], 4
      %s150 = int_to_ptr.vmem [resolvable:$true] %s149
      %152 = dma.hbm_to_vmem [thread:$0]  %s148, 64, %s150, [#allocation24]
    $region57: #{tpu_custom_call.1} parent=1 // pred_fallthru
      _
    // Predicated region
    $region58: #{tpu_custom_call.1} parent=1 // pred_check
      _
    $region59: #{tpu_custom_call.1} parent=1 // pred_check_branch
      %154 = sbr.rel (0) target = $region61
    $region60: #{tpu_custom_call.1} parent=1 // pred_region
      %156 = dma.done [#allocation9], 16
    $region61: #{tpu_custom_call.1} parent=1 // pred_fallthru
      _
    // Predicated region
    $region62: #{tpu_custom_call.1} parent=1 // pred_check
      _
    $region63: #{tpu_custom_call.1} parent=1 // pred_check_branch
      %158 = sbr.rel (0) target = $region65
    $region64: #{tpu_custom_call.1} parent=1 // pred_region
      %160 = dma.done [#allocation12], 16
    $region65: #{tpu_custom_call.1} parent=1 // pred_fallthru
      _
    // Predicated region
    $region66: #{tpu_custom_call.1} parent=1 // pred_check
      _
    $region67: #{tpu_custom_call.1} parent=1 // pred_check_branch
      %162 = sbr.rel (0) target = $region69
    $region68: #{tpu_custom_call.1} parent=1 // pred_region
      %164 = dma.done [#allocation12], 16
    $region69: #{tpu_custom_call.1} parent=1 // pred_fallthru
      _
    // Predicated region
    $region70: #{tpu_custom_call.1} parent=1 // pred_check
      _
    $region71: #{tpu_custom_call.1} parent=1 // pred_check_branch
      %166 = sbr.rel (0) target = $region73
    $region72: #{tpu_custom_call.1} parent=1 // pred_region
      %168 = dma.done [#allocation15], 2048
    $region73: #{tpu_custom_call.1} parent=1 // pred_fallthru
      _
    // Predicated region
    $region74: #{tpu_custom_call.1} parent=1 // pred_check
      _
    $region75: #{tpu_custom_call.1} parent=1 // pred_check_branch
      %170 = sbr.rel (0) target = $region77
    $region76: #{tpu_custom_call.1} parent=1 // pred_region
      %172 = dma.done [#allocation15], 32
    $region77: #{tpu_custom_call.1} parent=1 // pred_fallthru
      _
    // Predicated region
    $region78: #{tpu_custom_call.1} parent=1 // pred_check
      _
    $region79: #{tpu_custom_call.1} parent=1 // pred_check_branch
      %174 = sbr.rel (0) target = $region81
    $region80: #{tpu_custom_call.1} parent=1 // pred_region
      %176 = dma.done [#allocation18], 8192
    $region81: #{tpu_custom_call.1} parent=1 // pred_fallthru
      _
    // Predicated region
    $region82: #{tpu_custom_call.1} parent=1 // pred_check
      _
    $region83: #{tpu_custom_call.1} parent=1 // pred_check_branch
      %178 = sbr.rel (0) target = $region85
    $region84: #{tpu_custom_call.1} parent=1 // pred_region
      %180 = dma.done [#allocation18], 64
    $region85: #{tpu_custom_call.1} parent=1 // pred_fallthru
      _
    // Predicated region
    $region86: #{tpu_custom_call.1} parent=1 // pred_check
      _
    $region87: #{tpu_custom_call.1} parent=1 // pred_check_branch
      %182 = sbr.rel (0) target = $region89
    $region88: #{tpu_custom_call.1} parent=1 // pred_region
      %184 = dma.done [#allocation21], 64
    $region89: #{tpu_custom_call.1} parent=1 // pred_fallthru
      _
    // Predicated region
    $region90: #{tpu_custom_call.1} parent=1 // pred_check
      _
    $region91: #{tpu_custom_call.1} parent=1 // pred_check_branch
      %186 = sbr.rel (0) target = $region93
    $region92: #{tpu_custom_call.1} parent=1 // pred_region
      %188 = dma.done [#allocation21], 64
    $region93: #{tpu_custom_call.1} parent=1 // pred_fallthru
      _
    // Predicated region
    $region94: #{tpu_custom_call.1} parent=1 // pred_check
      _
    $region95: #{tpu_custom_call.1} parent=1 // pred_check_branch
      %190 = sbr.rel (0) target = $region97
    $region96: #{tpu_custom_call.1} parent=1 // pred_region
      %192 = dma.done [#allocation24], 64
    $region97: #{tpu_custom_call.1} parent=1 // pred_fallthru
      _
    // Predicated region
    $region98: #{tpu_custom_call.1} parent=1 // pred_check
      _
    $region99: #{tpu_custom_call.1} parent=1 // pred_check_branch
      %195 = sbr.rel target = $region101
    $region100: #{tpu_custom_call.1} parent=1 // pred_region
      %196 = sst [smem:[#allocation28]] [#allocation27]
      %197 = sst [smem:[#allocation29]] [#allocation26]
    $region101: #{tpu_custom_call.1} parent=1 // pred_fallthru
      _
    %199 = shalt.err (0)
    %s201 = sshll.u32 %s14, 4
    %s202 = int_to_ptr.hbm [resolvable:$true] %s201
    %s203 = sshll.u32 [#allocation2], 4
    %s204 = int_to_ptr.vmem [resolvable:$true] %s203
    %206 = dma.hbm_to_vmem [thread:$0]  %s202, 32768, %s204, [#allocation7]
    %s207 = scalar_lea.sflag [#allocation7], 1
    // Predicated region
    $region102: #{tpu_custom_call.1} parent=1 // pred_check
      _
    $region103: #{tpu_custom_call.1} parent=1 // pred_check_branch
      %209 = sbr.rel target = $region105
    $region104: #{tpu_custom_call.1} parent=1 // pred_region
      %210 = sst [smem:[#allocation28]] [#allocation31]
      %211 = sst [smem:[#allocation29]] [#allocation30]
    $region105: #{tpu_custom_call.1} parent=1 // pred_fallthru
      _
    %213 = shalt.err (0)
    %s215 = sshll.u32 %s15, 4
    %s216 = int_to_ptr.hbm [resolvable:$true] %s215
    %s217 = sshll.u32 [#allocation3], 4
    %s218 = int_to_ptr.vmem [resolvable:$true] %s217
    %220 = dma.hbm_to_vmem [thread:$0]  %s216, 32768, %s218, %s207
    %s221 = scalar_lea.sflag [#allocation7], 2
    // Predicated region
    $region106: #{tpu_custom_call.1} parent=1 // pred_check
      _
    $region107: #{tpu_custom_call.1} parent=1 // pred_check_branch
      %223 = sbr.rel target = $region109
    $region108: #{tpu_custom_call.1} parent=1 // pred_region
      %224 = sst [smem:[#allocation28]] [#allocation33]
      %225 = sst [smem:[#allocation29]] [#allocation32]
    $region109: #{tpu_custom_call.1} parent=1 // pred_fallthru
      _
    %227 = shalt.err (0)
    %s229 = sshll.u32 %s16, 4
    %s230 = int_to_ptr.hbm [resolvable:$true] %s229
    %s231 = sshll.u32 [#allocation4], 4
    %s232 = int_to_ptr.vmem [resolvable:$true] %s231
    %234 = dma.hbm_to_vmem [thread:$0]  %s230, 16384, %s232, %s221
    %s235 = scalar_lea.sflag [#allocation7], 3
    // Predicated region
    $region110: #{tpu_custom_call.1} parent=1 // pred_check
      _
    $region111: #{tpu_custom_call.1} parent=1 // pred_check_branch
      %237 = sbr.rel target = $region113
    $region112: #{tpu_custom_call.1} parent=1 // pred_region
      %238 = sst [smem:[#allocation28]] [#allocation35]
      %239 = sst [smem:[#allocation29]] [#allocation34]
    $region113: #{tpu_custom_call.1} parent=1 // pred_fallthru
      _
    %241 = shalt.err (0)
    %s243 = sshll.u32 %s17, 4
    %s244 = int_to_ptr.hbm [resolvable:$true] %s243
    %s245 = sshll.u32 [#allocation5], 4
    %s246 = int_to_ptr.vmem [resolvable:$true] %s245
    %248 = dma.hbm_to_vmem [thread:$0]  %s244, 16384, %s246, %s235
    %s249 = scalar_lea.sflag [#allocation7], 4
    // Predicated region
    $region114: #{tpu_custom_call.1} parent=1 // pred_check
      _
    $region115: #{tpu_custom_call.1} parent=1 // pred_check_branch
      %251 = sbr.rel target = $region117
    $region116: #{tpu_custom_call.1} parent=1 // pred_region
      %252 = sst [smem:[#allocation28]] [#allocation37]
      %253 = sst [smem:[#allocation29]] [#allocation36]
    $region117: #{tpu_custom_call.1} parent=1 // pred_fallthru
      _
    %255 = shalt.err (0)
    %s257 = sshll.u32 %s18, 4
    %s258 = int_to_ptr.hbm [resolvable:$true] %s257
    %s259 = sshll.u32 [#allocation6], 4
    %s260 = int_to_ptr.vmem [resolvable:$true] %s259
    %262 = dma.hbm_to_vmem [thread:$0]  %s258, 16384, %s260, %s249
    %v263 = vld [vmem:[%s0] sm:$0xf]
    %v264 = vld [vmem:[%s0 + $0x4] sm:$0xf]
    %v265 = vld [vmem:[%s0 + $0x8] sm:$0xf]
    %v266 = vld [vmem:[%s0 + $0xc] sm:$0xf]
    %v267 = vld [vmem:[%s0 + $0x10] sm:$0xf]
    %v268 = vld [vmem:[%s0 + $0x14] sm:$0xf]
    %v269 = vld [vmem:[%s0 + $0x18] sm:$0xf]
    %v270 = vld [vmem:[%s0 + $0x1c] sm:$0xf]
    %v271 = vld [vmem:[#allocation8] sm:$0x1]
    %v272 = vld [vmem:[#allocation11] sm:$0x1]
    %v274 = vperm.slane %v272, 0
    %v284 = vunpack.c.l.b16 %v263
    %v285 = vunpack.c.l.b16 %v264
    %v286 = vunpack.c.l.b16 %v265
    %v287 = vunpack.c.l.b16 %v266
    %v288 = vunpack.c.l.b16 %v267
    %v289 = vunpack.c.l.b16 %v268
    %v290 = vunpack.c.l.b16 %v269
    %v291 = vunpack.c.l.b16 %v270
    %v292 = vpack.c.b16 %v285, %v284
    %v293 = vpack.c.b16 %v287, %v286
    %v294 = vpack.c.b16 %v289, %v288
    %v295 = vpack.c.b16 %v291, %v290
    %vm296 = vcmask 15360
    %v298 = vsel %vm296, %v292, 0
    %v301 = vsel %vm296, %v293, 0
    %v304 = vsel %vm296, %v294, 0
    %v307 = vsel %vm296, %v295, 0
    %vm309 = vcmask 1040384
    %v311 = vsel %vm309, %v271, 0
    %313 = vmatpush.bf16.msra.mxu0 0
    %314 = vmatpush.bf16.msra.mxu0 0
    %315 = vmatpush.bf16.msra.mxu0 0
    %316 = vmatpush.bf16.msra.mxu0 0
    %317 = vmatpush.bf16.msra.mxu0 0
    %318 = vmatpush.bf16.msra.mxu0 0
    %319 = vmatpush.bf16.msra.mxu0 0
    %320 = vmatpush.bf16.msra.mxu0 %v311
    %321 = vmatmul.bf16.gmra.mxu0 %v298
    %v322 = vpop.f32.mrf.mxu0
    %v323 = vadd.f32 %v274, %v322
    %v324 = vpop.f32.mrf.mxu0
    %v325 = vadd.f32 %v274, %v324
    %326 = vmatmul.bf16.gmra.mxu0 %v301
    %v327 = vpop.f32.mrf.mxu0
    %v328 = vadd.f32 %v274, %v327
    %v329 = vpop.f32.mrf.mxu0
    %v330 = vadd.f32 %v274, %v329
    %331 = vmatmul.bf16.gmra.mxu0 %v304
    %v332 = vpop.f32.mrf.mxu0
    %v333 = vadd.f32 %v274, %v332
    %v334 = vpop.f32.mrf.mxu0
    %v335 = vadd.f32 %v274, %v334
    %336 = vmatmul.bf16.gmra.mxu0 %v307
    %v337 = vpop.f32.mrf.mxu0
    %v338 = vadd.f32 %v274, %v337
    %v339 = vpop.f32.mrf.mxu0
    %v340 = vadd.f32 %v274, %v339
    %341 = vdwg.mxu0
    %v342 = vmax.f32 %v323, 0.0
    %v343 = vmax.f32 %v325, 0.0
    %v344 = vmax.f32 %v328, 0.0
    %v345 = vmax.f32 %v330, 0.0
    %v346 = vmax.f32 %v333, 0.0
    %v347 = vmax.f32 %v335, 0.0
    %v348 = vmax.f32 %v338, 0.0
    %v349 = vmax.f32 %v340, 0.0
    %v350 = vpack.c.bf16 %v343, %v342
    %v351 = vpack.c.bf16 %v345, %v344
    %v352 = vpack.c.bf16 %v347, %v346
    %v353 = vpack.c.bf16 %v349, %v348
    %v354 = vld [vmem:[%s3] sm:$0xf]
    %v355 = vld [vmem:[%s3 + $0x4] sm:$0xf]
    %v356 = vld [vmem:[%s3 + $0x8] sm:$0xf]
    %v357 = vld [vmem:[%s3 + $0xc] sm:$0xf]
    %v358 = vld [vmem:[%s3 + $0x10] sm:$0xf]
    %v359 = vld [vmem:[%s3 + $0x14] sm:$0xf]
    %v360 = vld [vmem:[%s3 + $0x18] sm:$0xf]
    %v361 = vld [vmem:[%s3 + $0x1c] sm:$0xf]
    %v362 = vld [vmem:[#allocation13] sm:$0x1]
    %v364 = vperm.slane %v362, 0
    %v374 = vunpack.c.l.b16 %v354
    %v375 = vunpack.c.l.b16 %v355
    %v376 = vunpack.c.l.b16 %v356
    %v377 = vunpack.c.l.b16 %v357
    %v378 = vunpack.c.l.b16 %v358
    %v379 = vunpack.c.l.b16 %v359
    %v380 = vunpack.c.l.b16 %v360
    %v381 = vunpack.c.l.b16 %v361
    %v382 = vpack.c.b16 %v375, %v374
    %v383 = vpack.c.b16 %v377, %v376
    %v384 = vpack.c.b16 %v379, %v378
    %v385 = vpack.c.b16 %v381, %v380
    %vm390 = vcmask 523264
    %v392 = vsel %vm390, %v350, 0
    %v395 = vsel %vm390, %v351, 0
    %v398 = vsel %vm390, %v352, 0
    %v401 = vsel %vm390, %v353, 0
    %403 = vmatpush.bf16.msra.mxu0 0
    %404 = vmatpush.bf16.msra.mxu0 0
    %405 = vmatpush.bf16.msra.mxu0 0
    %406 = vmatpush.bf16.msra.mxu0 0
    %407 = vmatpush.bf16.msra.mxu0 %v385
    %408 = vmatpush.bf16.msra.mxu0 %v384
    %409 = vmatpush.bf16.msra.mxu0 %v383
    %410 = vmatpush.bf16.msra.mxu0 %v382
    %411 = vmatmul.bf16.gmra.mxu0 %v392
    %v412 = vpop.f32.mrf.mxu0
    %v413 = vadd.f32 %v364, %v412
    %v414 = vpop.f32.mrf.mxu0
    %v415 = vadd.f32 %v364, %v414
    %416 = vmatmul.bf16.gmra.mxu0 %v395
    %v417 = vpop.f32.mrf.mxu0
    %v418 = vadd.f32 %v364, %v417
    %v419 = vpop.f32.mrf.mxu0
    %v420 = vadd.f32 %v364, %v419
    %421 = vmatmul.bf16.gmra.mxu0 %v398
    %v422 = vpop.f32.mrf.mxu0
    %v423 = vadd.f32 %v364, %v422
    %v424 = vpop.f32.mrf.mxu0
    %v425 = vadd.f32 %v364, %v424
    %426 = vmatmul.bf16.gmra.mxu0 %v401
    %v427 = vpop.f32.mrf.mxu0
    %v428 = vadd.f32 %v364, %v427
    %v429 = vpop.f32.mrf.mxu0
    %v430 = vadd.f32 %v364, %v429
    %431 = vdwg.mxu0
    %v432 = vmax.f32 %v413, 0.0
    %v433 = vmax.f32 %v415, 0.0
    %v434 = vmax.f32 %v418, 0.0
    %v435 = vmax.f32 %v420, 0.0
    %v436 = vmax.f32 %v423, 0.0
    %v437 = vmax.f32 %v425, 0.0
    %v438 = vmax.f32 %v428, 0.0
    %v439 = vmax.f32 %v430, 0.0
    %v440 = vpack.c.bf16 %v433, %v432
    %v441 = vpack.c.bf16 %v435, %v434
    %v442 = vpack.c.bf16 %v437, %v436
    %v443 = vpack.c.bf16 %v439, %v438
    %v444 = vld [vmem:[#allocation14] sm:$0xff]
    %v445 = vld [vmem:[#allocation14 + $0x8] sm:$0xff]
    %v446 = vld [vmem:[#allocation14 + $0x10] sm:$0xff]
    %v447 = vld [vmem:[#allocation14 + $0x18] sm:$0xff]
    %v448 = vld [vmem:[#allocation14 + $0x20] sm:$0xff]
    %v449 = vld [vmem:[#allocation14 + $0x28] sm:$0xff]
    %v450 = vld [vmem:[#allocation14 + $0x30] sm:$0xff]
    %v451 = vld [vmem:[#allocation14 + $0x38] sm:$0xff]
    %v452 = vld [vmem:[#allocation14 + $0x40] sm:$0xff]
    %v453 = vld [vmem:[#allocation14 + $0x48] sm:$0xff]
    %v454 = vld [vmem:[#allocation14 + $0x50] sm:$0xff]
    %v455 = vld [vmem:[#allocation14 + $0x58] sm:$0xff]
    %v456 = vld [vmem:[#allocation14 + $0x60] sm:$0xff]
    %v457 = vld [vmem:[#allocation14 + $0x68] sm:$0xff]
    %v458 = vld [vmem:[#allocation14 + $0x70] sm:$0xff]
    %v459 = vld [vmem:[#allocation14 + $0x78] sm:$0xff]
    %v460 = vld [vmem:[#allocation16] sm:$0x3]
    %v462 = vperm.slane %v460, 0
    %v463 = vperm.slane %v460, 1
    %v482 = vunpack.c.l.b16 %v444
    %v483 = vunpack.c.h.b16 %v444
    %v484 = vunpack.c.l.b16 %v445
    %v485 = vunpack.c.h.b16 %v445
    %v486 = vunpack.c.l.b16 %v446
    %v487 = vunpack.c.h.b16 %v446
    %v488 = vunpack.c.l.b16 %v447
    %v489 = vunpack.c.h.b16 %v447
    %v490 = vunpack.c.l.b16 %v448
    %v491 = vunpack.c.h.b16 %v448
    %v492 = vunpack.c.l.b16 %v449
    %v493 = vunpack.c.h.b16 %v449
    %v494 = vunpack.c.l.b16 %v450
    %v495 = vunpack.c.h.b16 %v450
    %v496 = vunpack.c.l.b16 %v451
    %v497 = vunpack.c.h.b16 %v451
    %v498 = vunpack.c.l.b16 %v452
    %v499 = vunpack.c.h.b16 %v452
    %v500 = vunpack.c.l.b16 %v453
    %v501 = vunpack.c.h.b16 %v453
    %v502 = vunpack.c.l.b16 %v454
    %v503 = vunpack.c.h.b16 %v454
    %v504 = vunpack.c.l.b16 %v455
    %v505 = vunpack.c.h.b16 %v455
    %v506 = vunpack.c.l.b16 %v456
    %v507 = vunpack.c.h.b16 %v456
    %v508 = vunpack.c.l.b16 %v457
    %v509 = vunpack.c.h.b16 %v457
    %v510 = vunpack.c.l.b16 %v458
    %v511 = vunpack.c.h.b16 %v458
    %v512 = vunpack.c.l.b16 %v459
    %v513 = vunpack.c.h.b16 %v459
    %v514 = vpack.c.b16 %v484, %v482
    %v515 = vpack.c.b16 %v485, %v483
    %v516 = vpack.c.b16 %v488, %v486
    %v517 = vpack.c.b16 %v489, %v487
    %v518 = vpack.c.b16 %v492, %v490
    %v519 = vpack.c.b16 %v493, %v491
    %v520 = vpack.c.b16 %v496, %v494
    %v521 = vpack.c.b16 %v497, %v495
    %v522 = vpack.c.b16 %v500, %v498
    %v523 = vpack.c.b16 %v501, %v499
    %v524 = vpack.c.b16 %v504, %v502
    %v525 = vpack.c.b16 %v505, %v503
    %v526 = vpack.c.b16 %v508, %v506
    %v527 = vpack.c.b16 %v509, %v507
    %v528 = vpack.c.b16 %v512, %v510
    %v529 = vpack.c.b16 %v513, %v511
    %546 = vmatpush.bf16.msra.mxu0 %v528
    %547 = vmatpush.bf16.msra.mxu0 %v526
    %548 = vmatpush.bf16.msra.mxu0 %v524
    %549 = vmatpush.bf16.msra.mxu0 %v522
    %550 = vmatpush.bf16.msra.mxu0 %v520
    %551 = vmatpush.bf16.msra.mxu0 %v518
    %552 = vmatpush.bf16.msra.mxu0 %v516
    %553 = vmatpush.bf16.msra.mxu0 %v514
    %554 = vmatmul.bf16.gmra.mxu0 %v440
    %v555 = vpop.f32.mrf.mxu0
    %v556 = vadd.f32 %v462, %v555
    %v557 = vpop.f32.mrf.mxu0
    %v558 = vadd.f32 %v462, %v557
    %559 = vmatmul.bf16.gmra.mxu0 %v441
    %v560 = vpop.f32.mrf.mxu0
    %v561 = vadd.f32 %v462, %v560
    %v562 = vpop.f32.mrf.mxu0
    %v563 = vadd.f32 %v462, %v562
    %564 = vmatmul.bf16.gmra.mxu0 %v442
    %v565 = vpop.f32.mrf.mxu0
    %v566 = vadd.f32 %v462, %v565
    %v567 = vpop.f32.mrf.mxu0
    %v568 = vadd.f32 %v462, %v567
    %569 = vmatmul.bf16.gmra.mxu0 %v443
    %v570 = vpop.f32.mrf.mxu0
    %v571 = vadd.f32 %v462, %v570
    %v572 = vpop.f32.mrf.mxu0
    %v573 = vadd.f32 %v462, %v572
    %574 = vdwg.mxu0
    %575 = vmatpush.bf16.msra.mxu0 %v529
    %576 = vmatpush.bf16.msra.mxu0 %v527
    %577 = vmatpush.bf16.msra.mxu0 %v525
    %578 = vmatpush.bf16.msra.mxu0 %v523
    %579 = vmatpush.bf16.msra.mxu0 %v521
    %580 = vmatpush.bf16.msra.mxu0 %v519
    %581 = vmatpush.bf16.msra.mxu0 %v517
    %582 = vmatpush.bf16.msra.mxu0 %v515
    %583 = vmatmul.bf16.gmra.mxu0 %v440
    %v584 = vpop.f32.mrf.mxu0
    %v585 = vadd.f32 %v463, %v584
    %v586 = vpop.f32.mrf.mxu0
    %v587 = vadd.f32 %v463, %v586
    %588 = vmatmul.bf16.gmra.mxu0 %v441
    %v589 = vpop.f32.mrf.mxu0
    %v590 = vadd.f32 %v463, %v589
    %v591 = vpop.f32.mrf.mxu0
    %v592 = vadd.f32 %v463, %v591
    %593 = vmatmul.bf16.gmra.mxu0 %v442
    %v594 = vpop.f32.mrf.mxu0
    %v595 = vadd.f32 %v463, %v594
    %v596 = vpop.f32.mrf.mxu0
    %v597 = vadd.f32 %v463, %v596
    %598 = vmatmul.bf16.gmra.mxu0 %v443
    %v599 = vpop.f32.mrf.mxu0
    %v600 = vadd.f32 %v463, %v599
    %v601 = vpop.f32.mrf.mxu0
    %v602 = vadd.f32 %v463, %v601
    %603 = vdwg.mxu0
    %v604 = vmax.f32 %v556, 0.0
    %v605 = vmax.f32 %v585, 0.0
    %v606 = vmax.f32 %v558, 0.0
    %v607 = vmax.f32 %v587, 0.0
    %v608 = vmax.f32 %v561, 0.0
    %v609 = vmax.f32 %v590, 0.0
    %v610 = vmax.f32 %v563, 0.0
    %v611 = vmax.f32 %v592, 0.0
    %v612 = vmax.f32 %v566, 0.0
    %v613 = vmax.f32 %v595, 0.0
    %v614 = vmax.f32 %v568, 0.0
    %v615 = vmax.f32 %v597, 0.0
    %v616 = vmax.f32 %v571, 0.0
    %v617 = vmax.f32 %v600, 0.0
    %v618 = vmax.f32 %v573, 0.0
    %v619 = vmax.f32 %v602, 0.0
    %v620 = vpack.c.bf16 %v606, %v604
    %v621 = vpack.c.bf16 %v607, %v605
    %v622 = vpack.c.bf16 %v610, %v608
    %v623 = vpack.c.bf16 %v611, %v609
    %v624 = vpack.c.bf16 %v614, %v612
    %v625 = vpack.c.bf16 %v615, %v613
    %v626 = vpack.c.bf16 %v618, %v616
    %v627 = vpack.c.bf16 %v619, %v617
    %v628 = vld [vmem:[#allocation17] sm:$0xff]
    %v629 = vld [vmem:[#allocation17 + $0x8] sm:$0xff]
    %v630 = vld [vmem:[#allocation17 + $0x10] sm:$0xff]
    %v631 = vld [vmem:[#allocation17 + $0x18] sm:$0xff]
    %v632 = vld [vmem:[#allocation17 + $0x20] sm:$0xff]
    %v633 = vld [vmem:[#allocation17 + $0x28] sm:$0xff]
    %v634 = vld [vmem:[#allocation17 + $0x30] sm:$0xff]
    %v635 = vld [vmem:[#allocation17 + $0x38] sm:$0xff]
    %v636 = vld [vmem:[#allocation17 + $0x40] sm:$0xff]
    %v637 = vld [vmem:[#allocation17 + $0x48] sm:$0xff]
    %v638 = vld [vmem:[#allocation17 + $0x50] sm:$0xff]
    %v639 = vld [vmem:[#allocation17 + $0x58] sm:$0xff]
    %v640 = vld [vmem:[#allocation17 + $0x60] sm:$0xff]
    %v641 = vld [vmem:[#allocation17 + $0x68] sm:$0xff]
    %v642 = vld [vmem:[#allocation17 + $0x70] sm:$0xff]
    %v643 = vld [vmem:[#allocation17 + $0x78] sm:$0xff]
    %v644 = vld [vmem:[#allocation17 + $0x80] sm:$0xff]
    %v645 = vld [vmem:[#allocation17 + $0x88] sm:$0xff]
    %v646 = vld [vmem:[#allocation17 + $0x90] sm:$0xff]
    %v647 = vld [vmem:[#allocation17 + $0x98] sm:$0xff]
    %v648 = vld [vmem:[#allocation17 + $0xa0] sm:$0xff]
    %v649 = vld [vmem:[#allocation17 + $0xa8] sm:$0xff]
    %v650 = vld [vmem:[#allocation17 + $0xb0] sm:$0xff]
    %v651 = vld [vmem:[#allocation17 + $0xb8] sm:$0xff]
    %v652 = vld [vmem:[#allocation17 + $0xc0] sm:$0xff]
    %v653 = vld [vmem:[#allocation17 + $0xc8] sm:$0xff]
    %v654 = vld [vmem:[#allocation17 + $0xd0] sm:$0xff]
    %v655 = vld [vmem:[#allocation17 + $0xd8] sm:$0xff]
    %v656 = vld [vmem:[#allocation17 + $0xe0] sm:$0xff]
    %v657 = vld [vmem:[#allocation17 + $0xe8] sm:$0xff]
    %v658 = vld [vmem:[#allocation17 + $0xf0] sm:$0xff]
    %v659 = vld [vmem:[#allocation17 + $0xf8] sm:$0xff]
    %v660 = vld [vmem:[#allocation17 + $0x100] sm:$0xff]
    %v661 = vld [vmem:[#allocation17 + $0x108] sm:$0xff]
    %v662 = vld [vmem:[#allocation17 + $0x110] sm:$0xff]
    %v663 = vld [vmem:[#allocation17 + $0x118] sm:$0xff]
    %v664 = vld [vmem:[#allocation17 + $0x120] sm:$0xff]
    %v665 = vld [vmem:[#allocation17 + $0x128] sm:$0xff]
    %v666 = vld [vmem:[#allocation17 + $0x130] sm:$0xff]
    %v667 = vld [vmem:[#allocation17 + $0x138] sm:$0xff]
    %v668 = vld [vmem:[#allocation17 + $0x140] sm:$0xff]
    %v669 = vld [vmem:[#allocation17 + $0x148] sm:$0xff]
    %v670 = vld [vmem:[#allocation17 + $0x150] sm:$0xff]
    %v671 = vld [vmem:[#allocation17 + $0x158] sm:$0xff]
    %v672 = vld [vmem:[#allocation17 + $0x160] sm:$0xff]
    %v673 = vld [vmem:[#allocation17 + $0x168] sm:$0xff]
    %v674 = vld [vmem:[#allocation17 + $0x170] sm:$0xff]
    %v675 = vld [vmem:[#allocation17 + $0x178] sm:$0xff]
    %v676 = vld [vmem:[#allocation17 + $0x180] sm:$0xff]
    %v677 = vld [vmem:[#allocation17 + $0x188] sm:$0xff]
    %v678 = vld [vmem:[#allocation17 + $0x190] sm:$0xff]
    %v679 = vld [vmem:[#allocation17 + $0x198] sm:$0xff]
    %v680 = vld [vmem:[#allocation17 + $0x1a0] sm:$0xff]
    %v681 = vld [vmem:[#allocation17 + $0x1a8] sm:$0xff]
    %v682 = vld [vmem:[#allocation17 + $0x1b0] sm:$0xff]
    %v683 = vld [vmem:[#allocation17 + $0x1b8] sm:$0xff]
    %v684 = vld [vmem:[#allocation17 + $0x1c0] sm:$0xff]
    %v685 = vld [vmem:[#allocation17 + $0x1c8] sm:$0xff]
    %v686 = vld [vmem:[#allocation17 + $0x1d0] sm:$0xff]
    %v687 = vld [vmem:[#allocation17 + $0x1d8] sm:$0xff]
    %v688 = vld [vmem:[#allocation17 + $0x1e0] sm:$0xff]
    %v689 = vld [vmem:[#allocation17 + $0x1e8] sm:$0xff]
    %v690 = vld [vmem:[#allocation17 + $0x1f0] sm:$0xff]
    %v691 = vld [vmem:[#allocation17 + $0x1f8] sm:$0xff]
    %v692 = vld [vmem:[#allocation19] sm:$0xf]
    %v694 = vperm.slane %v692, 0
    %v695 = vperm.slane %v692, 1
    %v696 = vperm.slane %v692, 2
    %v697 = vperm.slane %v692, 3
    %v766 = vunpack.c.l.b16 %v628
    %v767 = vunpack.c.h.b16 %v628
    %v768 = vunpack.c.l.b16 %v629
    %v769 = vunpack.c.h.b16 %v629
    %v770 = vunpack.c.l.b16 %v630
    %v771 = vunpack.c.h.b16 %v630
    %v772 = vunpack.c.l.b16 %v631
    %v773 = vunpack.c.h.b16 %v631
    %v774 = vunpack.c.l.b16 %v632
    %v775 = vunpack.c.h.b16 %v632
    %v776 = vunpack.c.l.b16 %v633
    %v777 = vunpack.c.h.b16 %v633
    %v778 = vunpack.c.l.b16 %v634
    %v779 = vunpack.c.h.b16 %v634
    %v780 = vunpack.c.l.b16 %v635
    %v781 = vunpack.c.h.b16 %v635
    %v782 = vunpack.c.l.b16 %v636
    %v783 = vunpack.c.h.b16 %v636
    %v784 = vunpack.c.l.b16 %v637
    %v785 = vunpack.c.h.b16 %v637
    %v786 = vunpack.c.l.b16 %v638
    %v787 = vunpack.c.h.b16 %v638
    %v788 = vunpack.c.l.b16 %v639
    %v789 = vunpack.c.h.b16 %v639
    %v790 = vunpack.c.l.b16 %v640
    %v791 = vunpack.c.h.b16 %v640
    %v792 = vunpack.c.l.b16 %v641
    %v793 = vunpack.c.h.b16 %v641
    %v794 = vunpack.c.l.b16 %v642
    %v795 = vunpack.c.h.b16 %v642
    %v796 = vunpack.c.l.b16 %v643
    %v797 = vunpack.c.h.b16 %v643
    %v798 = vunpack.c.l.b16 %v644
    %v799 = vunpack.c.h.b16 %v644
    %v800 = vunpack.c.l.b16 %v645
    %v801 = vunpack.c.h.b16 %v645
    %v802 = vunpack.c.l.b16 %v646
    %v803 = vunpack.c.h.b16 %v646
    %v804 = vunpack.c.l.b16 %v647
    %v805 = vunpack.c.h.b16 %v647
    %v806 = vunpack.c.l.b16 %v648
    %v807 = vunpack.c.h.b16 %v648
    %v808 = vunpack.c.l.b16 %v649
    %v809 = vunpack.c.h.b16 %v649
    %v810 = vunpack.c.l.b16 %v650
    %v811 = vunpack.c.h.b16 %v650
    %v812 = vunpack.c.l.b16 %v651
    %v813 = vunpack.c.h.b16 %v651
    %v814 = vunpack.c.l.b16 %v652
    %v815 = vunpack.c.h.b16 %v652
    %v816 = vunpack.c.l.b16 %v653
    %v817 = vunpack.c.h.b16 %v653
    %v818 = vunpack.c.l.b16 %v654
    %v819 = vunpack.c.h.b16 %v654
    %v820 = vunpack.c.l.b16 %v655
    %v821 = vunpack.c.h.b16 %v655
    %v822 = vunpack.c.l.b16 %v656
    %v823 = vunpack.c.h.b16 %v656
    %v824 = vunpack.c.l.b16 %v657
    %v825 = vunpack.c.h.b16 %v657
    %v826 = vunpack.c.l.b16 %v658
    %v827 = vunpack.c.h.b16 %v658
    %v828 = vunpack.c.l.b16 %v659
    %v829 = vunpack.c.h.b16 %v659
    %v830 = vunpack.c.l.b16 %v660
    %v831 = vunpack.c.h.b16 %v660
    %v832 = vunpack.c.l.b16 %v661
    %v833 = vunpack.c.h.b16 %v661
    %v834 = vunpack.c.l.b16 %v662
    %v835 = vunpack.c.h.b16 %v662
    %v836 = vunpack.c.l.b16 %v663
    %v837 = vunpack.c.h.b16 %v663
    %v838 = vunpack.c.l.b16 %v664
    %v839 = vunpack.c.h.b16 %v664
    %v840 = vunpack.c.l.b16 %v665
    %v841 = vunpack.c.h.b16 %v665
    %v842 = vunpack.c.l.b16 %v666
    %v843 = vunpack.c.h.b16 %v666
    %v844 = vunpack.c.l.b16 %v667
    %v845 = vunpack.c.h.b16 %v667
    %v846 = vunpack.c.l.b16 %v668
    %v847 = vunpack.c.h.b16 %v668
    %v848 = vunpack.c.l.b16 %v669
    %v849 = vunpack.c.h.b16 %v669
    %v850 = vunpack.c.l.b16 %v670
    %v851 = vunpack.c.h.b16 %v670
    %v852 = vunpack.c.l.b16 %v671
    %v853 = vunpack.c.h.b16 %v671
    %v854 = vunpack.c.l.b16 %v672
    %v855 = vunpack.c.h.b16 %v672
    %v856 = vunpack.c.l.b16 %v673
    %v857 = vunpack.c.h.b16 %v673
    %v858 = vunpack.c.l.b16 %v674
    %v859 = vunpack.c.h.b16 %v674
    %v860 = vunpack.c.l.b16 %v675
    %v861 = vunpack.c.h.b16 %v675
    %v862 = vunpack.c.l.b16 %v676
    %v863 = vunpack.c.h.b16 %v676
    %v864 = vunpack.c.l.b16 %v677
    %v865 = vunpack.c.h.b16 %v677
    %v866 = vunpack.c.l.b16 %v678
    %v867 = vunpack.c.h.b16 %v678
    %v868 = vunpack.c.l.b16 %v679
    %v869 = vunpack.c.h.b16 %v679
    %v870 = vunpack.c.l.b16 %v680
    %v871 = vunpack.c.h.b16 %v680
    %v872 = vunpack.c.l.b16 %v681
    %v873 = vunpack.c.h.b16 %v681
    %v874 = vunpack.c.l.b16 %v682
    %v875 = vunpack.c.h.b16 %v682
    %v876 = vunpack.c.l.b16 %v683
    %v877 = vunpack.c.h.b16 %v683
    %v878 = vunpack.c.l.b16 %v684
    %v879 = vunpack.c.h.b16 %v684
    %v880 = vunpack.c.l.b16 %v685
    %v881 = vunpack.c.h.b16 %v685
    %v882 = vunpack.c.l.b16 %v686
    %v883 = vunpack.c.h.b16 %v686
    %v884 = vunpack.c.l.b16 %v687
    %v885 = vunpack.c.h.b16 %v687
    %v886 = vunpack.c.l.b16 %v688
    %v887 = vunpack.c.h.b16 %v688
    %v888 = vunpack.c.l.b16 %v689
    %v889 = vunpack.c.h.b16 %v689
    %v890 = vunpack.c.l.b16 %v690
    %v891 = vunpack.c.h.b16 %v690
    %v892 = vunpack.c.l.b16 %v691
    %v893 = vunpack.c.h.b16 %v691
    %v894 = vpack.c.b16 %v770, %v766
    %v895 = vpack.c.b16 %v771, %v767
    %v896 = vpack.c.b16 %v772, %v768
    %v897 = vpack.c.b16 %v773, %v769
    %v898 = vpack.c.b16 %v778, %v774
    %v899 = vpack.c.b16 %v779, %v775
    %v900 = vpack.c.b16 %v780, %v776
    %v901 = vpack.c.b16 %v781, %v777
    %v902 = vpack.c.b16 %v786, %v782
    %v903 = vpack.c.b16 %v787, %v783
    %v904 = vpack.c.b16 %v788, %v784
    %v905 = vpack.c.b16 %v789, %v785
    %v906 = vpack.c.b16 %v794, %v790
    %v907 = vpack.c.b16 %v795, %v791
    %v908 = vpack.c.b16 %v796, %v792
    %v909 = vpack.c.b16 %v797, %v793
    %v910 = vpack.c.b16 %v802, %v798
    %v911 = vpack.c.b16 %v803, %v799
    %v912 = vpack.c.b16 %v804, %v800
    %v913 = vpack.c.b16 %v805, %v801
    %v914 = vpack.c.b16 %v810, %v806
    %v915 = vpack.c.b16 %v811, %v807
    %v916 = vpack.c.b16 %v812, %v808
    %v917 = vpack.c.b16 %v813, %v809
    %v918 = vpack.c.b16 %v818, %v814
    %v919 = vpack.c.b16 %v819, %v815
    %v920 = vpack.c.b16 %v820, %v816
    %v921 = vpack.c.b16 %v821, %v817
    %v922 = vpack.c.b16 %v826, %v822
    %v923 = vpack.c.b16 %v827, %v823
    %v924 = vpack.c.b16 %v828, %v824
    %v925 = vpack.c.b16 %v829, %v825
    %v926 = vpack.c.b16 %v834, %v830
    %v927 = vpack.c.b16 %v835, %v831
    %v928 = vpack.c.b16 %v836, %v832
    %v929 = vpack.c.b16 %v837, %v833
    %v930 = vpack.c.b16 %v842, %v838
    %v931 = vpack.c.b16 %v843, %v839
    %v932 = vpack.c.b16 %v844, %v840
    %v933 = vpack.c.b16 %v845, %v841
    %v934 = vpack.c.b16 %v850, %v846
    %v935 = vpack.c.b16 %v851, %v847
    %v936 = vpack.c.b16 %v852, %v848
    %v937 = vpack.c.b16 %v853, %v849
    %v938 = vpack.c.b16 %v858, %v854
    %v939 = vpack.c.b16 %v859, %v855
    %v940 = vpack.c.b16 %v860, %v856
    %v941 = vpack.c.b16 %v861, %v857
    %v942 = vpack.c.b16 %v866, %v862
    %v943 = vpack.c.b16 %v867, %v863
    %v944 = vpack.c.b16 %v868, %v864
    %v945 = vpack.c.b16 %v869, %v865
    %v946 = vpack.c.b16 %v874, %v870
    %v947 = vpack.c.b16 %v875, %v871
    %v948 = vpack.c.b16 %v876, %v872
    %v949 = vpack.c.b16 %v877, %v873
    %v950 = vpack.c.b16 %v882, %v878
    %v951 = vpack.c.b16 %v883, %v879
    %v952 = vpack.c.b16 %v884, %v880
    %v953 = vpack.c.b16 %v885, %v881
    %v954 = vpack.c.b16 %v890, %v886
    %v955 = vpack.c.b16 %v891, %v887
    %v956 = vpack.c.b16 %v892, %v888
    %v957 = vpack.c.b16 %v893, %v889
    %1022 = vmatpush.bf16.msra.mxu0 %v922
    %1023 = vmatpush.bf16.msra.mxu0 %v918
    %1024 = vmatpush.bf16.msra.mxu0 %v914
    %1025 = vmatpush.bf16.msra.mxu0 %v910
    %1026 = vmatpush.bf16.msra.mxu0 %v906
    %1027 = vmatpush.bf16.msra.mxu0 %v902
    %1028 = vmatpush.bf16.msra.mxu0 %v898
    %1029 = vmatpush.bf16.msra.mxu0 %v894
    %1030 = vmatmul.bf16.gmra.mxu0 %v620
    %v1031 = vpop.f32.mrf.mxu0
    %v1032 = vadd.f32 %v694, %v1031
    %v1033 = vpop.f32.mrf.mxu0
    %v1034 = vadd.f32 %v694, %v1033
    %1035 = vmatmul.bf16.gmra.mxu0 %v622
    %v1036 = vpop.f32.mrf.mxu0
    %v1037 = vadd.f32 %v694, %v1036
    %v1038 = vpop.f32.mrf.mxu0
    %v1039 = vadd.f32 %v694, %v1038
    %1040 = vmatmul.bf16.gmra.mxu0 %v624
    %v1041 = vpop.f32.mrf.mxu0
    %v1042 = vadd.f32 %v694, %v1041
    %v1043 = vpop.f32.mrf.mxu0
    %v1044 = vadd.f32 %v694, %v1043
    %1045 = vmatmul.bf16.gmra.mxu0 %v626
    %v1046 = vpop.f32.mrf.mxu0
    %v1047 = vadd.f32 %v694, %v1046
    %v1048 = vpop.f32.mrf.mxu0
    %v1049 = vadd.f32 %v694, %v1048
    %1050 = vdwg.mxu0
    %1051 = vmatpush.bf16.msra.mxu0 %v954
    %1052 = vmatpush.bf16.msra.mxu0 %v950
    %1053 = vmatpush.bf16.msra.mxu0 %v946
    %1054 = vmatpush.bf16.msra.mxu0 %v942
    %1055 = vmatpush.bf16.msra.mxu0 %v938
    %1056 = vmatpush.bf16.msra.mxu0 %v934
    %1057 = vmatpush.bf16.msra.mxu0 %v930
    %1058 = vmatpush.bf16.msra.mxu0 %v926
    %1059 = vmatmul.bf16.gmra.mxu0 %v621
    %v1060 = vpop.f32.mrf.mxu0
    %v1061 = vadd.f32 %v1032, %v1060
    %v1062 = vpop.f32.mrf.mxu0
    %v1063 = vadd.f32 %v1034, %v1062
    %1064 = vmatmul.bf16.gmra.mxu0 %v623
    %v1065 = vpop.f32.mrf.mxu0
    %v1066 = vadd.f32 %v1037, %v1065
    %v1067 = vpop.f32.mrf.mxu0
    %v1068 = vadd.f32 %v1039, %v1067
    %1069 = vmatmul.bf16.gmra.mxu0 %v625
    %v1070 = vpop.f32.mrf.mxu0
    %v1071 = vadd.f32 %v1042, %v1070
    %v1072 = vpop.f32.mrf.mxu0
    %v1073 = vadd.f32 %v1044, %v1072
    %1074 = vmatmul.bf16.gmra.mxu0 %v627
    %v1075 = vpop.f32.mrf.mxu0
    %v1076 = vadd.f32 %v1047, %v1075
    %v1077 = vpop.f32.mrf.mxu0
    %v1078 = vadd.f32 %v1049, %v1077
    %1079 = vdwg.mxu0
    %1080 = vmatpush.bf16.msra.mxu0 %v923
    %1081 = vmatpush.bf16.msra.mxu0 %v919
    %1082 = vmatpush.bf16.msra.mxu0 %v915
    %1083 = vmatpush.bf16.msra.mxu0 %v911
    %1084 = vmatpush.bf16.msra.mxu0 %v907
    %1085 = vmatpush.bf16.msra.mxu0 %v903
    %1086 = vmatpush.bf16.msra.mxu0 %v899
    %1087 = vmatpush.bf16.msra.mxu0 %v895
    %1088 = vmatmul.bf16.gmra.mxu0 %v620
    %v1089 = vpop.f32.mrf.mxu0
    %v1090 = vadd.f32 %v695, %v1089
    %v1091 = vpop.f32.mrf.mxu0
    %v1092 = vadd.f32 %v695, %v1091
    %1093 = vmatmul.bf16.gmra.mxu0 %v622
    %v1094 = vpop.f32.mrf.mxu0
    %v1095 = vadd.f32 %v695, %v1094
    %v1096 = vpop.f32.mrf.mxu0
    %v1097 = vadd.f32 %v695, %v1096
    %1098 = vmatmul.bf16.gmra.mxu0 %v624
    %v1099 = vpop.f32.mrf.mxu0
    %v1100 = vadd.f32 %v695, %v1099
    %v1101 = vpop.f32.mrf.mxu0
    %v1102 = vadd.f32 %v695, %v1101
    %1103 = vmatmul.bf16.gmra.mxu0 %v626
    %v1104 = vpop.f32.mrf.mxu0
    %v1105 = vadd.f32 %v695, %v1104
    %v1106 = vpop.f32.mrf.mxu0
    %v1107 = vadd.f32 %v695, %v1106
    %1108 = vdwg.mxu0
    %1109 = vmatpush.bf16.msra.mxu0 %v955
    %1110 = vmatpush.bf16.msra.mxu0 %v951
    %1111 = vmatpush.bf16.msra.mxu0 %v947
    %1112 = vmatpush.bf16.msra.mxu0 %v943
    %1113 = vmatpush.bf16.msra.mxu0 %v939
    %1114 = vmatpush.bf16.msra.mxu0 %v935
    %1115 = vmatpush.bf16.msra.mxu0 %v931
    %1116 = vmatpush.bf16.msra.mxu0 %v927
    %1117 = vmatmul.bf16.gmra.mxu0 %v621
    %v1118 = vpop.f32.mrf.mxu0
    %v1119 = vadd.f32 %v1090, %v1118
    %v1120 = vpop.f32.mrf.mxu0
    %v1121 = vadd.f32 %v1092, %v1120
    %1122 = vmatmul.bf16.gmra.mxu0 %v623
    %v1123 = vpop.f32.mrf.mxu0
    %v1124 = vadd.f32 %v1095, %v1123
    %v1125 = vpop.f32.mrf.mxu0
    %v1126 = vadd.f32 %v1097, %v1125
    %1127 = vmatmul.bf16.gmra.mxu0 %v625
    %v1128 = vpop.f32.mrf.mxu0
    %v1129 = vadd.f32 %v1100, %v1128
    %v1130 = vpop.f32.mrf.mxu0
    %v1131 = vadd.f32 %v1102, %v1130
    %1132 = vmatmul.bf16.gmra.mxu0 %v627
    %v1133 = vpop.f32.mrf.mxu0
    %v1134 = vadd.f32 %v1105, %v1133
    %v1135 = vpop.f32.mrf.mxu0
    %v1136 = vadd.f32 %v1107, %v1135
    %1137 = vdwg.mxu0
    %1138 = vmatpush.bf16.msra.mxu0 %v924
    %1139 = vmatpush.bf16.msra.mxu0 %v920
    %1140 = vmatpush.bf16.msra.mxu0 %v916
    %1141 = vmatpush.bf16.msra.mxu0 %v912
    %1142 = vmatpush.bf16.msra.mxu0 %v908
    %1143 = vmatpush.bf16.msra.mxu0 %v904
    %1144 = vmatpush.bf16.msra.mxu0 %v900
    %1145 = vmatpush.bf16.msra.mxu0 %v896
    %1146 = vmatmul.bf16.gmra.mxu0 %v620
    %v1147 = vpop.f32.mrf.mxu0
    %v1148 = vadd.f32 %v696, %v1147
    %v1149 = vpop.f32.mrf.mxu0
    %v1150 = vadd.f32 %v696, %v1149
    %1151 = vmatmul.bf16.gmra.mxu0 %v622
    %v1152 = vpop.f32.mrf.mxu0
    %v1153 = vadd.f32 %v696, %v1152
    %v1154 = vpop.f32.mrf.mxu0
    %v1155 = vadd.f32 %v696, %v1154
    %1156 = vmatmul.bf16.gmra.mxu0 %v624
    %v1157 = vpop.f32.mrf.mxu0
    %v1158 = vadd.f32 %v696, %v1157
    %v1159 = vpop.f32.mrf.mxu0
    %v1160 = vadd.f32 %v696, %v1159
    %1161 = vmatmul.bf16.gmra.mxu0 %v626
    %v1162 = vpop.f32.mrf.mxu0
    %v1163 = vadd.f32 %v696, %v1162
    %v1164 = vpop.f32.mrf.mxu0
    %v1165 = vadd.f32 %v696, %v1164
    %1166 = vdwg.mxu0
    %1167 = vmatpush.bf16.msra.mxu0 %v956
    %1168 = vmatpush.bf16.msra.mxu0 %v952
    %1169 = vmatpush.bf16.msra.mxu0 %v948
    %1170 = vmatpush.bf16.msra.mxu0 %v944
    %1171 = vmatpush.bf16.msra.mxu0 %v940
    %1172 = vmatpush.bf16.msra.mxu0 %v936
    %1173 = vmatpush.bf16.msra.mxu0 %v932
    %1174 = vmatpush.bf16.msra.mxu0 %v928
    %1175 = vmatmul.bf16.gmra.mxu0 %v621
    %v1176 = vpop.f32.mrf.mxu0
    %v1177 = vadd.f32 %v1148, %v1176
    %v1178 = vpop.f32.mrf.mxu0
    %v1179 = vadd.f32 %v1150, %v1178
    %1180 = vmatmul.bf16.gmra.mxu0 %v623
    %v1181 = vpop.f32.mrf.mxu0
    %v1182 = vadd.f32 %v1153, %v1181
    %v1183 = vpop.f32.mrf.mxu0
    %v1184 = vadd.f32 %v1155, %v1183
    %1185 = vmatmul.bf16.gmra.mxu0 %v625
    %v1186 = vpop.f32.mrf.mxu0
    %v1187 = vadd.f32 %v1158, %v1186
    %v1188 = vpop.f32.mrf.mxu0
    %v1189 = vadd.f32 %v1160, %v1188
    %1190 = vmatmul.bf16.gmra.mxu0 %v627
    %v1191 = vpop.f32.mrf.mxu0
    %v1192 = vadd.f32 %v1163, %v1191
    %v1193 = vpop.f32.mrf.mxu0
    %v1194 = vadd.f32 %v1165, %v1193
    %1195 = vdwg.mxu0
    %1196 = vmatpush.bf16.msra.mxu0 %v925
    %1197 = vmatpush.bf16.msra.mxu0 %v921
    %1198 = vmatpush.bf16.msra.mxu0 %v917
    %1199 = vmatpush.bf16.msra.mxu0 %v913
    %1200 = vmatpush.bf16.msra.mxu0 %v909
    %1201 = vmatpush.bf16.msra.mxu0 %v905
    %1202 = vmatpush.bf16.msra.mxu0 %v901
    %1203 = vmatpush.bf16.msra.mxu0 %v897
    %1204 = vmatmul.bf16.gmra.mxu0 %v620
    %v1205 = vpop.f32.mrf.mxu0
    %v1206 = vadd.f32 %v697, %v1205
    %v1207 = vpop.f32.mrf.mxu0
    %v1208 = vadd.f32 %v697, %v1207
    %1209 = vmatmul.bf16.gmra.mxu0 %v622
    %v1210 = vpop.f32.mrf.mxu0
    %v1211 = vadd.f32 %v697, %v1210
    %v1212 = vpop.f32.mrf.mxu0
    %v1213 = vadd.f32 %v697, %v1212
    %1214 = vmatmul.bf16.gmra.mxu0 %v624
    %v1215 = vpop.f32.mrf.mxu0
    %v1216 = vadd.f32 %v697, %v1215
    %v1217 = vpop.f32.mrf.mxu0
    %v1218 = vadd.f32 %v697, %v1217
    %1219 = vmatmul.bf16.gmra.mxu0 %v626
    %v1220 = vpop.f32.mrf.mxu0
    %v1221 = vadd.f32 %v697, %v1220
    %v1222 = vpop.f32.mrf.mxu0
    %v1223 = vadd.f32 %v697, %v1222
    %1224 = vdwg.mxu0
    %1225 = vmatpush.bf16.msra.mxu0 %v957
    %1226 = vmatpush.bf16.msra.mxu0 %v953
    %1227 = vmatpush.bf16.msra.mxu0 %v949
    %1228 = vmatpush.bf16.msra.mxu0 %v945
    %1229 = vmatpush.bf16.msra.mxu0 %v941
    %1230 = vmatpush.bf16.msra.mxu0 %v937
    %1231 = vmatpush.bf16.msra.mxu0 %v933
    %1232 = vmatpush.bf16.msra.mxu0 %v929
    %1233 = vmatmul.bf16.gmra.mxu0 %v621
    %v1234 = vpop.f32.mrf.mxu0
    %v1235 = vadd.f32 %v1206, %v1234
    %v1236 = vpop.f32.mrf.mxu0
    %v1237 = vadd.f32 %v1208, %v1236
    %1238 = vmatmul.bf16.gmra.mxu0 %v623
    %v1239 = vpop.f32.mrf.mxu0
    %v1240 = vadd.f32 %v1211, %v1239
    %v1241 = vpop.f32.mrf.mxu0
    %v1242 = vadd.f32 %v1213, %v1241
    %1243 = vmatmul.bf16.gmra.mxu0 %v625
    %v1244 = vpop.f32.mrf.mxu0
    %v1245 = vadd.f32 %v1216, %v1244
    %v1246 = vpop.f32.mrf.mxu0
    %v1247 = vadd.f32 %v1218, %v1246
    %1248 = vmatmul.bf16.gmra.mxu0 %v627
    %v1249 = vpop.f32.mrf.mxu0
    %v1250 = vadd.f32 %v1221, %v1249
    %v1251 = vpop.f32.mrf.mxu0
    %v1252 = vadd.f32 %v1223, %v1251
    %1253 = vdwg.mxu0
    %v1254 = vmax.f32 %v1061, 0.0
    %v1255 = vmax.f32 %v1119, 0.0
    %v1256 = vmax.f32 %v1177, 0.0
    %v1257 = vmax.f32 %v1235, 0.0
    %v1258 = vmax.f32 %v1063, 0.0
    %v1259 = vmax.f32 %v1121, 0.0
    %v1260 = vmax.f32 %v1179, 0.0
    %v1261 = vmax.f32 %v1237, 0.0
    %v1262 = vmax.f32 %v1066, 0.0
    %v1263 = vmax.f32 %v1124, 0.0
    %v1264 = vmax.f32 %v1182, 0.0
    %v1265 = vmax.f32 %v1240, 0.0
    %v1266 = vmax.f32 %v1068, 0.0
    %v1267 = vmax.f32 %v1126, 0.0
    %v1268 = vmax.f32 %v1184, 0.0
    %v1269 = vmax.f32 %v1242, 0.0
    %v1270 = vmax.f32 %v1071, 0.0
    %v1271 = vmax.f32 %v1129, 0.0
    %v1272 = vmax.f32 %v1187, 0.0
    %v1273 = vmax.f32 %v1245, 0.0
    %v1274 = vmax.f32 %v1073, 0.0
    %v1275 = vmax.f32 %v1131, 0.0
    %v1276 = vmax.f32 %v1189, 0.0
    %v1277 = vmax.f32 %v1247, 0.0
    %v1278 = vmax.f32 %v1076, 0.0
    %v1279 = vmax.f32 %v1134, 0.0
    %v1280 = vmax.f32 %v1192, 0.0
    %v1281 = vmax.f32 %v1250, 0.0
    %v1282 = vmax.f32 %v1078, 0.0
    %v1283 = vmax.f32 %v1136, 0.0
    %v1284 = vmax.f32 %v1194, 0.0
    %v1285 = vmax.f32 %v1252, 0.0
    %v1286 = vpack.c.bf16 %v1258, %v1254
    %v1287 = vpack.c.bf16 %v1259, %v1255
    %v1288 = vpack.c.bf16 %v1260, %v1256
    %v1289 = vpack.c.bf16 %v1261, %v1257
    %v1290 = vpack.c.bf16 %v1266, %v1262
    %v1291 = vpack.c.bf16 %v1267, %v1263
    %v1292 = vpack.c.bf16 %v1268, %v1264
    %v1293 = vpack.c.bf16 %v1269, %v1265
    %v1294 = vpack.c.bf16 %v1274, %v1270
    %v1295 = vpack.c.bf16 %v1275, %v1271
    %v1296 = vpack.c.bf16 %v1276, %v1272
    %v1297 = vpack.c.bf16 %v1277, %v1273
    %v1298 = vpack.c.bf16 %v1282, %v1278
    %v1299 = vpack.c.bf16 %v1283, %v1279
    %v1300 = vpack.c.bf16 %v1284, %v1280
    %v1301 = vpack.c.bf16 %v1285, %v1281
    %s1302 = smul.u32 4, 64
    %s1303 = smul.u32 %s1302, 8
    %s1304 = sshll.u32 %s1303, 4
    %1305 = dma.done [#allocation7], %s1304
    %v1306 = vld [vmem:[#allocation2] sm:$0xff]
    %v1307 = vld [vmem:[#allocation2 + $0x8] sm:$0xff]
    %v1308 = vld [vmem:[#allocation2 + $0x10] sm:$0xff]
    %v1309 = vld [vmem:[#allocation2 + $0x18] sm:$0xff]
    %v1310 = vld [vmem:[#allocation2 + $0x20] sm:$0xff]
    %v1311 = vld [vmem:[#allocation2 + $0x28] sm:$0xff]
    %v1312 = vld [vmem:[#allocation2 + $0x30] sm:$0xff]
    %v1313 = vld [vmem:[#allocation2 + $0x38] sm:$0xff]
    %v1314 = vld [vmem:[#allocation2 + $0x40] sm:$0xff]
    %v1315 = vld [vmem:[#allocation2 + $0x48] sm:$0xff]
    %v1316 = vld [vmem:[#allocation2 + $0x50] sm:$0xff]
    %v1317 = vld [vmem:[#allocation2 + $0x58] sm:$0xff]
    %v1318 = vld [vmem:[#allocation2 + $0x60] sm:$0xff]
    %v1319 = vld [vmem:[#allocation2 + $0x68] sm:$0xff]
    %v1320 = vld [vmem:[#allocation2 + $0x70] sm:$0xff]
    %v1321 = vld [vmem:[#allocation2 + $0x78] sm:$0xff]
    %v1322 = vld [vmem:[#allocation2 + $0x80] sm:$0xff]
    %v1323 = vld [vmem:[#allocation2 + $0x88] sm:$0xff]
    %v1324 = vld [vmem:[#allocation2 + $0x90] sm:$0xff]
    %v1325 = vld [vmem:[#allocation2 + $0x98] sm:$0xff]
    %v1326 = vld [vmem:[#allocation2 + $0xa0] sm:$0xff]
    %v1327 = vld [vmem:[#allocation2 + $0xa8] sm:$0xff]
    %v1328 = vld [vmem:[#allocation2 + $0xb0] sm:$0xff]
    %v1329 = vld [vmem:[#allocation2 + $0xb8] sm:$0xff]
    %v1330 = vld [vmem:[#allocation2 + $0xc0] sm:$0xff]
    %v1331 = vld [vmem:[#allocation2 + $0xc8] sm:$0xff]
    %v1332 = vld [vmem:[#allocation2 + $0xd0] sm:$0xff]
    %v1333 = vld [vmem:[#allocation2 + $0xd8] sm:$0xff]
    %v1334 = vld [vmem:[#allocation2 + $0xe0] sm:$0xff]
    %v1335 = vld [vmem:[#allocation2 + $0xe8] sm:$0xff]
    %v1336 = vld [vmem:[#allocation2 + $0xf0] sm:$0xff]
    %v1337 = vld [vmem:[#allocation2 + $0xf8] sm:$0xff]
    %v1338 = vld [vmem:[#allocation2 + $0x100] sm:$0xff]
    %v1339 = vld [vmem:[#allocation2 + $0x108] sm:$0xff]
    %v1340 = vld [vmem:[#allocation2 + $0x110] sm:$0xff]
    %v1341 = vld [vmem:[#allocation2 + $0x118] sm:$0xff]
    %v1342 = vld [vmem:[#allocation2 + $0x120] sm:$0xff]
    %v1343 = vld [vmem:[#allocation2 + $0x128] sm:$0xff]
    %v1344 = vld [vmem:[#allocation2 + $0x130] sm:$0xff]
    %v1345 = vld [vmem:[#allocation2 + $0x138] sm:$0xff]
    %v1346 = vld [vmem:[#allocation2 + $0x140] sm:$0xff]
    %v1347 = vld [vmem:[#allocation2 + $0x148] sm:$0xff]
    %v1348 = vld [vmem:[#allocation2 + $0x150] sm:$0xff]
    %v1349 = vld [vmem:[#allocation2 + $0x158] sm:$0xff]
    %v1350 = vld [vmem:[#allocation2 + $0x160] sm:$0xff]
    %v1351 = vld [vmem:[#allocation2 + $0x168] sm:$0xff]
    %v1352 = vld [vmem:[#allocation2 + $0x170] sm:$0xff]
    %v1353 = vld [vmem:[#allocation2 + $0x178] sm:$0xff]
    %v1354 = vld [vmem:[#allocation2 + $0x180] sm:$0xff]
    %v1355 = vld [vmem:[#allocation2 + $0x188] sm:$0xff]
    %v1356 = vld [vmem:[#allocation2 + $0x190] sm:$0xff]
    %v1357 = vld [vmem:[#allocation2 + $0x198] sm:$0xff]
    %v1358 = vld [vmem:[#allocation2 + $0x1a0] sm:$0xff]
    %v1359 = vld [vmem:[#allocation2 + $0x1a8] sm:$0xff]
    %v1360 = vld [vmem:[#allocation2 + $0x1b0] sm:$0xff]
    %v1361 = vld [vmem:[#allocation2 + $0x1b8] sm:$0xff]
    %v1362 = vld [vmem:[#allocation2 + $0x1c0] sm:$0xff]
    %v1363 = vld [vmem:[#allocation2 + $0x1c8] sm:$0xff]
    %v1364 = vld [vmem:[#allocation2 + $0x1d0] sm:$0xff]
    %v1365 = vld [vmem:[#allocation2 + $0x1d8] sm:$0xff]
    %v1366 = vld [vmem:[#allocation2 + $0x1e0] sm:$0xff]
    %v1367 = vld [vmem:[#allocation2 + $0x1e8] sm:$0xff]
    %v1368 = vld [vmem:[#allocation2 + $0x1f0] sm:$0xff]
    %v1369 = vld [vmem:[#allocation2 + $0x1f8] sm:$0xff]
    %v1370 = vld [vmem:[#allocation2 + $0x200] sm:$0xff]
    %v1371 = vld [vmem:[#allocation2 + $0x208] sm:$0xff]
    %v1372 = vld [vmem:[#allocation2 + $0x210] sm:$0xff]
    %v1373 = vld [vmem:[#allocation2 + $0x218] sm:$0xff]
    %v1374 = vld [vmem:[#allocation2 + $0x220] sm:$0xff]
    %v1375 = vld [vmem:[#allocation2 + $0x228] sm:$0xff]
    %v1376 = vld [vmem:[#allocation2 + $0x230] sm:$0xff]
    %v1377 = vld [vmem:[#allocation2 + $0x238] sm:$0xff]
    %v1378 = vld [vmem:[#allocation2 + $0x240] sm:$0xff]
    %v1379 = vld [vmem:[#allocation2 + $0x248] sm:$0xff]
    %v1380 = vld [vmem:[#allocation2 + $0x250] sm:$0xff]
    %v1381 = vld [vmem:[#allocation2 + $0x258] sm:$0xff]
    %v1382 = vld [vmem:[#allocation2 + $0x260] sm:$0xff]
    %v1383 = vld [vmem:[#allocation2 + $0x268] sm:$0xff]
    %v1384 = vld [vmem:[#allocation2 + $0x270] sm:$0xff]
    %v1385 = vld [vmem:[#allocation2 + $0x278] sm:$0xff]
    %v1386 = vld [vmem:[#allocation2 + $0x280] sm:$0xff]
    %v1387 = vld [vmem:[#allocation2 + $0x288] sm:$0xff]
    %v1388 = vld [vmem:[#allocation2 + $0x290] sm:$0xff]
    %v1389 = vld [vmem:[#allocation2 + $0x298] sm:$0xff]
    %v1390 = vld [vmem:[#allocation2 + $0x2a0] sm:$0xff]
    %v1391 = vld [vmem:[#allocation2 + $0x2a8] sm:$0xff]
    %v1392 = vld [vmem:[#allocation2 + $0x2b0] sm:$0xff]
    %v1393 = vld [vmem:[#allocation2 + $0x2b8] sm:$0xff]
    %v1394 = vld [vmem:[#allocation2 + $0x2c0] sm:$0xff]
    %v1395 = vld [vmem:[#allocation2 + $0x2c8] sm:$0xff]
    %v1396 = vld [vmem:[#allocation2 + $0x2d0] sm:$0xff]
    %v1397 = vld [vmem:[#allocation2 + $0x2d8] sm:$0xff]
    %v1398 = vld [vmem:[#allocation2 + $0x2e0] sm:$0xff]
    %v1399 = vld [vmem:[#allocation2 + $0x2e8] sm:$0xff]
    %v1400 = vld [vmem:[#allocation2 + $0x2f0] sm:$0xff]
    %v1401 = vld [vmem:[#allocation2 + $0x2f8] sm:$0xff]
    %v1402 = vld [vmem:[#allocation2 + $0x300] sm:$0xff]
    %v1403 = vld [vmem:[#allocation2 + $0x308] sm:$0xff]
    %v1404 = vld [vmem:[#allocation2 + $0x310] sm:$0xff]
    %v1405 = vld [vmem:[#allocation2 + $0x318] sm:$0xff]
    %v1406 = vld [vmem:[#allocation2 + $0x320] sm:$0xff]
    %v1407 = vld [vmem:[#allocation2 + $0x328] sm:$0xff]
    %v1408 = vld [vmem:[#allocation2 + $0x330] sm:$0xff]
    %v1409 = vld [vmem:[#allocation2 + $0x338] sm:$0xff]
    %v1410 = vld [vmem:[#allocation2 + $0x340] sm:$0xff]
    %v1411 = vld [vmem:[#allocation2 + $0x348] sm:$0xff]
    %v1412 = vld [vmem:[#allocation2 + $0x350] sm:$0xff]
    %v1413 = vld [vmem:[#allocation2 + $0x358] sm:$0xff]
    %v1414 = vld [vmem:[#allocation2 + $0x360] sm:$0xff]
    %v1415 = vld [vmem:[#allocation2 + $0x368] sm:$0xff]
    %v1416 = vld [vmem:[#allocation2 + $0x370] sm:$0xff]
    %v1417 = vld [vmem:[#allocation2 + $0x378] sm:$0xff]
    %v1418 = vld [vmem:[#allocation2 + $0x380] sm:$0xff]
    %v1419 = vld [vmem:[#allocation2 + $0x388] sm:$0xff]
    %v1420 = vld [vmem:[#allocation2 + $0x390] sm:$0xff]
    %v1421 = vld [vmem:[#allocation2 + $0x398] sm:$0xff]
    %v1422 = vld [vmem:[#allocation2 + $0x3a0] sm:$0xff]
    %v1423 = vld [vmem:[#allocation2 + $0x3a8] sm:$0xff]
    %v1424 = vld [vmem:[#allocation2 + $0x3b0] sm:$0xff]
    %v1425 = vld [vmem:[#allocation2 + $0x3b8] sm:$0xff]
    %v1426 = vld [vmem:[#allocation2 + $0x3c0] sm:$0xff]
    %v1427 = vld [vmem:[#allocation2 + $0x3c8] sm:$0xff]
    %v1428 = vld [vmem:[#allocation2 + $0x3d0] sm:$0xff]
    %v1429 = vld [vmem:[#allocation2 + $0x3d8] sm:$0xff]
    %v1430 = vld [vmem:[#allocation2 + $0x3e0] sm:$0xff]
    %v1431 = vld [vmem:[#allocation2 + $0x3e8] sm:$0xff]
    %v1432 = vld [vmem:[#allocation2 + $0x3f0] sm:$0xff]
    %v1433 = vld [vmem:[#allocation2 + $0x3f8] sm:$0xff]
    %v1434 = vld [vmem:[#allocation2 + $0x400] sm:$0xff]
    %v1435 = vld [vmem:[#allocation2 + $0x408] sm:$0xff]
    %v1436 = vld [vmem:[#allocation2 + $0x410] sm:$0xff]
    %v1437 = vld [vmem:[#allocation2 + $0x418] sm:$0xff]
    %v1438 = vld [vmem:[#allocation2 + $0x420] sm:$0xff]
    %v1439 = vld [vmem:[#allocation2 + $0x428] sm:$0xff]
    %v1440 = vld [vmem:[#allocation2 + $0x430] sm:$0xff]
    %v1441 = vld [vmem:[#allocation2 + $0x438] sm:$0xff]
    %v1442 = vld [vmem:[#allocation2 + $0x440] sm:$0xff]
    %v1443 = vld [vmem:[#allocation2 + $0x448] sm:$0xff]
    %v1444 = vld [vmem:[#allocation2 + $0x450] sm:$0xff]
    %v1445 = vld [vmem:[#allocation2 + $0x458] sm:$0xff]
    %v1446 = vld [vmem:[#allocation2 + $0x460] sm:$0xff]
    %v1447 = vld [vmem:[#allocation2 + $0x468] sm:$0xff]
    %v1448 = vld [vmem:[#allocation2 + $0x470] sm:$0xff]
    %v1449 = vld [vmem:[#allocation2 + $0x478] sm:$0xff]
    %v1450 = vld [vmem:[#allocation2 + $0x480] sm:$0xff]
    %v1451 = vld [vmem:[#allocation2 + $0x488] sm:$0xff]
    %v1452 = vld [vmem:[#allocation2 + $0x490] sm:$0xff]
    %v1453 = vld [vmem:[#allocation2 + $0x498] sm:$0xff]
    %v1454 = vld [vmem:[#allocation2 + $0x4a0] sm:$0xff]
    %v1455 = vld [vmem:[#allocation2 + $0x4a8] sm:$0xff]
    %v1456 = vld [vmem:[#allocation2 + $0x4b0] sm:$0xff]
    %v1457 = vld [vmem:[#allocation2 + $0x4b8] sm:$0xff]
    %v1458 = vld [vmem:[#allocation2 + $0x4c0] sm:$0xff]
    %v1459 = vld [vmem:[#allocation2 + $0x4c8] sm:$0xff]
    %v1460 = vld [vmem:[#allocation2 + $0x4d0] sm:$0xff]
    %v1461 = vld [vmem:[#allocation2 + $0x4d8] sm:$0xff]
    %v1462 = vld [vmem:[#allocation2 + $0x4e0] sm:$0xff]
    %v1463 = vld [vmem:[#allocation2 + $0x4e8] sm:$0xff]
    %v1464 = vld [vmem:[#allocation2 + $0x4f0] sm:$0xff]
    %v1465 = vld [vmem:[#allocation2 + $0x4f8] sm:$0xff]
    %v1466 = vld [vmem:[#allocation2 + $0x500] sm:$0xff]
    %v1467 = vld [vmem:[#allocation2 + $0x508] sm:$0xff]
    %v1468 = vld [vmem:[#allocation2 + $0x510] sm:$0xff]
    %v1469 = vld [vmem:[#allocation2 + $0x518] sm:$0xff]
    %v1470 = vld [vmem:[#allocation2 + $0x520] sm:$0xff]
    %v1471 = vld [vmem:[#allocation2 + $0x528] sm:$0xff]
    %v1472 = vld [vmem:[#allocation2 + $0x530] sm:$0xff]
    %v1473 = vld [vmem:[#allocation2 + $0x538] sm:$0xff]
    %v1474 = vld [vmem:[#allocation2 + $0x540] sm:$0xff]
    %v1475 = vld [vmem:[#allocation2 + $0x548] sm:$0xff]
    %v1476 = vld [vmem:[#allocation2 + $0x550] sm:$0xff]
    %v1477 = vld [vmem:[#allocation2 + $0x558] sm:$0xff]
    %v1478 = vld [vmem:[#allocation2 + $0x560] sm:$0xff]
    %v1479 = vld [vmem:[#allocation2 + $0x568] sm:$0xff]
    %v1480 = vld [vmem:[#allocation2 + $0x570] sm:$0xff]
    %v1481 = vld [vmem:[#allocation2 + $0x578] sm:$0xff]
    %v1482 = vld [vmem:[#allocation2 + $0x580] sm:$0xff]
    %v1483 = vld [vmem:[#allocation2 + $0x588] sm:$0xff]
    %v1484 = vld [vmem:[#allocation2 + $0x590] sm:$0xff]
    %v1485 = vld [vmem:[#allocation2 + $0x598] sm:$0xff]
    %v1486 = vld [vmem:[#allocation2 + $0x5a0] sm:$0xff]
    %v1487 = vld [vmem:[#allocation2 + $0x5a8] sm:$0xff]
    %v1488 = vld [vmem:[#allocation2 + $0x5b0] sm:$0xff]
    %v1489 = vld [vmem:[#allocation2 + $0x5b8] sm:$0xff]
    %v1490 = vld [vmem:[#allocation2 + $0x5c0] sm:$0xff]
    %v1491 = vld [vmem:[#allocation2 + $0x5c8] sm:$0xff]
    %v1492 = vld [vmem:[#allocation2 + $0x5d0] sm:$0xff]
    %v1493 = vld [vmem:[#allocation2 + $0x5d8] sm:$0xff]
    %v1494 = vld [vmem:[#allocation2 + $0x5e0] sm:$0xff]
    %v1495 = vld [vmem:[#allocation2 + $0x5e8] sm:$0xff]
    %v1496 = vld [vmem:[#allocation2 + $0x5f0] sm:$0xff]
    %v1497 = vld [vmem:[#allocation2 + $0x5f8] sm:$0xff]
    %v1498 = vld [vmem:[#allocation2 + $0x600] sm:$0xff]
    %v1499 = vld [vmem:[#allocation2 + $0x608] sm:$0xff]
    %v1500 = vld [vmem:[#allocation2 + $0x610] sm:$0xff]
    %v1501 = vld [vmem:[#allocation2 + $0x618] sm:$0xff]
    %v1502 = vld [vmem:[#allocation2 + $0x620] sm:$0xff]
    %v1503 = vld [vmem:[#allocation2 + $0x628] sm:$0xff]
    %v1504 = vld [vmem:[#allocation2 + $0x630] sm:$0xff]
    %v1505 = vld [vmem:[#allocation2 + $0x638] sm:$0xff]
    %v1506 = vld [vmem:[#allocation2 + $0x640] sm:$0xff]
    %v1507 = vld [vmem:[#allocation2 + $0x648] sm:$0xff]
    %v1508 = vld [vmem:[#allocation2 + $0x650] sm:$0xff]
    %v1509 = vld [vmem:[#allocation2 + $0x658] sm:$0xff]
    %v1510 = vld [vmem:[#allocation2 + $0x660] sm:$0xff]
    %v1511 = vld [vmem:[#allocation2 + $0x668] sm:$0xff]
    %v1512 = vld [vmem:[#allocation2 + $0x670] sm:$0xff]
    %v1513 = vld [vmem:[#allocation2 + $0x678] sm:$0xff]
    %v1514 = vld [vmem:[#allocation2 + $0x680] sm:$0xff]
    %v1515 = vld [vmem:[#allocation2 + $0x688] sm:$0xff]
    %v1516 = vld [vmem:[#allocation2 + $0x690] sm:$0xff]
    %v1517 = vld [vmem:[#allocation2 + $0x698] sm:$0xff]
    %v1518 = vld [vmem:[#allocation2 + $0x6a0] sm:$0xff]
    %v1519 = vld [vmem:[#allocation2 + $0x6a8] sm:$0xff]
    %v1520 = vld [vmem:[#allocation2 + $0x6b0] sm:$0xff]
    %v1521 = vld [vmem:[#allocation2 + $0x6b8] sm:$0xff]
    %v1522 = vld [vmem:[#allocation2 + $0x6c0] sm:$0xff]
    %v1523 = vld [vmem:[#allocation2 + $0x6c8] sm:$0xff]
    %v1524 = vld [vmem:[#allocation2 + $0x6d0] sm:$0xff]
    %v1525 = vld [vmem:[#allocation2 + $0x6d8] sm:$0xff]
    %v1526 = vld [vmem:[#allocation2 + $0x6e0] sm:$0xff]
    %v1527 = vld [vmem:[#allocation2 + $0x6e8] sm:$0xff]
    %v1528 = vld [vmem:[#allocation2 + $0x6f0] sm:$0xff]
    %v1529 = vld [vmem:[#allocation2 + $0x6f8] sm:$0xff]
    %v1530 = vld [vmem:[#allocation2 + $0x700] sm:$0xff]
    %v1531 = vld [vmem:[#allocation2 + $0x708] sm:$0xff]
    %v1532 = vld [vmem:[#allocation2 + $0x710] sm:$0xff]
    %v1533 = vld [vmem:[#allocation2 + $0x718] sm:$0xff]
    %v1534 = vld [vmem:[#allocation2 + $0x720] sm:$0xff]
    %v1535 = vld [vmem:[#allocation2 + $0x728] sm:$0xff]
    %v1536 = vld [vmem:[#allocation2 + $0x730] sm:$0xff]
    %v1537 = vld [vmem:[#allocation2 + $0x738] sm:$0xff]
    %v1538 = vld [vmem:[#allocation2 + $0x740] sm:$0xff]
    %v1539 = vld [vmem:[#allocation2 + $0x748] sm:$0xff]
    %v1540 = vld [vmem:[#allocation2 + $0x750] sm:$0xff]
    %v1541 = vld [vmem:[#allocation2 + $0x758] sm:$0xff]
    %v1542 = vld [vmem:[#allocation2 + $0x760] sm:$0xff]
    %v1543 = vld [vmem:[#allocation2 + $0x768] sm:$0xff]
    %v1544 = vld [vmem:[#allocation2 + $0x770] sm:$0xff]
    %v1545 = vld [vmem:[#allocation2 + $0x778] sm:$0xff]
    %v1546 = vld [vmem:[#allocation2 + $0x780] sm:$0xff]
    %v1547 = vld [vmem:[#allocation2 + $0x788] sm:$0xff]
    %v1548 = vld [vmem:[#allocation2 + $0x790] sm:$0xff]
    %v1549 = vld [vmem:[#allocation2 + $0x798] sm:$0xff]
    %v1550 = vld [vmem:[#allocation2 + $0x7a0] sm:$0xff]
    %v1551 = vld [vmem:[#allocation2 + $0x7a8] sm:$0xff]
    %v1552 = vld [vmem:[#allocation2 + $0x7b0] sm:$0xff]
    %v1553 = vld [vmem:[#allocation2 + $0x7b8] sm:$0xff]
    %v1554 = vld [vmem:[#allocation2 + $0x7c0] sm:$0xff]
    %v1555 = vld [vmem:[#allocation2 + $0x7c8] sm:$0xff]
    %v1556 = vld [vmem:[#allocation2 + $0x7d0] sm:$0xff]
    %v1557 = vld [vmem:[#allocation2 + $0x7d8] sm:$0xff]
    %v1558 = vld [vmem:[#allocation2 + $0x7e0] sm:$0xff]
    %v1559 = vld [vmem:[#allocation2 + $0x7e8] sm:$0xff]
    %v1560 = vld [vmem:[#allocation2 + $0x7f0] sm:$0xff]
    %v1561 = vld [vmem:[#allocation2 + $0x7f8] sm:$0xff]
    %v1562 = vld [vmem:[%s9] sm:$0xff]
    %v1564 = vperm.slane %v1562, 0
    %v1565 = vperm.slane %v1562, 1
    %v1566 = vperm.slane %v1562, 2
    %v1567 = vperm.slane %v1562, 3
    %v1568 = vperm.slane %v1562, 4
    %v1569 = vperm.slane %v1562, 5
    %v1570 = vperm.slane %v1562, 6
    %v1571 = vperm.slane %v1562, 7
    %v1836 = vunpack.c.l.b16 %v1306
    %v1837 = vunpack.c.h.b16 %v1306
    %v1838 = vunpack.c.l.b16 %v1307
    %v1839 = vunpack.c.h.b16 %v1307
    %v1840 = vunpack.c.l.b16 %v1308
    %v1841 = vunpack.c.h.b16 %v1308
    %v1842 = vunpack.c.l.b16 %v1309
    %v1843 = vunpack.c.h.b16 %v1309
    %v1844 = vunpack.c.l.b16 %v1310
    %v1845 = vunpack.c.h.b16 %v1310
    %v1846 = vunpack.c.l.b16 %v1311
    %v1847 = vunpack.c.h.b16 %v1311
    %v1848 = vunpack.c.l.b16 %v1312
    %v1849 = vunpack.c.h.b16 %v1312
    %v1850 = vunpack.c.l.b16 %v1313
    %v1851 = vunpack.c.h.b16 %v1313
    %v1852 = vunpack.c.l.b16 %v1314
    %v1853 = vunpack.c.h.b16 %v1314
    %v1854 = vunpack.c.l.b16 %v1315
    %v1855 = vunpack.c.h.b16 %v1315
    %v1856 = vunpack.c.l.b16 %v1316
    %v1857 = vunpack.c.h.b16 %v1316
    %v1858 = vunpack.c.l.b16 %v1317
    %v1859 = vunpack.c.h.b16 %v1317
    %v1860 = vunpack.c.l.b16 %v1318
    %v1861 = vunpack.c.h.b16 %v1318
    %v1862 = vunpack.c.l.b16 %v1319
    %v1863 = vunpack.c.h.b16 %v1319
    %v1864 = vunpack.c.l.b16 %v1320
    %v1865 = vunpack.c.h.b16 %v1320
    %v1866 = vunpack.c.l.b16 %v1321
    %v1867 = vunpack.c.h.b16 %v1321
    %v1868 = vunpack.c.l.b16 %v1322
    %v1869 = vunpack.c.h.b16 %v1322
    %v1870 = vunpack.c.l.b16 %v1323
    %v1871 = vunpack.c.h.b16 %v1323
    %v1872 = vunpack.c.l.b16 %v1324
    %v1873 = vunpack.c.h.b16 %v1324
    %v1874 = vunpack.c.l.b16 %v1325
    %v1875 = vunpack.c.h.b16 %v1325
    %v1876 = vunpack.c.l.b16 %v1326
    %v1877 = vunpack.c.h.b16 %v1326
    %v1878 = vunpack.c.l.b16 %v1327
    %v1879 = vunpack.c.h.b16 %v1327
    %v1880 = vunpack.c.l.b16 %v1328
    %v1881 = vunpack.c.h.b16 %v1328
    %v1882 = vunpack.c.l.b16 %v1329
    %v1883 = vunpack.c.h.b16 %v1329
    %v1884 = vunpack.c.l.b16 %v1330
    %v1885 = vunpack.c.h.b16 %v1330
    %v1886 = vunpack.c.l.b16 %v1331
    %v1887 = vunpack.c.h.b16 %v1331
    %v1888 = vunpack.c.l.b16 %v1332
    %v1889 = vunpack.c.h.b16 %v1332
    %v1890 = vunpack.c.l.b16 %v1333
    %v1891 = vunpack.c.h.b16 %v1333
    %v1892 = vunpack.c.l.b16 %v1334
    %v1893 = vunpack.c.h.b16 %v1334
    %v1894 = vunpack.c.l.b16 %v1335
    %v1895 = vunpack.c.h.b16 %v1335
    %v1896 = vunpack.c.l.b16 %v1336
    %v1897 = vunpack.c.h.b16 %v1336
    %v1898 = vunpack.c.l.b16 %v1337
    %v1899 = vunpack.c.h.b16 %v1337
    %v1900 = vunpack.c.l.b16 %v1338
    %v1901 = vunpack.c.h.b16 %v1338
    %v1902 = vunpack.c.l.b16 %v1339
    %v1903 = vunpack.c.h.b16 %v1339
    %v1904 = vunpack.c.l.b16 %v1340
    %v1905 = vunpack.c.h.b16 %v1340
    %v1906 = vunpack.c.l.b16 %v1341
    %v1907 = vunpack.c.h.b16 %v1341
    %v1908 = vunpack.c.l.b16 %v1342
    %v1909 = vunpack.c.h.b16 %v1342
    %v1910 = vunpack.c.l.b16 %v1343
    %v1911 = vunpack.c.h.b16 %v1343
    %v1912 = vunpack.c.l.b16 %v1344
    %v1913 = vunpack.c.h.b16 %v1344
    %v1914 = vunpack.c.l.b16 %v1345
    %v1915 = vunpack.c.h.b16 %v1345
    %v1916 = vunpack.c.l.b16 %v1346
    %v1917 = vunpack.c.h.b16 %v1346
    %v1918 = vunpack.c.l.b16 %v1347
    %v1919 = vunpack.c.h.b16 %v1347
    %v1920 = vunpack.c.l.b16 %v1348
    %v1921 = vunpack.c.h.b16 %v1348
    %v1922 = vunpack.c.l.b16 %v1349
    %v1923 = vunpack.c.h.b16 %v1349
    %v1924 = vunpack.c.l.b16 %v1350
    %v1925 = vunpack.c.h.b16 %v1350
    %v1926 = vunpack.c.l.b16 %v1351
    %v1927 = vunpack.c.h.b16 %v1351
    %v1928 = vunpack.c.l.b16 %v1352
    %v1929 = vunpack.c.h.b16 %v1352
    %v1930 = vunpack.c.l.b16 %v1353
    %v1931 = vunpack.c.h.b16 %v1353
    %v1932 = vunpack.c.l.b16 %v1354
    %v1933 = vunpack.c.h.b16 %v1354
    %v1934 = vunpack.c.l.b16 %v1355
    %v1935 = vunpack.c.h.b16 %v1355
    %v1936 = vunpack.c.l.b16 %v1356
    %v1937 = vunpack.c.h.b16 %v1356
    %v1938 = vunpack.c.l.b16 %v1357
    %v1939 = vunpack.c.h.b16 %v1357
    %v1940 = vunpack.c.l.b16 %v1358
    %v1941 = vunpack.c.h.b16 %v1358
    %v1942 = vunpack.c.l.b16 %v1359
    %v1943 = vunpack.c.h.b16 %v1359
    %v1944 = vunpack.c.l.b16 %v1360
    %v1945 = vunpack.c.h.b16 %v1360
    %v1946 = vunpack.c.l.b16 %v1361
    %v1947 = vunpack.c.h.b16 %v1361
    %v1948 = vunpack.c.l.b16 %v1362
    %v1949 = vunpack.c.h.b16 %v1362
    %v1950 = vunpack.c.l.b16 %v1363
    %v1951 = vunpack.c.h.b16 %v1363
    %v1952 = vunpack.c.l.b16 %v1364
    %v1953 = vunpack.c.h.b16 %v1364
    %v1954 = vunpack.c.l.b16 %v1365
    %v1955 = vunpack.c.h.b16 %v1365
    %v1956 = vunpack.c.l.b16 %v1366
    %v1957 = vunpack.c.h.b16 %v1366
    %v1958 = vunpack.c.l.b16 %v1367
    %v1959 = vunpack.c.h.b16 %v1367
    %v1960 = vunpack.c.l.b16 %v1368
    %v1961 = vunpack.c.h.b16 %v1368
    %v1962 = vunpack.c.l.b16 %v1369
    %v1963 = vunpack.c.h.b16 %v1369
    %v1964 = vunpack.c.l.b16 %v1370
    %v1965 = vunpack.c.h.b16 %v1370
    %v1966 = vunpack.c.l.b16 %v1371
    %v1967 = vunpack.c.h.b16 %v1371
    %v1968 = vunpack.c.l.b16 %v1372
    %v1969 = vunpack.c.h.b16 %v1372
    %v1970 = vunpack.c.l.b16 %v1373
    %v1971 = vunpack.c.h.b16 %v1373
    %v1972 = vunpack.c.l.b16 %v1374
    %v1973 = vunpack.c.h.b16 %v1374
    %v1974 = vunpack.c.l.b16 %v1375
    %v1975 = vunpack.c.h.b16 %v1375
    %v1976 = vunpack.c.l.b16 %v1376
    %v1977 = vunpack.c.h.b16 %v1376
    %v1978 = vunpack.c.l.b16 %v1377
    %v1979 = vunpack.c.h.b16 %v1377
    %v1980 = vunpack.c.l.b16 %v1378
    %v1981 = vunpack.c.h.b16 %v1378
    %v1982 = vunpack.c.l.b16 %v1379
    %v1983 = vunpack.c.h.b16 %v1379
    %v1984 = vunpack.c.l.b16 %v1380
    %v1985 = vunpack.c.h.b16 %v1380
    %v1986 = vunpack.c.l.b16 %v1381
    %v1987 = vunpack.c.h.b16 %v1381
    %v1988 = vunpack.c.l.b16 %v1382
    %v1989 = vunpack.c.h.b16 %v1382
    %v1990 = vunpack.c.l.b16 %v1383
    %v1991 = vunpack.c.h.b16 %v1383
    %v1992 = vunpack.c.l.b16 %v1384
    %v1993 = vunpack.c.h.b16 %v1384
    %v1994 = vunpack.c.l.b16 %v1385
    %v1995 = vunpack.c.h.b16 %v1385
    %v1996 = vunpack.c.l.b16 %v1386
    %v1997 = vunpack.c.h.b16 %v1386
    %v1998 = vunpack.c.l.b16 %v1387
    %v1999 = vunpack.c.h.b16 %v1387
    %v2000 = vunpack.c.l.b16 %v1388
    %v2001 = vunpack.c.h.b16 %v1388
    %v2002 = vunpack.c.l.b16 %v1389
    %v2003 = vunpack.c.h.b16 %v1389
    %v2004 = vunpack.c.l.b16 %v1390
    %v2005 = vunpack.c.h.b16 %v1390
    %v2006 = vunpack.c.l.b16 %v1391
    %v2007 = vunpack.c.h.b16 %v1391
    %v2008 = vunpack.c.l.b16 %v1392
    %v2009 = vunpack.c.h.b16 %v1392
    %v2010 = vunpack.c.l.b16 %v1393
    %v2011 = vunpack.c.h.b16 %v1393
    %v2012 = vunpack.c.l.b16 %v1394
    %v2013 = vunpack.c.h.b16 %v1394
    %v2014 = vunpack.c.l.b16 %v1395
    %v2015 = vunpack.c.h.b16 %v1395
    %v2016 = vunpack.c.l.b16 %v1396
    %v2017 = vunpack.c.h.b16 %v1396
    %v2018 = vunpack.c.l.b16 %v1397
    %v2019 = vunpack.c.h.b16 %v1397
    %v2020 = vunpack.c.l.b16 %v1398
    %v2021 = vunpack.c.h.b16 %v1398
    %v2022 = vunpack.c.l.b16 %v1399
    %v2023 = vunpack.c.h.b16 %v1399
    %v2024 = vunpack.c.l.b16 %v1400
    %v2025 = vunpack.c.h.b16 %v1400
    %v2026 = vunpack.c.l.b16 %v1401
    %v2027 = vunpack.c.h.b16 %v1401
    %v2028 = vunpack.c.l.b16 %v1402
    %v2029 = vunpack.c.h.b16 %v1402
    %v2030 = vunpack.c.l.b16 %v1403
    %v2031 = vunpack.c.h.b16 %v1403
    %v2032 = vunpack.c.l.b16 %v1404
    %v2033 = vunpack.c.h.b16 %v1404
    %v2034 = vunpack.c.l.b16 %v1405
    %v2035 = vunpack.c.h.b16 %v1405
    %v2036 = vunpack.c.l.b16 %v1406
    %v2037 = vunpack.c.h.b16 %v1406
    %v2038 = vunpack.c.l.b16 %v1407
    %v2039 = vunpack.c.h.b16 %v1407
    %v2040 = vunpack.c.l.b16 %v1408
    %v2041 = vunpack.c.h.b16 %v1408
    %v2042 = vunpack.c.l.b16 %v1409
    %v2043 = vunpack.c.h.b16 %v1409
    %v2044 = vunpack.c.l.b16 %v1410
    %v2045 = vunpack.c.h.b16 %v1410
    %v2046 = vunpack.c.l.b16 %v1411
    %v2047 = vunpack.c.h.b16 %v1411
    %v2048 = vunpack.c.l.b16 %v1412
    %v2049 = vunpack.c.h.b16 %v1412
    %v2050 = vunpack.c.l.b16 %v1413
    %v2051 = vunpack.c.h.b16 %v1413
    %v2052 = vunpack.c.l.b16 %v1414
    %v2053 = vunpack.c.h.b16 %v1414
    %v2054 = vunpack.c.l.b16 %v1415
    %v2055 = vunpack.c.h.b16 %v1415
    %v2056 = vunpack.c.l.b16 %v1416
    %v2057 = vunpack.c.h.b16 %v1416
    %v2058 = vunpack.c.l.b16 %v1417
    %v2059 = vunpack.c.h.b16 %v1417
    %v2060 = vunpack.c.l.b16 %v1418
    %v2061 = vunpack.c.h.b16 %v1418
    %v2062 = vunpack.c.l.b16 %v1419
    %v2063 = vunpack.c.h.b16 %v1419
    %v2064 = vunpack.c.l.b16 %v1420
    %v2065 = vunpack.c.h.b16 %v1420
    %v2066 = vunpack.c.l.b16 %v1421
    %v2067 = vunpack.c.h.b16 %v1421
    %v2068 = vunpack.c.l.b16 %v1422
    %v2069 = vunpack.c.h.b16 %v1422
    %v2070 = vunpack.c.l.b16 %v1423
    %v2071 = vunpack.c.h.b16 %v1423
    %v2072 = vunpack.c.l.b16 %v1424
    %v2073 = vunpack.c.h.b16 %v1424
    %v2074 = vunpack.c.l.b16 %v1425
    %v2075 = vunpack.c.h.b16 %v1425
    %v2076 = vunpack.c.l.b16 %v1426
    %v2077 = vunpack.c.h.b16 %v1426
    %v2078 = vunpack.c.l.b16 %v1427
    %v2079 = vunpack.c.h.b16 %v1427
    %v2080 = vunpack.c.l.b16 %v1428
    %v2081 = vunpack.c.h.b16 %v1428
    %v2082 = vunpack.c.l.b16 %v1429
    %v2083 = vunpack.c.h.b16 %v1429
    %v2084 = vunpack.c.l.b16 %v1430
    %v2085 = vunpack.c.h.b16 %v1430
    %v2086 = vunpack.c.l.b16 %v1431
    %v2087 = vunpack.c.h.b16 %v1431
    %v2088 = vunpack.c.l.b16 %v1432
    %v2089 = vunpack.c.h.b16 %v1432
    %v2090 = vunpack.c.l.b16 %v1433
    %v2091 = vunpack.c.h.b16 %v1433
    %v2092 = vunpack.c.l.b16 %v1434
    %v2093 = vunpack.c.h.b16 %v1434
    %v2094 = vunpack.c.l.b16 %v1435
    %v2095 = vunpack.c.h.b16 %v1435
    %v2096 = vunpack.c.l.b16 %v1436
    %v2097 = vunpack.c.h.b16 %v1436
    %v2098 = vunpack.c.l.b16 %v1437
    %v2099 = vunpack.c.h.b16 %v1437
    %v2100 = vunpack.c.l.b16 %v1438
    %v2101 = vunpack.c.h.b16 %v1438
    %v2102 = vunpack.c.l.b16 %v1439
    %v2103 = vunpack.c.h.b16 %v1439
    %v2104 = vunpack.c.l.b16 %v1440
    %v2105 = vunpack.c.h.b16 %v1440
    %v2106 = vunpack.c.l.b16 %v1441
    %v2107 = vunpack.c.h.b16 %v1441
    %v2108 = vunpack.c.l.b16 %v1442
    %v2109 = vunpack.c.h.b16 %v1442
    %v2110 = vunpack.c.l.b16 %v1443
    %v2111 = vunpack.c.h.b16 %v1443
    %v2112 = vunpack.c.l.b16 %v1444
    %v2113 = vunpack.c.h.b16 %v1444
    %v2114 = vunpack.c.l.b16 %v1445
    %v2115 = vunpack.c.h.b16 %v1445
    %v2116 = vunpack.c.l.b16 %v1446
    %v2117 = vunpack.c.h.b16 %v1446
    %v2118 = vunpack.c.l.b16 %v1447
    %v2119 = vunpack.c.h.b16 %v1447
    %v2120 = vunpack.c.l.b16 %v1448
    %v2121 = vunpack.c.h.b16 %v1448
    %v2122 = vunpack.c.l.b16 %v1449
    %v2123 = vunpack.c.h.b16 %v1449
    %v2124 = vunpack.c.l.b16 %v1450
    %v2125 = vunpack.c.h.b16 %v1450
    %v2126 = vunpack.c.l.b16 %v1451
    %v2127 = vunpack.c.h.b16 %v1451
    %v2128 = vunpack.c.l.b16 %v1452
    %v2129 = vunpack.c.h.b16 %v1452
    %v2130 = vunpack.c.l.b16 %v1453
    %v2131 = vunpack.c.h.b16 %v1453
    %v2132 = vunpack.c.l.b16 %v1454
    %v2133 = vunpack.c.h.b16 %v1454
    %v2134 = vunpack.c.l.b16 %v1455
    %v2135 = vunpack.c.h.b16 %v1455
    %v2136 = vunpack.c.l.b16 %v1456
    %v2137 = vunpack.c.h.b16 %v1456
    %v2138 = vunpack.c.l.b16 %v1457
    %v2139 = vunpack.c.h.b16 %v1457
    %v2140 = vunpack.c.l.b16 %v1458
    %v2141 = vunpack.c.h.b16 %v1458
    %v2142 = vunpack.c.l.b16 %v1459
    %v2143 = vunpack.c.h.b16 %v1459
    %v2144 = vunpack.c.l.b16 %v1460
    %v2145 = vunpack.c.h.b16 %v1460
    %v2146 = vunpack.c.l.b16 %v1461
    %v2147 = vunpack.c.h.b16 %v1461
    %v2148 = vunpack.c.l.b16 %v1462
    %v2149 = vunpack.c.h.b16 %v1462
    %v2150 = vunpack.c.l.b16 %v1463
    %v2151 = vunpack.c.h.b16 %v1463
    %v2152 = vunpack.c.l.b16 %v1464
    %v2153 = vunpack.c.h.b16 %v1464
    %v2154 = vunpack.c.l.b16 %v1465
    %v2155 = vunpack.c.h.b16 %v1465
    %v2156 = vunpack.c.l.b16 %v1466
    %v2157 = vunpack.c.h.b16 %v1466
    %v2158 = vunpack.c.l.b16 %v1467
    %v2159 = vunpack.c.h.b16 %v1467
    %v2160 = vunpack.c.l.b16 %v1468
    %v2161 = vunpack.c.h.b16 %v1468
    %v2162 = vunpack.c.l.b16 %v1469
    %v2163 = vunpack.c.h.b16 %v1469
    %v2164 = vunpack.c.l.b16 %v1470
    %v2165 = vunpack.c.h.b16 %v1470
    %v2166 = vunpack.c.l.b16 %v1471
    %v2167 = vunpack.c.h.b16 %v1471
    %v2168 = vunpack.c.l.b16 %v1472
    %v2169 = vunpack.c.h.b16 %v1472
    %v2170 = vunpack.c.l.b16 %v1473
    %v2171 = vunpack.c.h.b16 %v1473
    %v2172 = vunpack.c.l.b16 %v1474
    %v2173 = vunpack.c.h.b16 %v1474
    %v2174 = vunpack.c.l.b16 %v1475
    %v2175 = vunpack.c.h.b16 %v1475
    %v2176 = vunpack.c.l.b16 %v1476
    %v2177 = vunpack.c.h.b16 %v1476
    %v2178 = vunpack.c.l.b16 %v1477
    %v2179 = vunpack.c.h.b16 %v1477
    %v2180 = vunpack.c.l.b16 %v1478
    %v2181 = vunpack.c.h.b16 %v1478
    %v2182 = vunpack.c.l.b16 %v1479
    %v2183 = vunpack.c.h.b16 %v1479
    %v2184 = vunpack.c.l.b16 %v1480
    %v2185 = vunpack.c.h.b16 %v1480
    %v2186 = vunpack.c.l.b16 %v1481
    %v2187 = vunpack.c.h.b16 %v1481
    %v2188 = vunpack.c.l.b16 %v1482
    %v2189 = vunpack.c.h.b16 %v1482
    %v2190 = vunpack.c.l.b16 %v1483
    %v2191 = vunpack.c.h.b16 %v1483
    %v2192 = vunpack.c.l.b16 %v1484
    %v2193 = vunpack.c.h.b16 %v1484
    %v2194 = vunpack.c.l.b16 %v1485
    %v2195 = vunpack.c.h.b16 %v1485
    %v2196 = vunpack.c.l.b16 %v1486
    %v2197 = vunpack.c.h.b16 %v1486
    %v2198 = vunpack.c.l.b16 %v1487
    %v2199 = vunpack.c.h.b16 %v1487
    %v2200 = vunpack.c.l.b16 %v1488
    %v2201 = vunpack.c.h.b16 %v1488
    %v2202 = vunpack.c.l.b16 %v1489
    %v2203 = vunpack.c.h.b16 %v1489
    %v2204 = vunpack.c.l.b16 %v1490
    %v2205 = vunpack.c.h.b16 %v1490
    %v2206 = vunpack.c.l.b16 %v1491
    %v2207 = vunpack.c.h.b16 %v1491
    %v2208 = vunpack.c.l.b16 %v1492
    %v2209 = vunpack.c.h.b16 %v1492
    %v2210 = vunpack.c.l.b16 %v1493
    %v2211 = vunpack.c.h.b16 %v1493
    %v2212 = vunpack.c.l.b16 %v1494
    %v2213 = vunpack.c.h.b16 %v1494
    %v2214 = vunpack.c.l.b16 %v1495
    %v2215 = vunpack.c.h.b16 %v1495
    %v2216 = vunpack.c.l.b16 %v1496
    %v2217 = vunpack.c.h.b16 %v1496
    %v2218 = vunpack.c.l.b16 %v1497
    %v2219 = vunpack.c.h.b16 %v1497
    %v2220 = vunpack.c.l.b16 %v1498
    %v2221 = vunpack.c.h.b16 %v1498
    %v2222 = vunpack.c.l.b16 %v1499
    %v2223 = vunpack.c.h.b16 %v1499
    %v2224 = vunpack.c.l.b16 %v1500
    %v2225 = vunpack.c.h.b16 %v1500
    %v2226 = vunpack.c.l.b16 %v1501
    %v2227 = vunpack.c.h.b16 %v1501
    %v2228 = vunpack.c.l.b16 %v1502
    %v2229 = vunpack.c.h.b16 %v1502
    %v2230 = vunpack.c.l.b16 %v1503
    %v2231 = vunpack.c.h.b16 %v1503
    %v2232 = vunpack.c.l.b16 %v1504
    %v2233 = vunpack.c.h.b16 %v1504
    %v2234 = vunpack.c.l.b16 %v1505
    %v2235 = vunpack.c.h.b16 %v1505
    %v2236 = vunpack.c.l.b16 %v1506
    %v2237 = vunpack.c.h.b16 %v1506
    %v2238 = vunpack.c.l.b16 %v1507
    %v2239 = vunpack.c.h.b16 %v1507
    %v2240 = vunpack.c.l.b16 %v1508
    %v2241 = vunpack.c.h.b16 %v1508
    %v2242 = vunpack.c.l.b16 %v1509
    %v2243 = vunpack.c.h.b16 %v1509
    %v2244 = vunpack.c.l.b16 %v1510
    %v2245 = vunpack.c.h.b16 %v1510
    %v2246 = vunpack.c.l.b16 %v1511
    %v2247 = vunpack.c.h.b16 %v1511
    %v2248 = vunpack.c.l.b16 %v1512
    %v2249 = vunpack.c.h.b16 %v1512
    %v2250 = vunpack.c.l.b16 %v1513
    %v2251 = vunpack.c.h.b16 %v1513
    %v2252 = vunpack.c.l.b16 %v1514
    %v2253 = vunpack.c.h.b16 %v1514
    %v2254 = vunpack.c.l.b16 %v1515
    %v2255 = vunpack.c.h.b16 %v1515
    %v2256 = vunpack.c.l.b16 %v1516
    %v2257 = vunpack.c.h.b16 %v1516
    %v2258 = vunpack.c.l.b16 %v1517
    %v2259 = vunpack.c.h.b16 %v1517
    %v2260 = vunpack.c.l.b16 %v1518
    %v2261 = vunpack.c.h.b16 %v1518
    %v2262 = vunpack.c.l.b16 %v1519
    %v2263 = vunpack.c.h.b16 %v1519
    %v2264 = vunpack.c.l.b16 %v1520
    %v2265 = vunpack.c.h.b16 %v1520
    %v2266 = vunpack.c.l.b16 %v1521
    %v2267 = vunpack.c.h.b16 %v1521
    %v2268 = vunpack.c.l.b16 %v1522
    %v2269 = vunpack.c.h.b16 %v1522
    %v2270 = vunpack.c.l.b16 %v1523
    %v2271 = vunpack.c.h.b16 %v1523
    %v2272 = vunpack.c.l.b16 %v1524
    %v2273 = vunpack.c.h.b16 %v1524
    %v2274 = vunpack.c.l.b16 %v1525
    %v2275 = vunpack.c.h.b16 %v1525
    %v2276 = vunpack.c.l.b16 %v1526
    %v2277 = vunpack.c.h.b16 %v1526
    %v2278 = vunpack.c.l.b16 %v1527
    %v2279 = vunpack.c.h.b16 %v1527
    %v2280 = vunpack.c.l.b16 %v1528
    %v2281 = vunpack.c.h.b16 %v1528
    %v2282 = vunpack.c.l.b16 %v1529
    %v2283 = vunpack.c.h.b16 %v1529
    %v2284 = vunpack.c.l.b16 %v1530
    %v2285 = vunpack.c.h.b16 %v1530
    %v2286 = vunpack.c.l.b16 %v1531
    %v2287 = vunpack.c.h.b16 %v1531
    %v2288 = vunpack.c.l.b16 %v1532
    %v2289 = vunpack.c.h.b16 %v1532
    %v2290 = vunpack.c.l.b16 %v1533
    %v2291 = vunpack.c.h.b16 %v1533
    %v2292 = vunpack.c.l.b16 %v1534
    %v2293 = vunpack.c.h.b16 %v1534
    %v2294 = vunpack.c.l.b16 %v1535
    %v2295 = vunpack.c.h.b16 %v1535
    %v2296 = vunpack.c.l.b16 %v1536
    %v2297 = vunpack.c.h.b16 %v1536
    %v2298 = vunpack.c.l.b16 %v1537
    %v2299 = vunpack.c.h.b16 %v1537
    %v2300 = vunpack.c.l.b16 %v1538
    %v2301 = vunpack.c.h.b16 %v1538
    %v2302 = vunpack.c.l.b16 %v1539
    %v2303 = vunpack.c.h.b16 %v1539
    %v2304 = vunpack.c.l.b16 %v1540
    %v2305 = vunpack.c.h.b16 %v1540
    %v2306 = vunpack.c.l.b16 %v1541
    %v2307 = vunpack.c.h.b16 %v1541
    %v2308 = vunpack.c.l.b16 %v1542
    %v2309 = vunpack.c.h.b16 %v1542
    %v2310 = vunpack.c.l.b16 %v1543
    %v2311 = vunpack.c.h.b16 %v1543
    %v2312 = vunpack.c.l.b16 %v1544
    %v2313 = vunpack.c.h.b16 %v1544
    %v2314 = vunpack.c.l.b16 %v1545
    %v2315 = vunpack.c.h.b16 %v1545
    %v2316 = vunpack.c.l.b16 %v1546
    %v2317 = vunpack.c.h.b16 %v1546
    %v2318 = vunpack.c.l.b16 %v1547
    %v2319 = vunpack.c.h.b16 %v1547
    %v2320 = vunpack.c.l.b16 %v1548
    %v2321 = vunpack.c.h.b16 %v1548
    %v2322 = vunpack.c.l.b16 %v1549
    %v2323 = vunpack.c.h.b16 %v1549
    %v2324 = vunpack.c.l.b16 %v1550
    %v2325 = vunpack.c.h.b16 %v1550
    %v2326 = vunpack.c.l.b16 %v1551
    %v2327 = vunpack.c.h.b16 %v1551
    %v2328 = vunpack.c.l.b16 %v1552
    %v2329 = vunpack.c.h.b16 %v1552
    %v2330 = vunpack.c.l.b16 %v1553
    %v2331 = vunpack.c.h.b16 %v1553
    %v2332 = vunpack.c.l.b16 %v1554
    %v2333 = vunpack.c.h.b16 %v1554
    %v2334 = vunpack.c.l.b16 %v1555
    %v2335 = vunpack.c.h.b16 %v1555
    %v2336 = vunpack.c.l.b16 %v1556
    %v2337 = vunpack.c.h.b16 %v1556
    %v2338 = vunpack.c.l.b16 %v1557
    %v2339 = vunpack.c.h.b16 %v1557
    %v2340 = vunpack.c.l.b16 %v1558
    %v2341 = vunpack.c.h.b16 %v1558
    %v2342 = vunpack.c.l.b16 %v1559
    %v2343 = vunpack.c.h.b16 %v1559
    %v2344 = vunpack.c.l.b16 %v1560
    %v2345 = vunpack.c.h.b16 %v1560
    %v2346 = vunpack.c.l.b16 %v1561
    %v2347 = vunpack.c.h.b16 %v1561
    %v2348 = vpack.c.b16 %v1844, %v1836
    %v2349 = vpack.c.b16 %v1845, %v1837
    %v2350 = vpack.c.b16 %v1846, %v1838
    %v2351 = vpack.c.b16 %v1847, %v1839
    %v2352 = vpack.c.b16 %v1848, %v1840
    %v2353 = vpack.c.b16 %v1849, %v1841
    %v2354 = vpack.c.b16 %v1850, %v1842
    %v2355 = vpack.c.b16 %v1851, %v1843
    %v2356 = vpack.c.b16 %v1860, %v1852
    %v2357 = vpack.c.b16 %v1861, %v1853
    %v2358 = vpack.c.b16 %v1862, %v1854
    %v2359 = vpack.c.b16 %v1863, %v1855
    %v2360 = vpack.c.b16 %v1864, %v1856
    %v2361 = vpack.c.b16 %v1865, %v1857
    %v2362 = vpack.c.b16 %v1866, %v1858
    %v2363 = vpack.c.b16 %v1867, %v1859
    %v2364 = vpack.c.b16 %v1876, %v1868
    %v2365 = vpack.c.b16 %v1877, %v1869
    %v2366 = vpack.c.b16 %v1878, %v1870
    %v2367 = vpack.c.b16 %v1879, %v1871
    %v2368 = vpack.c.b16 %v1880, %v1872
    %v2369 = vpack.c.b16 %v1881, %v1873
    %v2370 = vpack.c.b16 %v1882, %v1874
    %v2371 = vpack.c.b16 %v1883, %v1875
    %v2372 = vpack.c.b16 %v1892, %v1884
    %v2373 = vpack.c.b16 %v1893, %v1885
    %v2374 = vpack.c.b16 %v1894, %v1886
    %v2375 = vpack.c.b16 %v1895, %v1887
    %v2376 = vpack.c.b16 %v1896, %v1888
    %v2377 = vpack.c.b16 %v1897, %v1889
    %v2378 = vpack.c.b16 %v1898, %v1890
    %v2379 = vpack.c.b16 %v1899, %v1891
    %v2380 = vpack.c.b16 %v1908, %v1900
    %v2381 = vpack.c.b16 %v1909, %v1901
    %v2382 = vpack.c.b16 %v1910, %v1902
    %v2383 = vpack.c.b16 %v1911, %v1903
    %v2384 = vpack.c.b16 %v1912, %v1904
    %v2385 = vpack.c.b16 %v1913, %v1905
    %v2386 = vpack.c.b16 %v1914, %v1906
    %v2387 = vpack.c.b16 %v1915, %v1907
    %v2388 = vpack.c.b16 %v1924, %v1916
    %v2389 = vpack.c.b16 %v1925, %v1917
    %v2390 = vpack.c.b16 %v1926, %v1918
    %v2391 = vpack.c.b16 %v1927, %v1919
    %v2392 = vpack.c.b16 %v1928, %v1920
    %v2393 = vpack.c.b16 %v1929, %v1921
    %v2394 = vpack.c.b16 %v1930, %v1922
    %v2395 = vpack.c.b16 %v1931, %v1923
    %v2396 = vpack.c.b16 %v1940, %v1932
    %v2397 = vpack.c.b16 %v1941, %v1933
    %v2398 = vpack.c.b16 %v1942, %v1934
    %v2399 = vpack.c.b16 %v1943, %v1935
    %v2400 = vpack.c.b16 %v1944, %v1936
    %v2401 = vpack.c.b16 %v1945, %v1937
    %v2402 = vpack.c.b16 %v1946, %v1938
    %v2403 = vpack.c.b16 %v1947, %v1939
    %v2404 = vpack.c.b16 %v1956, %v1948
    %v2405 = vpack.c.b16 %v1957, %v1949
    %v2406 = vpack.c.b16 %v1958, %v1950
    %v2407 = vpack.c.b16 %v1959, %v1951
    %v2408 = vpack.c.b16 %v1960, %v1952
    %v2409 = vpack.c.b16 %v1961, %v1953
    %v2410 = vpack.c.b16 %v1962, %v1954
    %v2411 = vpack.c.b16 %v1963, %v1955
    %v2412 = vpack.c.b16 %v1972, %v1964
    %v2413 = vpack.c.b16 %v1973, %v1965
    %v2414 = vpack.c.b16 %v1974, %v1966
    %v2415 = vpack.c.b16 %v1975, %v1967
    %v2416 = vpack.c.b16 %v1976, %v1968
    %v2417 = vpack.c.b16 %v1977, %v1969
    %v2418 = vpack.c.b16 %v1978, %v1970
    %v2419 = vpack.c.b16 %v1979, %v1971
    %v2420 = vpack.c.b16 %v1988, %v1980
    %v2421 = vpack.c.b16 %v1989, %v1981
    %v2422 = vpack.c.b16 %v1990, %v1982
    %v2423 = vpack.c.b16 %v1991, %v1983
    %v2424 = vpack.c.b16 %v1992, %v1984
    %v2425 = vpack.c.b16 %v1993, %v1985
    %v2426 = vpack.c.b16 %v1994, %v1986
    %v2427 = vpack.c.b16 %v1995, %v1987
    %v2428 = vpack.c.b16 %v2004, %v1996
    %v2429 = vpack.c.b16 %v2005, %v1997
    %v2430 = vpack.c.b16 %v2006, %v1998
    %v2431 = vpack.c.b16 %v2007, %v1999
    %v2432 = vpack.c.b16 %v2008, %v2000
    %v2433 = vpack.c.b16 %v2009, %v2001
    %v2434 = vpack.c.b16 %v2010, %v2002
    %v2435 = vpack.c.b16 %v2011, %v2003
    %v2436 = vpack.c.b16 %v2020, %v2012
    %v2437 = vpack.c.b16 %v2021, %v2013
    %v2438 = vpack.c.b16 %v2022, %v2014
    %v2439 = vpack.c.b16 %v2023, %v2015
    %v2440 = vpack.c.b16 %v2024, %v2016
    %v2441 = vpack.c.b16 %v2025, %v2017
    %v2442 = vpack.c.b16 %v2026, %v2018
    %v2443 = vpack.c.b16 %v2027, %v2019
    %v2444 = vpack.c.b16 %v2036, %v2028
    %v2445 = vpack.c.b16 %v2037, %v2029
    %v2446 = vpack.c.b16 %v2038, %v2030
    %v2447 = vpack.c.b16 %v2039, %v2031
    %v2448 = vpack.c.b16 %v2040, %v2032
    %v2449 = vpack.c.b16 %v2041, %v2033
    %v2450 = vpack.c.b16 %v2042, %v2034
    %v2451 = vpack.c.b16 %v2043, %v2035
    %v2452 = vpack.c.b16 %v2052, %v2044
    %v2453 = vpack.c.b16 %v2053, %v2045
    %v2454 = vpack.c.b16 %v2054, %v2046
    %v2455 = vpack.c.b16 %v2055, %v2047
    %v2456 = vpack.c.b16 %v2056, %v2048
    %v2457 = vpack.c.b16 %v2057, %v2049
    %v2458 = vpack.c.b16 %v2058, %v2050
    %v2459 = vpack.c.b16 %v2059, %v2051
    %v2460 = vpack.c.b16 %v2068, %v2060
    %v2461 = vpack.c.b16 %v2069, %v2061
    %v2462 = vpack.c.b16 %v2070, %v2062
    %v2463 = vpack.c.b16 %v2071, %v2063
    %v2464 = vpack.c.b16 %v2072, %v2064
    %v2465 = vpack.c.b16 %v2073, %v2065
    %v2466 = vpack.c.b16 %v2074, %v2066
    %v2467 = vpack.c.b16 %v2075, %v2067
    %v2468 = vpack.c.b16 %v2084, %v2076
    %v2469 = vpack.c.b16 %v2085, %v2077
    %v2470 = vpack.c.b16 %v2086, %v2078
    %v2471 = vpack.c.b16 %v2087, %v2079
    %v2472 = vpack.c.b16 %v2088, %v2080
    %v2473 = vpack.c.b16 %v2089, %v2081
    %v2474 = vpack.c.b16 %v2090, %v2082
    %v2475 = vpack.c.b16 %v2091, %v2083
    %v2476 = vpack.c.b16 %v2100, %v2092
    %v2477 = vpack.c.b16 %v2101, %v2093
    %v2478 = vpack.c.b16 %v2102, %v2094
    %v2479 = vpack.c.b16 %v2103, %v2095
    %v2480 = vpack.c.b16 %v2104, %v2096
    %v2481 = vpack.c.b16 %v2105, %v2097
    %v2482 = vpack.c.b16 %v2106, %v2098
    %v2483 = vpack.c.b16 %v2107, %v2099
    %v2484 = vpack.c.b16 %v2116, %v2108
    %v2485 = vpack.c.b16 %v2117, %v2109
    %v2486 = vpack.c.b16 %v2118, %v2110
    %v2487 = vpack.c.b16 %v2119, %v2111
    %v2488 = vpack.c.b16 %v2120, %v2112
    %v2489 = vpack.c.b16 %v2121, %v2113
    %v2490 = vpack.c.b16 %v2122, %v2114
    %v2491 = vpack.c.b16 %v2123, %v2115
    %v2492 = vpack.c.b16 %v2132, %v2124
    %v2493 = vpack.c.b16 %v2133, %v2125
    %v2494 = vpack.c.b16 %v2134, %v2126
    %v2495 = vpack.c.b16 %v2135, %v2127
    %v2496 = vpack.c.b16 %v2136, %v2128
    %v2497 = vpack.c.b16 %v2137, %v2129
    %v2498 = vpack.c.b16 %v2138, %v2130
    %v2499 = vpack.c.b16 %v2139, %v2131
    %v2500 = vpack.c.b16 %v2148, %v2140
    %v2501 = vpack.c.b16 %v2149, %v2141
    %v2502 = vpack.c.b16 %v2150, %v2142
    %v2503 = vpack.c.b16 %v2151, %v2143
    %v2504 = vpack.c.b16 %v2152, %v2144
    %v2505 = vpack.c.b16 %v2153, %v2145
    %v2506 = vpack.c.b16 %v2154, %v2146
    %v2507 = vpack.c.b16 %v2155, %v2147
    %v2508 = vpack.c.b16 %v2164, %v2156
    %v2509 = vpack.c.b16 %v2165, %v2157
    %v2510 = vpack.c.b16 %v2166, %v2158
    %v2511 = vpack.c.b16 %v2167, %v2159
    %v2512 = vpack.c.b16 %v2168, %v2160
    %v2513 = vpack.c.b16 %v2169, %v2161
    %v2514 = vpack.c.b16 %v2170, %v2162
    %v2515 = vpack.c.b16 %v2171, %v2163
    %v2516 = vpack.c.b16 %v2180, %v2172
    %v2517 = vpack.c.b16 %v2181, %v2173
    %v2518 = vpack.c.b16 %v2182, %v2174
    %v2519 = vpack.c.b16 %v2183, %v2175
    %v2520 = vpack.c.b16 %v2184, %v2176
    %v2521 = vpack.c.b16 %v2185, %v2177
    %v2522 = vpack.c.b16 %v2186, %v2178
    %v2523 = vpack.c.b16 %v2187, %v2179
    %v2524 = vpack.c.b16 %v2196, %v2188
    %v2525 = vpack.c.b16 %v2197, %v2189
    %v2526 = vpack.c.b16 %v2198, %v2190
    %v2527 = vpack.c.b16 %v2199, %v2191
    %v2528 = vpack.c.b16 %v2200, %v2192
    %v2529 = vpack.c.b16 %v2201, %v2193
    %v2530 = vpack.c.b16 %v2202, %v2194
    %v2531 = vpack.c.b16 %v2203, %v2195
    %v2532 = vpack.c.b16 %v2212, %v2204
    %v2533 = vpack.c.b16 %v2213, %v2205
    %v2534 = vpack.c.b16 %v2214, %v2206
    %v2535 = vpack.c.b16 %v2215, %v2207
    %v2536 = vpack.c.b16 %v2216, %v2208
    %v2537 = vpack.c.b16 %v2217, %v2209
    %v2538 = vpack.c.b16 %v2218, %v2210
    %v2539 = vpack.c.b16 %v2219, %v2211
    %v2540 = vpack.c.b16 %v2228, %v2220
    %v2541 = vpack.c.b16 %v2229, %v2221
    %v2542 = vpack.c.b16 %v2230, %v2222
    %v2543 = vpack.c.b16 %v2231, %v2223
    %v2544 = vpack.c.b16 %v2232, %v2224
    %v2545 = vpack.c.b16 %v2233, %v2225
    %v2546 = vpack.c.b16 %v2234, %v2226
    %v2547 = vpack.c.b16 %v2235, %v2227
    %v2548 = vpack.c.b16 %v2244, %v2236
    %v2549 = vpack.c.b16 %v2245, %v2237
    %v2550 = vpack.c.b16 %v2246, %v2238
    %v2551 = vpack.c.b16 %v2247, %v2239
    %v2552 = vpack.c.b16 %v2248, %v2240
    %v2553 = vpack.c.b16 %v2249, %v2241
    %v2554 = vpack.c.b16 %v2250, %v2242
    %v2555 = vpack.c.b16 %v2251, %v2243
    %v2556 = vpack.c.b16 %v2260, %v2252
    %v2557 = vpack.c.b16 %v2261, %v2253
    %v2558 = vpack.c.b16 %v2262, %v2254
    %v2559 = vpack.c.b16 %v2263, %v2255
    %v2560 = vpack.c.b16 %v2264, %v2256
    %v2561 = vpack.c.b16 %v2265, %v2257
    %v2562 = vpack.c.b16 %v2266, %v2258
    %v2563 = vpack.c.b16 %v2267, %v2259
    %v2564 = vpack.c.b16 %v2276, %v2268
    %v2565 = vpack.c.b16 %v2277, %v2269
    %v2566 = vpack.c.b16 %v2278, %v2270
    %v2567 = vpack.c.b16 %v2279, %v2271
    %v2568 = vpack.c.b16 %v2280, %v2272
    %v2569 = vpack.c.b16 %v2281, %v2273
    %v2570 = vpack.c.b16 %v2282, %v2274
    %v2571 = vpack.c.b16 %v2283, %v2275
    %v2572 = vpack.c.b16 %v2292, %v2284
    %v2573 = vpack.c.b16 %v2293, %v2285
    %v2574 = vpack.c.b16 %v2294, %v2286
    %v2575 = vpack.c.b16 %v2295, %v2287
    %v2576 = vpack.c.b16 %v2296, %v2288
    %v2577 = vpack.c.b16 %v2297, %v2289
    %v2578 = vpack.c.b16 %v2298, %v2290
    %v2579 = vpack.c.b16 %v2299, %v2291
    %v2580 = vpack.c.b16 %v2308, %v2300
    %v2581 = vpack.c.b16 %v2309, %v2301
    %v2582 = vpack.c.b16 %v2310, %v2302
    %v2583 = vpack.c.b16 %v2311, %v2303
    %v2584 = vpack.c.b16 %v2312, %v2304
    %v2585 = vpack.c.b16 %v2313, %v2305
    %v2586 = vpack.c.b16 %v2314, %v2306
    %v2587 = vpack.c.b16 %v2315, %v2307
    %v2588 = vpack.c.b16 %v2324, %v2316
    %v2589 = vpack.c.b16 %v2325, %v2317
    %v2590 = vpack.c.b16 %v2326, %v2318
    %v2591 = vpack.c.b16 %v2327, %v2319
    %v2592 = vpack.c.b16 %v2328, %v2320
    %v2593 = vpack.c.b16 %v2329, %v2321
    %v2594 = vpack.c.b16 %v2330, %v2322
    %v2595 = vpack.c.b16 %v2331, %v2323
    %v2596 = vpack.c.b16 %v2340, %v2332
    %v2597 = vpack.c.b16 %v2341, %v2333
    %v2598 = vpack.c.b16 %v2342, %v2334
    %v2599 = vpack.c.b16 %v2343, %v2335
    %v2600 = vpack.c.b16 %v2344, %v2336
    %v2601 = vpack.c.b16 %v2345, %v2337
    %v2602 = vpack.c.b16 %v2346, %v2338
    %v2603 = vpack.c.b16 %v2347, %v2339
    %2860 = vmatpush.bf16.msra.mxu0 %v2404
    %2861 = vmatpush.bf16.msra.mxu0 %v2396
    %2862 = vmatpush.bf16.msra.mxu0 %v2388
    %2863 = vmatpush.bf16.msra.mxu0 %v2380
    %2864 = vmatpush.bf16.msra.mxu0 %v2372
    %2865 = vmatpush.bf16.msra.mxu0 %v2364
    %2866 = vmatpush.bf16.msra.mxu0 %v2356
    %2867 = vmatpush.bf16.msra.mxu0 %v2348
    %2868 = vmatmul.bf16.gmra.mxu0 %v1286
    %v2869 = vpop.f32.mrf.mxu0
    %v2870 = vadd.f32 %v1564, %v2869
    %v2871 = vpop.f32.mrf.mxu0
    %v2872 = vadd.f32 %v1564, %v2871
    %2873 = vmatmul.bf16.gmra.mxu0 %v1290
    %v2874 = vpop.f32.mrf.mxu0
    %v2875 = vadd.f32 %v1564, %v2874
    %v2876 = vpop.f32.mrf.mxu0
    %v2877 = vadd.f32 %v1564, %v2876
    %2878 = vmatmul.bf16.gmra.mxu0 %v1294
    %v2879 = vpop.f32.mrf.mxu0
    %v2880 = vadd.f32 %v1564, %v2879
    %v2881 = vpop.f32.mrf.mxu0
    %v2882 = vadd.f32 %v1564, %v2881
    %2883 = vmatmul.bf16.gmra.mxu0 %v1298
    %v2884 = vpop.f32.mrf.mxu0
    %v2885 = vadd.f32 %v1564, %v2884
    %v2886 = vpop.f32.mrf.mxu0
    %v2887 = vadd.f32 %v1564, %v2886
    %2888 = vdwg.mxu0
    %2889 = vmatpush.bf16.msra.mxu0 %v2468
    %2890 = vmatpush.bf16.msra.mxu0 %v2460
    %2891 = vmatpush.bf16.msra.mxu0 %v2452
    %2892 = vmatpush.bf16.msra.mxu0 %v2444
    %2893 = vmatpush.bf16.msra.mxu0 %v2436
    %2894 = vmatpush.bf16.msra.mxu0 %v2428
    %2895 = vmatpush.bf16.msra.mxu0 %v2420
    %2896 = vmatpush.bf16.msra.mxu0 %v2412
    %2897 = vmatmul.bf16.gmra.mxu0 %v1287
    %v2898 = vpop.f32.mrf.mxu0
    %v2899 = vadd.f32 %v2870, %v2898
    %v2900 = vpop.f32.mrf.mxu0
    %v2901 = vadd.f32 %v2872, %v2900
    %2902 = vmatmul.bf16.gmra.mxu0 %v1291
    %v2903 = vpop.f32.mrf.mxu0
    %v2904 = vadd.f32 %v2875, %v2903
    %v2905 = vpop.f32.mrf.mxu0
    %v2906 = vadd.f32 %v2877, %v2905
    %2907 = vmatmul.bf16.gmra.mxu0 %v1295
    %v2908 = vpop.f32.mrf.mxu0
    %v2909 = vadd.f32 %v2880, %v2908
    %v2910 = vpop.f32.mrf.mxu0
    %v2911 = vadd.f32 %v2882, %v2910
    %2912 = vmatmul.bf16.gmra.mxu0 %v1299
    %v2913 = vpop.f32.mrf.mxu0
    %v2914 = vadd.f32 %v2885, %v2913
    %v2915 = vpop.f32.mrf.mxu0
    %v2916 = vadd.f32 %v2887, %v2915
    %2917 = vdwg.mxu0
    %2918 = vmatpush.bf16.msra.mxu0 %v2532
    %2919 = vmatpush.bf16.msra.mxu0 %v2524
    %2920 = vmatpush.bf16.msra.mxu0 %v2516
    %2921 = vmatpush.bf16.msra.mxu0 %v2508
    %2922 = vmatpush.bf16.msra.mxu0 %v2500
    %2923 = vmatpush.bf16.msra.mxu0 %v2492
    %2924 = vmatpush.bf16.msra.mxu0 %v2484
    %2925 = vmatpush.bf16.msra.mxu0 %v2476
    %2926 = vmatmul.bf16.gmra.mxu0 %v1288
    %v2927 = vpop.f32.mrf.mxu0
    %v2928 = vadd.f32 %v2899, %v2927
    %v2929 = vpop.f32.mrf.mxu0
    %v2930 = vadd.f32 %v2901, %v2929
    %2931 = vmatmul.bf16.gmra.mxu0 %v1292
    %v2932 = vpop.f32.mrf.mxu0
    %v2933 = vadd.f32 %v2904, %v2932
    %v2934 = vpop.f32.mrf.mxu0
    %v2935 = vadd.f32 %v2906, %v2934
    %2936 = vmatmul.bf16.gmra.mxu0 %v1296
    %v2937 = vpop.f32.mrf.mxu0
    %v2938 = vadd.f32 %v2909, %v2937
    %v2939 = vpop.f32.mrf.mxu0
    %v2940 = vadd.f32 %v2911, %v2939
    %2941 = vmatmul.bf16.gmra.mxu0 %v1300
    %v2942 = vpop.f32.mrf.mxu0
    %v2943 = vadd.f32 %v2914, %v2942
    %v2944 = vpop.f32.mrf.mxu0
    %v2945 = vadd.f32 %v2916, %v2944
    %2946 = vdwg.mxu0
    %2947 = vmatpush.bf16.msra.mxu0 %v2596
    %2948 = vmatpush.bf16.msra.mxu0 %v2588
    %2949 = vmatpush.bf16.msra.mxu0 %v2580
    %2950 = vmatpush.bf16.msra.mxu0 %v2572
    %2951 = vmatpush.bf16.msra.mxu0 %v2564
    %2952 = vmatpush.bf16.msra.mxu0 %v2556
    %2953 = vmatpush.bf16.msra.mxu0 %v2548
    %2954 = vmatpush.bf16.msra.mxu0 %v2540
    %2955 = vmatmul.bf16.gmra.mxu0 %v1289
    %v2956 = vpop.f32.mrf.mxu0
    %v2957 = vadd.f32 %v2928, %v2956
    %v2958 = vpop.f32.mrf.mxu0
    %v2959 = vadd.f32 %v2930, %v2958
    %2960 = vmatmul.bf16.gmra.mxu0 %v1293
    %v2961 = vpop.f32.mrf.mxu0
    %v2962 = vadd.f32 %v2933, %v2961
    %v2963 = vpop.f32.mrf.mxu0
    %v2964 = vadd.f32 %v2935, %v2963
    %2965 = vmatmul.bf16.gmra.mxu0 %v1297
    %v2966 = vpop.f32.mrf.mxu0
    %v2967 = vadd.f32 %v2938, %v2966
    %v2968 = vpop.f32.mrf.mxu0
    %v2969 = vadd.f32 %v2940, %v2968
    %2970 = vmatmul.bf16.gmra.mxu0 %v1301
    %v2971 = vpop.f32.mrf.mxu0
    %v2972 = vadd.f32 %v2943, %v2971
    %v2973 = vpop.f32.mrf.mxu0
    %v2974 = vadd.f32 %v2945, %v2973
    %2975 = vdwg.mxu0
    %2976 = vmatpush.bf16.msra.mxu0 %v2405
    %2977 = vmatpush.bf16.msra.mxu0 %v2397
    %2978 = vmatpush.bf16.msra.mxu0 %v2389
    %2979 = vmatpush.bf16.msra.mxu0 %v2381
    %2980 = vmatpush.bf16.msra.mxu0 %v2373
    %2981 = vmatpush.bf16.msra.mxu0 %v2365
    %2982 = vmatpush.bf16.msra.mxu0 %v2357
    %2983 = vmatpush.bf16.msra.mxu0 %v2349
    %2984 = vmatmul.bf16.gmra.mxu0 %v1286
    %v2985 = vpop.f32.mrf.mxu0
    %v2986 = vadd.f32 %v1565, %v2985
    %v2987 = vpop.f32.mrf.mxu0
    %v2988 = vadd.f32 %v1565, %v2987
    %2989 = vmatmul.bf16.gmra.mxu0 %v1290
    %v2990 = vpop.f32.mrf.mxu0
    %v2991 = vadd.f32 %v1565, %v2990
    %v2992 = vpop.f32.mrf.mxu0
    %v2993 = vadd.f32 %v1565, %v2992
    %2994 = vmatmul.bf16.gmra.mxu0 %v1294
    %v2995 = vpop.f32.mrf.mxu0
    %v2996 = vadd.f32 %v1565, %v2995
    %v2997 = vpop.f32.mrf.mxu0
    %v2998 = vadd.f32 %v1565, %v2997
    %2999 = vmatmul.bf16.gmra.mxu0 %v1298
    %v3000 = vpop.f32.mrf.mxu0
    %v3001 = vadd.f32 %v1565, %v3000
    %v3002 = vpop.f32.mrf.mxu0
    %v3003 = vadd.f32 %v1565, %v3002
    %3004 = vdwg.mxu0
    %3005 = vmatpush.bf16.msra.mxu0 %v2469
    %3006 = vmatpush.bf16.msra.mxu0 %v2461
    %3007 = vmatpush.bf16.msra.mxu0 %v2453
    %3008 = vmatpush.bf16.msra.mxu0 %v2445
    %3009 = vmatpush.bf16.msra.mxu0 %v2437
    %3010 = vmatpush.bf16.msra.mxu0 %v2429
    %3011 = vmatpush.bf16.msra.mxu0 %v2421
    %3012 = vmatpush.bf16.msra.mxu0 %v2413
    %3013 = vmatmul.bf16.gmra.mxu0 %v1287
    %v3014 = vpop.f32.mrf.mxu0
    %v3015 = vadd.f32 %v2986, %v3014
    %v3016 = vpop.f32.mrf.mxu0
    %v3017 = vadd.f32 %v2988, %v3016
    %3018 = vmatmul.bf16.gmra.mxu0 %v1291
    %v3019 = vpop.f32.mrf.mxu0
    %v3020 = vadd.f32 %v2991, %v3019
    %v3021 = vpop.f32.mrf.mxu0
    %v3022 = vadd.f32 %v2993, %v3021
    %3023 = vmatmul.bf16.gmra.mxu0 %v1295
    %v3024 = vpop.f32.mrf.mxu0
    %v3025 = vadd.f32 %v2996, %v3024
    %v3026 = vpop.f32.mrf.mxu0
    %v3027 = vadd.f32 %v2998, %v3026
    %3028 = vmatmul.bf16.gmra.mxu0 %v1299
    %v3029 = vpop.f32.mrf.mxu0
    %v3030 = vadd.f32 %v3001, %v3029
    %v3031 = vpop.f32.mrf.mxu0
    %v3032 = vadd.f32 %v3003, %v3031
    %3033 = vdwg.mxu0
    %3034 = vmatpush.bf16.msra.mxu0 %v2533
    %3035 = vmatpush.bf16.msra.mxu0 %v2525
    %3036 = vmatpush.bf16.msra.mxu0 %v2517
    %3037 = vmatpush.bf16.msra.mxu0 %v2509
    %3038 = vmatpush.bf16.msra.mxu0 %v2501
    %3039 = vmatpush.bf16.msra.mxu0 %v2493
    %3040 = vmatpush.bf16.msra.mxu0 %v2485
    %3041 = vmatpush.bf16.msra.mxu0 %v2477
    %3042 = vmatmul.bf16.gmra.mxu0 %v1288
    %v3043 = vpop.f32.mrf.mxu0
    %v3044 = vadd.f32 %v3015, %v3043
    %v3045 = vpop.f32.mrf.mxu0
    %v3046 = vadd.f32 %v3017, %v3045
    %3047 = vmatmul.bf16.gmra.mxu0 %v1292
    %v3048 = vpop.f32.mrf.mxu0
    %v3049 = vadd.f32 %v3020, %v3048
    %v3050 = vpop.f32.mrf.mxu0
    %v3051 = vadd.f32 %v3022, %v3050
    %3052 = vmatmul.bf16.gmra.mxu0 %v1296
    %v3053 = vpop.f32.mrf.mxu0
    %v3054 = vadd.f32 %v3025, %v3053
    %v3055 = vpop.f32.mrf.mxu0
    %v3056 = vadd.f32 %v3027, %v3055
    %3057 = vmatmul.bf16.gmra.mxu0 %v1300
    %v3058 = vpop.f32.mrf.mxu0
    %v3059 = vadd.f32 %v3030, %v3058
    %v3060 = vpop.f32.mrf.mxu0
    %v3061 = vadd.f32 %v3032, %v3060
    %3062 = vdwg.mxu0
    %3063 = vmatpush.bf16.msra.mxu0 %v2597
    %3064 = vmatpush.bf16.msra.mxu0 %v2589
    %3065 = vmatpush.bf16.msra.mxu0 %v2581
    %3066 = vmatpush.bf16.msra.mxu0 %v2573
    %3067 = vmatpush.bf16.msra.mxu0 %v2565
    %3068 = vmatpush.bf16.msra.mxu0 %v2557
    %3069 = vmatpush.bf16.msra.mxu0 %v2549
    %3070 = vmatpush.bf16.msra.mxu0 %v2541
    %3071 = vmatmul.bf16.gmra.mxu0 %v1289
    %v3072 = vpop.f32.mrf.mxu0
    %v3073 = vadd.f32 %v3044, %v3072
    %v3074 = vpop.f32.mrf.mxu0
    %v3075 = vadd.f32 %v3046, %v3074
    %3076 = vmatmul.bf16.gmra.mxu0 %v1293
    %v3077 = vpop.f32.mrf.mxu0
    %v3078 = vadd.f32 %v3049, %v3077
    %v3079 = vpop.f32.mrf.mxu0
    %v3080 = vadd.f32 %v3051, %v3079
    %3081 = vmatmul.bf16.gmra.mxu0 %v1297
    %v3082 = vpop.f32.mrf.mxu0
    %v3083 = vadd.f32 %v3054, %v3082
    %v3084 = vpop.f32.mrf.mxu0
    %v3085 = vadd.f32 %v3056, %v3084
    %3086 = vmatmul.bf16.gmra.mxu0 %v1301
    %v3087 = vpop.f32.mrf.mxu0
    %v3088 = vadd.f32 %v3059, %v3087
    %v3089 = vpop.f32.mrf.mxu0
    %v3090 = vadd.f32 %v3061, %v3089
    %3091 = vdwg.mxu0
    %3092 = vmatpush.bf16.msra.mxu0 %v2406
    %3093 = vmatpush.bf16.msra.mxu0 %v2398
    %3094 = vmatpush.bf16.msra.mxu0 %v2390
    %3095 = vmatpush.bf16.msra.mxu0 %v2382
    %3096 = vmatpush.bf16.msra.mxu0 %v2374
    %3097 = vmatpush.bf16.msra.mxu0 %v2366
    %3098 = vmatpush.bf16.msra.mxu0 %v2358
    %3099 = vmatpush.bf16.msra.mxu0 %v2350
    %3100 = vmatmul.bf16.gmra.mxu0 %v1286
    %v3101 = vpop.f32.mrf.mxu0
    %v3102 = vadd.f32 %v1566, %v3101
    %v3103 = vpop.f32.mrf.mxu0
    %v3104 = vadd.f32 %v1566, %v3103
    %3105 = vmatmul.bf16.gmra.mxu0 %v1290
    %v3106 = vpop.f32.mrf.mxu0
    %v3107 = vadd.f32 %v1566, %v3106
    %v3108 = vpop.f32.mrf.mxu0
    %v3109 = vadd.f32 %v1566, %v3108
    %3110 = vmatmul.bf16.gmra.mxu0 %v1294
    %v3111 = vpop.f32.mrf.mxu0
    %v3112 = vadd.f32 %v1566, %v3111
    %v3113 = vpop.f32.mrf.mxu0
    %v3114 = vadd.f32 %v1566, %v3113
    %3115 = vmatmul.bf16.gmra.mxu0 %v1298
    %v3116 = vpop.f32.mrf.mxu0
    %v3117 = vadd.f32 %v1566, %v3116
    %v3118 = vpop.f32.mrf.mxu0
    %v3119 = vadd.f32 %v1566, %v3118
    %3120 = vdwg.mxu0
    %3121 = vmatpush.bf16.msra.mxu0 %v2470
    %3122 = vmatpush.bf16.msra.mxu0 %v2462
    %3123 = vmatpush.bf16.msra.mxu0 %v2454
    %3124 = vmatpush.bf16.msra.mxu0 %v2446
    %3125 = vmatpush.bf16.msra.mxu0 %v2438
    %3126 = vmatpush.bf16.msra.mxu0 %v2430
    %3127 = vmatpush.bf16.msra.mxu0 %v2422
    %3128 = vmatpush.bf16.msra.mxu0 %v2414
    %3129 = vmatmul.bf16.gmra.mxu0 %v1287
    %v3130 = vpop.f32.mrf.mxu0
    %v3131 = vadd.f32 %v3102, %v3130
    %v3132 = vpop.f32.mrf.mxu0
    %v3133 = vadd.f32 %v3104, %v3132
    %3134 = vmatmul.bf16.gmra.mxu0 %v1291
    %v3135 = vpop.f32.mrf.mxu0
    %v3136 = vadd.f32 %v3107, %v3135
    %v3137 = vpop.f32.mrf.mxu0
    %v3138 = vadd.f32 %v3109, %v3137
    %3139 = vmatmul.bf16.gmra.mxu0 %v1295
    %v3140 = vpop.f32.mrf.mxu0
    %v3141 = vadd.f32 %v3112, %v3140
    %v3142 = vpop.f32.mrf.mxu0
    %v3143 = vadd.f32 %v3114, %v3142
    %3144 = vmatmul.bf16.gmra.mxu0 %v1299
    %v3145 = vpop.f32.mrf.mxu0
    %v3146 = vadd.f32 %v3117, %v3145
    %v3147 = vpop.f32.mrf.mxu0
    %v3148 = vadd.f32 %v3119, %v3147
    %3149 = vdwg.mxu0
    %3150 = vmatpush.bf16.msra.mxu0 %v2534
    %3151 = vmatpush.bf16.msra.mxu0 %v2526
    %3152 = vmatpush.bf16.msra.mxu0 %v2518
    %3153 = vmatpush.bf16.msra.mxu0 %v2510
    %3154 = vmatpush.bf16.msra.mxu0 %v2502
    %3155 = vmatpush.bf16.msra.mxu0 %v2494
    %3156 = vmatpush.bf16.msra.mxu0 %v2486
    %3157 = vmatpush.bf16.msra.mxu0 %v2478
    %3158 = vmatmul.bf16.gmra.mxu0 %v1288
    %v3159 = vpop.f32.mrf.mxu0
    %v3160 = vadd.f32 %v3131, %v3159
    %v3161 = vpop.f32.mrf.mxu0
    %v3162 = vadd.f32 %v3133, %v3161
    %3163 = vmatmul.bf16.gmra.mxu0 %v1292
    %v3164 = vpop.f32.mrf.mxu0
    %v3165 = vadd.f32 %v3136, %v3164
    %v3166 = vpop.f32.mrf.mxu0
    %v3167 = vadd.f32 %v3138, %v3166
    %3168 = vmatmul.bf16.gmra.mxu0 %v1296
    %v3169 = vpop.f32.mrf.mxu0
    %v3170 = vadd.f32 %v3141, %v3169
    %v3171 = vpop.f32.mrf.mxu0
    %v3172 = vadd.f32 %v3143, %v3171
    %3173 = vmatmul.bf16.gmra.mxu0 %v1300
    %v3174 = vpop.f32.mrf.mxu0
    %v3175 = vadd.f32 %v3146, %v3174
    %v3176 = vpop.f32.mrf.mxu0
    %v3177 = vadd.f32 %v3148, %v3176
    %3178 = vdwg.mxu0
    %3179 = vmatpush.bf16.msra.mxu0 %v2598
    %3180 = vmatpush.bf16.msra.mxu0 %v2590
    %3181 = vmatpush.bf16.msra.mxu0 %v2582
    %3182 = vmatpush.bf16.msra.mxu0 %v2574
    %3183 = vmatpush.bf16.msra.mxu0 %v2566
    %3184 = vmatpush.bf16.msra.mxu0 %v2558
    %3185 = vmatpush.bf16.msra.mxu0 %v2550
    %3186 = vmatpush.bf16.msra.mxu0 %v2542
    %3187 = vmatmul.bf16.gmra.mxu0 %v1289
    %v3188 = vpop.f32.mrf.mxu0
    %v3189 = vadd.f32 %v3160, %v3188
    %v3190 = vpop.f32.mrf.mxu0
    %v3191 = vadd.f32 %v3162, %v3190
    %3192 = vmatmul.bf16.gmra.mxu0 %v1293
    %v3193 = vpop.f32.mrf.mxu0
    %v3194 = vadd.f32 %v3165, %v3193
    %v3195 = vpop.f32.mrf.mxu0
    %v3196 = vadd.f32 %v3167, %v3195
    %3197 = vmatmul.bf16.gmra.mxu0 %v1297
    %v3198 = vpop.f32.mrf.mxu0
    %v3199 = vadd.f32 %v3170, %v3198
    %v3200 = vpop.f32.mrf.mxu0
    %v3201 = vadd.f32 %v3172, %v3200
    %3202 = vmatmul.bf16.gmra.mxu0 %v1301
    %v3203 = vpop.f32.mrf.mxu0
    %v3204 = vadd.f32 %v3175, %v3203
    %v3205 = vpop.f32.mrf.mxu0
    %v3206 = vadd.f32 %v3177, %v3205
    %3207 = vdwg.mxu0
    %3208 = vmatpush.bf16.msra.mxu0 %v2407
    %3209 = vmatpush.bf16.msra.mxu0 %v2399
    %3210 = vmatpush.bf16.msra.mxu0 %v2391
    %3211 = vmatpush.bf16.msra.mxu0 %v2383
    %3212 = vmatpush.bf16.msra.mxu0 %v2375
    %3213 = vmatpush.bf16.msra.mxu0 %v2367
    %3214 = vmatpush.bf16.msra.mxu0 %v2359
    %3215 = vmatpush.bf16.msra.mxu0 %v2351
    %3216 = vmatmul.bf16.gmra.mxu0 %v1286
    %v3217 = vpop.f32.mrf.mxu0
    %v3218 = vadd.f32 %v1567, %v3217
    %v3219 = vpop.f32.mrf.mxu0
    %v3220 = vadd.f32 %v1567, %v3219
    %3221 = vmatmul.bf16.gmra.mxu0 %v1290
    %v3222 = vpop.f32.mrf.mxu0
    %v3223 = vadd.f32 %v1567, %v3222
    %v3224 = vpop.f32.mrf.mxu0
    %v3225 = vadd.f32 %v1567, %v3224
    %3226 = vmatmul.bf16.gmra.mxu0 %v1294
    %v3227 = vpop.f32.mrf.mxu0
    %v3228 = vadd.f32 %v1567, %v3227
    %v3229 = vpop.f32.mrf.mxu0
    %v3230 = vadd.f32 %v1567, %v3229
    %3231 = vmatmul.bf16.gmra.mxu0 %v1298
    %v3232 = vpop.f32.mrf.mxu0
    %v3233 = vadd.f32 %v1567, %v3232
    %v3234 = vpop.f32.mrf.mxu0
    %v3235 = vadd.f32 %v1567, %v3234
    %3236 = vdwg.mxu0
    %3237 = vmatpush.bf16.msra.mxu0 %v2471
    %3238 = vmatpush.bf16.msra.mxu0 %v2463
    %3239 = vmatpush.bf16.msra.mxu0 %v2455
    %3240 = vmatpush.bf16.msra.mxu0 %v2447
    %3241 = vmatpush.bf16.msra.mxu0 %v2439
    %3242 = vmatpush.bf16.msra.mxu0 %v2431
    %3243 = vmatpush.bf16.msra.mxu0 %v2423
    %3244 = vmatpush.bf16.msra.mxu0 %v2415
    %3245 = vmatmul.bf16.gmra.mxu0 %v1287
    %v3246 = vpop.f32.mrf.mxu0
    %v3247 = vadd.f32 %v3218, %v3246
    %v3248 = vpop.f32.mrf.mxu0
    %v3249 = vadd.f32 %v3220, %v3248
    %3250 = vmatmul.bf16.gmra.mxu0 %v1291
    %v3251 = vpop.f32.mrf.mxu0
    %v3252 = vadd.f32 %v3223, %v3251
    %v3253 = vpop.f32.mrf.mxu0
    %v3254 = vadd.f32 %v3225, %v3253
    %3255 = vmatmul.bf16.gmra.mxu0 %v1295
    %v3256 = vpop.f32.mrf.mxu0
    %v3257 = vadd.f32 %v3228, %v3256
    %v3258 = vpop.f32.mrf.mxu0
    %v3259 = vadd.f32 %v3230, %v3258
    %3260 = vmatmul.bf16.gmra.mxu0 %v1299
    %v3261 = vpop.f32.mrf.mxu0
    %v3262 = vadd.f32 %v3233, %v3261
    %v3263 = vpop.f32.mrf.mxu0
    %v3264 = vadd.f32 %v3235, %v3263
    %3265 = vdwg.mxu0
    %3266 = vmatpush.bf16.msra.mxu0 %v2535
    %3267 = vmatpush.bf16.msra.mxu0 %v2527
    %3268 = vmatpush.bf16.msra.mxu0 %v2519
    %3269 = vmatpush.bf16.msra.mxu0 %v2511
    %3270 = vmatpush.bf16.msra.mxu0 %v2503
    %3271 = vmatpush.bf16.msra.mxu0 %v2495
    %3272 = vmatpush.bf16.msra.mxu0 %v2487
    %3273 = vmatpush.bf16.msra.mxu0 %v2479
    %3274 = vmatmul.bf16.gmra.mxu0 %v1288
    %v3275 = vpop.f32.mrf.mxu0
    %v3276 = vadd.f32 %v3247, %v3275
    %v3277 = vpop.f32.mrf.mxu0
    %v3278 = vadd.f32 %v3249, %v3277
    %3279 = vmatmul.bf16.gmra.mxu0 %v1292
    %v3280 = vpop.f32.mrf.mxu0
    %v3281 = vadd.f32 %v3252, %v3280
    %v3282 = vpop.f32.mrf.mxu0
    %v3283 = vadd.f32 %v3254, %v3282
    %3284 = vmatmul.bf16.gmra.mxu0 %v1296
    %v3285 = vpop.f32.mrf.mxu0
    %v3286 = vadd.f32 %v3257, %v3285
    %v3287 = vpop.f32.mrf.mxu0
    %v3288 = vadd.f32 %v3259, %v3287
    %3289 = vmatmul.bf16.gmra.mxu0 %v1300
    %v3290 = vpop.f32.mrf.mxu0
    %v3291 = vadd.f32 %v3262, %v3290
    %v3292 = vpop.f32.mrf.mxu0
    %v3293 = vadd.f32 %v3264, %v3292
    %3294 = vdwg.mxu0
    %3295 = vmatpush.bf16.msra.mxu0 %v2599
    %3296 = vmatpush.bf16.msra.mxu0 %v2591
    %3297 = vmatpush.bf16.msra.mxu0 %v2583
    %3298 = vmatpush.bf16.msra.mxu0 %v2575
    %3299 = vmatpush.bf16.msra.mxu0 %v2567
    %3300 = vmatpush.bf16.msra.mxu0 %v2559
    %3301 = vmatpush.bf16.msra.mxu0 %v2551
    %3302 = vmatpush.bf16.msra.mxu0 %v2543
    %3303 = vmatmul.bf16.gmra.mxu0 %v1289
    %v3304 = vpop.f32.mrf.mxu0
    %v3305 = vadd.f32 %v3276, %v3304
    %v3306 = vpop.f32.mrf.mxu0
    %v3307 = vadd.f32 %v3278, %v3306
    %3308 = vmatmul.bf16.gmra.mxu0 %v1293
    %v3309 = vpop.f32.mrf.mxu0
    %v3310 = vadd.f32 %v3281, %v3309
    %v3311 = vpop.f32.mrf.mxu0
    %v3312 = vadd.f32 %v3283, %v3311
    %3313 = vmatmul.bf16.gmra.mxu0 %v1297
    %v3314 = vpop.f32.mrf.mxu0
    %v3315 = vadd.f32 %v3286, %v3314
    %v3316 = vpop.f32.mrf.mxu0
    %v3317 = vadd.f32 %v3288, %v3316
    %3318 = vmatmul.bf16.gmra.mxu0 %v1301
    %v3319 = vpop.f32.mrf.mxu0
    %v3320 = vadd.f32 %v3291, %v3319
    %v3321 = vpop.f32.mrf.mxu0
    %v3322 = vadd.f32 %v3293, %v3321
    %3323 = vdwg.mxu0
    %3324 = vmatpush.bf16.msra.mxu0 %v2408
    %3325 = vmatpush.bf16.msra.mxu0 %v2400
    %3326 = vmatpush.bf16.msra.mxu0 %v2392
    %3327 = vmatpush.bf16.msra.mxu0 %v2384
    %3328 = vmatpush.bf16.msra.mxu0 %v2376
    %3329 = vmatpush.bf16.msra.mxu0 %v2368
    %3330 = vmatpush.bf16.msra.mxu0 %v2360
    %3331 = vmatpush.bf16.msra.mxu0 %v2352
    %3332 = vmatmul.bf16.gmra.mxu0 %v1286
    %v3333 = vpop.f32.mrf.mxu0
    %v3334 = vadd.f32 %v1568, %v3333
    %v3335 = vpop.f32.mrf.mxu0
    %v3336 = vadd.f32 %v1568, %v3335
    %3337 = vmatmul.bf16.gmra.mxu0 %v1290
    %v3338 = vpop.f32.mrf.mxu0
    %v3339 = vadd.f32 %v1568, %v3338
    %v3340 = vpop.f32.mrf.mxu0
    %v3341 = vadd.f32 %v1568, %v3340
    %3342 = vmatmul.bf16.gmra.mxu0 %v1294
    %v3343 = vpop.f32.mrf.mxu0
    %v3344 = vadd.f32 %v1568, %v3343
    %v3345 = vpop.f32.mrf.mxu0
    %v3346 = vadd.f32 %v1568, %v3345
    %3347 = vmatmul.bf16.gmra.mxu0 %v1298
    %v3348 = vpop.f32.mrf.mxu0
    %v3349 = vadd.f32 %v1568, %v3348
    %v3350 = vpop.f32.mrf.mxu0
    %v3351 = vadd.f32 %v1568, %v3350
    %3352 = vdwg.mxu0
    %3353 = vmatpush.bf16.msra.mxu0 %v2472
    %3354 = vmatpush.bf16.msra.mxu0 %v2464
    %3355 = vmatpush.bf16.msra.mxu0 %v2456
    %3356 = vmatpush.bf16.msra.mxu0 %v2448
    %3357 = vmatpush.bf16.msra.mxu0 %v2440
    %3358 = vmatpush.bf16.msra.mxu0 %v2432
    %3359 = vmatpush.bf16.msra.mxu0 %v2424
    %3360 = vmatpush.bf16.msra.mxu0 %v2416
    %3361 = vmatmul.bf16.gmra.mxu0 %v1287
    %v3362 = vpop.f32.mrf.mxu0
    %v3363 = vadd.f32 %v3334, %v3362
    %v3364 = vpop.f32.mrf.mxu0
    %v3365 = vadd.f32 %v3336, %v3364
    %3366 = vmatmul.bf16.gmra.mxu0 %v1291
    %v3367 = vpop.f32.mrf.mxu0
    %v3368 = vadd.f32 %v3339, %v3367
    %v3369 = vpop.f32.mrf.mxu0
    %v3370 = vadd.f32 %v3341, %v3369
    %3371 = vmatmul.bf16.gmra.mxu0 %v1295
    %v3372 = vpop.f32.mrf.mxu0
    %v3373 = vadd.f32 %v3344, %v3372
    %v3374 = vpop.f32.mrf.mxu0
    %v3375 = vadd.f32 %v3346, %v3374
    %3376 = vmatmul.bf16.gmra.mxu0 %v1299
    %v3377 = vpop.f32.mrf.mxu0
    %v3378 = vadd.f32 %v3349, %v3377
    %v3379 = vpop.f32.mrf.mxu0
    %v3380 = vadd.f32 %v3351, %v3379
    %3381 = vdwg.mxu0
    %3382 = vmatpush.bf16.msra.mxu0 %v2536
    %3383 = vmatpush.bf16.msra.mxu0 %v2528
    %3384 = vmatpush.bf16.msra.mxu0 %v2520
    %3385 = vmatpush.bf16.msra.mxu0 %v2512
    %3386 = vmatpush.bf16.msra.mxu0 %v2504
    %3387 = vmatpush.bf16.msra.mxu0 %v2496
    %3388 = vmatpush.bf16.msra.mxu0 %v2488
    %3389 = vmatpush.bf16.msra.mxu0 %v2480
    %3390 = vmatmul.bf16.gmra.mxu0 %v1288
    %v3391 = vpop.f32.mrf.mxu0
    %v3392 = vadd.f32 %v3363, %v3391
    %v3393 = vpop.f32.mrf.mxu0
    %v3394 = vadd.f32 %v3365, %v3393
    %3395 = vmatmul.bf16.gmra.mxu0 %v1292
    %v3396 = vpop.f32.mrf.mxu0
    %v3397 = vadd.f32 %v3368, %v3396
    %v3398 = vpop.f32.mrf.mxu0
    %v3399 = vadd.f32 %v3370, %v3398
    %3400 = vmatmul.bf16.gmra.mxu0 %v1296
    %v3401 = vpop.f32.mrf.mxu0
    %v3402 = vadd.f32 %v3373, %v3401
    %v3403 = vpop.f32.mrf.mxu0
    %v3404 = vadd.f32 %v3375, %v3403
    %3405 = vmatmul.bf16.gmra.mxu0 %v1300
    %v3406 = vpop.f32.mrf.mxu0
    %v3407 = vadd.f32 %v3378, %v3406
    %v3408 = vpop.f32.mrf.mxu0
    %v3409 = vadd.f32 %v3380, %v3408
    %3410 = vdwg.mxu0
    %3411 = vmatpush.bf16.msra.mxu0 %v2600
    %3412 = vmatpush.bf16.msra.mxu0 %v2592
    %3413 = vmatpush.bf16.msra.mxu0 %v2584
    %3414 = vmatpush.bf16.msra.mxu0 %v2576
    %3415 = vmatpush.bf16.msra.mxu0 %v2568
    %3416 = vmatpush.bf16.msra.mxu0 %v2560
    %3417 = vmatpush.bf16.msra.mxu0 %v2552
    %3418 = vmatpush.bf16.msra.mxu0 %v2544
    %3419 = vmatmul.bf16.gmra.mxu0 %v1289
    %v3420 = vpop.f32.mrf.mxu0
    %v3421 = vadd.f32 %v3392, %v3420
    %v3422 = vpop.f32.mrf.mxu0
    %v3423 = vadd.f32 %v3394, %v3422
    %3424 = vmatmul.bf16.gmra.mxu0 %v1293
    %v3425 = vpop.f32.mrf.mxu0
    %v3426 = vadd.f32 %v3397, %v3425
    %v3427 = vpop.f32.mrf.mxu0
    %v3428 = vadd.f32 %v3399, %v3427
    %3429 = vmatmul.bf16.gmra.mxu0 %v1297
    %v3430 = vpop.f32.mrf.mxu0
    %v3431 = vadd.f32 %v3402, %v3430
    %v3432 = vpop.f32.mrf.mxu0
    %v3433 = vadd.f32 %v3404, %v3432
    %3434 = vmatmul.bf16.gmra.mxu0 %v1301
    %v3435 = vpop.f32.mrf.mxu0
    %v3436 = vadd.f32 %v3407, %v3435
    %v3437 = vpop.f32.mrf.mxu0
    %v3438 = vadd.f32 %v3409, %v3437
    %3439 = vdwg.mxu0
    %3440 = vmatpush.bf16.msra.mxu0 %v2409
    %3441 = vmatpush.bf16.msra.mxu0 %v2401
    %3442 = vmatpush.bf16.msra.mxu0 %v2393
    %3443 = vmatpush.bf16.msra.mxu0 %v2385
    %3444 = vmatpush.bf16.msra.mxu0 %v2377
    %3445 = vmatpush.bf16.msra.mxu0 %v2369
    %3446 = vmatpush.bf16.msra.mxu0 %v2361
    %3447 = vmatpush.bf16.msra.mxu0 %v2353
    %3448 = vmatmul.bf16.gmra.mxu0 %v1286
    %v3449 = vpop.f32.mrf.mxu0
    %v3450 = vadd.f32 %v1569, %v3449
    %v3451 = vpop.f32.mrf.mxu0
    %v3452 = vadd.f32 %v1569, %v3451
    %3453 = vmatmul.bf16.gmra.mxu0 %v1290
    %v3454 = vpop.f32.mrf.mxu0
    %v3455 = vadd.f32 %v1569, %v3454
    %v3456 = vpop.f32.mrf.mxu0
    %v3457 = vadd.f32 %v1569, %v3456
    %3458 = vmatmul.bf16.gmra.mxu0 %v1294
    %v3459 = vpop.f32.mrf.mxu0
    %v3460 = vadd.f32 %v1569, %v3459
    %v3461 = vpop.f32.mrf.mxu0
    %v3462 = vadd.f32 %v1569, %v3461
    %3463 = vmatmul.bf16.gmra.mxu0 %v1298
    %v3464 = vpop.f32.mrf.mxu0
    %v3465 = vadd.f32 %v1569, %v3464
    %v3466 = vpop.f32.mrf.mxu0
    %v3467 = vadd.f32 %v1569, %v3466
    %3468 = vdwg.mxu0
    %3469 = vmatpush.bf16.msra.mxu0 %v2473
    %3470 = vmatpush.bf16.msra.mxu0 %v2465
    %3471 = vmatpush.bf16.msra.mxu0 %v2457
    %3472 = vmatpush.bf16.msra.mxu0 %v2449
    %3473 = vmatpush.bf16.msra.mxu0 %v2441
    %3474 = vmatpush.bf16.msra.mxu0 %v2433
    %3475 = vmatpush.bf16.msra.mxu0 %v2425
    %3476 = vmatpush.bf16.msra.mxu0 %v2417
    %3477 = vmatmul.bf16.gmra.mxu0 %v1287
    %v3478 = vpop.f32.mrf.mxu0
    %v3479 = vadd.f32 %v3450, %v3478
    %v3480 = vpop.f32.mrf.mxu0
    %v3481 = vadd.f32 %v3452, %v3480
    %3482 = vmatmul.bf16.gmra.mxu0 %v1291
    %v3483 = vpop.f32.mrf.mxu0
    %v3484 = vadd.f32 %v3455, %v3483
    %v3485 = vpop.f32.mrf.mxu0
    %v3486 = vadd.f32 %v3457, %v3485
    %3487 = vmatmul.bf16.gmra.mxu0 %v1295
    %v3488 = vpop.f32.mrf.mxu0
    %v3489 = vadd.f32 %v3460, %v3488
    %v3490 = vpop.f32.mrf.mxu0
    %v3491 = vadd.f32 %v3462, %v3490
    %3492 = vmatmul.bf16.gmra.mxu0 %v1299
    %v3493 = vpop.f32.mrf.mxu0
    %v3494 = vadd.f32 %v3465, %v3493
    %v3495 = vpop.f32.mrf.mxu0
    %v3496 = vadd.f32 %v3467, %v3495
    %3497 = vdwg.mxu0
    %3498 = vmatpush.bf16.msra.mxu0 %v2537
    %3499 = vmatpush.bf16.msra.mxu0 %v2529
    %3500 = vmatpush.bf16.msra.mxu0 %v2521
    %3501 = vmatpush.bf16.msra.mxu0 %v2513
    %3502 = vmatpush.bf16.msra.mxu0 %v2505
    %3503 = vmatpush.bf16.msra.mxu0 %v2497
    %3504 = vmatpush.bf16.msra.mxu0 %v2489
    %3505 = vmatpush.bf16.msra.mxu0 %v2481
    %3506 = vmatmul.bf16.gmra.mxu0 %v1288
    %v3507 = vpop.f32.mrf.mxu0
    %v3508 = vadd.f32 %v3479, %v3507
    %v3509 = vpop.f32.mrf.mxu0
    %v3510 = vadd.f32 %v3481, %v3509
    %3511 = vmatmul.bf16.gmra.mxu0 %v1292
    %v3512 = vpop.f32.mrf.mxu0
    %v3513 = vadd.f32 %v3484, %v3512
    %v3514 = vpop.f32.mrf.mxu0
    %v3515 = vadd.f32 %v3486, %v3514
    %3516 = vmatmul.bf16.gmra.mxu0 %v1296
    %v3517 = vpop.f32.mrf.mxu0
    %v3518 = vadd.f32 %v3489, %v3517
    %v3519 = vpop.f32.mrf.mxu0
    %v3520 = vadd.f32 %v3491, %v3519
    %3521 = vmatmul.bf16.gmra.mxu0 %v1300
    %v3522 = vpop.f32.mrf.mxu0
    %v3523 = vadd.f32 %v3494, %v3522
    %v3524 = vpop.f32.mrf.mxu0
    %v3525 = vadd.f32 %v3496, %v3524
    %3526 = vdwg.mxu0
    %3527 = vmatpush.bf16.msra.mxu0 %v2601
    %3528 = vmatpush.bf16.msra.mxu0 %v2593
    %3529 = vmatpush.bf16.msra.mxu0 %v2585
    %3530 = vmatpush.bf16.msra.mxu0 %v2577
    %3531 = vmatpush.bf16.msra.mxu0 %v2569
    %3532 = vmatpush.bf16.msra.mxu0 %v2561
    %3533 = vmatpush.bf16.msra.mxu0 %v2553
    %3534 = vmatpush.bf16.msra.mxu0 %v2545
    %3535 = vmatmul.bf16.gmra.mxu0 %v1289
    %v3536 = vpop.f32.mrf.mxu0
    %v3537 = vadd.f32 %v3508, %v3536
    %v3538 = vpop.f32.mrf.mxu0
    %v3539 = vadd.f32 %v3510, %v3538
    %3540 = vmatmul.bf16.gmra.mxu0 %v1293
    %v3541 = vpop.f32.mrf.mxu0
    %v3542 = vadd.f32 %v3513, %v3541
    %v3543 = vpop.f32.mrf.mxu0
    %v3544 = vadd.f32 %v3515, %v3543
    %3545 = vmatmul.bf16.gmra.mxu0 %v1297
    %v3546 = vpop.f32.mrf.mxu0
    %v3547 = vadd.f32 %v3518, %v3546
    %v3548 = vpop.f32.mrf.mxu0
    %v3549 = vadd.f32 %v3520, %v3548
    %3550 = vmatmul.bf16.gmra.mxu0 %v1301
    %v3551 = vpop.f32.mrf.mxu0
    %v3552 = vadd.f32 %v3523, %v3551
    %v3553 = vpop.f32.mrf.mxu0
    %v3554 = vadd.f32 %v3525, %v3553
    %3555 = vdwg.mxu0
    %3556 = vmatpush.bf16.msra.mxu0 %v2410
    %3557 = vmatpush.bf16.msra.mxu0 %v2402
    %3558 = vmatpush.bf16.msra.mxu0 %v2394
    %3559 = vmatpush.bf16.msra.mxu0 %v2386
    %3560 = vmatpush.bf16.msra.mxu0 %v2378
    %3561 = vmatpush.bf16.msra.mxu0 %v2370
    %3562 = vmatpush.bf16.msra.mxu0 %v2362
    %3563 = vmatpush.bf16.msra.mxu0 %v2354
    %3564 = vmatmul.bf16.gmra.mxu0 %v1286
    %v3565 = vpop.f32.mrf.mxu0
    %v3566 = vadd.f32 %v1570, %v3565
    %v3567 = vpop.f32.mrf.mxu0
    %v3568 = vadd.f32 %v1570, %v3567
    %3569 = vmatmul.bf16.gmra.mxu0 %v1290
    %v3570 = vpop.f32.mrf.mxu0
    %v3571 = vadd.f32 %v1570, %v3570
    %v3572 = vpop.f32.mrf.mxu0
    %v3573 = vadd.f32 %v1570, %v3572
    %3574 = vmatmul.bf16.gmra.mxu0 %v1294
    %v3575 = vpop.f32.mrf.mxu0
    %v3576 = vadd.f32 %v1570, %v3575
    %v3577 = vpop.f32.mrf.mxu0
    %v3578 = vadd.f32 %v1570, %v3577
    %3579 = vmatmul.bf16.gmra.mxu0 %v1298
    %v3580 = vpop.f32.mrf.mxu0
    %v3581 = vadd.f32 %v1570, %v3580
    %v3582 = vpop.f32.mrf.mxu0
    %v3583 = vadd.f32 %v1570, %v3582
    %3584 = vdwg.mxu0
    %3585 = vmatpush.bf16.msra.mxu0 %v2474
    %3586 = vmatpush.bf16.msra.mxu0 %v2466
    %3587 = vmatpush.bf16.msra.mxu0 %v2458
    %3588 = vmatpush.bf16.msra.mxu0 %v2450
    %3589 = vmatpush.bf16.msra.mxu0 %v2442
    %3590 = vmatpush.bf16.msra.mxu0 %v2434
    %3591 = vmatpush.bf16.msra.mxu0 %v2426
    %3592 = vmatpush.bf16.msra.mxu0 %v2418
    %3593 = vmatmul.bf16.gmra.mxu0 %v1287
    %v3594 = vpop.f32.mrf.mxu0
    %v3595 = vadd.f32 %v3566, %v3594
    %v3596 = vpop.f32.mrf.mxu0
    %v3597 = vadd.f32 %v3568, %v3596
    %3598 = vmatmul.bf16.gmra.mxu0 %v1291
    %v3599 = vpop.f32.mrf.mxu0
    %v3600 = vadd.f32 %v3571, %v3599
    %v3601 = vpop.f32.mrf.mxu0
    %v3602 = vadd.f32 %v3573, %v3601
    %3603 = vmatmul.bf16.gmra.mxu0 %v1295
    %v3604 = vpop.f32.mrf.mxu0
    %v3605 = vadd.f32 %v3576, %v3604
    %v3606 = vpop.f32.mrf.mxu0
    %v3607 = vadd.f32 %v3578, %v3606
    %3608 = vmatmul.bf16.gmra.mxu0 %v1299
    %v3609 = vpop.f32.mrf.mxu0
    %v3610 = vadd.f32 %v3581, %v3609
    %v3611 = vpop.f32.mrf.mxu0
    %v3612 = vadd.f32 %v3583, %v3611
    %3613 = vdwg.mxu0
    %3614 = vmatpush.bf16.msra.mxu0 %v2538
    %3615 = vmatpush.bf16.msra.mxu0 %v2530
    %3616 = vmatpush.bf16.msra.mxu0 %v2522
    %3617 = vmatpush.bf16.msra.mxu0 %v2514
    %3618 = vmatpush.bf16.msra.mxu0 %v2506
    %3619 = vmatpush.bf16.msra.mxu0 %v2498
    %3620 = vmatpush.bf16.msra.mxu0 %v2490
    %3621 = vmatpush.bf16.msra.mxu0 %v2482
    %3622 = vmatmul.bf16.gmra.mxu0 %v1288
    %v3623 = vpop.f32.mrf.mxu0
    %v3624 = vadd.f32 %v3595, %v3623
    %v3625 = vpop.f32.mrf.mxu0
    %v3626 = vadd.f32 %v3597, %v3625
    %3627 = vmatmul.bf16.gmra.mxu0 %v1292
    %v3628 = vpop.f32.mrf.mxu0
    %v3629 = vadd.f32 %v3600, %v3628
    %v3630 = vpop.f32.mrf.mxu0
    %v3631 = vadd.f32 %v3602, %v3630
    %3632 = vmatmul.bf16.gmra.mxu0 %v1296
    %v3633 = vpop.f32.mrf.mxu0
    %v3634 = vadd.f32 %v3605, %v3633
    %v3635 = vpop.f32.mrf.mxu0
    %v3636 = vadd.f32 %v3607, %v3635
    %3637 = vmatmul.bf16.gmra.mxu0 %v1300
    %v3638 = vpop.f32.mrf.mxu0
    %v3639 = vadd.f32 %v3610, %v3638
    %v3640 = vpop.f32.mrf.mxu0
    %v3641 = vadd.f32 %v3612, %v3640
    %3642 = vdwg.mxu0
    %3643 = vmatpush.bf16.msra.mxu0 %v2602
    %3644 = vmatpush.bf16.msra.mxu0 %v2594
    %3645 = vmatpush.bf16.msra.mxu0 %v2586
    %3646 = vmatpush.bf16.msra.mxu0 %v2578
    %3647 = vmatpush.bf16.msra.mxu0 %v2570
    %3648 = vmatpush.bf16.msra.mxu0 %v2562
    %3649 = vmatpush.bf16.msra.mxu0 %v2554
    %3650 = vmatpush.bf16.msra.mxu0 %v2546
    %3651 = vmatmul.bf16.gmra.mxu0 %v1289
    %v3652 = vpop.f32.mrf.mxu0
    %v3653 = vadd.f32 %v3624, %v3652
    %v3654 = vpop.f32.mrf.mxu0
    %v3655 = vadd.f32 %v3626, %v3654
    %3656 = vmatmul.bf16.gmra.mxu0 %v1293
    %v3657 = vpop.f32.mrf.mxu0
    %v3658 = vadd.f32 %v3629, %v3657
    %v3659 = vpop.f32.mrf.mxu0
    %v3660 = vadd.f32 %v3631, %v3659
    %3661 = vmatmul.bf16.gmra.mxu0 %v1297
    %v3662 = vpop.f32.mrf.mxu0
    %v3663 = vadd.f32 %v3634, %v3662
    %v3664 = vpop.f32.mrf.mxu0
    %v3665 = vadd.f32 %v3636, %v3664
    %3666 = vmatmul.bf16.gmra.mxu0 %v1301
    %v3667 = vpop.f32.mrf.mxu0
    %v3668 = vadd.f32 %v3639, %v3667
    %v3669 = vpop.f32.mrf.mxu0
    %v3670 = vadd.f32 %v3641, %v3669
    %3671 = vdwg.mxu0
    %3672 = vmatpush.bf16.msra.mxu0 %v2411
    %3673 = vmatpush.bf16.msra.mxu0 %v2403
    %3674 = vmatpush.bf16.msra.mxu0 %v2395
    %3675 = vmatpush.bf16.msra.mxu0 %v2387
    %3676 = vmatpush.bf16.msra.mxu0 %v2379
    %3677 = vmatpush.bf16.msra.mxu0 %v2371
    %3678 = vmatpush.bf16.msra.mxu0 %v2363
    %3679 = vmatpush.bf16.msra.mxu0 %v2355
    %3680 = vmatmul.bf16.gmra.mxu0 %v1286
    %v3681 = vpop.f32.mrf.mxu0
    %v3682 = vadd.f32 %v1571, %v3681
    %v3683 = vpop.f32.mrf.mxu0
    %v3684 = vadd.f32 %v1571, %v3683
    %3685 = vmatmul.bf16.gmra.mxu0 %v1290
    %v3686 = vpop.f32.mrf.mxu0
    %v3687 = vadd.f32 %v1571, %v3686
    %v3688 = vpop.f32.mrf.mxu0
    %v3689 = vadd.f32 %v1571, %v3688
    %3690 = vmatmul.bf16.gmra.mxu0 %v1294
    %v3691 = vpop.f32.mrf.mxu0
    %v3692 = vadd.f32 %v1571, %v3691
    %v3693 = vpop.f32.mrf.mxu0
    %v3694 = vadd.f32 %v1571, %v3693
    %3695 = vmatmul.bf16.gmra.mxu0 %v1298
    %v3696 = vpop.f32.mrf.mxu0
    %v3697 = vadd.f32 %v1571, %v3696
    %v3698 = vpop.f32.mrf.mxu0
    %v3699 = vadd.f32 %v1571, %v3698
    %3700 = vdwg.mxu0
    %3701 = vmatpush.bf16.msra.mxu0 %v2475
    %3702 = vmatpush.bf16.msra.mxu0 %v2467
    %3703 = vmatpush.bf16.msra.mxu0 %v2459
    %3704 = vmatpush.bf16.msra.mxu0 %v2451
    %3705 = vmatpush.bf16.msra.mxu0 %v2443
    %3706 = vmatpush.bf16.msra.mxu0 %v2435
    %3707 = vmatpush.bf16.msra.mxu0 %v2427
    %3708 = vmatpush.bf16.msra.mxu0 %v2419
    %3709 = vmatmul.bf16.gmra.mxu0 %v1287
    %v3710 = vpop.f32.mrf.mxu0
    %v3711 = vadd.f32 %v3682, %v3710
    %v3712 = vpop.f32.mrf.mxu0
    %v3713 = vadd.f32 %v3684, %v3712
    %3714 = vmatmul.bf16.gmra.mxu0 %v1291
    %v3715 = vpop.f32.mrf.mxu0
    %v3716 = vadd.f32 %v3687, %v3715
    %v3717 = vpop.f32.mrf.mxu0
    %v3718 = vadd.f32 %v3689, %v3717
    %3719 = vmatmul.bf16.gmra.mxu0 %v1295
    %v3720 = vpop.f32.mrf.mxu0
    %v3721 = vadd.f32 %v3692, %v3720
    %v3722 = vpop.f32.mrf.mxu0
    %v3723 = vadd.f32 %v3694, %v3722
    %3724 = vmatmul.bf16.gmra.mxu0 %v1299
    %v3725 = vpop.f32.mrf.mxu0
    %v3726 = vadd.f32 %v3697, %v3725
    %v3727 = vpop.f32.mrf.mxu0
    %v3728 = vadd.f32 %v3699, %v3727
    %3729 = vdwg.mxu0
    %3730 = vmatpush.bf16.msra.mxu0 %v2539
    %3731 = vmatpush.bf16.msra.mxu0 %v2531
    %3732 = vmatpush.bf16.msra.mxu0 %v2523
    %3733 = vmatpush.bf16.msra.mxu0 %v2515
    %3734 = vmatpush.bf16.msra.mxu0 %v2507
    %3735 = vmatpush.bf16.msra.mxu0 %v2499
    %3736 = vmatpush.bf16.msra.mxu0 %v2491
    %3737 = vmatpush.bf16.msra.mxu0 %v2483
    %3738 = vmatmul.bf16.gmra.mxu0 %v1288
    %v3739 = vpop.f32.mrf.mxu0
    %v3740 = vadd.f32 %v3711, %v3739
    %v3741 = vpop.f32.mrf.mxu0
    %v3742 = vadd.f32 %v3713, %v3741
    %3743 = vmatmul.bf16.gmra.mxu0 %v1292
    %v3744 = vpop.f32.mrf.mxu0
    %v3745 = vadd.f32 %v3716, %v3744
    %v3746 = vpop.f32.mrf.mxu0
    %v3747 = vadd.f32 %v3718, %v3746
    %3748 = vmatmul.bf16.gmra.mxu0 %v1296
    %v3749 = vpop.f32.mrf.mxu0
    %v3750 = vadd.f32 %v3721, %v3749
    %v3751 = vpop.f32.mrf.mxu0
    %v3752 = vadd.f32 %v3723, %v3751
    %3753 = vmatmul.bf16.gmra.mxu0 %v1300
    %v3754 = vpop.f32.mrf.mxu0
    %v3755 = vadd.f32 %v3726, %v3754
    %v3756 = vpop.f32.mrf.mxu0
    %v3757 = vadd.f32 %v3728, %v3756
    %3758 = vdwg.mxu0
    %3759 = vmatpush.bf16.msra.mxu0 %v2603
    %3760 = vmatpush.bf16.msra.mxu0 %v2595
    %3761 = vmatpush.bf16.msra.mxu0 %v2587
    %3762 = vmatpush.bf16.msra.mxu0 %v2579
    %3763 = vmatpush.bf16.msra.mxu0 %v2571
    %3764 = vmatpush.bf16.msra.mxu0 %v2563
    %3765 = vmatpush.bf16.msra.mxu0 %v2555
    %3766 = vmatpush.bf16.msra.mxu0 %v2547
    %3767 = vmatmul.bf16.gmra.mxu0 %v1289
    %v3768 = vpop.f32.mrf.mxu0
    %v3769 = vadd.f32 %v3740, %v3768
    %v3770 = vpop.f32.mrf.mxu0
    %v3771 = vadd.f32 %v3742, %v3770
    %3772 = vmatmul.bf16.gmra.mxu0 %v1293
    %v3773 = vpop.f32.mrf.mxu0
    %v3774 = vadd.f32 %v3745, %v3773
    %v3775 = vpop.f32.mrf.mxu0
    %v3776 = vadd.f32 %v3747, %v3775
    %3777 = vmatmul.bf16.gmra.mxu0 %v1297
    %v3778 = vpop.f32.mrf.mxu0
    %v3779 = vadd.f32 %v3750, %v3778
    %v3780 = vpop.f32.mrf.mxu0
    %v3781 = vadd.f32 %v3752, %v3780
    %3782 = vmatmul.bf16.gmra.mxu0 %v1301
    %v3783 = vpop.f32.mrf.mxu0
    %v3784 = vadd.f32 %v3755, %v3783
    %v3785 = vpop.f32.mrf.mxu0
    %v3786 = vadd.f32 %v3757, %v3785
    %3787 = vdwg.mxu0
    %v3788 = vmax.f32 %v2957, 0.0
    %v3789 = vmax.f32 %v3073, 0.0
    %v3790 = vmax.f32 %v3189, 0.0
    %v3791 = vmax.f32 %v3305, 0.0
    %v3792 = vmax.f32 %v3421, 0.0
    %v3793 = vmax.f32 %v3537, 0.0
    %v3794 = vmax.f32 %v3653, 0.0
    %v3795 = vmax.f32 %v3769, 0.0
    %v3796 = vmax.f32 %v2959, 0.0
    %v3797 = vmax.f32 %v3075, 0.0
    %v3798 = vmax.f32 %v3191, 0.0
    %v3799 = vmax.f32 %v3307, 0.0
    %v3800 = vmax.f32 %v3423, 0.0
    %v3801 = vmax.f32 %v3539, 0.0
    %v3802 = vmax.f32 %v3655, 0.0
    %v3803 = vmax.f32 %v3771, 0.0
    %v3804 = vmax.f32 %v2962, 0.0
    %v3805 = vmax.f32 %v3078, 0.0
    %v3806 = vmax.f32 %v3194, 0.0
    %v3807 = vmax.f32 %v3310, 0.0
    %v3808 = vmax.f32 %v3426, 0.0
    %v3809 = vmax.f32 %v3542, 0.0
    %v3810 = vmax.f32 %v3658, 0.0
    %v3811 = vmax.f32 %v3774, 0.0
    %v3812 = vmax.f32 %v2964, 0.0
    %v3813 = vmax.f32 %v3080, 0.0
    %v3814 = vmax.f32 %v3196, 0.0
    %v3815 = vmax.f32 %v3312, 0.0
    %v3816 = vmax.f32 %v3428, 0.0
    %v3817 = vmax.f32 %v3544, 0.0
    %v3818 = vmax.f32 %v3660, 0.0
    %v3819 = vmax.f32 %v3776, 0.0
    %v3820 = vmax.f32 %v2967, 0.0
    %v3821 = vmax.f32 %v3083, 0.0
    %v3822 = vmax.f32 %v3199, 0.0
    %v3823 = vmax.f32 %v3315, 0.0
    %v3824 = vmax.f32 %v3431, 0.0
    %v3825 = vmax.f32 %v3547, 0.0
    %v3826 = vmax.f32 %v3663, 0.0
    %v3827 = vmax.f32 %v3779, 0.0
    %v3828 = vmax.f32 %v2969, 0.0
    %v3829 = vmax.f32 %v3085, 0.0
    %v3830 = vmax.f32 %v3201, 0.0
    %v3831 = vmax.f32 %v3317, 0.0
    %v3832 = vmax.f32 %v3433, 0.0
    %v3833 = vmax.f32 %v3549, 0.0
    %v3834 = vmax.f32 %v3665, 0.0
    %v3835 = vmax.f32 %v3781, 0.0
    %v3836 = vmax.f32 %v2972, 0.0
    %v3837 = vmax.f32 %v3088, 0.0
    %v3838 = vmax.f32 %v3204, 0.0
    %v3839 = vmax.f32 %v3320, 0.0
    %v3840 = vmax.f32 %v3436, 0.0
    %v3841 = vmax.f32 %v3552, 0.0
    %v3842 = vmax.f32 %v3668, 0.0
    %v3843 = vmax.f32 %v3784, 0.0
    %v3844 = vmax.f32 %v2974, 0.0
    %v3845 = vmax.f32 %v3090, 0.0
    %v3846 = vmax.f32 %v3206, 0.0
    %v3847 = vmax.f32 %v3322, 0.0
    %v3848 = vmax.f32 %v3438, 0.0
    %v3849 = vmax.f32 %v3554, 0.0
    %v3850 = vmax.f32 %v3670, 0.0
    %v3851 = vmax.f32 %v3786, 0.0
    %v3852 = vpack.c.bf16 %v3789, %v3788
    %v3853 = vpack.c.bf16 %v3791, %v3790
    %v3854 = vpack.c.bf16 %v3793, %v3792
    %v3855 = vpack.c.bf16 %v3795, %v3794
    %v3856 = vpack.c.bf16 %v3797, %v3796
    %v3857 = vpack.c.bf16 %v3799, %v3798
    %v3858 = vpack.c.bf16 %v3801, %v3800
    %v3859 = vpack.c.bf16 %v3803, %v3802
    %v3860 = vpack.c.bf16 %v3805, %v3804
    %v3861 = vpack.c.bf16 %v3807, %v3806
    %v3862 = vpack.c.bf16 %v3809, %v3808
    %v3863 = vpack.c.bf16 %v3811, %v3810
    %v3864 = vpack.c.bf16 %v3813, %v3812
    %v3865 = vpack.c.bf16 %v3815, %v3814
    %v3866 = vpack.c.bf16 %v3817, %v3816
    %v3867 = vpack.c.bf16 %v3819, %v3818
    %v3868 = vpack.c.bf16 %v3821, %v3820
    %v3869 = vpack.c.bf16 %v3823, %v3822
    %v3870 = vpack.c.bf16 %v3825, %v3824
    %v3871 = vpack.c.bf16 %v3827, %v3826
    %v3872 = vpack.c.bf16 %v3829, %v3828
    %v3873 = vpack.c.bf16 %v3831, %v3830
    %v3874 = vpack.c.bf16 %v3833, %v3832
    %v3875 = vpack.c.bf16 %v3835, %v3834
    %v3876 = vpack.c.bf16 %v3837, %v3836
    %v3877 = vpack.c.bf16 %v3839, %v3838
    %v3878 = vpack.c.bf16 %v3841, %v3840
    %v3879 = vpack.c.bf16 %v3843, %v3842
    %v3880 = vpack.c.bf16 %v3845, %v3844
    %v3881 = vpack.c.bf16 %v3847, %v3846
    %v3882 = vpack.c.bf16 %v3849, %v3848
    %v3883 = vpack.c.bf16 %v3851, %v3850
    %v3884 = vunpack.c.l.bf16 %v3852
    %v3885 = vunpack.c.h.bf16 %v3852
    %v3886 = vunpack.c.l.bf16 %v3853
    %v3887 = vunpack.c.h.bf16 %v3853
    %v3888 = vunpack.c.l.bf16 %v3854
    %v3889 = vunpack.c.h.bf16 %v3854
    %v3890 = vunpack.c.l.bf16 %v3855
    %v3891 = vunpack.c.h.bf16 %v3855
    %v3892 = vunpack.c.l.bf16 %v3856
    %v3893 = vunpack.c.h.bf16 %v3856
    %v3894 = vunpack.c.l.bf16 %v3857
    %v3895 = vunpack.c.h.bf16 %v3857
    %v3896 = vunpack.c.l.bf16 %v3858
    %v3897 = vunpack.c.h.bf16 %v3858
    %v3898 = vunpack.c.l.bf16 %v3859
    %v3899 = vunpack.c.h.bf16 %v3859
    %v3900 = vunpack.c.l.bf16 %v3860
    %v3901 = vunpack.c.h.bf16 %v3860
    %v3902 = vunpack.c.l.bf16 %v3861
    %v3903 = vunpack.c.h.bf16 %v3861
    %v3904 = vunpack.c.l.bf16 %v3862
    %v3905 = vunpack.c.h.bf16 %v3862
    %v3906 = vunpack.c.l.bf16 %v3863
    %v3907 = vunpack.c.h.bf16 %v3863
    %v3908 = vunpack.c.l.bf16 %v3864
    %v3909 = vunpack.c.h.bf16 %v3864
    %v3910 = vunpack.c.l.bf16 %v3865
    %v3911 = vunpack.c.h.bf16 %v3865
    %v3912 = vunpack.c.l.bf16 %v3866
    %v3913 = vunpack.c.h.bf16 %v3866
    %v3914 = vunpack.c.l.bf16 %v3867
    %v3915 = vunpack.c.h.bf16 %v3867
    %v3916 = vunpack.c.l.bf16 %v3868
    %v3917 = vunpack.c.h.bf16 %v3868
    %v3918 = vunpack.c.l.bf16 %v3869
    %v3919 = vunpack.c.h.bf16 %v3869
    %v3920 = vunpack.c.l.bf16 %v3870
    %v3921 = vunpack.c.h.bf16 %v3870
    %v3922 = vunpack.c.l.bf16 %v3871
    %v3923 = vunpack.c.h.bf16 %v3871
    %v3924 = vunpack.c.l.bf16 %v3872
    %v3925 = vunpack.c.h.bf16 %v3872
    %v3926 = vunpack.c.l.bf16 %v3873
    %v3927 = vunpack.c.h.bf16 %v3873
    %v3928 = vunpack.c.l.bf16 %v3874
    %v3929 = vunpack.c.h.bf16 %v3874
    %v3930 = vunpack.c.l.bf16 %v3875
    %v3931 = vunpack.c.h.bf16 %v3875
    %v3932 = vunpack.c.l.bf16 %v3876
    %v3933 = vunpack.c.h.bf16 %v3876
    %v3934 = vunpack.c.l.bf16 %v3877
    %v3935 = vunpack.c.h.bf16 %v3877
    %v3936 = vunpack.c.l.bf16 %v3878
    %v3937 = vunpack.c.h.bf16 %v3878
    %v3938 = vunpack.c.l.bf16 %v3879
    %v3939 = vunpack.c.h.bf16 %v3879
    %v3940 = vunpack.c.l.bf16 %v3880
    %v3941 = vunpack.c.h.bf16 %v3880
    %v3942 = vunpack.c.l.bf16 %v3881
    %v3943 = vunpack.c.h.bf16 %v3881
    %v3944 = vunpack.c.l.bf16 %v3882
    %v3945 = vunpack.c.h.bf16 %v3882
    %v3946 = vunpack.c.l.bf16 %v3883
    %v3947 = vunpack.c.h.bf16 %v3883
    %v3948 = vadd.f32 %v3884, %v3892
    %v3949 = vadd.f32 %v3948, %v3900
    %v3950 = vadd.f32 %v3949, %v3908
    %v3951 = vrot.slane %v3950, 4
    %v3952 = vadd.f32 %v3950, %v3951
    %v3953 = vrot.slane %v3952, 2
    %v3954 = vadd.f32 %v3952, %v3953
    %v3955 = vrot.slane %v3954, 1
    %v3956 = vadd.f32 %v3954, %v3955
    %v3957 = vadd.f32 %v3885, %v3893
    %v3958 = vadd.f32 %v3957, %v3901
    %v3959 = vadd.f32 %v3958, %v3909
    %v3960 = vrot.slane %v3959, 4
    %v3961 = vadd.f32 %v3959, %v3960
    %v3962 = vrot.slane %v3961, 2
    %v3963 = vadd.f32 %v3961, %v3962
    %v3964 = vrot.slane %v3963, 1
    %v3965 = vadd.f32 %v3963, %v3964
    %v3966 = vadd.f32 %v3886, %v3894
    %v3967 = vadd.f32 %v3966, %v3902
    %v3968 = vadd.f32 %v3967, %v3910
    %v3969 = vrot.slane %v3968, 4
    %v3970 = vadd.f32 %v3968, %v3969
    %v3971 = vrot.slane %v3970, 2
    %v3972 = vadd.f32 %v3970, %v3971
    %v3973 = vrot.slane %v3972, 1
    %v3974 = vadd.f32 %v3972, %v3973
    %v3975 = vadd.f32 %v3887, %v3895
    %v3976 = vadd.f32 %v3975, %v3903
    %v3977 = vadd.f32 %v3976, %v3911
    %v3978 = vrot.slane %v3977, 4
    %v3979 = vadd.f32 %v3977, %v3978
    %v3980 = vrot.slane %v3979, 2
    %v3981 = vadd.f32 %v3979, %v3980
    %v3982 = vrot.slane %v3981, 1
    %v3983 = vadd.f32 %v3981, %v3982
    %v3984 = vadd.f32 %v3888, %v3896
    %v3985 = vadd.f32 %v3984, %v3904
    %v3986 = vadd.f32 %v3985, %v3912
    %v3987 = vrot.slane %v3986, 4
    %v3988 = vadd.f32 %v3986, %v3987
    %v3989 = vrot.slane %v3988, 2
    %v3990 = vadd.f32 %v3988, %v3989
    %v3991 = vrot.slane %v3990, 1
    %v3992 = vadd.f32 %v3990, %v3991
    %v3993 = vadd.f32 %v3889, %v3897
    %v3994 = vadd.f32 %v3993, %v3905
    %v3995 = vadd.f32 %v3994, %v3913
    %v3996 = vrot.slane %v3995, 4
    %v3997 = vadd.f32 %v3995, %v3996
    %v3998 = vrot.slane %v3997, 2
    %v3999 = vadd.f32 %v3997, %v3998
    %v4000 = vrot.slane %v3999, 1
    %v4001 = vadd.f32 %v3999, %v4000
    %v4002 = vadd.f32 %v3890, %v3898
    %v4003 = vadd.f32 %v4002, %v3906
    %v4004 = vadd.f32 %v4003, %v3914
    %v4005 = vrot.slane %v4004, 4
    %v4006 = vadd.f32 %v4004, %v4005
    %v4007 = vrot.slane %v4006, 2
    %v4008 = vadd.f32 %v4006, %v4007
    %v4009 = vrot.slane %v4008, 1
    %v4010 = vadd.f32 %v4008, %v4009
    %v4011 = vadd.f32 %v3891, %v3899
    %v4012 = vadd.f32 %v4011, %v3907
    %v4013 = vadd.f32 %v4012, %v3915
    %v4014 = vrot.slane %v4013, 4
    %v4015 = vadd.f32 %v4013, %v4014
    %v4016 = vrot.slane %v4015, 2
    %v4017 = vadd.f32 %v4015, %v4016
    %v4018 = vrot.slane %v4017, 1
    %v4019 = vadd.f32 %v4017, %v4018
    %v4020 = vadd.f32 %v3916, %v3924
    %v4021 = vadd.f32 %v4020, %v3932
    %v4022 = vadd.f32 %v4021, %v3940
    %v4023 = vrot.slane %v4022, 4
    %v4024 = vadd.f32 %v4022, %v4023
    %v4025 = vrot.slane %v4024, 2
    %v4026 = vadd.f32 %v4024, %v4025
    %v4027 = vrot.slane %v4026, 1
    %v4028 = vadd.f32 %v4026, %v4027
    %v4029 = vadd.f32 %v3917, %v3925
    %v4030 = vadd.f32 %v4029, %v3933
    %v4031 = vadd.f32 %v4030, %v3941
    %v4032 = vrot.slane %v4031, 4
    %v4033 = vadd.f32 %v4031, %v4032
    %v4034 = vrot.slane %v4033, 2
    %v4035 = vadd.f32 %v4033, %v4034
    %v4036 = vrot.slane %v4035, 1
    %v4037 = vadd.f32 %v4035, %v4036
    %v4038 = vadd.f32 %v3918, %v3926
    %v4039 = vadd.f32 %v4038, %v3934
    %v4040 = vadd.f32 %v4039, %v3942
    %v4041 = vrot.slane %v4040, 4
    %v4042 = vadd.f32 %v4040, %v4041
    %v4043 = vrot.slane %v4042, 2
    %v4044 = vadd.f32 %v4042, %v4043
    %v4045 = vrot.slane %v4044, 1
    %v4046 = vadd.f32 %v4044, %v4045
    %v4047 = vadd.f32 %v3919, %v3927
    %v4048 = vadd.f32 %v4047, %v3935
    %v4049 = vadd.f32 %v4048, %v3943
    %v4050 = vrot.slane %v4049, 4
    %v4051 = vadd.f32 %v4049, %v4050
    %v4052 = vrot.slane %v4051, 2
    %v4053 = vadd.f32 %v4051, %v4052
    %v4054 = vrot.slane %v4053, 1
    %v4055 = vadd.f32 %v4053, %v4054
    %v4056 = vadd.f32 %v3920, %v3928
    %v4057 = vadd.f32 %v4056, %v3936
    %v4058 = vadd.f32 %v4057, %v3944
    %v4059 = vrot.slane %v4058, 4
    %v4060 = vadd.f32 %v4058, %v4059
    %v4061 = vrot.slane %v4060, 2
    %v4062 = vadd.f32 %v4060, %v4061
    %v4063 = vrot.slane %v4062, 1
    %v4064 = vadd.f32 %v4062, %v4063
    %v4065 = vadd.f32 %v3921, %v3929
    %v4066 = vadd.f32 %v4065, %v3937
    %v4067 = vadd.f32 %v4066, %v3945
    %v4068 = vrot.slane %v4067, 4
    %v4069 = vadd.f32 %v4067, %v4068
    %v4070 = vrot.slane %v4069, 2
    %v4071 = vadd.f32 %v4069, %v4070
    %v4072 = vrot.slane %v4071, 1
    %v4073 = vadd.f32 %v4071, %v4072
    %v4074 = vadd.f32 %v3922, %v3930
    %v4075 = vadd.f32 %v4074, %v3938
    %v4076 = vadd.f32 %v4075, %v3946
    %v4077 = vrot.slane %v4076, 4
    %v4078 = vadd.f32 %v4076, %v4077
    %v4079 = vrot.slane %v4078, 2
    %v4080 = vadd.f32 %v4078, %v4079
    %v4081 = vrot.slane %v4080, 1
    %v4082 = vadd.f32 %v4080, %v4081
    %v4083 = vadd.f32 %v3923, %v3931
    %v4084 = vadd.f32 %v4083, %v3939
    %v4085 = vadd.f32 %v4084, %v3947
    %v4086 = vrot.slane %v4085, 4
    %v4087 = vadd.f32 %v4085, %v4086
    %v4088 = vrot.slane %v4087, 2
    %v4089 = vadd.f32 %v4087, %v4088
    %v4090 = vrot.slane %v4089, 1
    %v4091 = vadd.f32 %v4089, %v4090
    %v4092 = vrcp.pop 32.0
    %v4093 = vmul.f32 32.0, %v4092
    %v4094 = vsub.f32 1.0, %v4093
    %v4095 = vmul.f32 %v4092, %v4094
    %v4096 = vadd.f32 %v4092, %v4095
    %vm4097 = vweird.f32 %v4092
    %v4098 = vsel %vm4097, %v4092, %v4096
    %v4099 = vmul.f32 %v3956, %v4098
    %v4100 = vmul.f32 %v3965, %v4098
    %v4101 = vmul.f32 %v3974, %v4098
    %v4102 = vmul.f32 %v3983, %v4098
    %v4103 = vmul.f32 %v3992, %v4098
    %v4104 = vmul.f32 %v4001, %v4098
    %v4105 = vmul.f32 %v4010, %v4098
    %v4106 = vmul.f32 %v4019, %v4098
    %v4107 = vmul.f32 %v4028, %v4098
    %v4108 = vmul.f32 %v4037, %v4098
    %v4109 = vmul.f32 %v4046, %v4098
    %v4110 = vmul.f32 %v4055, %v4098
    %v4111 = vmul.f32 %v4064, %v4098
    %v4112 = vmul.f32 %v4073, %v4098
    %v4113 = vmul.f32 %v4082, %v4098
    %v4114 = vmul.f32 %v4091, %v4098
    %v4115 = vpack.c.bf16 %v4099, %v4099
    %v4116 = vpack.c.bf16 %v4100, %v4100
    %v4117 = vpack.c.bf16 %v4101, %v4101
    %v4118 = vpack.c.bf16 %v4102, %v4102
    %v4119 = vpack.c.bf16 %v4103, %v4103
    %v4120 = vpack.c.bf16 %v4104, %v4104
    %v4121 = vpack.c.bf16 %v4105, %v4105
    %v4122 = vpack.c.bf16 %v4106, %v4106
    %v4123 = vpack.c.bf16 %v4107, %v4107
    %v4124 = vpack.c.bf16 %v4108, %v4108
    %v4125 = vpack.c.bf16 %v4109, %v4109
    %v4126 = vpack.c.bf16 %v4110, %v4110
    %v4127 = vpack.c.bf16 %v4111, %v4111
    %v4128 = vpack.c.bf16 %v4112, %v4112
    %v4129 = vpack.c.bf16 %v4113, %v4113
    %v4130 = vpack.c.bf16 %v4114, %v4114
    %s4131 = smul.u32 4, 128
    %s4132 = smul.u32 %s4131, 4
    %s4133 = sshll.u32 %s4132, 4
    %4134 = dma.done %s207, %s4133
    %v4135 = vld [vmem:[#allocation3] sm:$0xff]
    %v4136 = vld [vmem:[#allocation3 + $0x8] sm:$0xff]
    %v4137 = vld [vmem:[#allocation3 + $0x10] sm:$0xff]
    %v4138 = vld [vmem:[#allocation3 + $0x18] sm:$0xff]
    %v4139 = vld [vmem:[#allocation3 + $0x20] sm:$0xff]
    %v4140 = vld [vmem:[#allocation3 + $0x28] sm:$0xff]
    %v4141 = vld [vmem:[#allocation3 + $0x30] sm:$0xff]
    %v4142 = vld [vmem:[#allocation3 + $0x38] sm:$0xff]
    %v4143 = vld [vmem:[#allocation3 + $0x40] sm:$0xff]
    %v4144 = vld [vmem:[#allocation3 + $0x48] sm:$0xff]
    %v4145 = vld [vmem:[#allocation3 + $0x50] sm:$0xff]
    %v4146 = vld [vmem:[#allocation3 + $0x58] sm:$0xff]
    %v4147 = vld [vmem:[#allocation3 + $0x60] sm:$0xff]
    %v4148 = vld [vmem:[#allocation3 + $0x68] sm:$0xff]
    %v4149 = vld [vmem:[#allocation3 + $0x70] sm:$0xff]
    %v4150 = vld [vmem:[#allocation3 + $0x78] sm:$0xff]
    %v4151 = vld [vmem:[#allocation3 + $0x80] sm:$0xff]
    %v4152 = vld [vmem:[#allocation3 + $0x88] sm:$0xff]
    %v4153 = vld [vmem:[#allocation3 + $0x90] sm:$0xff]
    %v4154 = vld [vmem:[#allocation3 + $0x98] sm:$0xff]
    %v4155 = vld [vmem:[#allocation3 + $0xa0] sm:$0xff]
    %v4156 = vld [vmem:[#allocation3 + $0xa8] sm:$0xff]
    %v4157 = vld [vmem:[#allocation3 + $0xb0] sm:$0xff]
    %v4158 = vld [vmem:[#allocation3 + $0xb8] sm:$0xff]
    %v4159 = vld [vmem:[#allocation3 + $0xc0] sm:$0xff]
    %v4160 = vld [vmem:[#allocation3 + $0xc8] sm:$0xff]
    %v4161 = vld [vmem:[#allocation3 + $0xd0] sm:$0xff]
    %v4162 = vld [vmem:[#allocation3 + $0xd8] sm:$0xff]
    %v4163 = vld [vmem:[#allocation3 + $0xe0] sm:$0xff]
    %v4164 = vld [vmem:[#allocation3 + $0xe8] sm:$0xff]
    %v4165 = vld [vmem:[#allocation3 + $0xf0] sm:$0xff]
    %v4166 = vld [vmem:[#allocation3 + $0xf8] sm:$0xff]
    %v4167 = vld [vmem:[#allocation3 + $0x100] sm:$0xff]
    %v4168 = vld [vmem:[#allocation3 + $0x108] sm:$0xff]
    %v4169 = vld [vmem:[#allocation3 + $0x110] sm:$0xff]
    %v4170 = vld [vmem:[#allocation3 + $0x118] sm:$0xff]
    %v4171 = vld [vmem:[#allocation3 + $0x120] sm:$0xff]
    %v4172 = vld [vmem:[#allocation3 + $0x128] sm:$0xff]
    %v4173 = vld [vmem:[#allocation3 + $0x130] sm:$0xff]
    %v4174 = vld [vmem:[#allocation3 + $0x138] sm:$0xff]
    %v4175 = vld [vmem:[#allocation3 + $0x140] sm:$0xff]
    %v4176 = vld [vmem:[#allocation3 + $0x148] sm:$0xff]
    %v4177 = vld [vmem:[#allocation3 + $0x150] sm:$0xff]
    %v4178 = vld [vmem:[#allocation3 + $0x158] sm:$0xff]
    %v4179 = vld [vmem:[#allocation3 + $0x160] sm:$0xff]
    %v4180 = vld [vmem:[#allocation3 + $0x168] sm:$0xff]
    %v4181 = vld [vmem:[#allocation3 + $0x170] sm:$0xff]
    %v4182 = vld [vmem:[#allocation3 + $0x178] sm:$0xff]
    %v4183 = vld [vmem:[#allocation3 + $0x180] sm:$0xff]
    %v4184 = vld [vmem:[#allocation3 + $0x188] sm:$0xff]
    %v4185 = vld [vmem:[#allocation3 + $0x190] sm:$0xff]
    %v4186 = vld [vmem:[#allocation3 + $0x198] sm:$0xff]
    %v4187 = vld [vmem:[#allocation3 + $0x1a0] sm:$0xff]
    %v4188 = vld [vmem:[#allocation3 + $0x1a8] sm:$0xff]
    %v4189 = vld [vmem:[#allocation3 + $0x1b0] sm:$0xff]
    %v4190 = vld [vmem:[#allocation3 + $0x1b8] sm:$0xff]
    %v4191 = vld [vmem:[#allocation3 + $0x1c0] sm:$0xff]
    %v4192 = vld [vmem:[#allocation3 + $0x1c8] sm:$0xff]
    %v4193 = vld [vmem:[#allocation3 + $0x1d0] sm:$0xff]
    %v4194 = vld [vmem:[#allocation3 + $0x1d8] sm:$0xff]
    %v4195 = vld [vmem:[#allocation3 + $0x1e0] sm:$0xff]
    %v4196 = vld [vmem:[#allocation3 + $0x1e8] sm:$0xff]
    %v4197 = vld [vmem:[#allocation3 + $0x1f0] sm:$0xff]
    %v4198 = vld [vmem:[#allocation3 + $0x1f8] sm:$0xff]
    %v4199 = vld [vmem:[#allocation3 + $0x200] sm:$0xff]
    %v4200 = vld [vmem:[#allocation3 + $0x208] sm:$0xff]
    %v4201 = vld [vmem:[#allocation3 + $0x210] sm:$0xff]
    %v4202 = vld [vmem:[#allocation3 + $0x218] sm:$0xff]
    %v4203 = vld [vmem:[#allocation3 + $0x220] sm:$0xff]
    %v4204 = vld [vmem:[#allocation3 + $0x228] sm:$0xff]
    %v4205 = vld [vmem:[#allocation3 + $0x230] sm:$0xff]
    %v4206 = vld [vmem:[#allocation3 + $0x238] sm:$0xff]
    %v4207 = vld [vmem:[#allocation3 + $0x240] sm:$0xff]
    %v4208 = vld [vmem:[#allocation3 + $0x248] sm:$0xff]
    %v4209 = vld [vmem:[#allocation3 + $0x250] sm:$0xff]
    %v4210 = vld [vmem:[#allocation3 + $0x258] sm:$0xff]
    %v4211 = vld [vmem:[#allocation3 + $0x260] sm:$0xff]
    %v4212 = vld [vmem:[#allocation3 + $0x268] sm:$0xff]
    %v4213 = vld [vmem:[#allocation3 + $0x270] sm:$0xff]
    %v4214 = vld [vmem:[#allocation3 + $0x278] sm:$0xff]
    %v4215 = vld [vmem:[#allocation3 + $0x280] sm:$0xff]
    %v4216 = vld [vmem:[#allocation3 + $0x288] sm:$0xff]
    %v4217 = vld [vmem:[#allocation3 + $0x290] sm:$0xff]
    %v4218 = vld [vmem:[#allocation3 + $0x298] sm:$0xff]
    %v4219 = vld [vmem:[#allocation3 + $0x2a0] sm:$0xff]
    %v4220 = vld [vmem:[#allocation3 + $0x2a8] sm:$0xff]
    %v4221 = vld [vmem:[#allocation3 + $0x2b0] sm:$0xff]
    %v4222 = vld [vmem:[#allocation3 + $0x2b8] sm:$0xff]
    %v4223 = vld [vmem:[#allocation3 + $0x2c0] sm:$0xff]
    %v4224 = vld [vmem:[#allocation3 + $0x2c8] sm:$0xff]
    %v4225 = vld [vmem:[#allocation3 + $0x2d0] sm:$0xff]
    %v4226 = vld [vmem:[#allocation3 + $0x2d8] sm:$0xff]
    %v4227 = vld [vmem:[#allocation3 + $0x2e0] sm:$0xff]
    %v4228 = vld [vmem:[#allocation3 + $0x2e8] sm:$0xff]
    %v4229 = vld [vmem:[#allocation3 + $0x2f0] sm:$0xff]
    %v4230 = vld [vmem:[#allocation3 + $0x2f8] sm:$0xff]
    %v4231 = vld [vmem:[#allocation3 + $0x300] sm:$0xff]
    %v4232 = vld [vmem:[#allocation3 + $0x308] sm:$0xff]
    %v4233 = vld [vmem:[#allocation3 + $0x310] sm:$0xff]
    %v4234 = vld [vmem:[#allocation3 + $0x318] sm:$0xff]
    %v4235 = vld [vmem:[#allocation3 + $0x320] sm:$0xff]
    %v4236 = vld [vmem:[#allocation3 + $0x328] sm:$0xff]
    %v4237 = vld [vmem:[#allocation3 + $0x330] sm:$0xff]
    %v4238 = vld [vmem:[#allocation3 + $0x338] sm:$0xff]
    %v4239 = vld [vmem:[#allocation3 + $0x340] sm:$0xff]
    %v4240 = vld [vmem:[#allocation3 + $0x348] sm:$0xff]
    %v4241 = vld [vmem:[#allocation3 + $0x350] sm:$0xff]
    %v4242 = vld [vmem:[#allocation3 + $0x358] sm:$0xff]
    %v4243 = vld [vmem:[#allocation3 + $0x360] sm:$0xff]
    %v4244 = vld [vmem:[#allocation3 + $0x368] sm:$0xff]
    %v4245 = vld [vmem:[#allocation3 + $0x370] sm:$0xff]
    %v4246 = vld [vmem:[#allocation3 + $0x378] sm:$0xff]
    %v4247 = vld [vmem:[#allocation3 + $0x380] sm:$0xff]
    %v4248 = vld [vmem:[#allocation3 + $0x388] sm:$0xff]
    %v4249 = vld [vmem:[#allocation3 + $0x390] sm:$0xff]
    %v4250 = vld [vmem:[#allocation3 + $0x398] sm:$0xff]
    %v4251 = vld [vmem:[#allocation3 + $0x3a0] sm:$0xff]
    %v4252 = vld [vmem:[#allocation3 + $0x3a8] sm:$0xff]
    %v4253 = vld [vmem:[#allocation3 + $0x3b0] sm:$0xff]
    %v4254 = vld [vmem:[#allocation3 + $0x3b8] sm:$0xff]
    %v4255 = vld [vmem:[#allocation3 + $0x3c0] sm:$0xff]
    %v4256 = vld [vmem:[#allocation3 + $0x3c8] sm:$0xff]
    %v4257 = vld [vmem:[#allocation3 + $0x3d0] sm:$0xff]
    %v4258 = vld [vmem:[#allocation3 + $0x3d8] sm:$0xff]
    %v4259 = vld [vmem:[#allocation3 + $0x3e0] sm:$0xff]
    %v4260 = vld [vmem:[#allocation3 + $0x3e8] sm:$0xff]
    %v4261 = vld [vmem:[#allocation3 + $0x3f0] sm:$0xff]
    %v4262 = vld [vmem:[#allocation3 + $0x3f8] sm:$0xff]
    %v4263 = vld [vmem:[#allocation3 + $0x400] sm:$0xff]
    %v4264 = vld [vmem:[#allocation3 + $0x408] sm:$0xff]
    %v4265 = vld [vmem:[#allocation3 + $0x410] sm:$0xff]
    %v4266 = vld [vmem:[#allocation3 + $0x418] sm:$0xff]
    %v4267 = vld [vmem:[#allocation3 + $0x420] sm:$0xff]
    %v4268 = vld [vmem:[#allocation3 + $0x428] sm:$0xff]
    %v4269 = vld [vmem:[#allocation3 + $0x430] sm:$0xff]
    %v4270 = vld [vmem:[#allocation3 + $0x438] sm:$0xff]
    %v4271 = vld [vmem:[#allocation3 + $0x440] sm:$0xff]
    %v4272 = vld [vmem:[#allocation3 + $0x448] sm:$0xff]
    %v4273 = vld [vmem:[#allocation3 + $0x450] sm:$0xff]
    %v4274 = vld [vmem:[#allocation3 + $0x458] sm:$0xff]
    %v4275 = vld [vmem:[#allocation3 + $0x460] sm:$0xff]
    %v4276 = vld [vmem:[#allocation3 + $0x468] sm:$0xff]
    %v4277 = vld [vmem:[#allocation3 + $0x470] sm:$0xff]
    %v4278 = vld [vmem:[#allocation3 + $0x478] sm:$0xff]
    %v4279 = vld [vmem:[#allocation3 + $0x480] sm:$0xff]
    %v4280 = vld [vmem:[#allocation3 + $0x488] sm:$0xff]
    %v4281 = vld [vmem:[#allocation3 + $0x490] sm:$0xff]
    %v4282 = vld [vmem:[#allocation3 + $0x498] sm:$0xff]
    %v4283 = vld [vmem:[#allocation3 + $0x4a0] sm:$0xff]
    %v4284 = vld [vmem:[#allocation3 + $0x4a8] sm:$0xff]
    %v4285 = vld [vmem:[#allocation3 + $0x4b0] sm:$0xff]
    %v4286 = vld [vmem:[#allocation3 + $0x4b8] sm:$0xff]
    %v4287 = vld [vmem:[#allocation3 + $0x4c0] sm:$0xff]
    %v4288 = vld [vmem:[#allocation3 + $0x4c8] sm:$0xff]
    %v4289 = vld [vmem:[#allocation3 + $0x4d0] sm:$0xff]
    %v4290 = vld [vmem:[#allocation3 + $0x4d8] sm:$0xff]
    %v4291 = vld [vmem:[#allocation3 + $0x4e0] sm:$0xff]
    %v4292 = vld [vmem:[#allocation3 + $0x4e8] sm:$0xff]
    %v4293 = vld [vmem:[#allocation3 + $0x4f0] sm:$0xff]
    %v4294 = vld [vmem:[#allocation3 + $0x4f8] sm:$0xff]
    %v4295 = vld [vmem:[#allocation3 + $0x500] sm:$0xff]
    %v4296 = vld [vmem:[#allocation3 + $0x508] sm:$0xff]
    %v4297 = vld [vmem:[#allocation3 + $0x510] sm:$0xff]
    %v4298 = vld [vmem:[#allocation3 + $0x518] sm:$0xff]
    %v4299 = vld [vmem:[#allocation3 + $0x520] sm:$0xff]
    %v4300 = vld [vmem:[#allocation3 + $0x528] sm:$0xff]
    %v4301 = vld [vmem:[#allocation3 + $0x530] sm:$0xff]
    %v4302 = vld [vmem:[#allocation3 + $0x538] sm:$0xff]
    %v4303 = vld [vmem:[#allocation3 + $0x540] sm:$0xff]
    %v4304 = vld [vmem:[#allocation3 + $0x548] sm:$0xff]
    %v4305 = vld [vmem:[#allocation3 + $0x550] sm:$0xff]
    %v4306 = vld [vmem:[#allocation3 + $0x558] sm:$0xff]
    %v4307 = vld [vmem:[#allocation3 + $0x560] sm:$0xff]
    %v4308 = vld [vmem:[#allocation3 + $0x568] sm:$0xff]
    %v4309 = vld [vmem:[#allocation3 + $0x570] sm:$0xff]
    %v4310 = vld [vmem:[#allocation3 + $0x578] sm:$0xff]
    %v4311 = vld [vmem:[#allocation3 + $0x580] sm:$0xff]
    %v4312 = vld [vmem:[#allocation3 + $0x588] sm:$0xff]
    %v4313 = vld [vmem:[#allocation3 + $0x590] sm:$0xff]
    %v4314 = vld [vmem:[#allocation3 + $0x598] sm:$0xff]
    %v4315 = vld [vmem:[#allocation3 + $0x5a0] sm:$0xff]
    %v4316 = vld [vmem:[#allocation3 + $0x5a8] sm:$0xff]
    %v4317 = vld [vmem:[#allocation3 + $0x5b0] sm:$0xff]
    %v4318 = vld [vmem:[#allocation3 + $0x5b8] sm:$0xff]
    %v4319 = vld [vmem:[#allocation3 + $0x5c0] sm:$0xff]
    %v4320 = vld [vmem:[#allocation3 + $0x5c8] sm:$0xff]
    %v4321 = vld [vmem:[#allocation3 + $0x5d0] sm:$0xff]
    %v4322 = vld [vmem:[#allocation3 + $0x5d8] sm:$0xff]
    %v4323 = vld [vmem:[#allocation3 + $0x5e0] sm:$0xff]
    %v4324 = vld [vmem:[#allocation3 + $0x5e8] sm:$0xff]
    %v4325 = vld [vmem:[#allocation3 + $0x5f0] sm:$0xff]
    %v4326 = vld [vmem:[#allocation3 + $0x5f8] sm:$0xff]
    %v4327 = vld [vmem:[#allocation3 + $0x600] sm:$0xff]
    %v4328 = vld [vmem:[#allocation3 + $0x608] sm:$0xff]
    %v4329 = vld [vmem:[#allocation3 + $0x610] sm:$0xff]
    %v4330 = vld [vmem:[#allocation3 + $0x618] sm:$0xff]
    %v4331 = vld [vmem:[#allocation3 + $0x620] sm:$0xff]
    %v4332 = vld [vmem:[#allocation3 + $0x628] sm:$0xff]
    %v4333 = vld [vmem:[#allocation3 + $0x630] sm:$0xff]
    %v4334 = vld [vmem:[#allocation3 + $0x638] sm:$0xff]
    %v4335 = vld [vmem:[#allocation3 + $0x640] sm:$0xff]
    %v4336 = vld [vmem:[#allocation3 + $0x648] sm:$0xff]
    %v4337 = vld [vmem:[#allocation3 + $0x650] sm:$0xff]
    %v4338 = vld [vmem:[#allocation3 + $0x658] sm:$0xff]
    %v4339 = vld [vmem:[#allocation3 + $0x660] sm:$0xff]
    %v4340 = vld [vmem:[#allocation3 + $0x668] sm:$0xff]
    %v4341 = vld [vmem:[#allocation3 + $0x670] sm:$0xff]
    %v4342 = vld [vmem:[#allocation3 + $0x678] sm:$0xff]
    %v4343 = vld [vmem:[#allocation3 + $0x680] sm:$0xff]
    %v4344 = vld [vmem:[#allocation3 + $0x688] sm:$0xff]
    %v4345 = vld [vmem:[#allocation3 + $0x690] sm:$0xff]
    %v4346 = vld [vmem:[#allocation3 + $0x698] sm:$0xff]
    %v4347 = vld [vmem:[#allocation3 + $0x6a0] sm:$0xff]
    %v4348 = vld [vmem:[#allocation3 + $0x6a8] sm:$0xff]
    %v4349 = vld [vmem:[#allocation3 + $0x6b0] sm:$0xff]
    %v4350 = vld [vmem:[#allocation3 + $0x6b8] sm:$0xff]
    %v4351 = vld [vmem:[#allocation3 + $0x6c0] sm:$0xff]
    %v4352 = vld [vmem:[#allocation3 + $0x6c8] sm:$0xff]
    %v4353 = vld [vmem:[#allocation3 + $0x6d0] sm:$0xff]
    %v4354 = vld [vmem:[#allocation3 + $0x6d8] sm:$0xff]
    %v4355 = vld [vmem:[#allocation3 + $0x6e0] sm:$0xff]
    %v4356 = vld [vmem:[#allocation3 + $0x6e8] sm:$0xff]
    %v4357 = vld [vmem:[#allocation3 + $0x6f0] sm:$0xff]
    %v4358 = vld [vmem:[#allocation3 + $0x6f8] sm:$0xff]
    %v4359 = vld [vmem:[#allocation3 + $0x700] sm:$0xff]
    %v4360 = vld [vmem:[#allocation3 + $0x708] sm:$0xff]
    %v4361 = vld [vmem:[#allocation3 + $0x710] sm:$0xff]
    %v4362 = vld [vmem:[#allocation3 + $0x718] sm:$0xff]
    %v4363 = vld [vmem:[#allocation3 + $0x720] sm:$0xff]
    %v4364 = vld [vmem:[#allocation3 + $0x728] sm:$0xff]
    %v4365 = vld [vmem:[#allocation3 + $0x730] sm:$0xff]
    %v4366 = vld [vmem:[#allocation3 + $0x738] sm:$0xff]
    %v4367 = vld [vmem:[#allocation3 + $0x740] sm:$0xff]
    %v4368 = vld [vmem:[#allocation3 + $0x748] sm:$0xff]
    %v4369 = vld [vmem:[#allocation3 + $0x750] sm:$0xff]
    %v4370 = vld [vmem:[#allocation3 + $0x758] sm:$0xff]
    %v4371 = vld [vmem:[#allocation3 + $0x760] sm:$0xff]
    %v4372 = vld [vmem:[#allocation3 + $0x768] sm:$0xff]
    %v4373 = vld [vmem:[#allocation3 + $0x770] sm:$0xff]
    %v4374 = vld [vmem:[#allocation3 + $0x778] sm:$0xff]
    %v4375 = vld [vmem:[#allocation3 + $0x780] sm:$0xff]
    %v4376 = vld [vmem:[#allocation3 + $0x788] sm:$0xff]
    %v4377 = vld [vmem:[#allocation3 + $0x790] sm:$0xff]
    %v4378 = vld [vmem:[#allocation3 + $0x798] sm:$0xff]
    %v4379 = vld [vmem:[#allocation3 + $0x7a0] sm:$0xff]
    %v4380 = vld [vmem:[#allocation3 + $0x7a8] sm:$0xff]
    %v4381 = vld [vmem:[#allocation3 + $0x7b0] sm:$0xff]
    %v4382 = vld [vmem:[#allocation3 + $0x7b8] sm:$0xff]
    %v4383 = vld [vmem:[#allocation3 + $0x7c0] sm:$0xff]
    %v4384 = vld [vmem:[#allocation3 + $0x7c8] sm:$0xff]
    %v4385 = vld [vmem:[#allocation3 + $0x7d0] sm:$0xff]
    %v4386 = vld [vmem:[#allocation3 + $0x7d8] sm:$0xff]
    %v4387 = vld [vmem:[#allocation3 + $0x7e0] sm:$0xff]
    %v4388 = vld [vmem:[#allocation3 + $0x7e8] sm:$0xff]
    %v4389 = vld [vmem:[#allocation3 + $0x7f0] sm:$0xff]
    %v4390 = vld [vmem:[#allocation3 + $0x7f8] sm:$0xff]
    %v4391 = vld [vmem:[#allocation20] sm:$0xf]
    %v4393 = vperm.slane %v4391, 0
    %v4394 = vperm.slane %v4391, 1
    %v4395 = vperm.slane %v4391, 2
    %v4396 = vperm.slane %v4391, 3
    %v4417 = vunpack.c.l.b16 %v4115
    %v4418 = vunpack.c.l.b16 %v4116
    %v4419 = vunpack.c.l.b16 %v4117
    %v4420 = vunpack.c.l.b16 %v4118
    %v4421 = vunpack.c.l.b16 %v4119
    %v4422 = vunpack.c.l.b16 %v4120
    %v4423 = vunpack.c.l.b16 %v4121
    %v4424 = vunpack.c.l.b16 %v4122
    %v4425 = vunpack.c.l.b16 %v4123
    %v4426 = vunpack.c.l.b16 %v4124
    %v4427 = vunpack.c.l.b16 %v4125
    %v4428 = vunpack.c.l.b16 %v4126
    %v4429 = vunpack.c.l.b16 %v4127
    %v4430 = vunpack.c.l.b16 %v4128
    %v4431 = vunpack.c.l.b16 %v4129
    %v4432 = vunpack.c.l.b16 %v4130
    %vm4433 = vcmask 1041409
    %v4434 = vsel %vm4433, %v4425, %v4417
    %v4435 = vsel %vm4433, %v4426, %v4418
    %v4436 = vsel %vm4433, %v4427, %v4419
    %v4437 = vsel %vm4433, %v4428, %v4420
    %v4438 = vsel %vm4433, %v4429, %v4421
    %v4439 = vsel %vm4433, %v4430, %v4422
    %v4440 = vsel %vm4433, %v4431, %v4423
    %v4441 = vsel %vm4433, %v4432, %v4424
    %v4442 = vpack.c.b16 %v4434, %v4434
    %v4443 = vpack.c.b16 %v4435, %v4435
    %v4444 = vpack.c.b16 %v4436, %v4436
    %v4445 = vpack.c.b16 %v4437, %v4437
    %v4446 = vpack.c.b16 %v4438, %v4438
    %v4447 = vpack.c.b16 %v4439, %v4439
    %v4448 = vpack.c.b16 %v4440, %v4440
    %v4449 = vpack.c.b16 %v4441, %v4441
    %v4714 = vunpack.c.l.b16 %v4135
    %v4715 = vunpack.c.h.b16 %v4135
    %v4716 = vunpack.c.l.b16 %v4136
    %v4717 = vunpack.c.h.b16 %v4136
    %v4718 = vunpack.c.l.b16 %v4137
    %v4719 = vunpack.c.h.b16 %v4137
    %v4720 = vunpack.c.l.b16 %v4138
    %v4721 = vunpack.c.h.b16 %v4138
    %v4722 = vunpack.c.l.b16 %v4139
    %v4723 = vunpack.c.h.b16 %v4139
    %v4724 = vunpack.c.l.b16 %v4140
    %v4725 = vunpack.c.h.b16 %v4140
    %v4726 = vunpack.c.l.b16 %v4141
    %v4727 = vunpack.c.h.b16 %v4141
    %v4728 = vunpack.c.l.b16 %v4142
    %v4729 = vunpack.c.h.b16 %v4142
    %v4730 = vunpack.c.l.b16 %v4143
    %v4731 = vunpack.c.h.b16 %v4143
    %v4732 = vunpack.c.l.b16 %v4144
    %v4733 = vunpack.c.h.b16 %v4144
    %v4734 = vunpack.c.l.b16 %v4145
    %v4735 = vunpack.c.h.b16 %v4145
    %v4736 = vunpack.c.l.b16 %v4146
    %v4737 = vunpack.c.h.b16 %v4146
    %v4738 = vunpack.c.l.b16 %v4147
    %v4739 = vunpack.c.h.b16 %v4147
    %v4740 = vunpack.c.l.b16 %v4148
    %v4741 = vunpack.c.h.b16 %v4148
    %v4742 = vunpack.c.l.b16 %v4149
    %v4743 = vunpack.c.h.b16 %v4149
    %v4744 = vunpack.c.l.b16 %v4150
    %v4745 = vunpack.c.h.b16 %v4150
    %v4746 = vunpack.c.l.b16 %v4151
    %v4747 = vunpack.c.h.b16 %v4151
    %v4748 = vunpack.c.l.b16 %v4152
    %v4749 = vunpack.c.h.b16 %v4152
    %v4750 = vunpack.c.l.b16 %v4153
    %v4751 = vunpack.c.h.b16 %v4153
    %v4752 = vunpack.c.l.b16 %v4154
    %v4753 = vunpack.c.h.b16 %v4154
    %v4754 = vunpack.c.l.b16 %v4155
    %v4755 = vunpack.c.h.b16 %v4155
    %v4756 = vunpack.c.l.b16 %v4156
    %v4757 = vunpack.c.h.b16 %v4156
    %v4758 = vunpack.c.l.b16 %v4157
    %v4759 = vunpack.c.h.b16 %v4157
    %v4760 = vunpack.c.l.b16 %v4158
    %v4761 = vunpack.c.h.b16 %v4158
    %v4762 = vunpack.c.l.b16 %v4159
    %v4763 = vunpack.c.h.b16 %v4159
    %v4764 = vunpack.c.l.b16 %v4160
    %v4765 = vunpack.c.h.b16 %v4160
    %v4766 = vunpack.c.l.b16 %v4161
    %v4767 = vunpack.c.h.b16 %v4161
    %v4768 = vunpack.c.l.b16 %v4162
    %v4769 = vunpack.c.h.b16 %v4162
    %v4770 = vunpack.c.l.b16 %v4163
    %v4771 = vunpack.c.h.b16 %v4163
    %v4772 = vunpack.c.l.b16 %v4164
    %v4773 = vunpack.c.h.b16 %v4164
    %v4774 = vunpack.c.l.b16 %v4165
    %v4775 = vunpack.c.h.b16 %v4165
    %v4776 = vunpack.c.l.b16 %v4166
    %v4777 = vunpack.c.h.b16 %v4166
    %v4778 = vunpack.c.l.b16 %v4167
    %v4779 = vunpack.c.h.b16 %v4167
    %v4780 = vunpack.c.l.b16 %v4168
    %v4781 = vunpack.c.h.b16 %v4168
    %v4782 = vunpack.c.l.b16 %v4169
    %v4783 = vunpack.c.h.b16 %v4169
    %v4784 = vunpack.c.l.b16 %v4170
    %v4785 = vunpack.c.h.b16 %v4170
    %v4786 = vunpack.c.l.b16 %v4171
    %v4787 = vunpack.c.h.b16 %v4171
    %v4788 = vunpack.c.l.b16 %v4172
    %v4789 = vunpack.c.h.b16 %v4172
    %v4790 = vunpack.c.l.b16 %v4173
    %v4791 = vunpack.c.h.b16 %v4173
    %v4792 = vunpack.c.l.b16 %v4174
    %v4793 = vunpack.c.h.b16 %v4174
    %v4794 = vunpack.c.l.b16 %v4175
    %v4795 = vunpack.c.h.b16 %v4175
    %v4796 = vunpack.c.l.b16 %v4176
    %v4797 = vunpack.c.h.b16 %v4176
    %v4798 = vunpack.c.l.b16 %v4177
    %v4799 = vunpack.c.h.b16 %v4177
    %v4800 = vunpack.c.l.b16 %v4178
    %v4801 = vunpack.c.h.b16 %v4178
    %v4802 = vunpack.c.l.b16 %v4179
    %v4803 = vunpack.c.h.b16 %v4179
    %v4804 = vunpack.c.l.b16 %v4180
    %v4805 = vunpack.c.h.b16 %v4180
    %v4806 = vunpack.c.l.b16 %v4181
    %v4807 = vunpack.c.h.b16 %v4181
    %v4808 = vunpack.c.l.b16 %v4182
    %v4809 = vunpack.c.h.b16 %v4182
    %v4810 = vunpack.c.l.b16 %v4183
    %v4811 = vunpack.c.h.b16 %v4183
    %v4812 = vunpack.c.l.b16 %v4184
    %v4813 = vunpack.c.h.b16 %v4184
    %v4814 = vunpack.c.l.b16 %v4185
    %v4815 = vunpack.c.h.b16 %v4185
    %v4816 = vunpack.c.l.b16 %v4186
    %v4817 = vunpack.c.h.b16 %v4186
    %v4818 = vunpack.c.l.b16 %v4187
    %v4819 = vunpack.c.h.b16 %v4187
    %v4820 = vunpack.c.l.b16 %v4188
    %v4821 = vunpack.c.h.b16 %v4188
    %v4822 = vunpack.c.l.b16 %v4189
    %v4823 = vunpack.c.h.b16 %v4189
    %v4824 = vunpack.c.l.b16 %v4190
    %v4825 = vunpack.c.h.b16 %v4190
    %v4826 = vunpack.c.l.b16 %v4191
    %v4827 = vunpack.c.h.b16 %v4191
    %v4828 = vunpack.c.l.b16 %v4192
    %v4829 = vunpack.c.h.b16 %v4192
    %v4830 = vunpack.c.l.b16 %v4193
    %v4831 = vunpack.c.h.b16 %v4193
    %v4832 = vunpack.c.l.b16 %v4194
    %v4833 = vunpack.c.h.b16 %v4194
    %v4834 = vunpack.c.l.b16 %v4195
    %v4835 = vunpack.c.h.b16 %v4195
    %v4836 = vunpack.c.l.b16 %v4196
    %v4837 = vunpack.c.h.b16 %v4196
    %v4838 = vunpack.c.l.b16 %v4197
    %v4839 = vunpack.c.h.b16 %v4197
    %v4840 = vunpack.c.l.b16 %v4198
    %v4841 = vunpack.c.h.b16 %v4198
    %v4842 = vunpack.c.l.b16 %v4199
    %v4843 = vunpack.c.h.b16 %v4199
    %v4844 = vunpack.c.l.b16 %v4200
    %v4845 = vunpack.c.h.b16 %v4200
    %v4846 = vunpack.c.l.b16 %v4201
    %v4847 = vunpack.c.h.b16 %v4201
    %v4848 = vunpack.c.l.b16 %v4202
    %v4849 = vunpack.c.h.b16 %v4202
    %v4850 = vunpack.c.l.b16 %v4203
    %v4851 = vunpack.c.h.b16 %v4203
    %v4852 = vunpack.c.l.b16 %v4204
    %v4853 = vunpack.c.h.b16 %v4204
    %v4854 = vunpack.c.l.b16 %v4205
    %v4855 = vunpack.c.h.b16 %v4205
    %v4856 = vunpack.c.l.b16 %v4206
    %v4857 = vunpack.c.h.b16 %v4206
    %v4858 = vunpack.c.l.b16 %v4207
    %v4859 = vunpack.c.h.b16 %v4207
    %v4860 = vunpack.c.l.b16 %v4208
    %v4861 = vunpack.c.h.b16 %v4208
    %v4862 = vunpack.c.l.b16 %v4209
    %v4863 = vunpack.c.h.b16 %v4209
    %v4864 = vunpack.c.l.b16 %v4210
    %v4865 = vunpack.c.h.b16 %v4210
    %v4866 = vunpack.c.l.b16 %v4211
    %v4867 = vunpack.c.h.b16 %v4211
    %v4868 = vunpack.c.l.b16 %v4212
    %v4869 = vunpack.c.h.b16 %v4212
    %v4870 = vunpack.c.l.b16 %v4213
    %v4871 = vunpack.c.h.b16 %v4213
    %v4872 = vunpack.c.l.b16 %v4214
    %v4873 = vunpack.c.h.b16 %v4214
    %v4874 = vunpack.c.l.b16 %v4215
    %v4875 = vunpack.c.h.b16 %v4215
    %v4876 = vunpack.c.l.b16 %v4216
    %v4877 = vunpack.c.h.b16 %v4216
    %v4878 = vunpack.c.l.b16 %v4217
    %v4879 = vunpack.c.h.b16 %v4217
    %v4880 = vunpack.c.l.b16 %v4218
    %v4881 = vunpack.c.h.b16 %v4218
    %v4882 = vunpack.c.l.b16 %v4219
    %v4883 = vunpack.c.h.b16 %v4219
    %v4884 = vunpack.c.l.b16 %v4220
    %v4885 = vunpack.c.h.b16 %v4220
    %v4886 = vunpack.c.l.b16 %v4221
    %v4887 = vunpack.c.h.b16 %v4221
    %v4888 = vunpack.c.l.b16 %v4222
    %v4889 = vunpack.c.h.b16 %v4222
    %v4890 = vunpack.c.l.b16 %v4223
    %v4891 = vunpack.c.h.b16 %v4223
    %v4892 = vunpack.c.l.b16 %v4224
    %v4893 = vunpack.c.h.b16 %v4224
    %v4894 = vunpack.c.l.b16 %v4225
    %v4895 = vunpack.c.h.b16 %v4225
    %v4896 = vunpack.c.l.b16 %v4226
    %v4897 = vunpack.c.h.b16 %v4226
    %v4898 = vunpack.c.l.b16 %v4227
    %v4899 = vunpack.c.h.b16 %v4227
    %v4900 = vunpack.c.l.b16 %v4228
    %v4901 = vunpack.c.h.b16 %v4228
    %v4902 = vunpack.c.l.b16 %v4229
    %v4903 = vunpack.c.h.b16 %v4229
    %v4904 = vunpack.c.l.b16 %v4230
    %v4905 = vunpack.c.h.b16 %v4230
    %v4906 = vunpack.c.l.b16 %v4231
    %v4907 = vunpack.c.h.b16 %v4231
    %v4908 = vunpack.c.l.b16 %v4232
    %v4909 = vunpack.c.h.b16 %v4232
    %v4910 = vunpack.c.l.b16 %v4233
    %v4911 = vunpack.c.h.b16 %v4233
    %v4912 = vunpack.c.l.b16 %v4234
    %v4913 = vunpack.c.h.b16 %v4234
    %v4914 = vunpack.c.l.b16 %v4235
    %v4915 = vunpack.c.h.b16 %v4235
    %v4916 = vunpack.c.l.b16 %v4236
    %v4917 = vunpack.c.h.b16 %v4236
    %v4918 = vunpack.c.l.b16 %v4237
    %v4919 = vunpack.c.h.b16 %v4237
    %v4920 = vunpack.c.l.b16 %v4238
    %v4921 = vunpack.c.h.b16 %v4238
    %v4922 = vunpack.c.l.b16 %v4239
    %v4923 = vunpack.c.h.b16 %v4239
    %v4924 = vunpack.c.l.b16 %v4240
    %v4925 = vunpack.c.h.b16 %v4240
    %v4926 = vunpack.c.l.b16 %v4241
    %v4927 = vunpack.c.h.b16 %v4241
    %v4928 = vunpack.c.l.b16 %v4242
    %v4929 = vunpack.c.h.b16 %v4242
    %v4930 = vunpack.c.l.b16 %v4243
    %v4931 = vunpack.c.h.b16 %v4243
    %v4932 = vunpack.c.l.b16 %v4244
    %v4933 = vunpack.c.h.b16 %v4244
    %v4934 = vunpack.c.l.b16 %v4245
    %v4935 = vunpack.c.h.b16 %v4245
    %v4936 = vunpack.c.l.b16 %v4246
    %v4937 = vunpack.c.h.b16 %v4246
    %v4938 = vunpack.c.l.b16 %v4247
    %v4939 = vunpack.c.h.b16 %v4247
    %v4940 = vunpack.c.l.b16 %v4248
    %v4941 = vunpack.c.h.b16 %v4248
    %v4942 = vunpack.c.l.b16 %v4249
    %v4943 = vunpack.c.h.b16 %v4249
    %v4944 = vunpack.c.l.b16 %v4250
    %v4945 = vunpack.c.h.b16 %v4250
    %v4946 = vunpack.c.l.b16 %v4251
    %v4947 = vunpack.c.h.b16 %v4251
    %v4948 = vunpack.c.l.b16 %v4252
    %v4949 = vunpack.c.h.b16 %v4252
    %v4950 = vunpack.c.l.b16 %v4253
    %v4951 = vunpack.c.h.b16 %v4253
    %v4952 = vunpack.c.l.b16 %v4254
    %v4953 = vunpack.c.h.b16 %v4254
    %v4954 = vunpack.c.l.b16 %v4255
    %v4955 = vunpack.c.h.b16 %v4255
    %v4956 = vunpack.c.l.b16 %v4256
    %v4957 = vunpack.c.h.b16 %v4256
    %v4958 = vunpack.c.l.b16 %v4257
    %v4959 = vunpack.c.h.b16 %v4257
    %v4960 = vunpack.c.l.b16 %v4258
    %v4961 = vunpack.c.h.b16 %v4258
    %v4962 = vunpack.c.l.b16 %v4259
    %v4963 = vunpack.c.h.b16 %v4259
    %v4964 = vunpack.c.l.b16 %v4260
    %v4965 = vunpack.c.h.b16 %v4260
    %v4966 = vunpack.c.l.b16 %v4261
    %v4967 = vunpack.c.h.b16 %v4261
    %v4968 = vunpack.c.l.b16 %v4262
    %v4969 = vunpack.c.h.b16 %v4262
    %v4970 = vunpack.c.l.b16 %v4263
    %v4971 = vunpack.c.h.b16 %v4263
    %v4972 = vunpack.c.l.b16 %v4264
    %v4973 = vunpack.c.h.b16 %v4264
    %v4974 = vunpack.c.l.b16 %v4265
    %v4975 = vunpack.c.h.b16 %v4265
    %v4976 = vunpack.c.l.b16 %v4266
    %v4977 = vunpack.c.h.b16 %v4266
    %v4978 = vunpack.c.l.b16 %v4267
    %v4979 = vunpack.c.h.b16 %v4267
    %v4980 = vunpack.c.l.b16 %v4268
    %v4981 = vunpack.c.h.b16 %v4268
    %v4982 = vunpack.c.l.b16 %v4269
    %v4983 = vunpack.c.h.b16 %v4269
    %v4984 = vunpack.c.l.b16 %v4270
    %v4985 = vunpack.c.h.b16 %v4270
    %v4986 = vunpack.c.l.b16 %v4271
    %v4987 = vunpack.c.h.b16 %v4271
    %v4988 = vunpack.c.l.b16 %v4272
    %v4989 = vunpack.c.h.b16 %v4272
    %v4990 = vunpack.c.l.b16 %v4273
    %v4991 = vunpack.c.h.b16 %v4273
    %v4992 = vunpack.c.l.b16 %v4274
    %v4993 = vunpack.c.h.b16 %v4274
    %v4994 = vunpack.c.l.b16 %v4275
    %v4995 = vunpack.c.h.b16 %v4275
    %v4996 = vunpack.c.l.b16 %v4276
    %v4997 = vunpack.c.h.b16 %v4276
    %v4998 = vunpack.c.l.b16 %v4277
    %v4999 = vunpack.c.h.b16 %v4277
    %v5000 = vunpack.c.l.b16 %v4278
    %v5001 = vunpack.c.h.b16 %v4278
    %v5002 = vunpack.c.l.b16 %v4279
    %v5003 = vunpack.c.h.b16 %v4279
    %v5004 = vunpack.c.l.b16 %v4280
    %v5005 = vunpack.c.h.b16 %v4280
    %v5006 = vunpack.c.l.b16 %v4281
    %v5007 = vunpack.c.h.b16 %v4281
    %v5008 = vunpack.c.l.b16 %v4282
    %v5009 = vunpack.c.h.b16 %v4282
    %v5010 = vunpack.c.l.b16 %v4283
    %v5011 = vunpack.c.h.b16 %v4283
    %v5012 = vunpack.c.l.b16 %v4284
    %v5013 = vunpack.c.h.b16 %v4284
    %v5014 = vunpack.c.l.b16 %v4285
    %v5015 = vunpack.c.h.b16 %v4285
    %v5016 = vunpack.c.l.b16 %v4286
    %v5017 = vunpack.c.h.b16 %v4286
    %v5018 = vunpack.c.l.b16 %v4287
    %v5019 = vunpack.c.h.b16 %v4287
    %v5020 = vunpack.c.l.b16 %v4288
    %v5021 = vunpack.c.h.b16 %v4288
    %v5022 = vunpack.c.l.b16 %v4289
    %v5023 = vunpack.c.h.b16 %v4289
    %v5024 = vunpack.c.l.b16 %v4290
    %v5025 = vunpack.c.h.b16 %v4290
    %v5026 = vunpack.c.l.b16 %v4291
    %v5027 = vunpack.c.h.b16 %v4291
    %v5028 = vunpack.c.l.b16 %v4292
    %v5029 = vunpack.c.h.b16 %v4292
    %v5030 = vunpack.c.l.b16 %v4293
    %v5031 = vunpack.c.h.b16 %v4293
    %v5032 = vunpack.c.l.b16 %v4294
    %v5033 = vunpack.c.h.b16 %v4294
    %v5034 = vunpack.c.l.b16 %v4295
    %v5035 = vunpack.c.h.b16 %v4295
    %v5036 = vunpack.c.l.b16 %v4296
    %v5037 = vunpack.c.h.b16 %v4296
    %v5038 = vunpack.c.l.b16 %v4297
    %v5039 = vunpack.c.h.b16 %v4297
    %v5040 = vunpack.c.l.b16 %v4298
    %v5041 = vunpack.c.h.b16 %v4298
    %v5042 = vunpack.c.l.b16 %v4299
    %v5043 = vunpack.c.h.b16 %v4299
    %v5044 = vunpack.c.l.b16 %v4300
    %v5045 = vunpack.c.h.b16 %v4300
    %v5046 = vunpack.c.l.b16 %v4301
    %v5047 = vunpack.c.h.b16 %v4301
    %v5048 = vunpack.c.l.b16 %v4302
    %v5049 = vunpack.c.h.b16 %v4302
    %v5050 = vunpack.c.l.b16 %v4303
    %v5051 = vunpack.c.h.b16 %v4303
    %v5052 = vunpack.c.l.b16 %v4304
    %v5053 = vunpack.c.h.b16 %v4304
    %v5054 = vunpack.c.l.b16 %v4305
    %v5055 = vunpack.c.h.b16 %v4305
    %v5056 = vunpack.c.l.b16 %v4306
    %v5057 = vunpack.c.h.b16 %v4306
    %v5058 = vunpack.c.l.b16 %v4307
    %v5059 = vunpack.c.h.b16 %v4307
    %v5060 = vunpack.c.l.b16 %v4308
    %v5061 = vunpack.c.h.b16 %v4308
    %v5062 = vunpack.c.l.b16 %v4309
    %v5063 = vunpack.c.h.b16 %v4309
    %v5064 = vunpack.c.l.b16 %v4310
    %v5065 = vunpack.c.h.b16 %v4310
    %v5066 = vunpack.c.l.b16 %v4311
    %v5067 = vunpack.c.h.b16 %v4311
    %v5068 = vunpack.c.l.b16 %v4312
    %v5069 = vunpack.c.h.b16 %v4312
    %v5070 = vunpack.c.l.b16 %v4313
    %v5071 = vunpack.c.h.b16 %v4313
    %v5072 = vunpack.c.l.b16 %v4314
    %v5073 = vunpack.c.h.b16 %v4314
    %v5074 = vunpack.c.l.b16 %v4315
    %v5075 = vunpack.c.h.b16 %v4315
    %v5076 = vunpack.c.l.b16 %v4316
    %v5077 = vunpack.c.h.b16 %v4316
    %v5078 = vunpack.c.l.b16 %v4317
    %v5079 = vunpack.c.h.b16 %v4317
    %v5080 = vunpack.c.l.b16 %v4318
    %v5081 = vunpack.c.h.b16 %v4318
    %v5082 = vunpack.c.l.b16 %v4319
    %v5083 = vunpack.c.h.b16 %v4319
    %v5084 = vunpack.c.l.b16 %v4320
    %v5085 = vunpack.c.h.b16 %v4320
    %v5086 = vunpack.c.l.b16 %v4321
    %v5087 = vunpack.c.h.b16 %v4321
    %v5088 = vunpack.c.l.b16 %v4322
    %v5089 = vunpack.c.h.b16 %v4322
    %v5090 = vunpack.c.l.b16 %v4323
    %v5091 = vunpack.c.h.b16 %v4323
    %v5092 = vunpack.c.l.b16 %v4324
    %v5093 = vunpack.c.h.b16 %v4324
    %v5094 = vunpack.c.l.b16 %v4325
    %v5095 = vunpack.c.h.b16 %v4325
    %v5096 = vunpack.c.l.b16 %v4326
    %v5097 = vunpack.c.h.b16 %v4326
    %v5098 = vunpack.c.l.b16 %v4327
    %v5099 = vunpack.c.h.b16 %v4327
    %v5100 = vunpack.c.l.b16 %v4328
    %v5101 = vunpack.c.h.b16 %v4328
    %v5102 = vunpack.c.l.b16 %v4329
    %v5103 = vunpack.c.h.b16 %v4329
    %v5104 = vunpack.c.l.b16 %v4330
    %v5105 = vunpack.c.h.b16 %v4330
    %v5106 = vunpack.c.l.b16 %v4331
    %v5107 = vunpack.c.h.b16 %v4331
    %v5108 = vunpack.c.l.b16 %v4332
    %v5109 = vunpack.c.h.b16 %v4332
    %v5110 = vunpack.c.l.b16 %v4333
    %v5111 = vunpack.c.h.b16 %v4333
    %v5112 = vunpack.c.l.b16 %v4334
    %v5113 = vunpack.c.h.b16 %v4334
    %v5114 = vunpack.c.l.b16 %v4335
    %v5115 = vunpack.c.h.b16 %v4335
    %v5116 = vunpack.c.l.b16 %v4336
    %v5117 = vunpack.c.h.b16 %v4336
    %v5118 = vunpack.c.l.b16 %v4337
    %v5119 = vunpack.c.h.b16 %v4337
    %v5120 = vunpack.c.l.b16 %v4338
    %v5121 = vunpack.c.h.b16 %v4338
    %v5122 = vunpack.c.l.b16 %v4339
    %v5123 = vunpack.c.h.b16 %v4339
    %v5124 = vunpack.c.l.b16 %v4340
    %v5125 = vunpack.c.h.b16 %v4340
    %v5126 = vunpack.c.l.b16 %v4341
    %v5127 = vunpack.c.h.b16 %v4341
    %v5128 = vunpack.c.l.b16 %v4342
    %v5129 = vunpack.c.h.b16 %v4342
    %v5130 = vunpack.c.l.b16 %v4343
    %v5131 = vunpack.c.h.b16 %v4343
    %v5132 = vunpack.c.l.b16 %v4344
    %v5133 = vunpack.c.h.b16 %v4344
    %v5134 = vunpack.c.l.b16 %v4345
    %v5135 = vunpack.c.h.b16 %v4345
    %v5136 = vunpack.c.l.b16 %v4346
    %v5137 = vunpack.c.h.b16 %v4346
    %v5138 = vunpack.c.l.b16 %v4347
    %v5139 = vunpack.c.h.b16 %v4347
    %v5140 = vunpack.c.l.b16 %v4348
    %v5141 = vunpack.c.h.b16 %v4348
    %v5142 = vunpack.c.l.b16 %v4349
    %v5143 = vunpack.c.h.b16 %v4349
    %v5144 = vunpack.c.l.b16 %v4350
    %v5145 = vunpack.c.h.b16 %v4350
    %v5146 = vunpack.c.l.b16 %v4351
    %v5147 = vunpack.c.h.b16 %v4351
    %v5148 = vunpack.c.l.b16 %v4352
    %v5149 = vunpack.c.h.b16 %v4352
    %v5150 = vunpack.c.l.b16 %v4353
    %v5151 = vunpack.c.h.b16 %v4353
    %v5152 = vunpack.c.l.b16 %v4354
    %v5153 = vunpack.c.h.b16 %v4354
    %v5154 = vunpack.c.l.b16 %v4355
    %v5155 = vunpack.c.h.b16 %v4355
    %v5156 = vunpack.c.l.b16 %v4356
    %v5157 = vunpack.c.h.b16 %v4356
    %v5158 = vunpack.c.l.b16 %v4357
    %v5159 = vunpack.c.h.b16 %v4357
    %v5160 = vunpack.c.l.b16 %v4358
    %v5161 = vunpack.c.h.b16 %v4358
    %v5162 = vunpack.c.l.b16 %v4359
    %v5163 = vunpack.c.h.b16 %v4359
    %v5164 = vunpack.c.l.b16 %v4360
    %v5165 = vunpack.c.h.b16 %v4360
    %v5166 = vunpack.c.l.b16 %v4361
    %v5167 = vunpack.c.h.b16 %v4361
    %v5168 = vunpack.c.l.b16 %v4362
    %v5169 = vunpack.c.h.b16 %v4362
    %v5170 = vunpack.c.l.b16 %v4363
    %v5171 = vunpack.c.h.b16 %v4363
    %v5172 = vunpack.c.l.b16 %v4364
    %v5173 = vunpack.c.h.b16 %v4364
    %v5174 = vunpack.c.l.b16 %v4365
    %v5175 = vunpack.c.h.b16 %v4365
    %v5176 = vunpack.c.l.b16 %v4366
    %v5177 = vunpack.c.h.b16 %v4366
    %v5178 = vunpack.c.l.b16 %v4367
    %v5179 = vunpack.c.h.b16 %v4367
    %v5180 = vunpack.c.l.b16 %v4368
    %v5181 = vunpack.c.h.b16 %v4368
    %v5182 = vunpack.c.l.b16 %v4369
    %v5183 = vunpack.c.h.b16 %v4369
    %v5184 = vunpack.c.l.b16 %v4370
    %v5185 = vunpack.c.h.b16 %v4370
    %v5186 = vunpack.c.l.b16 %v4371
    %v5187 = vunpack.c.h.b16 %v4371
    %v5188 = vunpack.c.l.b16 %v4372
    %v5189 = vunpack.c.h.b16 %v4372
    %v5190 = vunpack.c.l.b16 %v4373
    %v5191 = vunpack.c.h.b16 %v4373
    %v5192 = vunpack.c.l.b16 %v4374
    %v5193 = vunpack.c.h.b16 %v4374
    %v5194 = vunpack.c.l.b16 %v4375
    %v5195 = vunpack.c.h.b16 %v4375
    %v5196 = vunpack.c.l.b16 %v4376
    %v5197 = vunpack.c.h.b16 %v4376
    %v5198 = vunpack.c.l.b16 %v4377
    %v5199 = vunpack.c.h.b16 %v4377
    %v5200 = vunpack.c.l.b16 %v4378
    %v5201 = vunpack.c.h.b16 %v4378
    %v5202 = vunpack.c.l.b16 %v4379
    %v5203 = vunpack.c.h.b16 %v4379
    %v5204 = vunpack.c.l.b16 %v4380
    %v5205 = vunpack.c.h.b16 %v4380
    %v5206 = vunpack.c.l.b16 %v4381
    %v5207 = vunpack.c.h.b16 %v4381
    %v5208 = vunpack.c.l.b16 %v4382
    %v5209 = vunpack.c.h.b16 %v4382
    %v5210 = vunpack.c.l.b16 %v4383
    %v5211 = vunpack.c.h.b16 %v4383
    %v5212 = vunpack.c.l.b16 %v4384
    %v5213 = vunpack.c.h.b16 %v4384
    %v5214 = vunpack.c.l.b16 %v4385
    %v5215 = vunpack.c.h.b16 %v4385
    %v5216 = vunpack.c.l.b16 %v4386
    %v5217 = vunpack.c.h.b16 %v4386
    %v5218 = vunpack.c.l.b16 %v4387
    %v5219 = vunpack.c.h.b16 %v4387
    %v5220 = vunpack.c.l.b16 %v4388
    %v5221 = vunpack.c.h.b16 %v4388
    %v5222 = vunpack.c.l.b16 %v4389
    %v5223 = vunpack.c.h.b16 %v4389
    %v5224 = vunpack.c.l.b16 %v4390
    %v5225 = vunpack.c.h.b16 %v4390
    %v5226 = vpack.c.b16 %v4718, %v4714
    %v5227 = vpack.c.b16 %v4719, %v4715
    %v5228 = vpack.c.b16 %v4720, %v4716
    %v5229 = vpack.c.b16 %v4721, %v4717
    %v5230 = vpack.c.b16 %v4726, %v4722
    %v5231 = vpack.c.b16 %v4727, %v4723
    %v5232 = vpack.c.b16 %v4728, %v4724
    %v5233 = vpack.c.b16 %v4729, %v4725
    %v5234 = vpack.c.b16 %v4734, %v4730
    %v5235 = vpack.c.b16 %v4735, %v4731
    %v5236 = vpack.c.b16 %v4736, %v4732
    %v5237 = vpack.c.b16 %v4737, %v4733
    %v5238 = vpack.c.b16 %v4742, %v4738
    %v5239 = vpack.c.b16 %v4743, %v4739
    %v5240 = vpack.c.b16 %v4744, %v4740
    %v5241 = vpack.c.b16 %v4745, %v4741
    %v5242 = vpack.c.b16 %v4750, %v4746
    %v5243 = vpack.c.b16 %v4751, %v4747
    %v5244 = vpack.c.b16 %v4752, %v4748
    %v5245 = vpack.c.b16 %v4753, %v4749
    %v5246 = vpack.c.b16 %v4758, %v4754
    %v5247 = vpack.c.b16 %v4759, %v4755
    %v5248 = vpack.c.b16 %v4760, %v4756
    %v5249 = vpack.c.b16 %v4761, %v4757
    %v5250 = vpack.c.b16 %v4766, %v4762
    %v5251 = vpack.c.b16 %v4767, %v4763
    %v5252 = vpack.c.b16 %v4768, %v4764
    %v5253 = vpack.c.b16 %v4769, %v4765
    %v5254 = vpack.c.b16 %v4774, %v4770
    %v5255 = vpack.c.b16 %v4775, %v4771
    %v5256 = vpack.c.b16 %v4776, %v4772
    %v5257 = vpack.c.b16 %v4777, %v4773
    %v5258 = vpack.c.b16 %v4782, %v4778
    %v5259 = vpack.c.b16 %v4783, %v4779
    %v5260 = vpack.c.b16 %v4784, %v4780
    %v5261 = vpack.c.b16 %v4785, %v4781
    %v5262 = vpack.c.b16 %v4790, %v4786
    %v5263 = vpack.c.b16 %v4791, %v4787
    %v5264 = vpack.c.b16 %v4792, %v4788
    %v5265 = vpack.c.b16 %v4793, %v4789
    %v5266 = vpack.c.b16 %v4798, %v4794
    %v5267 = vpack.c.b16 %v4799, %v4795
    %v5268 = vpack.c.b16 %v4800, %v4796
    %v5269 = vpack.c.b16 %v4801, %v4797
    %v5270 = vpack.c.b16 %v4806, %v4802
    %v5271 = vpack.c.b16 %v4807, %v4803
    %v5272 = vpack.c.b16 %v4808, %v4804
    %v5273 = vpack.c.b16 %v4809, %v4805
    %v5274 = vpack.c.b16 %v4814, %v4810
    %v5275 = vpack.c.b16 %v4815, %v4811
    %v5276 = vpack.c.b16 %v4816, %v4812
    %v5277 = vpack.c.b16 %v4817, %v4813
    %v5278 = vpack.c.b16 %v4822, %v4818
    %v5279 = vpack.c.b16 %v4823, %v4819
    %v5280 = vpack.c.b16 %v4824, %v4820
    %v5281 = vpack.c.b16 %v4825, %v4821
    %v5282 = vpack.c.b16 %v4830, %v4826
    %v5283 = vpack.c.b16 %v4831, %v4827
    %v5284 = vpack.c.b16 %v4832, %v4828
    %v5285 = vpack.c.b16 %v4833, %v4829
    %v5286 = vpack.c.b16 %v4838, %v4834
    %v5287 = vpack.c.b16 %v4839, %v4835
    %v5288 = vpack.c.b16 %v4840, %v4836
    %v5289 = vpack.c.b16 %v4841, %v4837
    %v5290 = vpack.c.b16 %v4846, %v4842
    %v5291 = vpack.c.b16 %v4847, %v4843
    %v5292 = vpack.c.b16 %v4848, %v4844
    %v5293 = vpack.c.b16 %v4849, %v4845
    %v5294 = vpack.c.b16 %v4854, %v4850
    %v5295 = vpack.c.b16 %v4855, %v4851
    %v5296 = vpack.c.b16 %v4856, %v4852
    %v5297 = vpack.c.b16 %v4857, %v4853
    %v5298 = vpack.c.b16 %v4862, %v4858
    %v5299 = vpack.c.b16 %v4863, %v4859
    %v5300 = vpack.c.b16 %v4864, %v4860
    %v5301 = vpack.c.b16 %v4865, %v4861
    %v5302 = vpack.c.b16 %v4870, %v4866
    %v5303 = vpack.c.b16 %v4871, %v4867
    %v5304 = vpack.c.b16 %v4872, %v4868
    %v5305 = vpack.c.b16 %v4873, %v4869
    %v5306 = vpack.c.b16 %v4878, %v4874
    %v5307 = vpack.c.b16 %v4879, %v4875
    %v5308 = vpack.c.b16 %v4880, %v4876
    %v5309 = vpack.c.b16 %v4881, %v4877
    %v5310 = vpack.c.b16 %v4886, %v4882
    %v5311 = vpack.c.b16 %v4887, %v4883
    %v5312 = vpack.c.b16 %v4888, %v4884
    %v5313 = vpack.c.b16 %v4889, %v4885
    %v5314 = vpack.c.b16 %v4894, %v4890
    %v5315 = vpack.c.b16 %v4895, %v4891
    %v5316 = vpack.c.b16 %v4896, %v4892
    %v5317 = vpack.c.b16 %v4897, %v4893
    %v5318 = vpack.c.b16 %v4902, %v4898
    %v5319 = vpack.c.b16 %v4903, %v4899
    %v5320 = vpack.c.b16 %v4904, %v4900
    %v5321 = vpack.c.b16 %v4905, %v4901
    %v5322 = vpack.c.b16 %v4910, %v4906
    %v5323 = vpack.c.b16 %v4911, %v4907
    %v5324 = vpack.c.b16 %v4912, %v4908
    %v5325 = vpack.c.b16 %v4913, %v4909
    %v5326 = vpack.c.b16 %v4918, %v4914
    %v5327 = vpack.c.b16 %v4919, %v4915
    %v5328 = vpack.c.b16 %v4920, %v4916
    %v5329 = vpack.c.b16 %v4921, %v4917
    %v5330 = vpack.c.b16 %v4926, %v4922
    %v5331 = vpack.c.b16 %v4927, %v4923
    %v5332 = vpack.c.b16 %v4928, %v4924
    %v5333 = vpack.c.b16 %v4929, %v4925
    %v5334 = vpack.c.b16 %v4934, %v4930
    %v5335 = vpack.c.b16 %v4935, %v4931
    %v5336 = vpack.c.b16 %v4936, %v4932
    %v5337 = vpack.c.b16 %v4937, %v4933
    %v5338 = vpack.c.b16 %v4942, %v4938
    %v5339 = vpack.c.b16 %v4943, %v4939
    %v5340 = vpack.c.b16 %v4944, %v4940
    %v5341 = vpack.c.b16 %v4945, %v4941
    %v5342 = vpack.c.b16 %v4950, %v4946
    %v5343 = vpack.c.b16 %v4951, %v4947
    %v5344 = vpack.c.b16 %v4952, %v4948
    %v5345 = vpack.c.b16 %v4953, %v4949
    %v5346 = vpack.c.b16 %v4958, %v4954
    %v5347 = vpack.c.b16 %v4959, %v4955
    %v5348 = vpack.c.b16 %v4960, %v4956
    %v5349 = vpack.c.b16 %v4961, %v4957
    %v5350 = vpack.c.b16 %v4966, %v4962
    %v5351 = vpack.c.b16 %v4967, %v4963
    %v5352 = vpack.c.b16 %v4968, %v4964
    %v5353 = vpack.c.b16 %v4969, %v4965
    %v5354 = vpack.c.b16 %v4974, %v4970
    %v5355 = vpack.c.b16 %v4975, %v4971
    %v5356 = vpack.c.b16 %v4976, %v4972
    %v5357 = vpack.c.b16 %v4977, %v4973
    %v5358 = vpack.c.b16 %v4982, %v4978
    %v5359 = vpack.c.b16 %v4983, %v4979
    %v5360 = vpack.c.b16 %v4984, %v4980
    %v5361 = vpack.c.b16 %v4985, %v4981
    %v5362 = vpack.c.b16 %v4990, %v4986
    %v5363 = vpack.c.b16 %v4991, %v4987
    %v5364 = vpack.c.b16 %v4992, %v4988
    %v5365 = vpack.c.b16 %v4993, %v4989
    %v5366 = vpack.c.b16 %v4998, %v4994
    %v5367 = vpack.c.b16 %v4999, %v4995
    %v5368 = vpack.c.b16 %v5000, %v4996
    %v5369 = vpack.c.b16 %v5001, %v4997
    %v5370 = vpack.c.b16 %v5006, %v5002
    %v5371 = vpack.c.b16 %v5007, %v5003
    %v5372 = vpack.c.b16 %v5008, %v5004
    %v5373 = vpack.c.b16 %v5009, %v5005
    %v5374 = vpack.c.b16 %v5014, %v5010
    %v5375 = vpack.c.b16 %v5015, %v5011
    %v5376 = vpack.c.b16 %v5016, %v5012
    %v5377 = vpack.c.b16 %v5017, %v5013
    %v5378 = vpack.c.b16 %v5022, %v5018
    %v5379 = vpack.c.b16 %v5023, %v5019
    %v5380 = vpack.c.b16 %v5024, %v5020
    %v5381 = vpack.c.b16 %v5025, %v5021
    %v5382 = vpack.c.b16 %v5030, %v5026
    %v5383 = vpack.c.b16 %v5031, %v5027
    %v5384 = vpack.c.b16 %v5032, %v5028
    %v5385 = vpack.c.b16 %v5033, %v5029
    %v5386 = vpack.c.b16 %v5038, %v5034
    %v5387 = vpack.c.b16 %v5039, %v5035
    %v5388 = vpack.c.b16 %v5040, %v5036
    %v5389 = vpack.c.b16 %v5041, %v5037
    %v5390 = vpack.c.b16 %v5046, %v5042
    %v5391 = vpack.c.b16 %v5047, %v5043
    %v5392 = vpack.c.b16 %v5048, %v5044
    %v5393 = vpack.c.b16 %v5049, %v5045
    %v5394 = vpack.c.b16 %v5054, %v5050
    %v5395 = vpack.c.b16 %v5055, %v5051
    %v5396 = vpack.c.b16 %v5056, %v5052
    %v5397 = vpack.c.b16 %v5057, %v5053
    %v5398 = vpack.c.b16 %v5062, %v5058
    %v5399 = vpack.c.b16 %v5063, %v5059
    %v5400 = vpack.c.b16 %v5064, %v5060
    %v5401 = vpack.c.b16 %v5065, %v5061
    %v5402 = vpack.c.b16 %v5070, %v5066
    %v5403 = vpack.c.b16 %v5071, %v5067
    %v5404 = vpack.c.b16 %v5072, %v5068
    %v5405 = vpack.c.b16 %v5073, %v5069
    %v5406 = vpack.c.b16 %v5078, %v5074
    %v5407 = vpack.c.b16 %v5079, %v5075
    %v5408 = vpack.c.b16 %v5080, %v5076
    %v5409 = vpack.c.b16 %v5081, %v5077
    %v5410 = vpack.c.b16 %v5086, %v5082
    %v5411 = vpack.c.b16 %v5087, %v5083
    %v5412 = vpack.c.b16 %v5088, %v5084
    %v5413 = vpack.c.b16 %v5089, %v5085
    %v5414 = vpack.c.b16 %v5094, %v5090
    %v5415 = vpack.c.b16 %v5095, %v5091
    %v5416 = vpack.c.b16 %v5096, %v5092
    %v5417 = vpack.c.b16 %v5097, %v5093
    %v5418 = vpack.c.b16 %v5102, %v5098
    %v5419 = vpack.c.b16 %v5103, %v5099
    %v5420 = vpack.c.b16 %v5104, %v5100
    %v5421 = vpack.c.b16 %v5105, %v5101
    %v5422 = vpack.c.b16 %v5110, %v5106
    %v5423 = vpack.c.b16 %v5111, %v5107
    %v5424 = vpack.c.b16 %v5112, %v5108
    %v5425 = vpack.c.b16 %v5113, %v5109
    %v5426 = vpack.c.b16 %v5118, %v5114
    %v5427 = vpack.c.b16 %v5119, %v5115
    %v5428 = vpack.c.b16 %v5120, %v5116
    %v5429 = vpack.c.b16 %v5121, %v5117
    %v5430 = vpack.c.b16 %v5126, %v5122
    %v5431 = vpack.c.b16 %v5127, %v5123
    %v5432 = vpack.c.b16 %v5128, %v5124
    %v5433 = vpack.c.b16 %v5129, %v5125
    %v5434 = vpack.c.b16 %v5134, %v5130
    %v5435 = vpack.c.b16 %v5135, %v5131
    %v5436 = vpack.c.b16 %v5136, %v5132
    %v5437 = vpack.c.b16 %v5137, %v5133
    %v5438 = vpack.c.b16 %v5142, %v5138
    %v5439 = vpack.c.b16 %v5143, %v5139
    %v5440 = vpack.c.b16 %v5144, %v5140
    %v5441 = vpack.c.b16 %v5145, %v5141
    %v5442 = vpack.c.b16 %v5150, %v5146
    %v5443 = vpack.c.b16 %v5151, %v5147
    %v5444 = vpack.c.b16 %v5152, %v5148
    %v5445 = vpack.c.b16 %v5153, %v5149
    %v5446 = vpack.c.b16 %v5158, %v5154
    %v5447 = vpack.c.b16 %v5159, %v5155
    %v5448 = vpack.c.b16 %v5160, %v5156
    %v5449 = vpack.c.b16 %v5161, %v5157
    %v5450 = vpack.c.b16 %v5166, %v5162
    %v5451 = vpack.c.b16 %v5167, %v5163
    %v5452 = vpack.c.b16 %v5168, %v5164
    %v5453 = vpack.c.b16 %v5169, %v5165
    %v5454 = vpack.c.b16 %v5174, %v5170
    %v5455 = vpack.c.b16 %v5175, %v5171
    %v5456 = vpack.c.b16 %v5176, %v5172
    %v5457 = vpack.c.b16 %v5177, %v5173
    %v5458 = vpack.c.b16 %v5182, %v5178
    %v5459 = vpack.c.b16 %v5183, %v5179
    %v5460 = vpack.c.b16 %v5184, %v5180
    %v5461 = vpack.c.b16 %v5185, %v5181
    %v5462 = vpack.c.b16 %v5190, %v5186
    %v5463 = vpack.c.b16 %v5191, %v5187
    %v5464 = vpack.c.b16 %v5192, %v5188
    %v5465 = vpack.c.b16 %v5193, %v5189
    %v5466 = vpack.c.b16 %v5198, %v5194
    %v5467 = vpack.c.b16 %v5199, %v5195
    %v5468 = vpack.c.b16 %v5200, %v5196
    %v5469 = vpack.c.b16 %v5201, %v5197
    %v5470 = vpack.c.b16 %v5206, %v5202
    %v5471 = vpack.c.b16 %v5207, %v5203
    %v5472 = vpack.c.b16 %v5208, %v5204
    %v5473 = vpack.c.b16 %v5209, %v5205
    %v5474 = vpack.c.b16 %v5214, %v5210
    %v5475 = vpack.c.b16 %v5215, %v5211
    %v5476 = vpack.c.b16 %v5216, %v5212
    %v5477 = vpack.c.b16 %v5217, %v5213
    %v5478 = vpack.c.b16 %v5222, %v5218
    %v5479 = vpack.c.b16 %v5223, %v5219
    %v5480 = vpack.c.b16 %v5224, %v5220
    %v5481 = vpack.c.b16 %v5225, %v5221
    %5738 = vmatpush.bf16.msra.mxu0 %v5254
    %5739 = vmatpush.bf16.msra.mxu0 %v5250
    %5740 = vmatpush.bf16.msra.mxu0 %v5246
    %5741 = vmatpush.bf16.msra.mxu0 %v5242
    %5742 = vmatpush.bf16.msra.mxu0 %v5238
    %5743 = vmatpush.bf16.msra.mxu0 %v5234
    %5744 = vmatpush.bf16.msra.mxu0 %v5230
    %5745 = vmatpush.bf16.msra.mxu0 %v5226
    %5746 = vmatmul.bf16.gmra.mxu0 %v4442
    %v5747 = vpop.f32.mrf.mxu0
    %v5748 = vadd.f32 %v4393, %v5747
    %v5749 = vpop.f32.mrf.mxu0
    %5750 = vdwg.mxu0
    %5751 = vmatpush.bf16.msra.mxu0 %v5286
    %5752 = vmatpush.bf16.msra.mxu0 %v5282
    %5753 = vmatpush.bf16.msra.mxu0 %v5278
    %5754 = vmatpush.bf16.msra.mxu0 %v5274
    %5755 = vmatpush.bf16.msra.mxu0 %v5270
    %5756 = vmatpush.bf16.msra.mxu0 %v5266
    %5757 = vmatpush.bf16.msra.mxu0 %v5262
    %5758 = vmatpush.bf16.msra.mxu0 %v5258
    %5759 = vmatmul.bf16.gmra.mxu0 %v4443
    %v5760 = vpop.f32.mrf.mxu0
    %v5761 = vadd.f32 %v5748, %v5760
    %v5762 = vpop.f32.mrf.mxu0
    %5763 = vdwg.mxu0
    %5764 = vmatpush.bf16.msra.mxu0 %v5318
    %5765 = vmatpush.bf16.msra.mxu0 %v5314
    %5766 = vmatpush.bf16.msra.mxu0 %v5310
    %5767 = vmatpush.bf16.msra.mxu0 %v5306
    %5768 = vmatpush.bf16.msra.mxu0 %v5302
    %5769 = vmatpush.bf16.msra.mxu0 %v5298
    %5770 = vmatpush.bf16.msra.mxu0 %v5294
    %5771 = vmatpush.bf16.msra.mxu0 %v5290
    %5772 = vmatmul.bf16.gmra.mxu0 %v4444
    %v5773 = vpop.f32.mrf.mxu0
    %v5774 = vadd.f32 %v5761, %v5773
    %v5775 = vpop.f32.mrf.mxu0
    %5776 = vdwg.mxu0
    %5777 = vmatpush.bf16.msra.mxu0 %v5350
    %5778 = vmatpush.bf16.msra.mxu0 %v5346
    %5779 = vmatpush.bf16.msra.mxu0 %v5342
    %5780 = vmatpush.bf16.msra.mxu0 %v5338
    %5781 = vmatpush.bf16.msra.mxu0 %v5334
    %5782 = vmatpush.bf16.msra.mxu0 %v5330
    %5783 = vmatpush.bf16.msra.mxu0 %v5326
    %5784 = vmatpush.bf16.msra.mxu0 %v5322
    %5785 = vmatmul.bf16.gmra.mxu0 %v4445
    %v5786 = vpop.f32.mrf.mxu0
    %v5787 = vadd.f32 %v5774, %v5786
    %v5788 = vpop.f32.mrf.mxu0
    %5789 = vdwg.mxu0
    %5790 = vmatpush.bf16.msra.mxu0 %v5382
    %5791 = vmatpush.bf16.msra.mxu0 %v5378
    %5792 = vmatpush.bf16.msra.mxu0 %v5374
    %5793 = vmatpush.bf16.msra.mxu0 %v5370
    %5794 = vmatpush.bf16.msra.mxu0 %v5366
    %5795 = vmatpush.bf16.msra.mxu0 %v5362
    %5796 = vmatpush.bf16.msra.mxu0 %v5358
    %5797 = vmatpush.bf16.msra.mxu0 %v5354
    %5798 = vmatmul.bf16.gmra.mxu0 %v4446
    %v5799 = vpop.f32.mrf.mxu0
    %v5800 = vadd.f32 %v5787, %v5799
    %v5801 = vpop.f32.mrf.mxu0
    %5802 = vdwg.mxu0
    %5803 = vmatpush.bf16.msra.mxu0 %v5414
    %5804 = vmatpush.bf16.msra.mxu0 %v5410
    %5805 = vmatpush.bf16.msra.mxu0 %v5406
    %5806 = vmatpush.bf16.msra.mxu0 %v5402
    %5807 = vmatpush.bf16.msra.mxu0 %v5398
    %5808 = vmatpush.bf16.msra.mxu0 %v5394
    %5809 = vmatpush.bf16.msra.mxu0 %v5390
    %5810 = vmatpush.bf16.msra.mxu0 %v5386
    %5811 = vmatmul.bf16.gmra.mxu0 %v4447
    %v5812 = vpop.f32.mrf.mxu0
    %v5813 = vadd.f32 %v5800, %v5812
    %v5814 = vpop.f32.mrf.mxu0
    %5815 = vdwg.mxu0
    %5816 = vmatpush.bf16.msra.mxu0 %v5446
    %5817 = vmatpush.bf16.msra.mxu0 %v5442
    %5818 = vmatpush.bf16.msra.mxu0 %v5438
    %5819 = vmatpush.bf16.msra.mxu0 %v5434
    %5820 = vmatpush.bf16.msra.mxu0 %v5430
    %5821 = vmatpush.bf16.msra.mxu0 %v5426
    %5822 = vmatpush.bf16.msra.mxu0 %v5422
    %5823 = vmatpush.bf16.msra.mxu0 %v5418
    %5824 = vmatmul.bf16.gmra.mxu0 %v4448
    %v5825 = vpop.f32.mrf.mxu0
    %v5826 = vadd.f32 %v5813, %v5825
    %v5827 = vpop.f32.mrf.mxu0
    %5828 = vdwg.mxu0
    %5829 = vmatpush.bf16.msra.mxu0 %v5478
    %5830 = vmatpush.bf16.msra.mxu0 %v5474
    %5831 = vmatpush.bf16.msra.mxu0 %v5470
    %5832 = vmatpush.bf16.msra.mxu0 %v5466
    %5833 = vmatpush.bf16.msra.mxu0 %v5462
    %5834 = vmatpush.bf16.msra.mxu0 %v5458
    %5835 = vmatpush.bf16.msra.mxu0 %v5454
    %5836 = vmatpush.bf16.msra.mxu0 %v5450
    %5837 = vmatmul.bf16.gmra.mxu0 %v4449
    %v5838 = vpop.f32.mrf.mxu0
    %v5839 = vadd.f32 %v5826, %v5838
    %v5840 = vpop.f32.mrf.mxu0
    %5841 = vdwg.mxu0
    %5842 = vmatpush.bf16.msra.mxu0 %v5255
    %5843 = vmatpush.bf16.msra.mxu0 %v5251
    %5844 = vmatpush.bf16.msra.mxu0 %v5247
    %5845 = vmatpush.bf16.msra.mxu0 %v5243
    %5846 = vmatpush.bf16.msra.mxu0 %v5239
    %5847 = vmatpush.bf16.msra.mxu0 %v5235
    %5848 = vmatpush.bf16.msra.mxu0 %v5231
    %5849 = vmatpush.bf16.msra.mxu0 %v5227
    %5850 = vmatmul.bf16.gmra.mxu0 %v4442
    %v5851 = vpop.f32.mrf.mxu0
    %v5852 = vadd.f32 %v4394, %v5851
    %v5853 = vpop.f32.mrf.mxu0
    %5854 = vdwg.mxu0
    %5855 = vmatpush.bf16.msra.mxu0 %v5287
    %5856 = vmatpush.bf16.msra.mxu0 %v5283
    %5857 = vmatpush.bf16.msra.mxu0 %v5279
    %5858 = vmatpush.bf16.msra.mxu0 %v5275
    %5859 = vmatpush.bf16.msra.mxu0 %v5271
    %5860 = vmatpush.bf16.msra.mxu0 %v5267
    %5861 = vmatpush.bf16.msra.mxu0 %v5263
    %5862 = vmatpush.bf16.msra.mxu0 %v5259
    %5863 = vmatmul.bf16.gmra.mxu0 %v4443
    %v5864 = vpop.f32.mrf.mxu0
    %v5865 = vadd.f32 %v5852, %v5864
    %v5866 = vpop.f32.mrf.mxu0
    %5867 = vdwg.mxu0
    %5868 = vmatpush.bf16.msra.mxu0 %v5319
    %5869 = vmatpush.bf16.msra.mxu0 %v5315
    %5870 = vmatpush.bf16.msra.mxu0 %v5311
    %5871 = vmatpush.bf16.msra.mxu0 %v5307
    %5872 = vmatpush.bf16.msra.mxu0 %v5303
    %5873 = vmatpush.bf16.msra.mxu0 %v5299
    %5874 = vmatpush.bf16.msra.mxu0 %v5295
    %5875 = vmatpush.bf16.msra.mxu0 %v5291
    %5876 = vmatmul.bf16.gmra.mxu0 %v4444
    %v5877 = vpop.f32.mrf.mxu0
    %v5878 = vadd.f32 %v5865, %v5877
    %v5879 = vpop.f32.mrf.mxu0
    %5880 = vdwg.mxu0
    %5881 = vmatpush.bf16.msra.mxu0 %v5351
    %5882 = vmatpush.bf16.msra.mxu0 %v5347
    %5883 = vmatpush.bf16.msra.mxu0 %v5343
    %5884 = vmatpush.bf16.msra.mxu0 %v5339
    %5885 = vmatpush.bf16.msra.mxu0 %v5335
    %5886 = vmatpush.bf16.msra.mxu0 %v5331
    %5887 = vmatpush.bf16.msra.mxu0 %v5327
    %5888 = vmatpush.bf16.msra.mxu0 %v5323
    %5889 = vmatmul.bf16.gmra.mxu0 %v4445
    %v5890 = vpop.f32.mrf.mxu0
    %v5891 = vadd.f32 %v5878, %v5890
    %v5892 = vpop.f32.mrf.mxu0
    %5893 = vdwg.mxu0
    %5894 = vmatpush.bf16.msra.mxu0 %v5383
    %5895 = vmatpush.bf16.msra.mxu0 %v5379
    %5896 = vmatpush.bf16.msra.mxu0 %v5375
    %5897 = vmatpush.bf16.msra.mxu0 %v5371
    %5898 = vmatpush.bf16.msra.mxu0 %v5367
    %5899 = vmatpush.bf16.msra.mxu0 %v5363
    %5900 = vmatpush.bf16.msra.mxu0 %v5359
    %5901 = vmatpush.bf16.msra.mxu0 %v5355
    %5902 = vmatmul.bf16.gmra.mxu0 %v4446
    %v5903 = vpop.f32.mrf.mxu0
    %v5904 = vadd.f32 %v5891, %v5903
    %v5905 = vpop.f32.mrf.mxu0
    %5906 = vdwg.mxu0
    %5907 = vmatpush.bf16.msra.mxu0 %v5415
    %5908 = vmatpush.bf16.msra.mxu0 %v5411
    %5909 = vmatpush.bf16.msra.mxu0 %v5407
    %5910 = vmatpush.bf16.msra.mxu0 %v5403
    %5911 = vmatpush.bf16.msra.mxu0 %v5399
    %5912 = vmatpush.bf16.msra.mxu0 %v5395
    %5913 = vmatpush.bf16.msra.mxu0 %v5391
    %5914 = vmatpush.bf16.msra.mxu0 %v5387
    %5915 = vmatmul.bf16.gmra.mxu0 %v4447
    %v5916 = vpop.f32.mrf.mxu0
    %v5917 = vadd.f32 %v5904, %v5916
    %v5918 = vpop.f32.mrf.mxu0
    %5919 = vdwg.mxu0
    %5920 = vmatpush.bf16.msra.mxu0 %v5447
    %5921 = vmatpush.bf16.msra.mxu0 %v5443
    %5922 = vmatpush.bf16.msra.mxu0 %v5439
    %5923 = vmatpush.bf16.msra.mxu0 %v5435
    %5924 = vmatpush.bf16.msra.mxu0 %v5431
    %5925 = vmatpush.bf16.msra.mxu0 %v5427
    %5926 = vmatpush.bf16.msra.mxu0 %v5423
    %5927 = vmatpush.bf16.msra.mxu0 %v5419
    %5928 = vmatmul.bf16.gmra.mxu0 %v4448
    %v5929 = vpop.f32.mrf.mxu0
    %v5930 = vadd.f32 %v5917, %v5929
    %v5931 = vpop.f32.mrf.mxu0
    %5932 = vdwg.mxu0
    %5933 = vmatpush.bf16.msra.mxu0 %v5479
    %5934 = vmatpush.bf16.msra.mxu0 %v5475
    %5935 = vmatpush.bf16.msra.mxu0 %v5471
    %5936 = vmatpush.bf16.msra.mxu0 %v5467
    %5937 = vmatpush.bf16.msra.mxu0 %v5463
    %5938 = vmatpush.bf16.msra.mxu0 %v5459
    %5939 = vmatpush.bf16.msra.mxu0 %v5455
    %5940 = vmatpush.bf16.msra.mxu0 %v5451
    %5941 = vmatmul.bf16.gmra.mxu0 %v4449
    %v5942 = vpop.f32.mrf.mxu0
    %v5943 = vadd.f32 %v5930, %v5942
    %v5944 = vpop.f32.mrf.mxu0
    %5945 = vdwg.mxu0
    %5946 = vmatpush.bf16.msra.mxu0 %v5256
    %5947 = vmatpush.bf16.msra.mxu0 %v5252
    %5948 = vmatpush.bf16.msra.mxu0 %v5248
    %5949 = vmatpush.bf16.msra.mxu0 %v5244
    %5950 = vmatpush.bf16.msra.mxu0 %v5240
    %5951 = vmatpush.bf16.msra.mxu0 %v5236
    %5952 = vmatpush.bf16.msra.mxu0 %v5232
    %5953 = vmatpush.bf16.msra.mxu0 %v5228
    %5954 = vmatmul.bf16.gmra.mxu0 %v4442
    %v5955 = vpop.f32.mrf.mxu0
    %v5956 = vadd.f32 %v4395, %v5955
    %v5957 = vpop.f32.mrf.mxu0
    %5958 = vdwg.mxu0
    %5959 = vmatpush.bf16.msra.mxu0 %v5288
    %5960 = vmatpush.bf16.msra.mxu0 %v5284
    %5961 = vmatpush.bf16.msra.mxu0 %v5280
    %5962 = vmatpush.bf16.msra.mxu0 %v5276
    %5963 = vmatpush.bf16.msra.mxu0 %v5272
    %5964 = vmatpush.bf16.msra.mxu0 %v5268
    %5965 = vmatpush.bf16.msra.mxu0 %v5264
    %5966 = vmatpush.bf16.msra.mxu0 %v5260
    %5967 = vmatmul.bf16.gmra.mxu0 %v4443
    %v5968 = vpop.f32.mrf.mxu0
    %v5969 = vadd.f32 %v5956, %v5968
    %v5970 = vpop.f32.mrf.mxu0
    %5971 = vdwg.mxu0
    %5972 = vmatpush.bf16.msra.mxu0 %v5320
    %5973 = vmatpush.bf16.msra.mxu0 %v5316
    %5974 = vmatpush.bf16.msra.mxu0 %v5312
    %5975 = vmatpush.bf16.msra.mxu0 %v5308
    %5976 = vmatpush.bf16.msra.mxu0 %v5304
    %5977 = vmatpush.bf16.msra.mxu0 %v5300
    %5978 = vmatpush.bf16.msra.mxu0 %v5296
    %5979 = vmatpush.bf16.msra.mxu0 %v5292
    %5980 = vmatmul.bf16.gmra.mxu0 %v4444
    %v5981 = vpop.f32.mrf.mxu0
    %v5982 = vadd.f32 %v5969, %v5981
    %v5983 = vpop.f32.mrf.mxu0
    %5984 = vdwg.mxu0
    %5985 = vmatpush.bf16.msra.mxu0 %v5352
    %5986 = vmatpush.bf16.msra.mxu0 %v5348
    %5987 = vmatpush.bf16.msra.mxu0 %v5344
    %5988 = vmatpush.bf16.msra.mxu0 %v5340
    %5989 = vmatpush.bf16.msra.mxu0 %v5336
    %5990 = vmatpush.bf16.msra.mxu0 %v5332
    %5991 = vmatpush.bf16.msra.mxu0 %v5328
    %5992 = vmatpush.bf16.msra.mxu0 %v5324
    %5993 = vmatmul.bf16.gmra.mxu0 %v4445
    %v5994 = vpop.f32.mrf.mxu0
    %v5995 = vadd.f32 %v5982, %v5994
    %v5996 = vpop.f32.mrf.mxu0
    %5997 = vdwg.mxu0
    %5998 = vmatpush.bf16.msra.mxu0 %v5384
    %5999 = vmatpush.bf16.msra.mxu0 %v5380
    %6000 = vmatpush.bf16.msra.mxu0 %v5376
    %6001 = vmatpush.bf16.msra.mxu0 %v5372
    %6002 = vmatpush.bf16.msra.mxu0 %v5368
    %6003 = vmatpush.bf16.msra.mxu0 %v5364
    %6004 = vmatpush.bf16.msra.mxu0 %v5360
    %6005 = vmatpush.bf16.msra.mxu0 %v5356
    %6006 = vmatmul.bf16.gmra.mxu0 %v4446
    %v6007 = vpop.f32.mrf.mxu0
    %v6008 = vadd.f32 %v5995, %v6007
    %v6009 = vpop.f32.mrf.mxu0
    %6010 = vdwg.mxu0
    %6011 = vmatpush.bf16.msra.mxu0 %v5416
    %6012 = vmatpush.bf16.msra.mxu0 %v5412
    %6013 = vmatpush.bf16.msra.mxu0 %v5408
    %6014 = vmatpush.bf16.msra.mxu0 %v5404
    %6015 = vmatpush.bf16.msra.mxu0 %v5400
    %6016 = vmatpush.bf16.msra.mxu0 %v5396
    %6017 = vmatpush.bf16.msra.mxu0 %v5392
    %6018 = vmatpush.bf16.msra.mxu0 %v5388
    %6019 = vmatmul.bf16.gmra.mxu0 %v4447
    %v6020 = vpop.f32.mrf.mxu0
    %v6021 = vadd.f32 %v6008, %v6020
    %v6022 = vpop.f32.mrf.mxu0
    %6023 = vdwg.mxu0
    %6024 = vmatpush.bf16.msra.mxu0 %v5448
    %6025 = vmatpush.bf16.msra.mxu0 %v5444
    %6026 = vmatpush.bf16.msra.mxu0 %v5440
    %6027 = vmatpush.bf16.msra.mxu0 %v5436
    %6028 = vmatpush.bf16.msra.mxu0 %v5432
    %6029 = vmatpush.bf16.msra.mxu0 %v5428
    %6030 = vmatpush.bf16.msra.mxu0 %v5424
    %6031 = vmatpush.bf16.msra.mxu0 %v5420
    %6032 = vmatmul.bf16.gmra.mxu0 %v4448
    %v6033 = vpop.f32.mrf.mxu0
    %v6034 = vadd.f32 %v6021, %v6033
    %v6035 = vpop.f32.mrf.mxu0
    %6036 = vdwg.mxu0
    %6037 = vmatpush.bf16.msra.mxu0 %v5480
    %6038 = vmatpush.bf16.msra.mxu0 %v5476
    %6039 = vmatpush.bf16.msra.mxu0 %v5472
    %6040 = vmatpush.bf16.msra.mxu0 %v5468
    %6041 = vmatpush.bf16.msra.mxu0 %v5464
    %6042 = vmatpush.bf16.msra.mxu0 %v5460
    %6043 = vmatpush.bf16.msra.mxu0 %v5456
    %6044 = vmatpush.bf16.msra.mxu0 %v5452
    %6045 = vmatmul.bf16.gmra.mxu0 %v4449
    %v6046 = vpop.f32.mrf.mxu0
    %v6047 = vadd.f32 %v6034, %v6046
    %v6048 = vpop.f32.mrf.mxu0
    %6049 = vdwg.mxu0
    %6050 = vmatpush.bf16.msra.mxu0 %v5257
    %6051 = vmatpush.bf16.msra.mxu0 %v5253
    %6052 = vmatpush.bf16.msra.mxu0 %v5249
    %6053 = vmatpush.bf16.msra.mxu0 %v5245
    %6054 = vmatpush.bf16.msra.mxu0 %v5241
    %6055 = vmatpush.bf16.msra.mxu0 %v5237
    %6056 = vmatpush.bf16.msra.mxu0 %v5233
    %6057 = vmatpush.bf16.msra.mxu0 %v5229
    %6058 = vmatmul.bf16.gmra.mxu0 %v4442
    %v6059 = vpop.f32.mrf.mxu0
    %v6060 = vadd.f32 %v4396, %v6059
    %v6061 = vpop.f32.mrf.mxu0
    %6062 = vdwg.mxu0
    %6063 = vmatpush.bf16.msra.mxu0 %v5289
    %6064 = vmatpush.bf16.msra.mxu0 %v5285
    %6065 = vmatpush.bf16.msra.mxu0 %v5281
    %6066 = vmatpush.bf16.msra.mxu0 %v5277
    %6067 = vmatpush.bf16.msra.mxu0 %v5273
    %6068 = vmatpush.bf16.msra.mxu0 %v5269
    %6069 = vmatpush.bf16.msra.mxu0 %v5265
    %6070 = vmatpush.bf16.msra.mxu0 %v5261
    %6071 = vmatmul.bf16.gmra.mxu0 %v4443
    %v6072 = vpop.f32.mrf.mxu0
    %v6073 = vadd.f32 %v6060, %v6072
    %v6074 = vpop.f32.mrf.mxu0
    %6075 = vdwg.mxu0
    %6076 = vmatpush.bf16.msra.mxu0 %v5321
    %6077 = vmatpush.bf16.msra.mxu0 %v5317
    %6078 = vmatpush.bf16.msra.mxu0 %v5313
    %6079 = vmatpush.bf16.msra.mxu0 %v5309
    %6080 = vmatpush.bf16.msra.mxu0 %v5305
    %6081 = vmatpush.bf16.msra.mxu0 %v5301
    %6082 = vmatpush.bf16.msra.mxu0 %v5297
    %6083 = vmatpush.bf16.msra.mxu0 %v5293
    %6084 = vmatmul.bf16.gmra.mxu0 %v4444
    %v6085 = vpop.f32.mrf.mxu0
    %v6086 = vadd.f32 %v6073, %v6085
    %v6087 = vpop.f32.mrf.mxu0
    %6088 = vdwg.mxu0
    %6089 = vmatpush.bf16.msra.mxu0 %v5353
    %6090 = vmatpush.bf16.msra.mxu0 %v5349
    %6091 = vmatpush.bf16.msra.mxu0 %v5345
    %6092 = vmatpush.bf16.msra.mxu0 %v5341
    %6093 = vmatpush.bf16.msra.mxu0 %v5337
    %6094 = vmatpush.bf16.msra.mxu0 %v5333
    %6095 = vmatpush.bf16.msra.mxu0 %v5329
    %6096 = vmatpush.bf16.msra.mxu0 %v5325
    %6097 = vmatmul.bf16.gmra.mxu0 %v4445
    %v6098 = vpop.f32.mrf.mxu0
    %v6099 = vadd.f32 %v6086, %v6098
    %v6100 = vpop.f32.mrf.mxu0
    %6101 = vdwg.mxu0
    %6102 = vmatpush.bf16.msra.mxu0 %v5385
    %6103 = vmatpush.bf16.msra.mxu0 %v5381
    %6104 = vmatpush.bf16.msra.mxu0 %v5377
    %6105 = vmatpush.bf16.msra.mxu0 %v5373
    %6106 = vmatpush.bf16.msra.mxu0 %v5369
    %6107 = vmatpush.bf16.msra.mxu0 %v5365
    %6108 = vmatpush.bf16.msra.mxu0 %v5361
    %6109 = vmatpush.bf16.msra.mxu0 %v5357
    %6110 = vmatmul.bf16.gmra.mxu0 %v4446
    %v6111 = vpop.f32.mrf.mxu0
    %v6112 = vadd.f32 %v6099, %v6111
    %v6113 = vpop.f32.mrf.mxu0
    %6114 = vdwg.mxu0
    %6115 = vmatpush.bf16.msra.mxu0 %v5417
    %6116 = vmatpush.bf16.msra.mxu0 %v5413
    %6117 = vmatpush.bf16.msra.mxu0 %v5409
    %6118 = vmatpush.bf16.msra.mxu0 %v5405
    %6119 = vmatpush.bf16.msra.mxu0 %v5401
    %6120 = vmatpush.bf16.msra.mxu0 %v5397
    %6121 = vmatpush.bf16.msra.mxu0 %v5393
    %6122 = vmatpush.bf16.msra.mxu0 %v5389
    %6123 = vmatmul.bf16.gmra.mxu0 %v4447
    %v6124 = vpop.f32.mrf.mxu0
    %v6125 = vadd.f32 %v6112, %v6124
    %v6126 = vpop.f32.mrf.mxu0
    %6127 = vdwg.mxu0
    %6128 = vmatpush.bf16.msra.mxu0 %v5449
    %6129 = vmatpush.bf16.msra.mxu0 %v5445
    %6130 = vmatpush.bf16.msra.mxu0 %v5441
    %6131 = vmatpush.bf16.msra.mxu0 %v5437
    %6132 = vmatpush.bf16.msra.mxu0 %v5433
    %6133 = vmatpush.bf16.msra.mxu0 %v5429
    %6134 = vmatpush.bf16.msra.mxu0 %v5425
    %6135 = vmatpush.bf16.msra.mxu0 %v5421
    %6136 = vmatmul.bf16.gmra.mxu0 %v4448
    %v6137 = vpop.f32.mrf.mxu0
    %v6138 = vadd.f32 %v6125, %v6137
    %v6139 = vpop.f32.mrf.mxu0
    %6140 = vdwg.mxu0
    %6141 = vmatpush.bf16.msra.mxu0 %v5481
    %6142 = vmatpush.bf16.msra.mxu0 %v5477
    %6143 = vmatpush.bf16.msra.mxu0 %v5473
    %6144 = vmatpush.bf16.msra.mxu0 %v5469
    %6145 = vmatpush.bf16.msra.mxu0 %v5465
    %6146 = vmatpush.bf16.msra.mxu0 %v5461
    %6147 = vmatpush.bf16.msra.mxu0 %v5457
    %6148 = vmatpush.bf16.msra.mxu0 %v5453
    %6149 = vmatmul.bf16.gmra.mxu0 %v4449
    %v6150 = vpop.f32.mrf.mxu0
    %v6151 = vadd.f32 %v6138, %v6150
    %v6152 = vpop.f32.mrf.mxu0
    %6153 = vdwg.mxu0
    %v6154 = vmax.f32 %v5839, 0.0
    %v6155 = vmax.f32 %v5943, 0.0
    %v6156 = vmax.f32 %v6047, 0.0
    %v6157 = vmax.f32 %v6151, 0.0
    %v6158 = vpack.c.bf16 %v6154, %v6154
    %v6159 = vpack.c.bf16 %v6155, %v6155
    %v6160 = vpack.c.bf16 %v6156, %v6156
    %v6161 = vpack.c.bf16 %v6157, %v6157
    %s6162 = smul.u32 %s1302, 4
    %s6163 = sshll.u32 %s6162, 4
    %6164 = dma.done %s221, %s6163
    %v6165 = vld [vmem:[#allocation4] sm:$0xff]
    %v6166 = vld [vmem:[#allocation4 + $0x8] sm:$0xff]
    %v6167 = vld [vmem:[#allocation4 + $0x10] sm:$0xff]
    %v6168 = vld [vmem:[#allocation4 + $0x18] sm:$0xff]
    %v6169 = vld [vmem:[#allocation4 + $0x20] sm:$0xff]
    %v6170 = vld [vmem:[#allocation4 + $0x28] sm:$0xff]
    %v6171 = vld [vmem:[#allocation4 + $0x30] sm:$0xff]
    %v6172 = vld [vmem:[#allocation4 + $0x38] sm:$0xff]
    %v6173 = vld [vmem:[#allocation4 + $0x40] sm:$0xff]
    %v6174 = vld [vmem:[#allocation4 + $0x48] sm:$0xff]
    %v6175 = vld [vmem:[#allocation4 + $0x50] sm:$0xff]
    %v6176 = vld [vmem:[#allocation4 + $0x58] sm:$0xff]
    %v6177 = vld [vmem:[#allocation4 + $0x60] sm:$0xff]
    %v6178 = vld [vmem:[#allocation4 + $0x68] sm:$0xff]
    %v6179 = vld [vmem:[#allocation4 + $0x70] sm:$0xff]
    %v6180 = vld [vmem:[#allocation4 + $0x78] sm:$0xff]
    %v6181 = vld [vmem:[#allocation4 + $0x80] sm:$0xff]
    %v6182 = vld [vmem:[#allocation4 + $0x88] sm:$0xff]
    %v6183 = vld [vmem:[#allocation4 + $0x90] sm:$0xff]
    %v6184 = vld [vmem:[#allocation4 + $0x98] sm:$0xff]
    %v6185 = vld [vmem:[#allocation4 + $0xa0] sm:$0xff]
    %v6186 = vld [vmem:[#allocation4 + $0xa8] sm:$0xff]
    %v6187 = vld [vmem:[#allocation4 + $0xb0] sm:$0xff]
    %v6188 = vld [vmem:[#allocation4 + $0xb8] sm:$0xff]
    %v6189 = vld [vmem:[#allocation4 + $0xc0] sm:$0xff]
    %v6190 = vld [vmem:[#allocation4 + $0xc8] sm:$0xff]
    %v6191 = vld [vmem:[#allocation4 + $0xd0] sm:$0xff]
    %v6192 = vld [vmem:[#allocation4 + $0xd8] sm:$0xff]
    %v6193 = vld [vmem:[#allocation4 + $0xe0] sm:$0xff]
    %v6194 = vld [vmem:[#allocation4 + $0xe8] sm:$0xff]
    %v6195 = vld [vmem:[#allocation4 + $0xf0] sm:$0xff]
    %v6196 = vld [vmem:[#allocation4 + $0xf8] sm:$0xff]
    %v6197 = vld [vmem:[#allocation4 + $0x100] sm:$0xff]
    %v6198 = vld [vmem:[#allocation4 + $0x108] sm:$0xff]
    %v6199 = vld [vmem:[#allocation4 + $0x110] sm:$0xff]
    %v6200 = vld [vmem:[#allocation4 + $0x118] sm:$0xff]
    %v6201 = vld [vmem:[#allocation4 + $0x120] sm:$0xff]
    %v6202 = vld [vmem:[#allocation4 + $0x128] sm:$0xff]
    %v6203 = vld [vmem:[#allocation4 + $0x130] sm:$0xff]
    %v6204 = vld [vmem:[#allocation4 + $0x138] sm:$0xff]
    %v6205 = vld [vmem:[#allocation4 + $0x140] sm:$0xff]
    %v6206 = vld [vmem:[#allocation4 + $0x148] sm:$0xff]
    %v6207 = vld [vmem:[#allocation4 + $0x150] sm:$0xff]
    %v6208 = vld [vmem:[#allocation4 + $0x158] sm:$0xff]
    %v6209 = vld [vmem:[#allocation4 + $0x160] sm:$0xff]
    %v6210 = vld [vmem:[#allocation4 + $0x168] sm:$0xff]
    %v6211 = vld [vmem:[#allocation4 + $0x170] sm:$0xff]
    %v6212 = vld [vmem:[#allocation4 + $0x178] sm:$0xff]
    %v6213 = vld [vmem:[#allocation4 + $0x180] sm:$0xff]
    %v6214 = vld [vmem:[#allocation4 + $0x188] sm:$0xff]
    %v6215 = vld [vmem:[#allocation4 + $0x190] sm:$0xff]
    %v6216 = vld [vmem:[#allocation4 + $0x198] sm:$0xff]
    %v6217 = vld [vmem:[#allocation4 + $0x1a0] sm:$0xff]
    %v6218 = vld [vmem:[#allocation4 + $0x1a8] sm:$0xff]
    %v6219 = vld [vmem:[#allocation4 + $0x1b0] sm:$0xff]
    %v6220 = vld [vmem:[#allocation4 + $0x1b8] sm:$0xff]
    %v6221 = vld [vmem:[#allocation4 + $0x1c0] sm:$0xff]
    %v6222 = vld [vmem:[#allocation4 + $0x1c8] sm:$0xff]
    %v6223 = vld [vmem:[#allocation4 + $0x1d0] sm:$0xff]
    %v6224 = vld [vmem:[#allocation4 + $0x1d8] sm:$0xff]
    %v6225 = vld [vmem:[#allocation4 + $0x1e0] sm:$0xff]
    %v6226 = vld [vmem:[#allocation4 + $0x1e8] sm:$0xff]
    %v6227 = vld [vmem:[#allocation4 + $0x1f0] sm:$0xff]
    %v6228 = vld [vmem:[#allocation4 + $0x1f8] sm:$0xff]
    %v6229 = vld [vmem:[#allocation4 + $0x200] sm:$0xff]
    %v6230 = vld [vmem:[#allocation4 + $0x208] sm:$0xff]
    %v6231 = vld [vmem:[#allocation4 + $0x210] sm:$0xff]
    %v6232 = vld [vmem:[#allocation4 + $0x218] sm:$0xff]
    %v6233 = vld [vmem:[#allocation4 + $0x220] sm:$0xff]
    %v6234 = vld [vmem:[#allocation4 + $0x228] sm:$0xff]
    %v6235 = vld [vmem:[#allocation4 + $0x230] sm:$0xff]
    %v6236 = vld [vmem:[#allocation4 + $0x238] sm:$0xff]
    %v6237 = vld [vmem:[#allocation4 + $0x240] sm:$0xff]
    %v6238 = vld [vmem:[#allocation4 + $0x248] sm:$0xff]
    %v6239 = vld [vmem:[#allocation4 + $0x250] sm:$0xff]
    %v6240 = vld [vmem:[#allocation4 + $0x258] sm:$0xff]
    %v6241 = vld [vmem:[#allocation4 + $0x260] sm:$0xff]
    %v6242 = vld [vmem:[#allocation4 + $0x268] sm:$0xff]
    %v6243 = vld [vmem:[#allocation4 + $0x270] sm:$0xff]
    %v6244 = vld [vmem:[#allocation4 + $0x278] sm:$0xff]
    %v6245 = vld [vmem:[#allocation4 + $0x280] sm:$0xff]
    %v6246 = vld [vmem:[#allocation4 + $0x288] sm:$0xff]
    %v6247 = vld [vmem:[#allocation4 + $0x290] sm:$0xff]
    %v6248 = vld [vmem:[#allocation4 + $0x298] sm:$0xff]
    %v6249 = vld [vmem:[#allocation4 + $0x2a0] sm:$0xff]
    %v6250 = vld [vmem:[#allocation4 + $0x2a8] sm:$0xff]
    %v6251 = vld [vmem:[#allocation4 + $0x2b0] sm:$0xff]
    %v6252 = vld [vmem:[#allocation4 + $0x2b8] sm:$0xff]
    %v6253 = vld [vmem:[#allocation4 + $0x2c0] sm:$0xff]
    %v6254 = vld [vmem:[#allocation4 + $0x2c8] sm:$0xff]
    %v6255 = vld [vmem:[#allocation4 + $0x2d0] sm:$0xff]
    %v6256 = vld [vmem:[#allocation4 + $0x2d8] sm:$0xff]
    %v6257 = vld [vmem:[#allocation4 + $0x2e0] sm:$0xff]
    %v6258 = vld [vmem:[#allocation4 + $0x2e8] sm:$0xff]
    %v6259 = vld [vmem:[#allocation4 + $0x2f0] sm:$0xff]
    %v6260 = vld [vmem:[#allocation4 + $0x2f8] sm:$0xff]
    %v6261 = vld [vmem:[#allocation4 + $0x300] sm:$0xff]
    %v6262 = vld [vmem:[#allocation4 + $0x308] sm:$0xff]
    %v6263 = vld [vmem:[#allocation4 + $0x310] sm:$0xff]
    %v6264 = vld [vmem:[#allocation4 + $0x318] sm:$0xff]
    %v6265 = vld [vmem:[#allocation4 + $0x320] sm:$0xff]
    %v6266 = vld [vmem:[#allocation4 + $0x328] sm:$0xff]
    %v6267 = vld [vmem:[#allocation4 + $0x330] sm:$0xff]
    %v6268 = vld [vmem:[#allocation4 + $0x338] sm:$0xff]
    %v6269 = vld [vmem:[#allocation4 + $0x340] sm:$0xff]
    %v6270 = vld [vmem:[#allocation4 + $0x348] sm:$0xff]
    %v6271 = vld [vmem:[#allocation4 + $0x350] sm:$0xff]
    %v6272 = vld [vmem:[#allocation4 + $0x358] sm:$0xff]
    %v6273 = vld [vmem:[#allocation4 + $0x360] sm:$0xff]
    %v6274 = vld [vmem:[#allocation4 + $0x368] sm:$0xff]
    %v6275 = vld [vmem:[#allocation4 + $0x370] sm:$0xff]
    %v6276 = vld [vmem:[#allocation4 + $0x378] sm:$0xff]
    %v6277 = vld [vmem:[#allocation4 + $0x380] sm:$0xff]
    %v6278 = vld [vmem:[#allocation4 + $0x388] sm:$0xff]
    %v6279 = vld [vmem:[#allocation4 + $0x390] sm:$0xff]
    %v6280 = vld [vmem:[#allocation4 + $0x398] sm:$0xff]
    %v6281 = vld [vmem:[#allocation4 + $0x3a0] sm:$0xff]
    %v6282 = vld [vmem:[#allocation4 + $0x3a8] sm:$0xff]
    %v6283 = vld [vmem:[#allocation4 + $0x3b0] sm:$0xff]
    %v6284 = vld [vmem:[#allocation4 + $0x3b8] sm:$0xff]
    %v6285 = vld [vmem:[#allocation4 + $0x3c0] sm:$0xff]
    %v6286 = vld [vmem:[#allocation4 + $0x3c8] sm:$0xff]
    %v6287 = vld [vmem:[#allocation4 + $0x3d0] sm:$0xff]
    %v6288 = vld [vmem:[#allocation4 + $0x3d8] sm:$0xff]
    %v6289 = vld [vmem:[#allocation4 + $0x3e0] sm:$0xff]
    %v6290 = vld [vmem:[#allocation4 + $0x3e8] sm:$0xff]
    %v6291 = vld [vmem:[#allocation4 + $0x3f0] sm:$0xff]
    %v6292 = vld [vmem:[#allocation4 + $0x3f8] sm:$0xff]
    %v6293 = vld [vmem:[#allocation22] sm:$0xf]
    %v6295 = vperm.slane %v6293, 0
    %v6296 = vperm.slane %v6293, 1
    %v6297 = vperm.slane %v6293, 2
    %v6298 = vperm.slane %v6293, 3
    %v6431 = vunpack.c.l.b16 %v6165
    %v6432 = vunpack.c.h.b16 %v6165
    %v6433 = vunpack.c.l.b16 %v6166
    %v6434 = vunpack.c.h.b16 %v6166
    %v6435 = vunpack.c.l.b16 %v6167
    %v6436 = vunpack.c.h.b16 %v6167
    %v6437 = vunpack.c.l.b16 %v6168
    %v6438 = vunpack.c.h.b16 %v6168
    %v6439 = vunpack.c.l.b16 %v6169
    %v6440 = vunpack.c.h.b16 %v6169
    %v6441 = vunpack.c.l.b16 %v6170
    %v6442 = vunpack.c.h.b16 %v6170
    %v6443 = vunpack.c.l.b16 %v6171
    %v6444 = vunpack.c.h.b16 %v6171
    %v6445 = vunpack.c.l.b16 %v6172
    %v6446 = vunpack.c.h.b16 %v6172
    %v6447 = vunpack.c.l.b16 %v6173
    %v6448 = vunpack.c.h.b16 %v6173
    %v6449 = vunpack.c.l.b16 %v6174
    %v6450 = vunpack.c.h.b16 %v6174
    %v6451 = vunpack.c.l.b16 %v6175
    %v6452 = vunpack.c.h.b16 %v6175
    %v6453 = vunpack.c.l.b16 %v6176
    %v6454 = vunpack.c.h.b16 %v6176
    %v6455 = vunpack.c.l.b16 %v6177
    %v6456 = vunpack.c.h.b16 %v6177
    %v6457 = vunpack.c.l.b16 %v6178
    %v6458 = vunpack.c.h.b16 %v6178
    %v6459 = vunpack.c.l.b16 %v6179
    %v6460 = vunpack.c.h.b16 %v6179
    %v6461 = vunpack.c.l.b16 %v6180
    %v6462 = vunpack.c.h.b16 %v6180
    %v6463 = vunpack.c.l.b16 %v6181
    %v6464 = vunpack.c.h.b16 %v6181
    %v6465 = vunpack.c.l.b16 %v6182
    %v6466 = vunpack.c.h.b16 %v6182
    %v6467 = vunpack.c.l.b16 %v6183
    %v6468 = vunpack.c.h.b16 %v6183
    %v6469 = vunpack.c.l.b16 %v6184
    %v6470 = vunpack.c.h.b16 %v6184
    %v6471 = vunpack.c.l.b16 %v6185
    %v6472 = vunpack.c.h.b16 %v6185
    %v6473 = vunpack.c.l.b16 %v6186
    %v6474 = vunpack.c.h.b16 %v6186
    %v6475 = vunpack.c.l.b16 %v6187
    %v6476 = vunpack.c.h.b16 %v6187
    %v6477 = vunpack.c.l.b16 %v6188
    %v6478 = vunpack.c.h.b16 %v6188
    %v6479 = vunpack.c.l.b16 %v6189
    %v6480 = vunpack.c.h.b16 %v6189
    %v6481 = vunpack.c.l.b16 %v6190
    %v6482 = vunpack.c.h.b16 %v6190
    %v6483 = vunpack.c.l.b16 %v6191
    %v6484 = vunpack.c.h.b16 %v6191
    %v6485 = vunpack.c.l.b16 %v6192
    %v6486 = vunpack.c.h.b16 %v6192
    %v6487 = vunpack.c.l.b16 %v6193
    %v6488 = vunpack.c.h.b16 %v6193
    %v6489 = vunpack.c.l.b16 %v6194
    %v6490 = vunpack.c.h.b16 %v6194
    %v6491 = vunpack.c.l.b16 %v6195
    %v6492 = vunpack.c.h.b16 %v6195
    %v6493 = vunpack.c.l.b16 %v6196
    %v6494 = vunpack.c.h.b16 %v6196
    %v6495 = vunpack.c.l.b16 %v6197
    %v6496 = vunpack.c.h.b16 %v6197
    %v6497 = vunpack.c.l.b16 %v6198
    %v6498 = vunpack.c.h.b16 %v6198
    %v6499 = vunpack.c.l.b16 %v6199
    %v6500 = vunpack.c.h.b16 %v6199
    %v6501 = vunpack.c.l.b16 %v6200
    %v6502 = vunpack.c.h.b16 %v6200
    %v6503 = vunpack.c.l.b16 %v6201
    %v6504 = vunpack.c.h.b16 %v6201
    %v6505 = vunpack.c.l.b16 %v6202
    %v6506 = vunpack.c.h.b16 %v6202
    %v6507 = vunpack.c.l.b16 %v6203
    %v6508 = vunpack.c.h.b16 %v6203
    %v6509 = vunpack.c.l.b16 %v6204
    %v6510 = vunpack.c.h.b16 %v6204
    %v6511 = vunpack.c.l.b16 %v6205
    %v6512 = vunpack.c.h.b16 %v6205
    %v6513 = vunpack.c.l.b16 %v6206
    %v6514 = vunpack.c.h.b16 %v6206
    %v6515 = vunpack.c.l.b16 %v6207
    %v6516 = vunpack.c.h.b16 %v6207
    %v6517 = vunpack.c.l.b16 %v6208
    %v6518 = vunpack.c.h.b16 %v6208
    %v6519 = vunpack.c.l.b16 %v6209
    %v6520 = vunpack.c.h.b16 %v6209
    %v6521 = vunpack.c.l.b16 %v6210
    %v6522 = vunpack.c.h.b16 %v6210
    %v6523 = vunpack.c.l.b16 %v6211
    %v6524 = vunpack.c.h.b16 %v6211
    %v6525 = vunpack.c.l.b16 %v6212
    %v6526 = vunpack.c.h.b16 %v6212
    %v6527 = vunpack.c.l.b16 %v6213
    %v6528 = vunpack.c.h.b16 %v6213
    %v6529 = vunpack.c.l.b16 %v6214
    %v6530 = vunpack.c.h.b16 %v6214
    %v6531 = vunpack.c.l.b16 %v6215
    %v6532 = vunpack.c.h.b16 %v6215
    %v6533 = vunpack.c.l.b16 %v6216
    %v6534 = vunpack.c.h.b16 %v6216
    %v6535 = vunpack.c.l.b16 %v6217
    %v6536 = vunpack.c.h.b16 %v6217
    %v6537 = vunpack.c.l.b16 %v6218
    %v6538 = vunpack.c.h.b16 %v6218
    %v6539 = vunpack.c.l.b16 %v6219
    %v6540 = vunpack.c.h.b16 %v6219
    %v6541 = vunpack.c.l.b16 %v6220
    %v6542 = vunpack.c.h.b16 %v6220
    %v6543 = vunpack.c.l.b16 %v6221
    %v6544 = vunpack.c.h.b16 %v6221
    %v6545 = vunpack.c.l.b16 %v6222
    %v6546 = vunpack.c.h.b16 %v6222
    %v6547 = vunpack.c.l.b16 %v6223
    %v6548 = vunpack.c.h.b16 %v6223
    %v6549 = vunpack.c.l.b16 %v6224
    %v6550 = vunpack.c.h.b16 %v6224
    %v6551 = vunpack.c.l.b16 %v6225
    %v6552 = vunpack.c.h.b16 %v6225
    %v6553 = vunpack.c.l.b16 %v6226
    %v6554 = vunpack.c.h.b16 %v6226
    %v6555 = vunpack.c.l.b16 %v6227
    %v6556 = vunpack.c.h.b16 %v6227
    %v6557 = vunpack.c.l.b16 %v6228
    %v6558 = vunpack.c.h.b16 %v6228
    %v6559 = vunpack.c.l.b16 %v6229
    %v6560 = vunpack.c.h.b16 %v6229
    %v6561 = vunpack.c.l.b16 %v6230
    %v6562 = vunpack.c.h.b16 %v6230
    %v6563 = vunpack.c.l.b16 %v6231
    %v6564 = vunpack.c.h.b16 %v6231
    %v6565 = vunpack.c.l.b16 %v6232
    %v6566 = vunpack.c.h.b16 %v6232
    %v6567 = vunpack.c.l.b16 %v6233
    %v6568 = vunpack.c.h.b16 %v6233
    %v6569 = vunpack.c.l.b16 %v6234
    %v6570 = vunpack.c.h.b16 %v6234
    %v6571 = vunpack.c.l.b16 %v6235
    %v6572 = vunpack.c.h.b16 %v6235
    %v6573 = vunpack.c.l.b16 %v6236
    %v6574 = vunpack.c.h.b16 %v6236
    %v6575 = vunpack.c.l.b16 %v6237
    %v6576 = vunpack.c.h.b16 %v6237
    %v6577 = vunpack.c.l.b16 %v6238
    %v6578 = vunpack.c.h.b16 %v6238
    %v6579 = vunpack.c.l.b16 %v6239
    %v6580 = vunpack.c.h.b16 %v6239
    %v6581 = vunpack.c.l.b16 %v6240
    %v6582 = vunpack.c.h.b16 %v6240
    %v6583 = vunpack.c.l.b16 %v6241
    %v6584 = vunpack.c.h.b16 %v6241
    %v6585 = vunpack.c.l.b16 %v6242
    %v6586 = vunpack.c.h.b16 %v6242
    %v6587 = vunpack.c.l.b16 %v6243
    %v6588 = vunpack.c.h.b16 %v6243
    %v6589 = vunpack.c.l.b16 %v6244
    %v6590 = vunpack.c.h.b16 %v6244
    %v6591 = vunpack.c.l.b16 %v6245
    %v6592 = vunpack.c.h.b16 %v6245
    %v6593 = vunpack.c.l.b16 %v6246
    %v6594 = vunpack.c.h.b16 %v6246
    %v6595 = vunpack.c.l.b16 %v6247
    %v6596 = vunpack.c.h.b16 %v6247
    %v6597 = vunpack.c.l.b16 %v6248
    %v6598 = vunpack.c.h.b16 %v6248
    %v6599 = vunpack.c.l.b16 %v6249
    %v6600 = vunpack.c.h.b16 %v6249
    %v6601 = vunpack.c.l.b16 %v6250
    %v6602 = vunpack.c.h.b16 %v6250
    %v6603 = vunpack.c.l.b16 %v6251
    %v6604 = vunpack.c.h.b16 %v6251
    %v6605 = vunpack.c.l.b16 %v6252
    %v6606 = vunpack.c.h.b16 %v6252
    %v6607 = vunpack.c.l.b16 %v6253
    %v6608 = vunpack.c.h.b16 %v6253
    %v6609 = vunpack.c.l.b16 %v6254
    %v6610 = vunpack.c.h.b16 %v6254
    %v6611 = vunpack.c.l.b16 %v6255
    %v6612 = vunpack.c.h.b16 %v6255
    %v6613 = vunpack.c.l.b16 %v6256
    %v6614 = vunpack.c.h.b16 %v6256
    %v6615 = vunpack.c.l.b16 %v6257
    %v6616 = vunpack.c.h.b16 %v6257
    %v6617 = vunpack.c.l.b16 %v6258
    %v6618 = vunpack.c.h.b16 %v6258
    %v6619 = vunpack.c.l.b16 %v6259
    %v6620 = vunpack.c.h.b16 %v6259
    %v6621 = vunpack.c.l.b16 %v6260
    %v6622 = vunpack.c.h.b16 %v6260
    %v6623 = vunpack.c.l.b16 %v6261
    %v6624 = vunpack.c.h.b16 %v6261
    %v6625 = vunpack.c.l.b16 %v6262
    %v6626 = vunpack.c.h.b16 %v6262
    %v6627 = vunpack.c.l.b16 %v6263
    %v6628 = vunpack.c.h.b16 %v6263
    %v6629 = vunpack.c.l.b16 %v6264
    %v6630 = vunpack.c.h.b16 %v6264
    %v6631 = vunpack.c.l.b16 %v6265
    %v6632 = vunpack.c.h.b16 %v6265
    %v6633 = vunpack.c.l.b16 %v6266
    %v6634 = vunpack.c.h.b16 %v6266
    %v6635 = vunpack.c.l.b16 %v6267
    %v6636 = vunpack.c.h.b16 %v6267
    %v6637 = vunpack.c.l.b16 %v6268
    %v6638 = vunpack.c.h.b16 %v6268
    %v6639 = vunpack.c.l.b16 %v6269
    %v6640 = vunpack.c.h.b16 %v6269
    %v6641 = vunpack.c.l.b16 %v6270
    %v6642 = vunpack.c.h.b16 %v6270
    %v6643 = vunpack.c.l.b16 %v6271
    %v6644 = vunpack.c.h.b16 %v6271
    %v6645 = vunpack.c.l.b16 %v6272
    %v6646 = vunpack.c.h.b16 %v6272
    %v6647 = vunpack.c.l.b16 %v6273
    %v6648 = vunpack.c.h.b16 %v6273
    %v6649 = vunpack.c.l.b16 %v6274
    %v6650 = vunpack.c.h.b16 %v6274
    %v6651 = vunpack.c.l.b16 %v6275
    %v6652 = vunpack.c.h.b16 %v6275
    %v6653 = vunpack.c.l.b16 %v6276
    %v6654 = vunpack.c.h.b16 %v6276
    %v6655 = vunpack.c.l.b16 %v6277
    %v6656 = vunpack.c.h.b16 %v6277
    %v6657 = vunpack.c.l.b16 %v6278
    %v6658 = vunpack.c.h.b16 %v6278
    %v6659 = vunpack.c.l.b16 %v6279
    %v6660 = vunpack.c.h.b16 %v6279
    %v6661 = vunpack.c.l.b16 %v6280
    %v6662 = vunpack.c.h.b16 %v6280
    %v6663 = vunpack.c.l.b16 %v6281
    %v6664 = vunpack.c.h.b16 %v6281
    %v6665 = vunpack.c.l.b16 %v6282
    %v6666 = vunpack.c.h.b16 %v6282
    %v6667 = vunpack.c.l.b16 %v6283
    %v6668 = vunpack.c.h.b16 %v6283
    %v6669 = vunpack.c.l.b16 %v6284
    %v6670 = vunpack.c.h.b16 %v6284
    %v6671 = vunpack.c.l.b16 %v6285
    %v6672 = vunpack.c.h.b16 %v6285
    %v6673 = vunpack.c.l.b16 %v6286
    %v6674 = vunpack.c.h.b16 %v6286
    %v6675 = vunpack.c.l.b16 %v6287
    %v6676 = vunpack.c.h.b16 %v6287
    %v6677 = vunpack.c.l.b16 %v6288
    %v6678 = vunpack.c.h.b16 %v6288
    %v6679 = vunpack.c.l.b16 %v6289
    %v6680 = vunpack.c.h.b16 %v6289
    %v6681 = vunpack.c.l.b16 %v6290
    %v6682 = vunpack.c.h.b16 %v6290
    %v6683 = vunpack.c.l.b16 %v6291
    %v6684 = vunpack.c.h.b16 %v6291
    %v6685 = vunpack.c.l.b16 %v6292
    %v6686 = vunpack.c.h.b16 %v6292
    %v6687 = vpack.c.b16 %v6435, %v6431
    %v6688 = vpack.c.b16 %v6436, %v6432
    %v6689 = vpack.c.b16 %v6437, %v6433
    %v6690 = vpack.c.b16 %v6438, %v6434
    %v6691 = vpack.c.b16 %v6443, %v6439
    %v6692 = vpack.c.b16 %v6444, %v6440
    %v6693 = vpack.c.b16 %v6445, %v6441
    %v6694 = vpack.c.b16 %v6446, %v6442
    %v6695 = vpack.c.b16 %v6451, %v6447
    %v6696 = vpack.c.b16 %v6452, %v6448
    %v6697 = vpack.c.b16 %v6453, %v6449
    %v6698 = vpack.c.b16 %v6454, %v6450
    %v6699 = vpack.c.b16 %v6459, %v6455
    %v6700 = vpack.c.b16 %v6460, %v6456
    %v6701 = vpack.c.b16 %v6461, %v6457
    %v6702 = vpack.c.b16 %v6462, %v6458
    %v6703 = vpack.c.b16 %v6467, %v6463
    %v6704 = vpack.c.b16 %v6468, %v6464
    %v6705 = vpack.c.b16 %v6469, %v6465
    %v6706 = vpack.c.b16 %v6470, %v6466
    %v6707 = vpack.c.b16 %v6475, %v6471
    %v6708 = vpack.c.b16 %v6476, %v6472
    %v6709 = vpack.c.b16 %v6477, %v6473
    %v6710 = vpack.c.b16 %v6478, %v6474
    %v6711 = vpack.c.b16 %v6483, %v6479
    %v6712 = vpack.c.b16 %v6484, %v6480
    %v6713 = vpack.c.b16 %v6485, %v6481
    %v6714 = vpack.c.b16 %v6486, %v6482
    %v6715 = vpack.c.b16 %v6491, %v6487
    %v6716 = vpack.c.b16 %v6492, %v6488
    %v6717 = vpack.c.b16 %v6493, %v6489
    %v6718 = vpack.c.b16 %v6494, %v6490
    %v6719 = vpack.c.b16 %v6499, %v6495
    %v6720 = vpack.c.b16 %v6500, %v6496
    %v6721 = vpack.c.b16 %v6501, %v6497
    %v6722 = vpack.c.b16 %v6502, %v6498
    %v6723 = vpack.c.b16 %v6507, %v6503
    %v6724 = vpack.c.b16 %v6508, %v6504
    %v6725 = vpack.c.b16 %v6509, %v6505
    %v6726 = vpack.c.b16 %v6510, %v6506
    %v6727 = vpack.c.b16 %v6515, %v6511
    %v6728 = vpack.c.b16 %v6516, %v6512
    %v6729 = vpack.c.b16 %v6517, %v6513
    %v6730 = vpack.c.b16 %v6518, %v6514
    %v6731 = vpack.c.b16 %v6523, %v6519
    %v6732 = vpack.c.b16 %v6524, %v6520
    %v6733 = vpack.c.b16 %v6525, %v6521
    %v6734 = vpack.c.b16 %v6526, %v6522
    %v6735 = vpack.c.b16 %v6531, %v6527
    %v6736 = vpack.c.b16 %v6532, %v6528
    %v6737 = vpack.c.b16 %v6533, %v6529
    %v6738 = vpack.c.b16 %v6534, %v6530
    %v6739 = vpack.c.b16 %v6539, %v6535
    %v6740 = vpack.c.b16 %v6540, %v6536
    %v6741 = vpack.c.b16 %v6541, %v6537
    %v6742 = vpack.c.b16 %v6542, %v6538
    %v6743 = vpack.c.b16 %v6547, %v6543
    %v6744 = vpack.c.b16 %v6548, %v6544
    %v6745 = vpack.c.b16 %v6549, %v6545
    %v6746 = vpack.c.b16 %v6550, %v6546
    %v6747 = vpack.c.b16 %v6555, %v6551
    %v6748 = vpack.c.b16 %v6556, %v6552
    %v6749 = vpack.c.b16 %v6557, %v6553
    %v6750 = vpack.c.b16 %v6558, %v6554
    %v6751 = vpack.c.b16 %v6563, %v6559
    %v6752 = vpack.c.b16 %v6564, %v6560
    %v6753 = vpack.c.b16 %v6565, %v6561
    %v6754 = vpack.c.b16 %v6566, %v6562
    %v6755 = vpack.c.b16 %v6571, %v6567
    %v6756 = vpack.c.b16 %v6572, %v6568
    %v6757 = vpack.c.b16 %v6573, %v6569
    %v6758 = vpack.c.b16 %v6574, %v6570
    %v6759 = vpack.c.b16 %v6579, %v6575
    %v6760 = vpack.c.b16 %v6580, %v6576
    %v6761 = vpack.c.b16 %v6581, %v6577
    %v6762 = vpack.c.b16 %v6582, %v6578
    %v6763 = vpack.c.b16 %v6587, %v6583
    %v6764 = vpack.c.b16 %v6588, %v6584
    %v6765 = vpack.c.b16 %v6589, %v6585
    %v6766 = vpack.c.b16 %v6590, %v6586
    %v6767 = vpack.c.b16 %v6595, %v6591
    %v6768 = vpack.c.b16 %v6596, %v6592
    %v6769 = vpack.c.b16 %v6597, %v6593
    %v6770 = vpack.c.b16 %v6598, %v6594
    %v6771 = vpack.c.b16 %v6603, %v6599
    %v6772 = vpack.c.b16 %v6604, %v6600
    %v6773 = vpack.c.b16 %v6605, %v6601
    %v6774 = vpack.c.b16 %v6606, %v6602
    %v6775 = vpack.c.b16 %v6611, %v6607
    %v6776 = vpack.c.b16 %v6612, %v6608
    %v6777 = vpack.c.b16 %v6613, %v6609
    %v6778 = vpack.c.b16 %v6614, %v6610
    %v6779 = vpack.c.b16 %v6619, %v6615
    %v6780 = vpack.c.b16 %v6620, %v6616
    %v6781 = vpack.c.b16 %v6621, %v6617
    %v6782 = vpack.c.b16 %v6622, %v6618
    %v6783 = vpack.c.b16 %v6627, %v6623
    %v6784 = vpack.c.b16 %v6628, %v6624
    %v6785 = vpack.c.b16 %v6629, %v6625
    %v6786 = vpack.c.b16 %v6630, %v6626
    %v6787 = vpack.c.b16 %v6635, %v6631
    %v6788 = vpack.c.b16 %v6636, %v6632
    %v6789 = vpack.c.b16 %v6637, %v6633
    %v6790 = vpack.c.b16 %v6638, %v6634
    %v6791 = vpack.c.b16 %v6643, %v6639
    %v6792 = vpack.c.b16 %v6644, %v6640
    %v6793 = vpack.c.b16 %v6645, %v6641
    %v6794 = vpack.c.b16 %v6646, %v6642
    %v6795 = vpack.c.b16 %v6651, %v6647
    %v6796 = vpack.c.b16 %v6652, %v6648
    %v6797 = vpack.c.b16 %v6653, %v6649
    %v6798 = vpack.c.b16 %v6654, %v6650
    %v6799 = vpack.c.b16 %v6659, %v6655
    %v6800 = vpack.c.b16 %v6660, %v6656
    %v6801 = vpack.c.b16 %v6661, %v6657
    %v6802 = vpack.c.b16 %v6662, %v6658
    %v6803 = vpack.c.b16 %v6667, %v6663
    %v6804 = vpack.c.b16 %v6668, %v6664
    %v6805 = vpack.c.b16 %v6669, %v6665
    %v6806 = vpack.c.b16 %v6670, %v6666
    %v6807 = vpack.c.b16 %v6675, %v6671
    %v6808 = vpack.c.b16 %v6676, %v6672
    %v6809 = vpack.c.b16 %v6677, %v6673
    %v6810 = vpack.c.b16 %v6678, %v6674
    %v6811 = vpack.c.b16 %v6683, %v6679
    %v6812 = vpack.c.b16 %v6684, %v6680
    %v6813 = vpack.c.b16 %v6685, %v6681
    %v6814 = vpack.c.b16 %v6686, %v6682
    %6943 = vmatpush.bf16.msra.mxu0 %v6715
    %6944 = vmatpush.bf16.msra.mxu0 %v6711
    %6945 = vmatpush.bf16.msra.mxu0 %v6707
    %6946 = vmatpush.bf16.msra.mxu0 %v6703
    %6947 = vmatpush.bf16.msra.mxu0 %v6699
    %6948 = vmatpush.bf16.msra.mxu0 %v6695
    %6949 = vmatpush.bf16.msra.mxu0 %v6691
    %6950 = vmatpush.bf16.msra.mxu0 %v6687
    %6951 = vmatmul.bf16.gmra.mxu0 %v6158
    %v6952 = vpop.f32.mrf.mxu0
    %v6953 = vadd.f32 %v6295, %v6952
    %v6954 = vpop.f32.mrf.mxu0
    %6955 = vdwg.mxu0
    %6956 = vmatpush.bf16.msra.mxu0 %v6747
    %6957 = vmatpush.bf16.msra.mxu0 %v6743
    %6958 = vmatpush.bf16.msra.mxu0 %v6739
    %6959 = vmatpush.bf16.msra.mxu0 %v6735
    %6960 = vmatpush.bf16.msra.mxu0 %v6731
    %6961 = vmatpush.bf16.msra.mxu0 %v6727
    %6962 = vmatpush.bf16.msra.mxu0 %v6723
    %6963 = vmatpush.bf16.msra.mxu0 %v6719
    %6964 = vmatmul.bf16.gmra.mxu0 %v6159
    %v6965 = vpop.f32.mrf.mxu0
    %v6966 = vadd.f32 %v6953, %v6965
    %v6967 = vpop.f32.mrf.mxu0
    %6968 = vdwg.mxu0
    %6969 = vmatpush.bf16.msra.mxu0 %v6779
    %6970 = vmatpush.bf16.msra.mxu0 %v6775
    %6971 = vmatpush.bf16.msra.mxu0 %v6771
    %6972 = vmatpush.bf16.msra.mxu0 %v6767
    %6973 = vmatpush.bf16.msra.mxu0 %v6763
    %6974 = vmatpush.bf16.msra.mxu0 %v6759
    %6975 = vmatpush.bf16.msra.mxu0 %v6755
    %6976 = vmatpush.bf16.msra.mxu0 %v6751
    %6977 = vmatmul.bf16.gmra.mxu0 %v6160
    %v6978 = vpop.f32.mrf.mxu0
    %v6979 = vadd.f32 %v6966, %v6978
    %v6980 = vpop.f32.mrf.mxu0
    %6981 = vdwg.mxu0
    %6982 = vmatpush.bf16.msra.mxu0 %v6811
    %6983 = vmatpush.bf16.msra.mxu0 %v6807
    %6984 = vmatpush.bf16.msra.mxu0 %v6803
    %6985 = vmatpush.bf16.msra.mxu0 %v6799
    %6986 = vmatpush.bf16.msra.mxu0 %v6795
    %6987 = vmatpush.bf16.msra.mxu0 %v6791
    %6988 = vmatpush.bf16.msra.mxu0 %v6787
    %6989 = vmatpush.bf16.msra.mxu0 %v6783
    %6990 = vmatmul.bf16.gmra.mxu0 %v6161
    %v6991 = vpop.f32.mrf.mxu0
    %v6992 = vadd.f32 %v6979, %v6991
    %v6993 = vpop.f32.mrf.mxu0
    %6994 = vdwg.mxu0
    %6995 = vmatpush.bf16.msra.mxu0 %v6716
    %6996 = vmatpush.bf16.msra.mxu0 %v6712
    %6997 = vmatpush.bf16.msra.mxu0 %v6708
    %6998 = vmatpush.bf16.msra.mxu0 %v6704
    %6999 = vmatpush.bf16.msra.mxu0 %v6700
    %7000 = vmatpush.bf16.msra.mxu0 %v6696
    %7001 = vmatpush.bf16.msra.mxu0 %v6692
    %7002 = vmatpush.bf16.msra.mxu0 %v6688
    %7003 = vmatmul.bf16.gmra.mxu0 %v6158
    %v7004 = vpop.f32.mrf.mxu0
    %v7005 = vadd.f32 %v6296, %v7004
    %v7006 = vpop.f32.mrf.mxu0
    %7007 = vdwg.mxu0
    %7008 = vmatpush.bf16.msra.mxu0 %v6748
    %7009 = vmatpush.bf16.msra.mxu0 %v6744
    %7010 = vmatpush.bf16.msra.mxu0 %v6740
    %7011 = vmatpush.bf16.msra.mxu0 %v6736
    %7012 = vmatpush.bf16.msra.mxu0 %v6732
    %7013 = vmatpush.bf16.msra.mxu0 %v6728
    %7014 = vmatpush.bf16.msra.mxu0 %v6724
    %7015 = vmatpush.bf16.msra.mxu0 %v6720
    %7016 = vmatmul.bf16.gmra.mxu0 %v6159
    %v7017 = vpop.f32.mrf.mxu0
    %v7018 = vadd.f32 %v7005, %v7017
    %v7019 = vpop.f32.mrf.mxu0
    %7020 = vdwg.mxu0
    %7021 = vmatpush.bf16.msra.mxu0 %v6780
    %7022 = vmatpush.bf16.msra.mxu0 %v6776
    %7023 = vmatpush.bf16.msra.mxu0 %v6772
    %7024 = vmatpush.bf16.msra.mxu0 %v6768
    %7025 = vmatpush.bf16.msra.mxu0 %v6764
    %7026 = vmatpush.bf16.msra.mxu0 %v6760
    %7027 = vmatpush.bf16.msra.mxu0 %v6756
    %7028 = vmatpush.bf16.msra.mxu0 %v6752
    %7029 = vmatmul.bf16.gmra.mxu0 %v6160
    %v7030 = vpop.f32.mrf.mxu0
    %v7031 = vadd.f32 %v7018, %v7030
    %v7032 = vpop.f32.mrf.mxu0
    %7033 = vdwg.mxu0
    %7034 = vmatpush.bf16.msra.mxu0 %v6812
    %7035 = vmatpush.bf16.msra.mxu0 %v6808
    %7036 = vmatpush.bf16.msra.mxu0 %v6804
    %7037 = vmatpush.bf16.msra.mxu0 %v6800
    %7038 = vmatpush.bf16.msra.mxu0 %v6796
    %7039 = vmatpush.bf16.msra.mxu0 %v6792
    %7040 = vmatpush.bf16.msra.mxu0 %v6788
    %7041 = vmatpush.bf16.msra.mxu0 %v6784
    %7042 = vmatmul.bf16.gmra.mxu0 %v6161
    %v7043 = vpop.f32.mrf.mxu0
    %v7044 = vadd.f32 %v7031, %v7043
    %v7045 = vpop.f32.mrf.mxu0
    %7046 = vdwg.mxu0
    %7047 = vmatpush.bf16.msra.mxu0 %v6717
    %7048 = vmatpush.bf16.msra.mxu0 %v6713
    %7049 = vmatpush.bf16.msra.mxu0 %v6709
    %7050 = vmatpush.bf16.msra.mxu0 %v6705
    %7051 = vmatpush.bf16.msra.mxu0 %v6701
    %7052 = vmatpush.bf16.msra.mxu0 %v6697
    %7053 = vmatpush.bf16.msra.mxu0 %v6693
    %7054 = vmatpush.bf16.msra.mxu0 %v6689
    %7055 = vmatmul.bf16.gmra.mxu0 %v6158
    %v7056 = vpop.f32.mrf.mxu0
    %v7057 = vadd.f32 %v6297, %v7056
    %v7058 = vpop.f32.mrf.mxu0
    %7059 = vdwg.mxu0
    %7060 = vmatpush.bf16.msra.mxu0 %v6749
    %7061 = vmatpush.bf16.msra.mxu0 %v6745
    %7062 = vmatpush.bf16.msra.mxu0 %v6741
    %7063 = vmatpush.bf16.msra.mxu0 %v6737
    %7064 = vmatpush.bf16.msra.mxu0 %v6733
    %7065 = vmatpush.bf16.msra.mxu0 %v6729
    %7066 = vmatpush.bf16.msra.mxu0 %v6725
    %7067 = vmatpush.bf16.msra.mxu0 %v6721
    %7068 = vmatmul.bf16.gmra.mxu0 %v6159
    %v7069 = vpop.f32.mrf.mxu0
    %v7070 = vadd.f32 %v7057, %v7069
    %v7071 = vpop.f32.mrf.mxu0
    %7072 = vdwg.mxu0
    %7073 = vmatpush.bf16.msra.mxu0 %v6781
    %7074 = vmatpush.bf16.msra.mxu0 %v6777
    %7075 = vmatpush.bf16.msra.mxu0 %v6773
    %7076 = vmatpush.bf16.msra.mxu0 %v6769
    %7077 = vmatpush.bf16.msra.mxu0 %v6765
    %7078 = vmatpush.bf16.msra.mxu0 %v6761
    %7079 = vmatpush.bf16.msra.mxu0 %v6757
    %7080 = vmatpush.bf16.msra.mxu0 %v6753
    %7081 = vmatmul.bf16.gmra.mxu0 %v6160
    %v7082 = vpop.f32.mrf.mxu0
    %v7083 = vadd.f32 %v7070, %v7082
    %v7084 = vpop.f32.mrf.mxu0
    %7085 = vdwg.mxu0
    %7086 = vmatpush.bf16.msra.mxu0 %v6813
    %7087 = vmatpush.bf16.msra.mxu0 %v6809
    %7088 = vmatpush.bf16.msra.mxu0 %v6805
    %7089 = vmatpush.bf16.msra.mxu0 %v6801
    %7090 = vmatpush.bf16.msra.mxu0 %v6797
    %7091 = vmatpush.bf16.msra.mxu0 %v6793
    %7092 = vmatpush.bf16.msra.mxu0 %v6789
    %7093 = vmatpush.bf16.msra.mxu0 %v6785
    %7094 = vmatmul.bf16.gmra.mxu0 %v6161
    %v7095 = vpop.f32.mrf.mxu0
    %v7096 = vadd.f32 %v7083, %v7095
    %v7097 = vpop.f32.mrf.mxu0
    %7098 = vdwg.mxu0
    %7099 = vmatpush.bf16.msra.mxu0 %v6718
    %7100 = vmatpush.bf16.msra.mxu0 %v6714
    %7101 = vmatpush.bf16.msra.mxu0 %v6710
    %7102 = vmatpush.bf16.msra.mxu0 %v6706
    %7103 = vmatpush.bf16.msra.mxu0 %v6702
    %7104 = vmatpush.bf16.msra.mxu0 %v6698
    %7105 = vmatpush.bf16.msra.mxu0 %v6694
    %7106 = vmatpush.bf16.msra.mxu0 %v6690
    %7107 = vmatmul.bf16.gmra.mxu0 %v6158
    %v7108 = vpop.f32.mrf.mxu0
    %v7109 = vadd.f32 %v6298, %v7108
    %v7110 = vpop.f32.mrf.mxu0
    %7111 = vdwg.mxu0
    %7112 = vmatpush.bf16.msra.mxu0 %v6750
    %7113 = vmatpush.bf16.msra.mxu0 %v6746
    %7114 = vmatpush.bf16.msra.mxu0 %v6742
    %7115 = vmatpush.bf16.msra.mxu0 %v6738
    %7116 = vmatpush.bf16.msra.mxu0 %v6734
    %7117 = vmatpush.bf16.msra.mxu0 %v6730
    %7118 = vmatpush.bf16.msra.mxu0 %v6726
    %7119 = vmatpush.bf16.msra.mxu0 %v6722
    %7120 = vmatmul.bf16.gmra.mxu0 %v6159
    %v7121 = vpop.f32.mrf.mxu0
    %v7122 = vadd.f32 %v7109, %v7121
    %v7123 = vpop.f32.mrf.mxu0
    %7124 = vdwg.mxu0
    %7125 = vmatpush.bf16.msra.mxu0 %v6782
    %7126 = vmatpush.bf16.msra.mxu0 %v6778
    %7127 = vmatpush.bf16.msra.mxu0 %v6774
    %7128 = vmatpush.bf16.msra.mxu0 %v6770
    %7129 = vmatpush.bf16.msra.mxu0 %v6766
    %7130 = vmatpush.bf16.msra.mxu0 %v6762
    %7131 = vmatpush.bf16.msra.mxu0 %v6758
    %7132 = vmatpush.bf16.msra.mxu0 %v6754
    %7133 = vmatmul.bf16.gmra.mxu0 %v6160
    %v7134 = vpop.f32.mrf.mxu0
    %v7135 = vadd.f32 %v7122, %v7134
    %v7136 = vpop.f32.mrf.mxu0
    %7137 = vdwg.mxu0
    %7138 = vmatpush.bf16.msra.mxu0 %v6814
    %7139 = vmatpush.bf16.msra.mxu0 %v6810
    %7140 = vmatpush.bf16.msra.mxu0 %v6806
    %7141 = vmatpush.bf16.msra.mxu0 %v6802
    %7142 = vmatpush.bf16.msra.mxu0 %v6798
    %7143 = vmatpush.bf16.msra.mxu0 %v6794
    %7144 = vmatpush.bf16.msra.mxu0 %v6790
    %7145 = vmatpush.bf16.msra.mxu0 %v6786
    %7146 = vmatmul.bf16.gmra.mxu0 %v6161
    %v7147 = vpop.f32.mrf.mxu0
    %v7148 = vadd.f32 %v7135, %v7147
    %v7149 = vpop.f32.mrf.mxu0
    %7150 = vdwg.mxu0
    %v7151 = vmax.f32 %v6992, 0.0
    %v7152 = vmax.f32 %v7044, 0.0
    %v7153 = vmax.f32 %v7096, 0.0
    %v7154 = vmax.f32 %v7148, 0.0
    %v7155 = vpack.c.bf16 %v7151, %v7151
    %v7156 = vpack.c.bf16 %v7152, %v7152
    %v7157 = vpack.c.bf16 %v7153, %v7153
    %v7158 = vpack.c.bf16 %v7154, %v7154
    %s7159 = sshll.u32 %s6162, 4
    %7160 = dma.done %s235, %s7159
    %v7161 = vld [vmem:[#allocation5] sm:$0xff]
    %v7162 = vld [vmem:[#allocation5 + $0x8] sm:$0xff]
    %v7163 = vld [vmem:[#allocation5 + $0x10] sm:$0xff]
    %v7164 = vld [vmem:[#allocation5 + $0x18] sm:$0xff]
    %v7165 = vld [vmem:[#allocation5 + $0x20] sm:$0xff]
    %v7166 = vld [vmem:[#allocation5 + $0x28] sm:$0xff]
    %v7167 = vld [vmem:[#allocation5 + $0x30] sm:$0xff]
    %v7168 = vld [vmem:[#allocation5 + $0x38] sm:$0xff]
    %v7169 = vld [vmem:[#allocation5 + $0x40] sm:$0xff]
    %v7170 = vld [vmem:[#allocation5 + $0x48] sm:$0xff]
    %v7171 = vld [vmem:[#allocation5 + $0x50] sm:$0xff]
    %v7172 = vld [vmem:[#allocation5 + $0x58] sm:$0xff]
    %v7173 = vld [vmem:[#allocation5 + $0x60] sm:$0xff]
    %v7174 = vld [vmem:[#allocation5 + $0x68] sm:$0xff]
    %v7175 = vld [vmem:[#allocation5 + $0x70] sm:$0xff]
    %v7176 = vld [vmem:[#allocation5 + $0x78] sm:$0xff]
    %v7177 = vld [vmem:[#allocation5 + $0x80] sm:$0xff]
    %v7178 = vld [vmem:[#allocation5 + $0x88] sm:$0xff]
    %v7179 = vld [vmem:[#allocation5 + $0x90] sm:$0xff]
    %v7180 = vld [vmem:[#allocation5 + $0x98] sm:$0xff]
    %v7181 = vld [vmem:[#allocation5 + $0xa0] sm:$0xff]
    %v7182 = vld [vmem:[#allocation5 + $0xa8] sm:$0xff]
    %v7183 = vld [vmem:[#allocation5 + $0xb0] sm:$0xff]
    %v7184 = vld [vmem:[#allocation5 + $0xb8] sm:$0xff]
    %v7185 = vld [vmem:[#allocation5 + $0xc0] sm:$0xff]
    %v7186 = vld [vmem:[#allocation5 + $0xc8] sm:$0xff]
    %v7187 = vld [vmem:[#allocation5 + $0xd0] sm:$0xff]
    %v7188 = vld [vmem:[#allocation5 + $0xd8] sm:$0xff]
    %v7189 = vld [vmem:[#allocation5 + $0xe0] sm:$0xff]
    %v7190 = vld [vmem:[#allocation5 + $0xe8] sm:$0xff]
    %v7191 = vld [vmem:[#allocation5 + $0xf0] sm:$0xff]
    %v7192 = vld [vmem:[#allocation5 + $0xf8] sm:$0xff]
    %v7193 = vld [vmem:[#allocation5 + $0x100] sm:$0xff]
    %v7194 = vld [vmem:[#allocation5 + $0x108] sm:$0xff]
    %v7195 = vld [vmem:[#allocation5 + $0x110] sm:$0xff]
    %v7196 = vld [vmem:[#allocation5 + $0x118] sm:$0xff]
    %v7197 = vld [vmem:[#allocation5 + $0x120] sm:$0xff]
    %v7198 = vld [vmem:[#allocation5 + $0x128] sm:$0xff]
    %v7199 = vld [vmem:[#allocation5 + $0x130] sm:$0xff]
    %v7200 = vld [vmem:[#allocation5 + $0x138] sm:$0xff]
    %v7201 = vld [vmem:[#allocation5 + $0x140] sm:$0xff]
    %v7202 = vld [vmem:[#allocation5 + $0x148] sm:$0xff]
    %v7203 = vld [vmem:[#allocation5 + $0x150] sm:$0xff]
    %v7204 = vld [vmem:[#allocation5 + $0x158] sm:$0xff]
    %v7205 = vld [vmem:[#allocation5 + $0x160] sm:$0xff]
    %v7206 = vld [vmem:[#allocation5 + $0x168] sm:$0xff]
    %v7207 = vld [vmem:[#allocation5 + $0x170] sm:$0xff]
    %v7208 = vld [vmem:[#allocation5 + $0x178] sm:$0xff]
    %v7209 = vld [vmem:[#allocation5 + $0x180] sm:$0xff]
    %v7210 = vld [vmem:[#allocation5 + $0x188] sm:$0xff]
    %v7211 = vld [vmem:[#allocation5 + $0x190] sm:$0xff]
    %v7212 = vld [vmem:[#allocation5 + $0x198] sm:$0xff]
    %v7213 = vld [vmem:[#allocation5 + $0x1a0] sm:$0xff]
    %v7214 = vld [vmem:[#allocation5 + $0x1a8] sm:$0xff]
    %v7215 = vld [vmem:[#allocation5 + $0x1b0] sm:$0xff]
    %v7216 = vld [vmem:[#allocation5 + $0x1b8] sm:$0xff]
    %v7217 = vld [vmem:[#allocation5 + $0x1c0] sm:$0xff]
    %v7218 = vld [vmem:[#allocation5 + $0x1c8] sm:$0xff]
    %v7219 = vld [vmem:[#allocation5 + $0x1d0] sm:$0xff]
    %v7220 = vld [vmem:[#allocation5 + $0x1d8] sm:$0xff]
    %v7221 = vld [vmem:[#allocation5 + $0x1e0] sm:$0xff]
    %v7222 = vld [vmem:[#allocation5 + $0x1e8] sm:$0xff]
    %v7223 = vld [vmem:[#allocation5 + $0x1f0] sm:$0xff]
    %v7224 = vld [vmem:[#allocation5 + $0x1f8] sm:$0xff]
    %v7225 = vld [vmem:[#allocation5 + $0x200] sm:$0xff]
    %v7226 = vld [vmem:[#allocation5 + $0x208] sm:$0xff]
    %v7227 = vld [vmem:[#allocation5 + $0x210] sm:$0xff]
    %v7228 = vld [vmem:[#allocation5 + $0x218] sm:$0xff]
    %v7229 = vld [vmem:[#allocation5 + $0x220] sm:$0xff]
    %v7230 = vld [vmem:[#allocation5 + $0x228] sm:$0xff]
    %v7231 = vld [vmem:[#allocation5 + $0x230] sm:$0xff]
    %v7232 = vld [vmem:[#allocation5 + $0x238] sm:$0xff]
    %v7233 = vld [vmem:[#allocation5 + $0x240] sm:$0xff]
    %v7234 = vld [vmem:[#allocation5 + $0x248] sm:$0xff]
    %v7235 = vld [vmem:[#allocation5 + $0x250] sm:$0xff]
    %v7236 = vld [vmem:[#allocation5 + $0x258] sm:$0xff]
    %v7237 = vld [vmem:[#allocation5 + $0x260] sm:$0xff]
    %v7238 = vld [vmem:[#allocation5 + $0x268] sm:$0xff]
    %v7239 = vld [vmem:[#allocation5 + $0x270] sm:$0xff]
    %v7240 = vld [vmem:[#allocation5 + $0x278] sm:$0xff]
    %v7241 = vld [vmem:[#allocation5 + $0x280] sm:$0xff]
    %v7242 = vld [vmem:[#allocation5 + $0x288] sm:$0xff]
    %v7243 = vld [vmem:[#allocation5 + $0x290] sm:$0xff]
    %v7244 = vld [vmem:[#allocation5 + $0x298] sm:$0xff]
    %v7245 = vld [vmem:[#allocation5 + $0x2a0] sm:$0xff]
    %v7246 = vld [vmem:[#allocation5 + $0x2a8] sm:$0xff]
    %v7247 = vld [vmem:[#allocation5 + $0x2b0] sm:$0xff]
    %v7248 = vld [vmem:[#allocation5 + $0x2b8] sm:$0xff]
    %v7249 = vld [vmem:[#allocation5 + $0x2c0] sm:$0xff]
    %v7250 = vld [vmem:[#allocation5 + $0x2c8] sm:$0xff]
    %v7251 = vld [vmem:[#allocation5 + $0x2d0] sm:$0xff]
    %v7252 = vld [vmem:[#allocation5 + $0x2d8] sm:$0xff]
    %v7253 = vld [vmem:[#allocation5 + $0x2e0] sm:$0xff]
    %v7254 = vld [vmem:[#allocation5 + $0x2e8] sm:$0xff]
    %v7255 = vld [vmem:[#allocation5 + $0x2f0] sm:$0xff]
    %v7256 = vld [vmem:[#allocation5 + $0x2f8] sm:$0xff]
    %v7257 = vld [vmem:[#allocation5 + $0x300] sm:$0xff]
    %v7258 = vld [vmem:[#allocation5 + $0x308] sm:$0xff]
    %v7259 = vld [vmem:[#allocation5 + $0x310] sm:$0xff]
    %v7260 = vld [vmem:[#allocation5 + $0x318] sm:$0xff]
    %v7261 = vld [vmem:[#allocation5 + $0x320] sm:$0xff]
    %v7262 = vld [vmem:[#allocation5 + $0x328] sm:$0xff]
    %v7263 = vld [vmem:[#allocation5 + $0x330] sm:$0xff]
    %v7264 = vld [vmem:[#allocation5 + $0x338] sm:$0xff]
    %v7265 = vld [vmem:[#allocation5 + $0x340] sm:$0xff]
    %v7266 = vld [vmem:[#allocation5 + $0x348] sm:$0xff]
    %v7267 = vld [vmem:[#allocation5 + $0x350] sm:$0xff]
    %v7268 = vld [vmem:[#allocation5 + $0x358] sm:$0xff]
    %v7269 = vld [vmem:[#allocation5 + $0x360] sm:$0xff]
    %v7270 = vld [vmem:[#allocation5 + $0x368] sm:$0xff]
    %v7271 = vld [vmem:[#allocation5 + $0x370] sm:$0xff]
    %v7272 = vld [vmem:[#allocation5 + $0x378] sm:$0xff]
    %v7273 = vld [vmem:[#allocation5 + $0x380] sm:$0xff]
    %v7274 = vld [vmem:[#allocation5 + $0x388] sm:$0xff]
    %v7275 = vld [vmem:[#allocation5 + $0x390] sm:$0xff]
    %v7276 = vld [vmem:[#allocation5 + $0x398] sm:$0xff]
    %v7277 = vld [vmem:[#allocation5 + $0x3a0] sm:$0xff]
    %v7278 = vld [vmem:[#allocation5 + $0x3a8] sm:$0xff]
    %v7279 = vld [vmem:[#allocation5 + $0x3b0] sm:$0xff]
    %v7280 = vld [vmem:[#allocation5 + $0x3b8] sm:$0xff]
    %v7281 = vld [vmem:[#allocation5 + $0x3c0] sm:$0xff]
    %v7282 = vld [vmem:[#allocation5 + $0x3c8] sm:$0xff]
    %v7283 = vld [vmem:[#allocation5 + $0x3d0] sm:$0xff]
    %v7284 = vld [vmem:[#allocation5 + $0x3d8] sm:$0xff]
    %v7285 = vld [vmem:[#allocation5 + $0x3e0] sm:$0xff]
    %v7286 = vld [vmem:[#allocation5 + $0x3e8] sm:$0xff]
    %v7287 = vld [vmem:[#allocation5 + $0x3f0] sm:$0xff]
    %v7288 = vld [vmem:[#allocation5 + $0x3f8] sm:$0xff]
    %v7289 = vld [vmem:[%s12] sm:$0xf]
    %v7291 = vperm.slane %v7289, 0
    %v7292 = vperm.slane %v7289, 1
    %v7293 = vperm.slane %v7289, 2
    %v7294 = vperm.slane %v7289, 3
    %v7427 = vunpack.c.l.b16 %v7161
    %v7428 = vunpack.c.h.b16 %v7161
    %v7429 = vunpack.c.l.b16 %v7162
    %v7430 = vunpack.c.h.b16 %v7162
    %v7431 = vunpack.c.l.b16 %v7163
    %v7432 = vunpack.c.h.b16 %v7163
    %v7433 = vunpack.c.l.b16 %v7164
    %v7434 = vunpack.c.h.b16 %v7164
    %v7435 = vunpack.c.l.b16 %v7165
    %v7436 = vunpack.c.h.b16 %v7165
    %v7437 = vunpack.c.l.b16 %v7166
    %v7438 = vunpack.c.h.b16 %v7166
    %v7439 = vunpack.c.l.b16 %v7167
    %v7440 = vunpack.c.h.b16 %v7167
    %v7441 = vunpack.c.l.b16 %v7168
    %v7442 = vunpack.c.h.b16 %v7168
    %v7443 = vunpack.c.l.b16 %v7169
    %v7444 = vunpack.c.h.b16 %v7169
    %v7445 = vunpack.c.l.b16 %v7170
    %v7446 = vunpack.c.h.b16 %v7170
    %v7447 = vunpack.c.l.b16 %v7171
    %v7448 = vunpack.c.h.b16 %v7171
    %v7449 = vunpack.c.l.b16 %v7172
    %v7450 = vunpack.c.h.b16 %v7172
    %v7451 = vunpack.c.l.b16 %v7173
    %v7452 = vunpack.c.h.b16 %v7173
    %v7453 = vunpack.c.l.b16 %v7174
    %v7454 = vunpack.c.h.b16 %v7174
    %v7455 = vunpack.c.l.b16 %v7175
    %v7456 = vunpack.c.h.b16 %v7175
    %v7457 = vunpack.c.l.b16 %v7176
    %v7458 = vunpack.c.h.b16 %v7176
    %v7459 = vunpack.c.l.b16 %v7177
    %v7460 = vunpack.c.h.b16 %v7177
    %v7461 = vunpack.c.l.b16 %v7178
    %v7462 = vunpack.c.h.b16 %v7178
    %v7463 = vunpack.c.l.b16 %v7179
    %v7464 = vunpack.c.h.b16 %v7179
    %v7465 = vunpack.c.l.b16 %v7180
    %v7466 = vunpack.c.h.b16 %v7180
    %v7467 = vunpack.c.l.b16 %v7181
    %v7468 = vunpack.c.h.b16 %v7181
    %v7469 = vunpack.c.l.b16 %v7182
    %v7470 = vunpack.c.h.b16 %v7182
    %v7471 = vunpack.c.l.b16 %v7183
    %v7472 = vunpack.c.h.b16 %v7183
    %v7473 = vunpack.c.l.b16 %v7184
    %v7474 = vunpack.c.h.b16 %v7184
    %v7475 = vunpack.c.l.b16 %v7185
    %v7476 = vunpack.c.h.b16 %v7185
    %v7477 = vunpack.c.l.b16 %v7186
    %v7478 = vunpack.c.h.b16 %v7186
    %v7479 = vunpack.c.l.b16 %v7187
    %v7480 = vunpack.c.h.b16 %v7187
    %v7481 = vunpack.c.l.b16 %v7188
    %v7482 = vunpack.c.h.b16 %v7188
    %v7483 = vunpack.c.l.b16 %v7189
    %v7484 = vunpack.c.h.b16 %v7189
    %v7485 = vunpack.c.l.b16 %v7190
    %v7486 = vunpack.c.h.b16 %v7190
    %v7487 = vunpack.c.l.b16 %v7191
    %v7488 = vunpack.c.h.b16 %v7191
    %v7489 = vunpack.c.l.b16 %v7192
    %v7490 = vunpack.c.h.b16 %v7192
    %v7491 = vunpack.c.l.b16 %v7193
    %v7492 = vunpack.c.h.b16 %v7193
    %v7493 = vunpack.c.l.b16 %v7194
    %v7494 = vunpack.c.h.b16 %v7194
    %v7495 = vunpack.c.l.b16 %v7195
    %v7496 = vunpack.c.h.b16 %v7195
    %v7497 = vunpack.c.l.b16 %v7196
    %v7498 = vunpack.c.h.b16 %v7196
    %v7499 = vunpack.c.l.b16 %v7197
    %v7500 = vunpack.c.h.b16 %v7197
    %v7501 = vunpack.c.l.b16 %v7198
    %v7502 = vunpack.c.h.b16 %v7198
    %v7503 = vunpack.c.l.b16 %v7199
    %v7504 = vunpack.c.h.b16 %v7199
    %v7505 = vunpack.c.l.b16 %v7200
    %v7506 = vunpack.c.h.b16 %v7200
    %v7507 = vunpack.c.l.b16 %v7201
    %v7508 = vunpack.c.h.b16 %v7201
    %v7509 = vunpack.c.l.b16 %v7202
    %v7510 = vunpack.c.h.b16 %v7202
    %v7511 = vunpack.c.l.b16 %v7203
    %v7512 = vunpack.c.h.b16 %v7203
    %v7513 = vunpack.c.l.b16 %v7204
    %v7514 = vunpack.c.h.b16 %v7204
    %v7515 = vunpack.c.l.b16 %v7205
    %v7516 = vunpack.c.h.b16 %v7205
    %v7517 = vunpack.c.l.b16 %v7206
    %v7518 = vunpack.c.h.b16 %v7206
    %v7519 = vunpack.c.l.b16 %v7207
    %v7520 = vunpack.c.h.b16 %v7207
    %v7521 = vunpack.c.l.b16 %v7208
    %v7522 = vunpack.c.h.b16 %v7208
    %v7523 = vunpack.c.l.b16 %v7209
    %v7524 = vunpack.c.h.b16 %v7209
    %v7525 = vunpack.c.l.b16 %v7210
    %v7526 = vunpack.c.h.b16 %v7210
    %v7527 = vunpack.c.l.b16 %v7211
    %v7528 = vunpack.c.h.b16 %v7211
    %v7529 = vunpack.c.l.b16 %v7212
    %v7530 = vunpack.c.h.b16 %v7212
    %v7531 = vunpack.c.l.b16 %v7213
    %v7532 = vunpack.c.h.b16 %v7213
    %v7533 = vunpack.c.l.b16 %v7214
    %v7534 = vunpack.c.h.b16 %v7214
    %v7535 = vunpack.c.l.b16 %v7215
    %v7536 = vunpack.c.h.b16 %v7215
    %v7537 = vunpack.c.l.b16 %v7216
    %v7538 = vunpack.c.h.b16 %v7216
    %v7539 = vunpack.c.l.b16 %v7217
    %v7540 = vunpack.c.h.b16 %v7217
    %v7541 = vunpack.c.l.b16 %v7218
    %v7542 = vunpack.c.h.b16 %v7218
    %v7543 = vunpack.c.l.b16 %v7219
    %v7544 = vunpack.c.h.b16 %v7219
    %v7545 = vunpack.c.l.b16 %v7220
    %v7546 = vunpack.c.h.b16 %v7220
    %v7547 = vunpack.c.l.b16 %v7221
    %v7548 = vunpack.c.h.b16 %v7221
    %v7549 = vunpack.c.l.b16 %v7222
    %v7550 = vunpack.c.h.b16 %v7222
    %v7551 = vunpack.c.l.b16 %v7223
    %v7552 = vunpack.c.h.b16 %v7223
    %v7553 = vunpack.c.l.b16 %v7224
    %v7554 = vunpack.c.h.b16 %v7224
    %v7555 = vunpack.c.l.b16 %v7225
    %v7556 = vunpack.c.h.b16 %v7225
    %v7557 = vunpack.c.l.b16 %v7226
    %v7558 = vunpack.c.h.b16 %v7226
    %v7559 = vunpack.c.l.b16 %v7227
    %v7560 = vunpack.c.h.b16 %v7227
    %v7561 = vunpack.c.l.b16 %v7228
    %v7562 = vunpack.c.h.b16 %v7228
    %v7563 = vunpack.c.l.b16 %v7229
    %v7564 = vunpack.c.h.b16 %v7229
    %v7565 = vunpack.c.l.b16 %v7230
    %v7566 = vunpack.c.h.b16 %v7230
    %v7567 = vunpack.c.l.b16 %v7231
    %v7568 = vunpack.c.h.b16 %v7231
    %v7569 = vunpack.c.l.b16 %v7232
    %v7570 = vunpack.c.h.b16 %v7232
    %v7571 = vunpack.c.l.b16 %v7233
    %v7572 = vunpack.c.h.b16 %v7233
    %v7573 = vunpack.c.l.b16 %v7234
    %v7574 = vunpack.c.h.b16 %v7234
    %v7575 = vunpack.c.l.b16 %v7235
    %v7576 = vunpack.c.h.b16 %v7235
    %v7577 = vunpack.c.l.b16 %v7236
    %v7578 = vunpack.c.h.b16 %v7236
    %v7579 = vunpack.c.l.b16 %v7237
    %v7580 = vunpack.c.h.b16 %v7237
    %v7581 = vunpack.c.l.b16 %v7238
    %v7582 = vunpack.c.h.b16 %v7238
    %v7583 = vunpack.c.l.b16 %v7239
    %v7584 = vunpack.c.h.b16 %v7239
    %v7585 = vunpack.c.l.b16 %v7240
    %v7586 = vunpack.c.h.b16 %v7240
    %v7587 = vunpack.c.l.b16 %v7241
    %v7588 = vunpack.c.h.b16 %v7241
    %v7589 = vunpack.c.l.b16 %v7242
    %v7590 = vunpack.c.h.b16 %v7242
    %v7591 = vunpack.c.l.b16 %v7243
    %v7592 = vunpack.c.h.b16 %v7243
    %v7593 = vunpack.c.l.b16 %v7244
    %v7594 = vunpack.c.h.b16 %v7244
    %v7595 = vunpack.c.l.b16 %v7245
    %v7596 = vunpack.c.h.b16 %v7245
    %v7597 = vunpack.c.l.b16 %v7246
    %v7598 = vunpack.c.h.b16 %v7246
    %v7599 = vunpack.c.l.b16 %v7247
    %v7600 = vunpack.c.h.b16 %v7247
    %v7601 = vunpack.c.l.b16 %v7248
    %v7602 = vunpack.c.h.b16 %v7248
    %v7603 = vunpack.c.l.b16 %v7249
    %v7604 = vunpack.c.h.b16 %v7249
    %v7605 = vunpack.c.l.b16 %v7250
    %v7606 = vunpack.c.h.b16 %v7250
    %v7607 = vunpack.c.l.b16 %v7251
    %v7608 = vunpack.c.h.b16 %v7251
    %v7609 = vunpack.c.l.b16 %v7252
    %v7610 = vunpack.c.h.b16 %v7252
    %v7611 = vunpack.c.l.b16 %v7253
    %v7612 = vunpack.c.h.b16 %v7253
    %v7613 = vunpack.c.l.b16 %v7254
    %v7614 = vunpack.c.h.b16 %v7254
    %v7615 = vunpack.c.l.b16 %v7255
    %v7616 = vunpack.c.h.b16 %v7255
    %v7617 = vunpack.c.l.b16 %v7256
    %v7618 = vunpack.c.h.b16 %v7256
    %v7619 = vunpack.c.l.b16 %v7257
    %v7620 = vunpack.c.h.b16 %v7257
    %v7621 = vunpack.c.l.b16 %v7258
    %v7622 = vunpack.c.h.b16 %v7258
    %v7623 = vunpack.c.l.b16 %v7259
    %v7624 = vunpack.c.h.b16 %v7259
    %v7625 = vunpack.c.l.b16 %v7260
    %v7626 = vunpack.c.h.b16 %v7260
    %v7627 = vunpack.c.l.b16 %v7261
    %v7628 = vunpack.c.h.b16 %v7261
    %v7629 = vunpack.c.l.b16 %v7262
    %v7630 = vunpack.c.h.b16 %v7262
    %v7631 = vunpack.c.l.b16 %v7263
    %v7632 = vunpack.c.h.b16 %v7263
    %v7633 = vunpack.c.l.b16 %v7264
    %v7634 = vunpack.c.h.b16 %v7264
    %v7635 = vunpack.c.l.b16 %v7265
    %v7636 = vunpack.c.h.b16 %v7265
    %v7637 = vunpack.c.l.b16 %v7266
    %v7638 = vunpack.c.h.b16 %v7266
    %v7639 = vunpack.c.l.b16 %v7267
    %v7640 = vunpack.c.h.b16 %v7267
    %v7641 = vunpack.c.l.b16 %v7268
    %v7642 = vunpack.c.h.b16 %v7268
    %v7643 = vunpack.c.l.b16 %v7269
    %v7644 = vunpack.c.h.b16 %v7269
    %v7645 = vunpack.c.l.b16 %v7270
    %v7646 = vunpack.c.h.b16 %v7270
    %v7647 = vunpack.c.l.b16 %v7271
    %v7648 = vunpack.c.h.b16 %v7271
    %v7649 = vunpack.c.l.b16 %v7272
    %v7650 = vunpack.c.h.b16 %v7272
    %v7651 = vunpack.c.l.b16 %v7273
    %v7652 = vunpack.c.h.b16 %v7273
    %v7653 = vunpack.c.l.b16 %v7274
    %v7654 = vunpack.c.h.b16 %v7274
    %v7655 = vunpack.c.l.b16 %v7275
    %v7656 = vunpack.c.h.b16 %v7275
    %v7657 = vunpack.c.l.b16 %v7276
    %v7658 = vunpack.c.h.b16 %v7276
    %v7659 = vunpack.c.l.b16 %v7277
    %v7660 = vunpack.c.h.b16 %v7277
    %v7661 = vunpack.c.l.b16 %v7278
    %v7662 = vunpack.c.h.b16 %v7278
    %v7663 = vunpack.c.l.b16 %v7279
    %v7664 = vunpack.c.h.b16 %v7279
    %v7665 = vunpack.c.l.b16 %v7280
    %v7666 = vunpack.c.h.b16 %v7280
    %v7667 = vunpack.c.l.b16 %v7281
    %v7668 = vunpack.c.h.b16 %v7281
    %v7669 = vunpack.c.l.b16 %v7282
    %v7670 = vunpack.c.h.b16 %v7282
    %v7671 = vunpack.c.l.b16 %v7283
    %v7672 = vunpack.c.h.b16 %v7283
    %v7673 = vunpack.c.l.b16 %v7284
    %v7674 = vunpack.c.h.b16 %v7284
    %v7675 = vunpack.c.l.b16 %v7285
    %v7676 = vunpack.c.h.b16 %v7285
    %v7677 = vunpack.c.l.b16 %v7286
    %v7678 = vunpack.c.h.b16 %v7286
    %v7679 = vunpack.c.l.b16 %v7287
    %v7680 = vunpack.c.h.b16 %v7287
    %v7681 = vunpack.c.l.b16 %v7288
    %v7682 = vunpack.c.h.b16 %v7288
    %v7683 = vpack.c.b16 %v7431, %v7427
    %v7684 = vpack.c.b16 %v7432, %v7428
    %v7685 = vpack.c.b16 %v7433, %v7429
    %v7686 = vpack.c.b16 %v7434, %v7430
    %v7687 = vpack.c.b16 %v7439, %v7435
    %v7688 = vpack.c.b16 %v7440, %v7436
    %v7689 = vpack.c.b16 %v7441, %v7437
    %v7690 = vpack.c.b16 %v7442, %v7438
    %v7691 = vpack.c.b16 %v7447, %v7443
    %v7692 = vpack.c.b16 %v7448, %v7444
    %v7693 = vpack.c.b16 %v7449, %v7445
    %v7694 = vpack.c.b16 %v7450, %v7446
    %v7695 = vpack.c.b16 %v7455, %v7451
    %v7696 = vpack.c.b16 %v7456, %v7452
    %v7697 = vpack.c.b16 %v7457, %v7453
    %v7698 = vpack.c.b16 %v7458, %v7454
    %v7699 = vpack.c.b16 %v7463, %v7459
    %v7700 = vpack.c.b16 %v7464, %v7460
    %v7701 = vpack.c.b16 %v7465, %v7461
    %v7702 = vpack.c.b16 %v7466, %v7462
    %v7703 = vpack.c.b16 %v7471, %v7467
    %v7704 = vpack.c.b16 %v7472, %v7468
    %v7705 = vpack.c.b16 %v7473, %v7469
    %v7706 = vpack.c.b16 %v7474, %v7470
    %v7707 = vpack.c.b16 %v7479, %v7475
    %v7708 = vpack.c.b16 %v7480, %v7476
    %v7709 = vpack.c.b16 %v7481, %v7477
    %v7710 = vpack.c.b16 %v7482, %v7478
    %v7711 = vpack.c.b16 %v7487, %v7483
    %v7712 = vpack.c.b16 %v7488, %v7484
    %v7713 = vpack.c.b16 %v7489, %v7485
    %v7714 = vpack.c.b16 %v7490, %v7486
    %v7715 = vpack.c.b16 %v7495, %v7491
    %v7716 = vpack.c.b16 %v7496, %v7492
    %v7717 = vpack.c.b16 %v7497, %v7493
    %v7718 = vpack.c.b16 %v7498, %v7494
    %v7719 = vpack.c.b16 %v7503, %v7499
    %v7720 = vpack.c.b16 %v7504, %v7500
    %v7721 = vpack.c.b16 %v7505, %v7501
    %v7722 = vpack.c.b16 %v7506, %v7502
    %v7723 = vpack.c.b16 %v7511, %v7507
    %v7724 = vpack.c.b16 %v7512, %v7508
    %v7725 = vpack.c.b16 %v7513, %v7509
    %v7726 = vpack.c.b16 %v7514, %v7510
    %v7727 = vpack.c.b16 %v7519, %v7515
    %v7728 = vpack.c.b16 %v7520, %v7516
    %v7729 = vpack.c.b16 %v7521, %v7517
    %v7730 = vpack.c.b16 %v7522, %v7518
    %v7731 = vpack.c.b16 %v7527, %v7523
    %v7732 = vpack.c.b16 %v7528, %v7524
    %v7733 = vpack.c.b16 %v7529, %v7525
    %v7734 = vpack.c.b16 %v7530, %v7526
    %v7735 = vpack.c.b16 %v7535, %v7531
    %v7736 = vpack.c.b16 %v7536, %v7532
    %v7737 = vpack.c.b16 %v7537, %v7533
    %v7738 = vpack.c.b16 %v7538, %v7534
    %v7739 = vpack.c.b16 %v7543, %v7539
    %v7740 = vpack.c.b16 %v7544, %v7540
    %v7741 = vpack.c.b16 %v7545, %v7541
    %v7742 = vpack.c.b16 %v7546, %v7542
    %v7743 = vpack.c.b16 %v7551, %v7547
    %v7744 = vpack.c.b16 %v7552, %v7548
    %v7745 = vpack.c.b16 %v7553, %v7549
    %v7746 = vpack.c.b16 %v7554, %v7550
    %v7747 = vpack.c.b16 %v7559, %v7555
    %v7748 = vpack.c.b16 %v7560, %v7556
    %v7749 = vpack.c.b16 %v7561, %v7557
    %v7750 = vpack.c.b16 %v7562, %v7558
    %v7751 = vpack.c.b16 %v7567, %v7563
    %v7752 = vpack.c.b16 %v7568, %v7564
    %v7753 = vpack.c.b16 %v7569, %v7565
    %v7754 = vpack.c.b16 %v7570, %v7566
    %v7755 = vpack.c.b16 %v7575, %v7571
    %v7756 = vpack.c.b16 %v7576, %v7572
    %v7757 = vpack.c.b16 %v7577, %v7573
    %v7758 = vpack.c.b16 %v7578, %v7574
    %v7759 = vpack.c.b16 %v7583, %v7579
    %v7760 = vpack.c.b16 %v7584, %v7580
    %v7761 = vpack.c.b16 %v7585, %v7581
    %v7762 = vpack.c.b16 %v7586, %v7582
    %v7763 = vpack.c.b16 %v7591, %v7587
    %v7764 = vpack.c.b16 %v7592, %v7588
    %v7765 = vpack.c.b16 %v7593, %v7589
    %v7766 = vpack.c.b16 %v7594, %v7590
    %v7767 = vpack.c.b16 %v7599, %v7595
    %v7768 = vpack.c.b16 %v7600, %v7596
    %v7769 = vpack.c.b16 %v7601, %v7597
    %v7770 = vpack.c.b16 %v7602, %v7598
    %v7771 = vpack.c.b16 %v7607, %v7603
    %v7772 = vpack.c.b16 %v7608, %v7604
    %v7773 = vpack.c.b16 %v7609, %v7605
    %v7774 = vpack.c.b16 %v7610, %v7606
    %v7775 = vpack.c.b16 %v7615, %v7611
    %v7776 = vpack.c.b16 %v7616, %v7612
    %v7777 = vpack.c.b16 %v7617, %v7613
    %v7778 = vpack.c.b16 %v7618, %v7614
    %v7779 = vpack.c.b16 %v7623, %v7619
    %v7780 = vpack.c.b16 %v7624, %v7620
    %v7781 = vpack.c.b16 %v7625, %v7621
    %v7782 = vpack.c.b16 %v7626, %v7622
    %v7783 = vpack.c.b16 %v7631, %v7627
    %v7784 = vpack.c.b16 %v7632, %v7628
    %v7785 = vpack.c.b16 %v7633, %v7629
    %v7786 = vpack.c.b16 %v7634, %v7630
    %v7787 = vpack.c.b16 %v7639, %v7635
    %v7788 = vpack.c.b16 %v7640, %v7636
    %v7789 = vpack.c.b16 %v7641, %v7637
    %v7790 = vpack.c.b16 %v7642, %v7638
    %v7791 = vpack.c.b16 %v7647, %v7643
    %v7792 = vpack.c.b16 %v7648, %v7644
    %v7793 = vpack.c.b16 %v7649, %v7645
    %v7794 = vpack.c.b16 %v7650, %v7646
    %v7795 = vpack.c.b16 %v7655, %v7651
    %v7796 = vpack.c.b16 %v7656, %v7652
    %v7797 = vpack.c.b16 %v7657, %v7653
    %v7798 = vpack.c.b16 %v7658, %v7654
    %v7799 = vpack.c.b16 %v7663, %v7659
    %v7800 = vpack.c.b16 %v7664, %v7660
    %v7801 = vpack.c.b16 %v7665, %v7661
    %v7802 = vpack.c.b16 %v7666, %v7662
    %v7803 = vpack.c.b16 %v7671, %v7667
    %v7804 = vpack.c.b16 %v7672, %v7668
    %v7805 = vpack.c.b16 %v7673, %v7669
    %v7806 = vpack.c.b16 %v7674, %v7670
    %v7807 = vpack.c.b16 %v7679, %v7675
    %v7808 = vpack.c.b16 %v7680, %v7676
    %v7809 = vpack.c.b16 %v7681, %v7677
    %v7810 = vpack.c.b16 %v7682, %v7678
    %7939 = vmatpush.bf16.msra.mxu0 %v7711
    %7940 = vmatpush.bf16.msra.mxu0 %v7707
    %7941 = vmatpush.bf16.msra.mxu0 %v7703
    %7942 = vmatpush.bf16.msra.mxu0 %v7699
    %7943 = vmatpush.bf16.msra.mxu0 %v7695
    %7944 = vmatpush.bf16.msra.mxu0 %v7691
    %7945 = vmatpush.bf16.msra.mxu0 %v7687
    %7946 = vmatpush.bf16.msra.mxu0 %v7683
    %7947 = vmatmul.bf16.gmra.mxu0 %v7155
    %v7948 = vpop.f32.mrf.mxu0
    %v7949 = vadd.f32 %v7291, %v7948
    %v7950 = vpop.f32.mrf.mxu0
    %7951 = vdwg.mxu0
    %7952 = vmatpush.bf16.msra.mxu0 %v7743
    %7953 = vmatpush.bf16.msra.mxu0 %v7739
    %7954 = vmatpush.bf16.msra.mxu0 %v7735
    %7955 = vmatpush.bf16.msra.mxu0 %v7731
    %7956 = vmatpush.bf16.msra.mxu0 %v7727
    %7957 = vmatpush.bf16.msra.mxu0 %v7723
    %7958 = vmatpush.bf16.msra.mxu0 %v7719
    %7959 = vmatpush.bf16.msra.mxu0 %v7715
    %7960 = vmatmul.bf16.gmra.mxu0 %v7156
    %v7961 = vpop.f32.mrf.mxu0
    %v7962 = vadd.f32 %v7949, %v7961
    %v7963 = vpop.f32.mrf.mxu0
    %7964 = vdwg.mxu0
    %7965 = vmatpush.bf16.msra.mxu0 %v7775
    %7966 = vmatpush.bf16.msra.mxu0 %v7771
    %7967 = vmatpush.bf16.msra.mxu0 %v7767
    %7968 = vmatpush.bf16.msra.mxu0 %v7763
    %7969 = vmatpush.bf16.msra.mxu0 %v7759
    %7970 = vmatpush.bf16.msra.mxu0 %v7755
    %7971 = vmatpush.bf16.msra.mxu0 %v7751
    %7972 = vmatpush.bf16.msra.mxu0 %v7747
    %7973 = vmatmul.bf16.gmra.mxu0 %v7157
    %v7974 = vpop.f32.mrf.mxu0
    %v7975 = vadd.f32 %v7962, %v7974
    %v7976 = vpop.f32.mrf.mxu0
    %7977 = vdwg.mxu0
    %7978 = vmatpush.bf16.msra.mxu0 %v7807
    %7979 = vmatpush.bf16.msra.mxu0 %v7803
    %7980 = vmatpush.bf16.msra.mxu0 %v7799
    %7981 = vmatpush.bf16.msra.mxu0 %v7795
    %7982 = vmatpush.bf16.msra.mxu0 %v7791
    %7983 = vmatpush.bf16.msra.mxu0 %v7787
    %7984 = vmatpush.bf16.msra.mxu0 %v7783
    %7985 = vmatpush.bf16.msra.mxu0 %v7779
    %7986 = vmatmul.bf16.gmra.mxu0 %v7158
    %v7987 = vpop.f32.mrf.mxu0
    %v7988 = vadd.f32 %v7975, %v7987
    %v7989 = vpop.f32.mrf.mxu0
    %7990 = vdwg.mxu0
    %7991 = vmatpush.bf16.msra.mxu0 %v7712
    %7992 = vmatpush.bf16.msra.mxu0 %v7708
    %7993 = vmatpush.bf16.msra.mxu0 %v7704
    %7994 = vmatpush.bf16.msra.mxu0 %v7700
    %7995 = vmatpush.bf16.msra.mxu0 %v7696
    %7996 = vmatpush.bf16.msra.mxu0 %v7692
    %7997 = vmatpush.bf16.msra.mxu0 %v7688
    %7998 = vmatpush.bf16.msra.mxu0 %v7684
    %7999 = vmatmul.bf16.gmra.mxu0 %v7155
    %v8000 = vpop.f32.mrf.mxu0
    %v8001 = vadd.f32 %v7292, %v8000
    %v8002 = vpop.f32.mrf.mxu0
    %8003 = vdwg.mxu0
    %8004 = vmatpush.bf16.msra.mxu0 %v7744
    %8005 = vmatpush.bf16.msra.mxu0 %v7740
    %8006 = vmatpush.bf16.msra.mxu0 %v7736
    %8007 = vmatpush.bf16.msra.mxu0 %v7732
    %8008 = vmatpush.bf16.msra.mxu0 %v7728
    %8009 = vmatpush.bf16.msra.mxu0 %v7724
    %8010 = vmatpush.bf16.msra.mxu0 %v7720
    %8011 = vmatpush.bf16.msra.mxu0 %v7716
    %8012 = vmatmul.bf16.gmra.mxu0 %v7156
    %v8013 = vpop.f32.mrf.mxu0
    %v8014 = vadd.f32 %v8001, %v8013
    %v8015 = vpop.f32.mrf.mxu0
    %8016 = vdwg.mxu0
    %8017 = vmatpush.bf16.msra.mxu0 %v7776
    %8018 = vmatpush.bf16.msra.mxu0 %v7772
    %8019 = vmatpush.bf16.msra.mxu0 %v7768
    %8020 = vmatpush.bf16.msra.mxu0 %v7764
    %8021 = vmatpush.bf16.msra.mxu0 %v7760
    %8022 = vmatpush.bf16.msra.mxu0 %v7756
    %8023 = vmatpush.bf16.msra.mxu0 %v7752
    %8024 = vmatpush.bf16.msra.mxu0 %v7748
    %8025 = vmatmul.bf16.gmra.mxu0 %v7157
    %v8026 = vpop.f32.mrf.mxu0
    %v8027 = vadd.f32 %v8014, %v8026
    %v8028 = vpop.f32.mrf.mxu0
    %8029 = vdwg.mxu0
    %8030 = vmatpush.bf16.msra.mxu0 %v7808
    %8031 = vmatpush.bf16.msra.mxu0 %v7804
    %8032 = vmatpush.bf16.msra.mxu0 %v7800
    %8033 = vmatpush.bf16.msra.mxu0 %v7796
    %8034 = vmatpush.bf16.msra.mxu0 %v7792
    %8035 = vmatpush.bf16.msra.mxu0 %v7788
    %8036 = vmatpush.bf16.msra.mxu0 %v7784
    %8037 = vmatpush.bf16.msra.mxu0 %v7780
    %8038 = vmatmul.bf16.gmra.mxu0 %v7158
    %v8039 = vpop.f32.mrf.mxu0
    %v8040 = vadd.f32 %v8027, %v8039
    %v8041 = vpop.f32.mrf.mxu0
    %8042 = vdwg.mxu0
    %8043 = vmatpush.bf16.msra.mxu0 %v7713
    %8044 = vmatpush.bf16.msra.mxu0 %v7709
    %8045 = vmatpush.bf16.msra.mxu0 %v7705
    %8046 = vmatpush.bf16.msra.mxu0 %v7701
    %8047 = vmatpush.bf16.msra.mxu0 %v7697
    %8048 = vmatpush.bf16.msra.mxu0 %v7693
    %8049 = vmatpush.bf16.msra.mxu0 %v7689
    %8050 = vmatpush.bf16.msra.mxu0 %v7685
    %8051 = vmatmul.bf16.gmra.mxu0 %v7155
    %v8052 = vpop.f32.mrf.mxu0
    %v8053 = vadd.f32 %v7293, %v8052
    %v8054 = vpop.f32.mrf.mxu0
    %8055 = vdwg.mxu0
    %8056 = vmatpush.bf16.msra.mxu0 %v7745
    %8057 = vmatpush.bf16.msra.mxu0 %v7741
    %8058 = vmatpush.bf16.msra.mxu0 %v7737
    %8059 = vmatpush.bf16.msra.mxu0 %v7733
    %8060 = vmatpush.bf16.msra.mxu0 %v7729
    %8061 = vmatpush.bf16.msra.mxu0 %v7725
    %8062 = vmatpush.bf16.msra.mxu0 %v7721
    %8063 = vmatpush.bf16.msra.mxu0 %v7717
    %8064 = vmatmul.bf16.gmra.mxu0 %v7156
    %v8065 = vpop.f32.mrf.mxu0
    %v8066 = vadd.f32 %v8053, %v8065
    %v8067 = vpop.f32.mrf.mxu0
    %8068 = vdwg.mxu0
    %8069 = vmatpush.bf16.msra.mxu0 %v7777
    %8070 = vmatpush.bf16.msra.mxu0 %v7773
    %8071 = vmatpush.bf16.msra.mxu0 %v7769
    %8072 = vmatpush.bf16.msra.mxu0 %v7765
    %8073 = vmatpush.bf16.msra.mxu0 %v7761
    %8074 = vmatpush.bf16.msra.mxu0 %v7757
    %8075 = vmatpush.bf16.msra.mxu0 %v7753
    %8076 = vmatpush.bf16.msra.mxu0 %v7749
    %8077 = vmatmul.bf16.gmra.mxu0 %v7157
    %v8078 = vpop.f32.mrf.mxu0
    %v8079 = vadd.f32 %v8066, %v8078
    %v8080 = vpop.f32.mrf.mxu0
    %8081 = vdwg.mxu0
    %8082 = vmatpush.bf16.msra.mxu0 %v7809
    %8083 = vmatpush.bf16.msra.mxu0 %v7805
    %8084 = vmatpush.bf16.msra.mxu0 %v7801
    %8085 = vmatpush.bf16.msra.mxu0 %v7797
    %8086 = vmatpush.bf16.msra.mxu0 %v7793
    %8087 = vmatpush.bf16.msra.mxu0 %v7789
    %8088 = vmatpush.bf16.msra.mxu0 %v7785
    %8089 = vmatpush.bf16.msra.mxu0 %v7781
    %8090 = vmatmul.bf16.gmra.mxu0 %v7158
    %v8091 = vpop.f32.mrf.mxu0
    %v8092 = vadd.f32 %v8079, %v8091
    %v8093 = vpop.f32.mrf.mxu0
    %8094 = vdwg.mxu0
    %8095 = vmatpush.bf16.msra.mxu0 %v7714
    %8096 = vmatpush.bf16.msra.mxu0 %v7710
    %8097 = vmatpush.bf16.msra.mxu0 %v7706
    %8098 = vmatpush.bf16.msra.mxu0 %v7702
    %8099 = vmatpush.bf16.msra.mxu0 %v7698
    %8100 = vmatpush.bf16.msra.mxu0 %v7694
    %8101 = vmatpush.bf16.msra.mxu0 %v7690
    %8102 = vmatpush.bf16.msra.mxu0 %v7686
    %8103 = vmatmul.bf16.gmra.mxu0 %v7155
    %v8104 = vpop.f32.mrf.mxu0
    %v8105 = vadd.f32 %v7294, %v8104
    %v8106 = vpop.f32.mrf.mxu0
    %8107 = vdwg.mxu0
    %8108 = vmatpush.bf16.msra.mxu0 %v7746
    %8109 = vmatpush.bf16.msra.mxu0 %v7742
    %8110 = vmatpush.bf16.msra.mxu0 %v7738
    %8111 = vmatpush.bf16.msra.mxu0 %v7734
    %8112 = vmatpush.bf16.msra.mxu0 %v7730
    %8113 = vmatpush.bf16.msra.mxu0 %v7726
    %8114 = vmatpush.bf16.msra.mxu0 %v7722
    %8115 = vmatpush.bf16.msra.mxu0 %v7718
    %8116 = vmatmul.bf16.gmra.mxu0 %v7156
    %v8117 = vpop.f32.mrf.mxu0
    %v8118 = vadd.f32 %v8105, %v8117
    %v8119 = vpop.f32.mrf.mxu0
    %8120 = vdwg.mxu0
    %8121 = vmatpush.bf16.msra.mxu0 %v7778
    %8122 = vmatpush.bf16.msra.mxu0 %v7774
    %8123 = vmatpush.bf16.msra.mxu0 %v7770
    %8124 = vmatpush.bf16.msra.mxu0 %v7766
    %8125 = vmatpush.bf16.msra.mxu0 %v7762
    %8126 = vmatpush.bf16.msra.mxu0 %v7758
    %8127 = vmatpush.bf16.msra.mxu0 %v7754
    %8128 = vmatpush.bf16.msra.mxu0 %v7750
    %8129 = vmatmul.bf16.gmra.mxu0 %v7157
    %v8130 = vpop.f32.mrf.mxu0
    %v8131 = vadd.f32 %v8118, %v8130
    %v8132 = vpop.f32.mrf.mxu0
    %8133 = vdwg.mxu0
    %8134 = vmatpush.bf16.msra.mxu0 %v7810
    %8135 = vmatpush.bf16.msra.mxu0 %v7806
    %8136 = vmatpush.bf16.msra.mxu0 %v7802
    %8137 = vmatpush.bf16.msra.mxu0 %v7798
    %8138 = vmatpush.bf16.msra.mxu0 %v7794
    %8139 = vmatpush.bf16.msra.mxu0 %v7790
    %8140 = vmatpush.bf16.msra.mxu0 %v7786
    %8141 = vmatpush.bf16.msra.mxu0 %v7782
    %8142 = vmatmul.bf16.gmra.mxu0 %v7158
    %v8143 = vpop.f32.mrf.mxu0
    %v8144 = vadd.f32 %v8131, %v8143
    %v8145 = vpop.f32.mrf.mxu0
    %8146 = vdwg.mxu0
    %v8147 = vmax.f32 %v7988, 0.0
    %v8148 = vmax.f32 %v8040, 0.0
    %v8149 = vmax.f32 %v8092, 0.0
    %v8150 = vmax.f32 %v8144, 0.0
    %v8151 = vpack.c.bf16 %v8147, %v8147
    %v8152 = vpack.c.bf16 %v8148, %v8148
    %v8153 = vpack.c.bf16 %v8149, %v8149
    %v8154 = vpack.c.bf16 %v8150, %v8150
    %s8155 = sshll.u32 %s6162, 4
    %8156 = dma.done %s249, %s8155
    %v8157 = vld [vmem:[#allocation6] sm:$0xff]
    %v8158 = vld [vmem:[#allocation6 + $0x8] sm:$0xff]
    %v8159 = vld [vmem:[#allocation6 + $0x10] sm:$0xff]
    %v8160 = vld [vmem:[#allocation6 + $0x18] sm:$0xff]
    %v8161 = vld [vmem:[#allocation6 + $0x20] sm:$0xff]
    %v8162 = vld [vmem:[#allocation6 + $0x28] sm:$0xff]
    %v8163 = vld [vmem:[#allocation6 + $0x30] sm:$0xff]
    %v8164 = vld [vmem:[#allocation6 + $0x38] sm:$0xff]
    %v8165 = vld [vmem:[#allocation6 + $0x40] sm:$0xff]
    %v8166 = vld [vmem:[#allocation6 + $0x48] sm:$0xff]
    %v8167 = vld [vmem:[#allocation6 + $0x50] sm:$0xff]
    %v8168 = vld [vmem:[#allocation6 + $0x58] sm:$0xff]
    %v8169 = vld [vmem:[#allocation6 + $0x60] sm:$0xff]
    %v8170 = vld [vmem:[#allocation6 + $0x68] sm:$0xff]
    %v8171 = vld [vmem:[#allocation6 + $0x70] sm:$0xff]
    %v8172 = vld [vmem:[#allocation6 + $0x78] sm:$0xff]
    %v8173 = vld [vmem:[#allocation6 + $0x80] sm:$0xff]
    %v8174 = vld [vmem:[#allocation6 + $0x88] sm:$0xff]
    %v8175 = vld [vmem:[#allocation6 + $0x90] sm:$0xff]
    %v8176 = vld [vmem:[#allocation6 + $0x98] sm:$0xff]
    %v8177 = vld [vmem:[#allocation6 + $0xa0] sm:$0xff]
    %v8178 = vld [vmem:[#allocation6 + $0xa8] sm:$0xff]
    %v8179 = vld [vmem:[#allocation6 + $0xb0] sm:$0xff]
    %v8180 = vld [vmem:[#allocation6 + $0xb8] sm:$0xff]
    %v8181 = vld [vmem:[#allocation6 + $0xc0] sm:$0xff]
    %v8182 = vld [vmem:[#allocation6 + $0xc8] sm:$0xff]
    %v8183 = vld [vmem:[#allocation6 + $0xd0] sm:$0xff]
    %v8184 = vld [vmem:[#allocation6 + $0xd8] sm:$0xff]
    %v8185 = vld [vmem:[#allocation6 + $0xe0] sm:$0xff]
    %v8186 = vld [vmem:[#allocation6 + $0xe8] sm:$0xff]
    %v8187 = vld [vmem:[#allocation6 + $0xf0] sm:$0xff]
    %v8188 = vld [vmem:[#allocation6 + $0xf8] sm:$0xff]
    %v8189 = vld [vmem:[#allocation6 + $0x100] sm:$0xff]
    %v8190 = vld [vmem:[#allocation6 + $0x108] sm:$0xff]
    %v8191 = vld [vmem:[#allocation6 + $0x110] sm:$0xff]
    %v8192 = vld [vmem:[#allocation6 + $0x118] sm:$0xff]
    %v8193 = vld [vmem:[#allocation6 + $0x120] sm:$0xff]
    %v8194 = vld [vmem:[#allocation6 + $0x128] sm:$0xff]
    %v8195 = vld [vmem:[#allocation6 + $0x130] sm:$0xff]
    %v8196 = vld [vmem:[#allocation6 + $0x138] sm:$0xff]
    %v8197 = vld [vmem:[#allocation6 + $0x140] sm:$0xff]
    %v8198 = vld [vmem:[#allocation6 + $0x148] sm:$0xff]
    %v8199 = vld [vmem:[#allocation6 + $0x150] sm:$0xff]
    %v8200 = vld [vmem:[#allocation6 + $0x158] sm:$0xff]
    %v8201 = vld [vmem:[#allocation6 + $0x160] sm:$0xff]
    %v8202 = vld [vmem:[#allocation6 + $0x168] sm:$0xff]
    %v8203 = vld [vmem:[#allocation6 + $0x170] sm:$0xff]
    %v8204 = vld [vmem:[#allocation6 + $0x178] sm:$0xff]
    %v8205 = vld [vmem:[#allocation6 + $0x180] sm:$0xff]
    %v8206 = vld [vmem:[#allocation6 + $0x188] sm:$0xff]
    %v8207 = vld [vmem:[#allocation6 + $0x190] sm:$0xff]
    %v8208 = vld [vmem:[#allocation6 + $0x198] sm:$0xff]
    %v8209 = vld [vmem:[#allocation6 + $0x1a0] sm:$0xff]
    %v8210 = vld [vmem:[#allocation6 + $0x1a8] sm:$0xff]
    %v8211 = vld [vmem:[#allocation6 + $0x1b0] sm:$0xff]
    %v8212 = vld [vmem:[#allocation6 + $0x1b8] sm:$0xff]
    %v8213 = vld [vmem:[#allocation6 + $0x1c0] sm:$0xff]
    %v8214 = vld [vmem:[#allocation6 + $0x1c8] sm:$0xff]
    %v8215 = vld [vmem:[#allocation6 + $0x1d0] sm:$0xff]
    %v8216 = vld [vmem:[#allocation6 + $0x1d8] sm:$0xff]
    %v8217 = vld [vmem:[#allocation6 + $0x1e0] sm:$0xff]
    %v8218 = vld [vmem:[#allocation6 + $0x1e8] sm:$0xff]
    %v8219 = vld [vmem:[#allocation6 + $0x1f0] sm:$0xff]
    %v8220 = vld [vmem:[#allocation6 + $0x1f8] sm:$0xff]
    %v8221 = vld [vmem:[#allocation6 + $0x200] sm:$0xff]
    %v8222 = vld [vmem:[#allocation6 + $0x208] sm:$0xff]
    %v8223 = vld [vmem:[#allocation6 + $0x210] sm:$0xff]
    %v8224 = vld [vmem:[#allocation6 + $0x218] sm:$0xff]
    %v8225 = vld [vmem:[#allocation6 + $0x220] sm:$0xff]
    %v8226 = vld [vmem:[#allocation6 + $0x228] sm:$0xff]
    %v8227 = vld [vmem:[#allocation6 + $0x230] sm:$0xff]
    %v8228 = vld [vmem:[#allocation6 + $0x238] sm:$0xff]
    %v8229 = vld [vmem:[#allocation6 + $0x240] sm:$0xff]
    %v8230 = vld [vmem:[#allocation6 + $0x248] sm:$0xff]
    %v8231 = vld [vmem:[#allocation6 + $0x250] sm:$0xff]
    %v8232 = vld [vmem:[#allocation6 + $0x258] sm:$0xff]
    %v8233 = vld [vmem:[#allocation6 + $0x260] sm:$0xff]
    %v8234 = vld [vmem:[#allocation6 + $0x268] sm:$0xff]
    %v8235 = vld [vmem:[#allocation6 + $0x270] sm:$0xff]
    %v8236 = vld [vmem:[#allocation6 + $0x278] sm:$0xff]
    %v8237 = vld [vmem:[#allocation6 + $0x280] sm:$0xff]
    %v8238 = vld [vmem:[#allocation6 + $0x288] sm:$0xff]
    %v8239 = vld [vmem:[#allocation6 + $0x290] sm:$0xff]
    %v8240 = vld [vmem:[#allocation6 + $0x298] sm:$0xff]
    %v8241 = vld [vmem:[#allocation6 + $0x2a0] sm:$0xff]
    %v8242 = vld [vmem:[#allocation6 + $0x2a8] sm:$0xff]
    %v8243 = vld [vmem:[#allocation6 + $0x2b0] sm:$0xff]
    %v8244 = vld [vmem:[#allocation6 + $0x2b8] sm:$0xff]
    %v8245 = vld [vmem:[#allocation6 + $0x2c0] sm:$0xff]
    %v8246 = vld [vmem:[#allocation6 + $0x2c8] sm:$0xff]
    %v8247 = vld [vmem:[#allocation6 + $0x2d0] sm:$0xff]
    %v8248 = vld [vmem:[#allocation6 + $0x2d8] sm:$0xff]
    %v8249 = vld [vmem:[#allocation6 + $0x2e0] sm:$0xff]
    %v8250 = vld [vmem:[#allocation6 + $0x2e8] sm:$0xff]
    %v8251 = vld [vmem:[#allocation6 + $0x2f0] sm:$0xff]
    %v8252 = vld [vmem:[#allocation6 + $0x2f8] sm:$0xff]
    %v8253 = vld [vmem:[#allocation6 + $0x300] sm:$0xff]
    %v8254 = vld [vmem:[#allocation6 + $0x308] sm:$0xff]
    %v8255 = vld [vmem:[#allocation6 + $0x310] sm:$0xff]
    %v8256 = vld [vmem:[#allocation6 + $0x318] sm:$0xff]
    %v8257 = vld [vmem:[#allocation6 + $0x320] sm:$0xff]
    %v8258 = vld [vmem:[#allocation6 + $0x328] sm:$0xff]
    %v8259 = vld [vmem:[#allocation6 + $0x330] sm:$0xff]
    %v8260 = vld [vmem:[#allocation6 + $0x338] sm:$0xff]
    %v8261 = vld [vmem:[#allocation6 + $0x340] sm:$0xff]
    %v8262 = vld [vmem:[#allocation6 + $0x348] sm:$0xff]
    %v8263 = vld [vmem:[#allocation6 + $0x350] sm:$0xff]
    %v8264 = vld [vmem:[#allocation6 + $0x358] sm:$0xff]
    %v8265 = vld [vmem:[#allocation6 + $0x360] sm:$0xff]
    %v8266 = vld [vmem:[#allocation6 + $0x368] sm:$0xff]
    %v8267 = vld [vmem:[#allocation6 + $0x370] sm:$0xff]
    %v8268 = vld [vmem:[#allocation6 + $0x378] sm:$0xff]
    %v8269 = vld [vmem:[#allocation6 + $0x380] sm:$0xff]
    %v8270 = vld [vmem:[#allocation6 + $0x388] sm:$0xff]
    %v8271 = vld [vmem:[#allocation6 + $0x390] sm:$0xff]
    %v8272 = vld [vmem:[#allocation6 + $0x398] sm:$0xff]
    %v8273 = vld [vmem:[#allocation6 + $0x3a0] sm:$0xff]
    %v8274 = vld [vmem:[#allocation6 + $0x3a8] sm:$0xff]
    %v8275 = vld [vmem:[#allocation6 + $0x3b0] sm:$0xff]
    %v8276 = vld [vmem:[#allocation6 + $0x3b8] sm:$0xff]
    %v8277 = vld [vmem:[#allocation6 + $0x3c0] sm:$0xff]
    %v8278 = vld [vmem:[#allocation6 + $0x3c8] sm:$0xff]
    %v8279 = vld [vmem:[#allocation6 + $0x3d0] sm:$0xff]
    %v8280 = vld [vmem:[#allocation6 + $0x3d8] sm:$0xff]
    %v8281 = vld [vmem:[#allocation6 + $0x3e0] sm:$0xff]
    %v8282 = vld [vmem:[#allocation6 + $0x3e8] sm:$0xff]
    %v8283 = vld [vmem:[#allocation6 + $0x3f0] sm:$0xff]
    %v8284 = vld [vmem:[#allocation6 + $0x3f8] sm:$0xff]
    %v8285 = vld [vmem:[#allocation23] sm:$0xf]
    %v8287 = vperm.slane %v8285, 0
    %v8288 = vperm.slane %v8285, 1
    %v8289 = vperm.slane %v8285, 2
    %v8290 = vperm.slane %v8285, 3
    %v8423 = vunpack.c.l.b16 %v8157
    %v8424 = vunpack.c.h.b16 %v8157
    %v8425 = vunpack.c.l.b16 %v8158
    %v8426 = vunpack.c.h.b16 %v8158
    %v8427 = vunpack.c.l.b16 %v8159
    %v8428 = vunpack.c.h.b16 %v8159
    %v8429 = vunpack.c.l.b16 %v8160
    %v8430 = vunpack.c.h.b16 %v8160
    %v8431 = vunpack.c.l.b16 %v8161
    %v8432 = vunpack.c.h.b16 %v8161
    %v8433 = vunpack.c.l.b16 %v8162
    %v8434 = vunpack.c.h.b16 %v8162
    %v8435 = vunpack.c.l.b16 %v8163
    %v8436 = vunpack.c.h.b16 %v8163
    %v8437 = vunpack.c.l.b16 %v8164
    %v8438 = vunpack.c.h.b16 %v8164
    %v8439 = vunpack.c.l.b16 %v8165
    %v8440 = vunpack.c.h.b16 %v8165
    %v8441 = vunpack.c.l.b16 %v8166
    %v8442 = vunpack.c.h.b16 %v8166
    %v8443 = vunpack.c.l.b16 %v8167
    %v8444 = vunpack.c.h.b16 %v8167
    %v8445 = vunpack.c.l.b16 %v8168
    %v8446 = vunpack.c.h.b16 %v8168
    %v8447 = vunpack.c.l.b16 %v8169
    %v8448 = vunpack.c.h.b16 %v8169
    %v8449 = vunpack.c.l.b16 %v8170
    %v8450 = vunpack.c.h.b16 %v8170
    %v8451 = vunpack.c.l.b16 %v8171
    %v8452 = vunpack.c.h.b16 %v8171
    %v8453 = vunpack.c.l.b16 %v8172
    %v8454 = vunpack.c.h.b16 %v8172
    %v8455 = vunpack.c.l.b16 %v8173
    %v8456 = vunpack.c.h.b16 %v8173
    %v8457 = vunpack.c.l.b16 %v8174
    %v8458 = vunpack.c.h.b16 %v8174
    %v8459 = vunpack.c.l.b16 %v8175
    %v8460 = vunpack.c.h.b16 %v8175
    %v8461 = vunpack.c.l.b16 %v8176
    %v8462 = vunpack.c.h.b16 %v8176
    %v8463 = vunpack.c.l.b16 %v8177
    %v8464 = vunpack.c.h.b16 %v8177
    %v8465 = vunpack.c.l.b16 %v8178
    %v8466 = vunpack.c.h.b16 %v8178
    %v8467 = vunpack.c.l.b16 %v8179
    %v8468 = vunpack.c.h.b16 %v8179
    %v8469 = vunpack.c.l.b16 %v8180
    %v8470 = vunpack.c.h.b16 %v8180
    %v8471 = vunpack.c.l.b16 %v8181
    %v8472 = vunpack.c.h.b16 %v8181
    %v8473 = vunpack.c.l.b16 %v8182
    %v8474 = vunpack.c.h.b16 %v8182
    %v8475 = vunpack.c.l.b16 %v8183
    %v8476 = vunpack.c.h.b16 %v8183
    %v8477 = vunpack.c.l.b16 %v8184
    %v8478 = vunpack.c.h.b16 %v8184
    %v8479 = vunpack.c.l.b16 %v8185
    %v8480 = vunpack.c.h.b16 %v8185
    %v8481 = vunpack.c.l.b16 %v8186
    %v8482 = vunpack.c.h.b16 %v8186
    %v8483 = vunpack.c.l.b16 %v8187
    %v8484 = vunpack.c.h.b16 %v8187
    %v8485 = vunpack.c.l.b16 %v8188
    %v8486 = vunpack.c.h.b16 %v8188
    %v8487 = vunpack.c.l.b16 %v8189
    %v8488 = vunpack.c.h.b16 %v8189
    %v8489 = vunpack.c.l.b16 %v8190
    %v8490 = vunpack.c.h.b16 %v8190
    %v8491 = vunpack.c.l.b16 %v8191
    %v8492 = vunpack.c.h.b16 %v8191
    %v8493 = vunpack.c.l.b16 %v8192
    %v8494 = vunpack.c.h.b16 %v8192
    %v8495 = vunpack.c.l.b16 %v8193
    %v8496 = vunpack.c.h.b16 %v8193
    %v8497 = vunpack.c.l.b16 %v8194
    %v8498 = vunpack.c.h.b16 %v8194
    %v8499 = vunpack.c.l.b16 %v8195
    %v8500 = vunpack.c.h.b16 %v8195
    %v8501 = vunpack.c.l.b16 %v8196
    %v8502 = vunpack.c.h.b16 %v8196
    %v8503 = vunpack.c.l.b16 %v8197
    %v8504 = vunpack.c.h.b16 %v8197
    %v8505 = vunpack.c.l.b16 %v8198
    %v8506 = vunpack.c.h.b16 %v8198
    %v8507 = vunpack.c.l.b16 %v8199
    %v8508 = vunpack.c.h.b16 %v8199
    %v8509 = vunpack.c.l.b16 %v8200
    %v8510 = vunpack.c.h.b16 %v8200
    %v8511 = vunpack.c.l.b16 %v8201
    %v8512 = vunpack.c.h.b16 %v8201
    %v8513 = vunpack.c.l.b16 %v8202
    %v8514 = vunpack.c.h.b16 %v8202
    %v8515 = vunpack.c.l.b16 %v8203
    %v8516 = vunpack.c.h.b16 %v8203
    %v8517 = vunpack.c.l.b16 %v8204
    %v8518 = vunpack.c.h.b16 %v8204
    %v8519 = vunpack.c.l.b16 %v8205
    %v8520 = vunpack.c.h.b16 %v8205
    %v8521 = vunpack.c.l.b16 %v8206
    %v8522 = vunpack.c.h.b16 %v8206
    %v8523 = vunpack.c.l.b16 %v8207
    %v8524 = vunpack.c.h.b16 %v8207
    %v8525 = vunpack.c.l.b16 %v8208
    %v8526 = vunpack.c.h.b16 %v8208
    %v8527 = vunpack.c.l.b16 %v8209
    %v8528 = vunpack.c.h.b16 %v8209
    %v8529 = vunpack.c.l.b16 %v8210
    %v8530 = vunpack.c.h.b16 %v8210
    %v8531 = vunpack.c.l.b16 %v8211
    %v8532 = vunpack.c.h.b16 %v8211
    %v8533 = vunpack.c.l.b16 %v8212
    %v8534 = vunpack.c.h.b16 %v8212
    %v8535 = vunpack.c.l.b16 %v8213
    %v8536 = vunpack.c.h.b16 %v8213
    %v8537 = vunpack.c.l.b16 %v8214
    %v8538 = vunpack.c.h.b16 %v8214
    %v8539 = vunpack.c.l.b16 %v8215
    %v8540 = vunpack.c.h.b16 %v8215
    %v8541 = vunpack.c.l.b16 %v8216
    %v8542 = vunpack.c.h.b16 %v8216
    %v8543 = vunpack.c.l.b16 %v8217
    %v8544 = vunpack.c.h.b16 %v8217
    %v8545 = vunpack.c.l.b16 %v8218
    %v8546 = vunpack.c.h.b16 %v8218
    %v8547 = vunpack.c.l.b16 %v8219
    %v8548 = vunpack.c.h.b16 %v8219
    %v8549 = vunpack.c.l.b16 %v8220
    %v8550 = vunpack.c.h.b16 %v8220
    %v8551 = vunpack.c.l.b16 %v8221
    %v8552 = vunpack.c.h.b16 %v8221
    %v8553 = vunpack.c.l.b16 %v8222
    %v8554 = vunpack.c.h.b16 %v8222
    %v8555 = vunpack.c.l.b16 %v8223
    %v8556 = vunpack.c.h.b16 %v8223
    %v8557 = vunpack.c.l.b16 %v8224
    %v8558 = vunpack.c.h.b16 %v8224
    %v8559 = vunpack.c.l.b16 %v8225
    %v8560 = vunpack.c.h.b16 %v8225
    %v8561 = vunpack.c.l.b16 %v8226
    %v8562 = vunpack.c.h.b16 %v8226
    %v8563 = vunpack.c.l.b16 %v8227
    %v8564 = vunpack.c.h.b16 %v8227
    %v8565 = vunpack.c.l.b16 %v8228
    %v8566 = vunpack.c.h.b16 %v8228
    %v8567 = vunpack.c.l.b16 %v8229
    %v8568 = vunpack.c.h.b16 %v8229
    %v8569 = vunpack.c.l.b16 %v8230
    %v8570 = vunpack.c.h.b16 %v8230
    %v8571 = vunpack.c.l.b16 %v8231
    %v8572 = vunpack.c.h.b16 %v8231
    %v8573 = vunpack.c.l.b16 %v8232
    %v8574 = vunpack.c.h.b16 %v8232
    %v8575 = vunpack.c.l.b16 %v8233
    %v8576 = vunpack.c.h.b16 %v8233
    %v8577 = vunpack.c.l.b16 %v8234
    %v8578 = vunpack.c.h.b16 %v8234
    %v8579 = vunpack.c.l.b16 %v8235
    %v8580 = vunpack.c.h.b16 %v8235
    %v8581 = vunpack.c.l.b16 %v8236
    %v8582 = vunpack.c.h.b16 %v8236
    %v8583 = vunpack.c.l.b16 %v8237
    %v8584 = vunpack.c.h.b16 %v8237
    %v8585 = vunpack.c.l.b16 %v8238
    %v8586 = vunpack.c.h.b16 %v8238
    %v8587 = vunpack.c.l.b16 %v8239
    %v8588 = vunpack.c.h.b16 %v8239
    %v8589 = vunpack.c.l.b16 %v8240
    %v8590 = vunpack.c.h.b16 %v8240
    %v8591 = vunpack.c.l.b16 %v8241
    %v8592 = vunpack.c.h.b16 %v8241
    %v8593 = vunpack.c.l.b16 %v8242
    %v8594 = vunpack.c.h.b16 %v8242
    %v8595 = vunpack.c.l.b16 %v8243
    %v8596 = vunpack.c.h.b16 %v8243
    %v8597 = vunpack.c.l.b16 %v8244
    %v8598 = vunpack.c.h.b16 %v8244
    %v8599 = vunpack.c.l.b16 %v8245
    %v8600 = vunpack.c.h.b16 %v8245
    %v8601 = vunpack.c.l.b16 %v8246
    %v8602 = vunpack.c.h.b16 %v8246
    %v8603 = vunpack.c.l.b16 %v8247
    %v8604 = vunpack.c.h.b16 %v8247
    %v8605 = vunpack.c.l.b16 %v8248
    %v8606 = vunpack.c.h.b16 %v8248
    %v8607 = vunpack.c.l.b16 %v8249
    %v8608 = vunpack.c.h.b16 %v8249
    %v8609 = vunpack.c.l.b16 %v8250
    %v8610 = vunpack.c.h.b16 %v8250
    %v8611 = vunpack.c.l.b16 %v8251
    %v8612 = vunpack.c.h.b16 %v8251
    %v8613 = vunpack.c.l.b16 %v8252
    %v8614 = vunpack.c.h.b16 %v8252
    %v8615 = vunpack.c.l.b16 %v8253
    %v8616 = vunpack.c.h.b16 %v8253
    %v8617 = vunpack.c.l.b16 %v8254
    %v8618 = vunpack.c.h.b16 %v8254
    %v8619 = vunpack.c.l.b16 %v8255
    %v8620 = vunpack.c.h.b16 %v8255
    %v8621 = vunpack.c.l.b16 %v8256
    %v8622 = vunpack.c.h.b16 %v8256
    %v8623 = vunpack.c.l.b16 %v8257
    %v8624 = vunpack.c.h.b16 %v8257
    %v8625 = vunpack.c.l.b16 %v8258
    %v8626 = vunpack.c.h.b16 %v8258
    %v8627 = vunpack.c.l.b16 %v8259
    %v8628 = vunpack.c.h.b16 %v8259
    %v8629 = vunpack.c.l.b16 %v8260
    %v8630 = vunpack.c.h.b16 %v8260
    %v8631 = vunpack.c.l.b16 %v8261
    %v8632 = vunpack.c.h.b16 %v8261
    %v8633 = vunpack.c.l.b16 %v8262
    %v8634 = vunpack.c.h.b16 %v8262
    %v8635 = vunpack.c.l.b16 %v8263
    %v8636 = vunpack.c.h.b16 %v8263
    %v8637 = vunpack.c.l.b16 %v8264
    %v8638 = vunpack.c.h.b16 %v8264
    %v8639 = vunpack.c.l.b16 %v8265
    %v8640 = vunpack.c.h.b16 %v8265
    %v8641 = vunpack.c.l.b16 %v8266
    %v8642 = vunpack.c.h.b16 %v8266
    %v8643 = vunpack.c.l.b16 %v8267
    %v8644 = vunpack.c.h.b16 %v8267
    %v8645 = vunpack.c.l.b16 %v8268
    %v8646 = vunpack.c.h.b16 %v8268
    %v8647 = vunpack.c.l.b16 %v8269
    %v8648 = vunpack.c.h.b16 %v8269
    %v8649 = vunpack.c.l.b16 %v8270
    %v8650 = vunpack.c.h.b16 %v8270
    %v8651 = vunpack.c.l.b16 %v8271
    %v8652 = vunpack.c.h.b16 %v8271
    %v8653 = vunpack.c.l.b16 %v8272
    %v8654 = vunpack.c.h.b16 %v8272
    %v8655 = vunpack.c.l.b16 %v8273
    %v8656 = vunpack.c.h.b16 %v8273
    %v8657 = vunpack.c.l.b16 %v8274
    %v8658 = vunpack.c.h.b16 %v8274
    %v8659 = vunpack.c.l.b16 %v8275
    %v8660 = vunpack.c.h.b16 %v8275
    %v8661 = vunpack.c.l.b16 %v8276
    %v8662 = vunpack.c.h.b16 %v8276
    %v8663 = vunpack.c.l.b16 %v8277
    %v8664 = vunpack.c.h.b16 %v8277
    %v8665 = vunpack.c.l.b16 %v8278
    %v8666 = vunpack.c.h.b16 %v8278
    %v8667 = vunpack.c.l.b16 %v8279
    %v8668 = vunpack.c.h.b16 %v8279
    %v8669 = vunpack.c.l.b16 %v8280
    %v8670 = vunpack.c.h.b16 %v8280
    %v8671 = vunpack.c.l.b16 %v8281
    %v8672 = vunpack.c.h.b16 %v8281
    %v8673 = vunpack.c.l.b16 %v8282
    %v8674 = vunpack.c.h.b16 %v8282
    %v8675 = vunpack.c.l.b16 %v8283
    %v8676 = vunpack.c.h.b16 %v8283
    %v8677 = vunpack.c.l.b16 %v8284
    %v8678 = vunpack.c.h.b16 %v8284
    %v8679 = vpack.c.b16 %v8427, %v8423
    %v8680 = vpack.c.b16 %v8428, %v8424
    %v8681 = vpack.c.b16 %v8429, %v8425
    %v8682 = vpack.c.b16 %v8430, %v8426
    %v8683 = vpack.c.b16 %v8435, %v8431
    %v8684 = vpack.c.b16 %v8436, %v8432
    %v8685 = vpack.c.b16 %v8437, %v8433
    %v8686 = vpack.c.b16 %v8438, %v8434
    %v8687 = vpack.c.b16 %v8443, %v8439
    %v8688 = vpack.c.b16 %v8444, %v8440
    %v8689 = vpack.c.b16 %v8445, %v8441
    %v8690 = vpack.c.b16 %v8446, %v8442
    %v8691 = vpack.c.b16 %v8451, %v8447
    %v8692 = vpack.c.b16 %v8452, %v8448
    %v8693 = vpack.c.b16 %v8453, %v8449
    %v8694 = vpack.c.b16 %v8454, %v8450
    %v8695 = vpack.c.b16 %v8459, %v8455
    %v8696 = vpack.c.b16 %v8460, %v8456
    %v8697 = vpack.c.b16 %v8461, %v8457
    %v8698 = vpack.c.b16 %v8462, %v8458
    %v8699 = vpack.c.b16 %v8467, %v8463
    %v8700 = vpack.c.b16 %v8468, %v8464
    %v8701 = vpack.c.b16 %v8469, %v8465
    %v8702 = vpack.c.b16 %v8470, %v8466
    %v8703 = vpack.c.b16 %v8475, %v8471
    %v8704 = vpack.c.b16 %v8476, %v8472
    %v8705 = vpack.c.b16 %v8477, %v8473
    %v8706 = vpack.c.b16 %v8478, %v8474
    %v8707 = vpack.c.b16 %v8483, %v8479
    %v8708 = vpack.c.b16 %v8484, %v8480
    %v8709 = vpack.c.b16 %v8485, %v8481
    %v8710 = vpack.c.b16 %v8486, %v8482
    %v8711 = vpack.c.b16 %v8491, %v8487
    %v8712 = vpack.c.b16 %v8492, %v8488
    %v8713 = vpack.c.b16 %v8493, %v8489
    %v8714 = vpack.c.b16 %v8494, %v8490
    %v8715 = vpack.c.b16 %v8499, %v8495
    %v8716 = vpack.c.b16 %v8500, %v8496
    %v8717 = vpack.c.b16 %v8501, %v8497
    %v8718 = vpack.c.b16 %v8502, %v8498
    %v8719 = vpack.c.b16 %v8507, %v8503
    %v8720 = vpack.c.b16 %v8508, %v8504
    %v8721 = vpack.c.b16 %v8509, %v8505
    %v8722 = vpack.c.b16 %v8510, %v8506
    %v8723 = vpack.c.b16 %v8515, %v8511
    %v8724 = vpack.c.b16 %v8516, %v8512
    %v8725 = vpack.c.b16 %v8517, %v8513
    %v8726 = vpack.c.b16 %v8518, %v8514
    %v8727 = vpack.c.b16 %v8523, %v8519
    %v8728 = vpack.c.b16 %v8524, %v8520
    %v8729 = vpack.c.b16 %v8525, %v8521
    %v8730 = vpack.c.b16 %v8526, %v8522
    %v8731 = vpack.c.b16 %v8531, %v8527
    %v8732 = vpack.c.b16 %v8532, %v8528
    %v8733 = vpack.c.b16 %v8533, %v8529
    %v8734 = vpack.c.b16 %v8534, %v8530
    %v8735 = vpack.c.b16 %v8539, %v8535
    %v8736 = vpack.c.b16 %v8540, %v8536
    %v8737 = vpack.c.b16 %v8541, %v8537
    %v8738 = vpack.c.b16 %v8542, %v8538
    %v8739 = vpack.c.b16 %v8547, %v8543
    %v8740 = vpack.c.b16 %v8548, %v8544
    %v8741 = vpack.c.b16 %v8549, %v8545
    %v8742 = vpack.c.b16 %v8550, %v8546
    %v8743 = vpack.c.b16 %v8555, %v8551
    %v8744 = vpack.c.b16 %v8556, %v8552
    %v8745 = vpack.c.b16 %v8557, %v8553
    %v8746 = vpack.c.b16 %v8558, %v8554
    %v8747 = vpack.c.b16 %v8563, %v8559
    %v8748 = vpack.c.b16 %v8564, %v8560
    %v8749 = vpack.c.b16 %v8565, %v8561
    %v8750 = vpack.c.b16 %v8566, %v8562
    %v8751 = vpack.c.b16 %v8571, %v8567
    %v8752 = vpack.c.b16 %v8572, %v8568
    %v8753 = vpack.c.b16 %v8573, %v8569
    %v8754 = vpack.c.b16 %v8574, %v8570
    %v8755 = vpack.c.b16 %v8579, %v8575
    %v8756 = vpack.c.b16 %v8580, %v8576
    %v8757 = vpack.c.b16 %v8581, %v8577
    %v8758 = vpack.c.b16 %v8582, %v8578
    %v8759 = vpack.c.b16 %v8587, %v8583
    %v8760 = vpack.c.b16 %v8588, %v8584
    %v8761 = vpack.c.b16 %v8589, %v8585
    %v8762 = vpack.c.b16 %v8590, %v8586
    %v8763 = vpack.c.b16 %v8595, %v8591
    %v8764 = vpack.c.b16 %v8596, %v8592
    %v8765 = vpack.c.b16 %v8597, %v8593
    %v8766 = vpack.c.b16 %v8598, %v8594
    %v8767 = vpack.c.b16 %v8603, %v8599
    %v8768 = vpack.c.b16 %v8604, %v8600
    %v8769 = vpack.c.b16 %v8605, %v8601
    %v8770 = vpack.c.b16 %v8606, %v8602
    %v8771 = vpack.c.b16 %v8611, %v8607
    %v8772 = vpack.c.b16 %v8612, %v8608
    %v8773 = vpack.c.b16 %v8613, %v8609
    %v8774 = vpack.c.b16 %v8614, %v8610
    %v8775 = vpack.c.b16 %v8619, %v8615
    %v8776 = vpack.c.b16 %v8620, %v8616
    %v8777 = vpack.c.b16 %v8621, %v8617
    %v8778 = vpack.c.b16 %v8622, %v8618
    %v8779 = vpack.c.b16 %v8627, %v8623
    %v8780 = vpack.c.b16 %v8628, %v8624
    %v8781 = vpack.c.b16 %v8629, %v8625
    %v8782 = vpack.c.b16 %v8630, %v8626
    %v8783 = vpack.c.b16 %v8635, %v8631
    %v8784 = vpack.c.b16 %v8636, %v8632
    %v8785 = vpack.c.b16 %v8637, %v8633
    %v8786 = vpack.c.b16 %v8638, %v8634
    %v8787 = vpack.c.b16 %v8643, %v8639
    %v8788 = vpack.c.b16 %v8644, %v8640
    %v8789 = vpack.c.b16 %v8645, %v8641
    %v8790 = vpack.c.b16 %v8646, %v8642
    %v8791 = vpack.c.b16 %v8651, %v8647
    %v8792 = vpack.c.b16 %v8652, %v8648
    %v8793 = vpack.c.b16 %v8653, %v8649
    %v8794 = vpack.c.b16 %v8654, %v8650
    %v8795 = vpack.c.b16 %v8659, %v8655
    %v8796 = vpack.c.b16 %v8660, %v8656
    %v8797 = vpack.c.b16 %v8661, %v8657
    %v8798 = vpack.c.b16 %v8662, %v8658
    %v8799 = vpack.c.b16 %v8667, %v8663
    %v8800 = vpack.c.b16 %v8668, %v8664
    %v8801 = vpack.c.b16 %v8669, %v8665
    %v8802 = vpack.c.b16 %v8670, %v8666
    %v8803 = vpack.c.b16 %v8675, %v8671
    %v8804 = vpack.c.b16 %v8676, %v8672
    %v8805 = vpack.c.b16 %v8677, %v8673
    %v8806 = vpack.c.b16 %v8678, %v8674
    %8935 = vmatpush.bf16.msra.mxu0 %v8707
    %8936 = vmatpush.bf16.msra.mxu0 %v8703
    %8937 = vmatpush.bf16.msra.mxu0 %v8699
    %8938 = vmatpush.bf16.msra.mxu0 %v8695
    %8939 = vmatpush.bf16.msra.mxu0 %v8691
    %8940 = vmatpush.bf16.msra.mxu0 %v8687
    %8941 = vmatpush.bf16.msra.mxu0 %v8683
    %8942 = vmatpush.bf16.msra.mxu0 %v8679
    %8943 = vmatmul.bf16.gmra.mxu0 %v8151
    %v8944 = vpop.f32.mrf.mxu0
    %v8945 = vadd.f32 %v8287, %v8944
    %v8946 = vpop.f32.mrf.mxu0
    %8947 = vdwg.mxu0
    %8948 = vmatpush.bf16.msra.mxu0 %v8739
    %8949 = vmatpush.bf16.msra.mxu0 %v8735
    %8950 = vmatpush.bf16.msra.mxu0 %v8731
    %8951 = vmatpush.bf16.msra.mxu0 %v8727
    %8952 = vmatpush.bf16.msra.mxu0 %v8723
    %8953 = vmatpush.bf16.msra.mxu0 %v8719
    %8954 = vmatpush.bf16.msra.mxu0 %v8715
    %8955 = vmatpush.bf16.msra.mxu0 %v8711
    %8956 = vmatmul.bf16.gmra.mxu0 %v8152
    %v8957 = vpop.f32.mrf.mxu0
    %v8958 = vadd.f32 %v8945, %v8957
    %v8959 = vpop.f32.mrf.mxu0
    %8960 = vdwg.mxu0
    %8961 = vmatpush.bf16.msra.mxu0 %v8771
    %8962 = vmatpush.bf16.msra.mxu0 %v8767
    %8963 = vmatpush.bf16.msra.mxu0 %v8763
    %8964 = vmatpush.bf16.msra.mxu0 %v8759
    %8965 = vmatpush.bf16.msra.mxu0 %v8755
    %8966 = vmatpush.bf16.msra.mxu0 %v8751
    %8967 = vmatpush.bf16.msra.mxu0 %v8747
    %8968 = vmatpush.bf16.msra.mxu0 %v8743
    %8969 = vmatmul.bf16.gmra.mxu0 %v8153
    %v8970 = vpop.f32.mrf.mxu0
    %v8971 = vadd.f32 %v8958, %v8970
    %v8972 = vpop.f32.mrf.mxu0
    %8973 = vdwg.mxu0
    %8974 = vmatpush.bf16.msra.mxu0 %v8803
    %8975 = vmatpush.bf16.msra.mxu0 %v8799
    %8976 = vmatpush.bf16.msra.mxu0 %v8795
    %8977 = vmatpush.bf16.msra.mxu0 %v8791
    %8978 = vmatpush.bf16.msra.mxu0 %v8787
    %8979 = vmatpush.bf16.msra.mxu0 %v8783
    %8980 = vmatpush.bf16.msra.mxu0 %v8779
    %8981 = vmatpush.bf16.msra.mxu0 %v8775
    %8982 = vmatmul.bf16.gmra.mxu0 %v8154
    %v8983 = vpop.f32.mrf.mxu0
    %v8984 = vadd.f32 %v8971, %v8983
    %v8985 = vpop.f32.mrf.mxu0
    %8986 = vdwg.mxu0
    %8987 = vmatpush.bf16.msra.mxu0 %v8708
    %8988 = vmatpush.bf16.msra.mxu0 %v8704
    %8989 = vmatpush.bf16.msra.mxu0 %v8700
    %8990 = vmatpush.bf16.msra.mxu0 %v8696
    %8991 = vmatpush.bf16.msra.mxu0 %v8692
    %8992 = vmatpush.bf16.msra.mxu0 %v8688
    %8993 = vmatpush.bf16.msra.mxu0 %v8684
    %8994 = vmatpush.bf16.msra.mxu0 %v8680
    %8995 = vmatmul.bf16.gmra.mxu0 %v8151
    %v8996 = vpop.f32.mrf.mxu0
    %v8997 = vadd.f32 %v8288, %v8996
    %v8998 = vpop.f32.mrf.mxu0
    %8999 = vdwg.mxu0
    %9000 = vmatpush.bf16.msra.mxu0 %v8740
    %9001 = vmatpush.bf16.msra.mxu0 %v8736
    %9002 = vmatpush.bf16.msra.mxu0 %v8732
    %9003 = vmatpush.bf16.msra.mxu0 %v8728
    %9004 = vmatpush.bf16.msra.mxu0 %v8724
    %9005 = vmatpush.bf16.msra.mxu0 %v8720
    %9006 = vmatpush.bf16.msra.mxu0 %v8716
    %9007 = vmatpush.bf16.msra.mxu0 %v8712
    %9008 = vmatmul.bf16.gmra.mxu0 %v8152
    %v9009 = vpop.f32.mrf.mxu0
    %v9010 = vadd.f32 %v8997, %v9009
    %v9011 = vpop.f32.mrf.mxu0
    %9012 = vdwg.mxu0
    %9013 = vmatpush.bf16.msra.mxu0 %v8772
    %9014 = vmatpush.bf16.msra.mxu0 %v8768
    %9015 = vmatpush.bf16.msra.mxu0 %v8764
    %9016 = vmatpush.bf16.msra.mxu0 %v8760
    %9017 = vmatpush.bf16.msra.mxu0 %v8756
    %9018 = vmatpush.bf16.msra.mxu0 %v8752
    %9019 = vmatpush.bf16.msra.mxu0 %v8748
    %9020 = vmatpush.bf16.msra.mxu0 %v8744
    %9021 = vmatmul.bf16.gmra.mxu0 %v8153
    %v9022 = vpop.f32.mrf.mxu0
    %v9023 = vadd.f32 %v9010, %v9022
    %v9024 = vpop.f32.mrf.mxu0
    %9025 = vdwg.mxu0
    %9026 = vmatpush.bf16.msra.mxu0 %v8804
    %9027 = vmatpush.bf16.msra.mxu0 %v8800
    %9028 = vmatpush.bf16.msra.mxu0 %v8796
    %9029 = vmatpush.bf16.msra.mxu0 %v8792
    %9030 = vmatpush.bf16.msra.mxu0 %v8788
    %9031 = vmatpush.bf16.msra.mxu0 %v8784
    %9032 = vmatpush.bf16.msra.mxu0 %v8780
    %9033 = vmatpush.bf16.msra.mxu0 %v8776
    %9034 = vmatmul.bf16.gmra.mxu0 %v8154
    %v9035 = vpop.f32.mrf.mxu0
    %v9036 = vadd.f32 %v9023, %v9035
    %v9037 = vpop.f32.mrf.mxu0
    %9038 = vdwg.mxu0
    %9039 = vmatpush.bf16.msra.mxu0 %v8709
    %9040 = vmatpush.bf16.msra.mxu0 %v8705
    %9041 = vmatpush.bf16.msra.mxu0 %v8701
    %9042 = vmatpush.bf16.msra.mxu0 %v8697
    %9043 = vmatpush.bf16.msra.mxu0 %v8693
    %9044 = vmatpush.bf16.msra.mxu0 %v8689
    %9045 = vmatpush.bf16.msra.mxu0 %v8685
    %9046 = vmatpush.bf16.msra.mxu0 %v8681
    %9047 = vmatmul.bf16.gmra.mxu0 %v8151
    %v9048 = vpop.f32.mrf.mxu0
    %v9049 = vadd.f32 %v8289, %v9048
    %v9050 = vpop.f32.mrf.mxu0
    %9051 = vdwg.mxu0
    %9052 = vmatpush.bf16.msra.mxu0 %v8741
    %9053 = vmatpush.bf16.msra.mxu0 %v8737
    %9054 = vmatpush.bf16.msra.mxu0 %v8733
    %9055 = vmatpush.bf16.msra.mxu0 %v8729
    %9056 = vmatpush.bf16.msra.mxu0 %v8725
    %9057 = vmatpush.bf16.msra.mxu0 %v8721
    %9058 = vmatpush.bf16.msra.mxu0 %v8717
    %9059 = vmatpush.bf16.msra.mxu0 %v8713
    %9060 = vmatmul.bf16.gmra.mxu0 %v8152
    %v9061 = vpop.f32.mrf.mxu0
    %v9062 = vadd.f32 %v9049, %v9061
    %v9063 = vpop.f32.mrf.mxu0
    %9064 = vdwg.mxu0
    %9065 = vmatpush.bf16.msra.mxu0 %v8773
    %9066 = vmatpush.bf16.msra.mxu0 %v8769
    %9067 = vmatpush.bf16.msra.mxu0 %v8765
    %9068 = vmatpush.bf16.msra.mxu0 %v8761
    %9069 = vmatpush.bf16.msra.mxu0 %v8757
    %9070 = vmatpush.bf16.msra.mxu0 %v8753
    %9071 = vmatpush.bf16.msra.mxu0 %v8749
    %9072 = vmatpush.bf16.msra.mxu0 %v8745
    %9073 = vmatmul.bf16.gmra.mxu0 %v8153
    %v9074 = vpop.f32.mrf.mxu0
    %v9075 = vadd.f32 %v9062, %v9074
    %v9076 = vpop.f32.mrf.mxu0
    %9077 = vdwg.mxu0
    %9078 = vmatpush.bf16.msra.mxu0 %v8805
    %9079 = vmatpush.bf16.msra.mxu0 %v8801
    %9080 = vmatpush.bf16.msra.mxu0 %v8797
    %9081 = vmatpush.bf16.msra.mxu0 %v8793
    %9082 = vmatpush.bf16.msra.mxu0 %v8789
    %9083 = vmatpush.bf16.msra.mxu0 %v8785
    %9084 = vmatpush.bf16.msra.mxu0 %v8781
    %9085 = vmatpush.bf16.msra.mxu0 %v8777
    %9086 = vmatmul.bf16.gmra.mxu0 %v8154
    %v9087 = vpop.f32.mrf.mxu0
    %v9088 = vadd.f32 %v9075, %v9087
    %v9089 = vpop.f32.mrf.mxu0
    %9090 = vdwg.mxu0
    %9091 = vmatpush.bf16.msra.mxu0 %v8710
    %9092 = vmatpush.bf16.msra.mxu0 %v8706
    %9093 = vmatpush.bf16.msra.mxu0 %v8702
    %9094 = vmatpush.bf16.msra.mxu0 %v8698
    %9095 = vmatpush.bf16.msra.mxu0 %v8694
    %9096 = vmatpush.bf16.msra.mxu0 %v8690
    %9097 = vmatpush.bf16.msra.mxu0 %v8686
    %9098 = vmatpush.bf16.msra.mxu0 %v8682
    %9099 = vmatmul.bf16.gmra.mxu0 %v8151
    %v9100 = vpop.f32.mrf.mxu0
    %v9101 = vadd.f32 %v8290, %v9100
    %v9102 = vpop.f32.mrf.mxu0
    %9103 = vdwg.mxu0
    %9104 = vmatpush.bf16.msra.mxu0 %v8742
    %9105 = vmatpush.bf16.msra.mxu0 %v8738
    %9106 = vmatpush.bf16.msra.mxu0 %v8734
    %9107 = vmatpush.bf16.msra.mxu0 %v8730
    %9108 = vmatpush.bf16.msra.mxu0 %v8726
    %9109 = vmatpush.bf16.msra.mxu0 %v8722
    %9110 = vmatpush.bf16.msra.mxu0 %v8718
    %9111 = vmatpush.bf16.msra.mxu0 %v8714
    %9112 = vmatmul.bf16.gmra.mxu0 %v8152
    %v9113 = vpop.f32.mrf.mxu0
    %v9114 = vadd.f32 %v9101, %v9113
    %v9115 = vpop.f32.mrf.mxu0
    %9116 = vdwg.mxu0
    %9117 = vmatpush.bf16.msra.mxu0 %v8774
    %9118 = vmatpush.bf16.msra.mxu0 %v8770
    %9119 = vmatpush.bf16.msra.mxu0 %v8766
    %9120 = vmatpush.bf16.msra.mxu0 %v8762
    %9121 = vmatpush.bf16.msra.mxu0 %v8758
    %9122 = vmatpush.bf16.msra.mxu0 %v8754
    %9123 = vmatpush.bf16.msra.mxu0 %v8750
    %9124 = vmatpush.bf16.msra.mxu0 %v8746
    %9125 = vmatmul.bf16.gmra.mxu0 %v8153
    %v9126 = vpop.f32.mrf.mxu0
    %v9127 = vadd.f32 %v9114, %v9126
    %v9128 = vpop.f32.mrf.mxu0
    %9129 = vdwg.mxu0
    %9130 = vmatpush.bf16.msra.mxu0 %v8806
    %9131 = vmatpush.bf16.msra.mxu0 %v8802
    %9132 = vmatpush.bf16.msra.mxu0 %v8798
    %9133 = vmatpush.bf16.msra.mxu0 %v8794
    %9134 = vmatpush.bf16.msra.mxu0 %v8790
    %9135 = vmatpush.bf16.msra.mxu0 %v8786
    %9136 = vmatpush.bf16.msra.mxu0 %v8782
    %9137 = vmatpush.bf16.msra.mxu0 %v8778
    %9138 = vmatmul.bf16.gmra.mxu0 %v8154
    %v9139 = vpop.f32.mrf.mxu0
    %v9140 = vadd.f32 %v9127, %v9139
    %v9141 = vpop.f32.mrf.mxu0
    %9142 = vdwg.mxu0
    %v9147 = vrot.slane %v9036, 6
    %v9148 = vrot.slane %v9088, 4
    %v9149 = vrot.slane %v9140, 2
    %vm9150 = vcmask 1041408
    %v9151 = vsel %vm9150, %v8984, %v9147
    %vm9152 = vcmask 1045508
    %v9153 = vsel %vm9152, %v9148, %v9149
    %vm9154 = vcmask 1043456
    %v9155 = vsel %vm9154, %v9151, %v9153
    %9157 = vst [vmem:[#allocation25] sm:$0xff] %v9155
    // Predicated region
    $region118: #{tpu_custom_call.1} parent=1 // pred_check
      _
    $region119: #{tpu_custom_call.1} parent=1 // pred_check_branch
      %9159 = sbr.rel (0) target = $region121
    $region120: #{tpu_custom_call.1} parent=1 // pred_region
      %9161 = vsyncadd [#allocation10], 0
      %s9163 = sshll.u32 [#allocation25], 4
      %s9164 = int_to_ptr.vmem [resolvable:$true] %s9163
      %s9165 = sshll.u32 %s19, 4
      %s9166 = int_to_ptr.hbm [resolvable:$true] %s9165
      %9168 = dma.vmem_to_hbm [thread:$0]  %s9164, 128, %s9166, [#allocation10]
    $region121: #{tpu_custom_call.1} parent=1 // pred_fallthru
      _
    // Predicated region
    $region122: #{tpu_custom_call.1} parent=1 // pred_check
      _
    $region123: #{tpu_custom_call.1} parent=1 // pred_check_branch
      %9170 = sbr.rel (0) target = $region125
    $region124: #{tpu_custom_call.1} parent=1 // pred_region
      %9172 = dma.done [#allocation10], 128
    $region125: #{tpu_custom_call.1} parent=1 // pred_fallthru
      _
    %9173 = vsyncpa [#allocation9], 1
    %9174 = vsyncpa [#allocation12], 1
    %9175 = vsyncpa [#allocation15], 1
    %9176 = vsyncpa [#allocation18], 1
    %9177 = vsyncpa [#allocation21], 1
    %9178 = vsyncpa [#allocation24], 1
    %9179 = vsyncpa [#allocation10], 1
  %9180 = vsyncmov [#allocation7]
  %s9181 = vpop.sfrf %9180
  %p9182 = scmp.eq.s32.totalorder %s9181, 0
  %p9183 = pneg %p9182
  %9185 = shalt.err (%p9183)
  %s9186 = scalar_lea.sflag [#allocation7], 1
  %9187 = vsyncmov %s9186
  %s9188 = vpop.sfrf %9187
  %p9189 = scmp.eq.s32.totalorder %s9188, 0
  %p9190 = pneg %p9189
  %9192 = shalt.err (%p9190)
  %s9193 = scalar_lea.sflag [#allocation7], 2
  %9194 = vsyncmov %s9193
  %s9195 = vpop.sfrf %9194
  %p9196 = scmp.eq.s32.totalorder %s9195, 0
  %p9197 = pneg %p9196
  %9199 = shalt.err (%p9197)
  %s9200 = scalar_lea.sflag [#allocation7], 3
  %9201 = vsyncmov %s9200
  %s9202 = vpop.sfrf %9201
  %p9203 = scmp.eq.s32.totalorder %s9202, 0
  %p9204 = pneg %p9203
  %9206 = shalt.err (%p9204)
  %s9207 = scalar_lea.sflag [#allocation7], 4
  %9208 = vsyncmov %s9207
  %s9209 = vpop.sfrf %9208
  %p9210 = scmp.eq.s32.totalorder %s9209, 0
  %p9211 = pneg %p9210
  %9213 = shalt.err (%p9211)

</llo_original>
